<compile_context>
chip_gen: v5e
topology: v5e:2x2
jax: 0.10.0
libtpu: 0.0.40
codegen_flags: <defaults>
</compile_context>

<pallas_src>
import functools

import jax
import jax.numpy as jnp
from jax import lax
from jax.experimental import pallas as pl
from jax.experimental.pallas import tpu as pltpu

# ---- model hyper-parameters (PyTorch defaults of MembraneSystemModel) ----
INPUT_SIZE = 10
LSTM_UNITS = 64        # logical hidden size H
PAD_H = 128            # lane-padded hidden size (each gate block spans one full vreg lane set)
LSTM_LAYERS = 3
FC_UNITS = 64
FC_LAYERS = 5
OUT_MOL = 4
TIME_STEP = 0.1


# ------------------------------ shared math ------------------------------
def _sigmoid_exact(z):
    return 1.0 / (1.0 + jnp.exp(-z))


def _sigmoid_tanh(z):
    # exact identity sigmoid(z) = 0.5 * tanh(0.5 * z) + 0.5 ; one EUP push per gate,
    # the extra mul/add ride free VPU slots.
    return 0.5 * jnp.tanh(0.5 * z) + 0.5


def _lstm_cell_padded(gates, c_prev):
    """One LSTM cell update on lane-padded gates.

    gates: (B, 4*PAD_H), gate k occupies lanes [k*PAD_H:(k+1)*PAD_H] (whole vregs).
    Padded lanes carry exact zeros through c and h (gates are 0 there ->
    i=f=o=0.5, g=0 -> c=0, h=0).
    """
    Hp = PAD_H
    i_g = _sigmoid_tanh(gates[:, 0 * Hp:1 * Hp])
    f_g = _sigmoid_tanh(gates[:, 1 * Hp:2 * Hp])
    g_g = jnp.tanh(gates[:, 2 * Hp:3 * Hp])
    o_g = _sigmoid_tanh(gates[:, 3 * Hp:4 * Hp])
    c = f_g * c_prev + i_g * g_g
    h = o_g * jnp.tanh(c)
    return h, c


def _physics_block(mol, feat, time_step):
    """PhysicsLayer.forward, vectorized over the leading axis.

    mol: (N, 4), feat: (N, 10) -> (N, 10)
    """
    Tt = feat[:, 0:1]
    V = feat[:, 1:2]
    E = feat[:, 2:3]
    VF = feat[:, 3:4]
    VA = feat[:, 4:5]
    VB = feat[:, 5:6]
    CFLA = feat[:, 6:7]
    CFK = feat[:, 7:8]
    CALA = feat[:, 8:9]
    CBK = feat[:, 9:10]

    NFLA = CFLA * VF
    NFK = CFK * VF
    NALA = CALA * VA
    NBK = CBK * VB

    JLA = mol[:, 0:1]
    JK = mol[:, 1:2]
    JVA = mol[:, 2:3]
    JVB = mol[:, 3:4]

    dLA = JLA * time_step
    dK = JK * time_step
    dVA = JVA * time_step
    dVB = JVB * time_step

    nVF = VF - dVA - dVB
    nVA = VA + dVA
    nVB = VB + dVB

    nNFLA = NFLA - dLA
    nNFK = NFK - dK
    nNALA = NALA + dLA
    nNBK = NBK + dK

    eps = 1e-6
    nCFLA = nNFLA / (nVF + eps)
    nCFK = nNFK / (nVF + eps)
    nCALA = nNALA / (nVA + eps)
    nCBK = nNBK / (nVB + eps)

    return jnp.concatenate(
        [Tt, V, E, nCFLA, nCFK, nCALA, nCBK, nVF, nVA, nVB], axis=-1)


# ------------------------------ Pallas kernel ------------------------------
def _membrane_kernel(T, BC,
                     ts_ref, x_ref,
                     wih0_ref, whh0_ref, b0_ref,
                     wih1_ref, whh1_ref, b1_ref,
                     wih2_ref, whh2_ref, b2_ref,
                     wf0_ref, bf0_ref, wf1_ref, bf1_ref, wf2_ref, bf2_ref,
                     wf3_ref, bf3_ref, wf4_ref, bf4_ref,
                     mol_ref, state_ref,
                     proj_ref, hall_ref):
    """One batch chunk (BC rows, padded to a multiple of 8), all T timesteps.

    x_ref: (T*BC, 10)  t-major.
    proj_ref: (T*BC, 4*PAD_H) scratch — current layer's input projection (all t).
    hall_ref: (T*BC, PAD_H)   scratch — current layer's hidden state for all t.
    """
    Hp = PAD_H

    # ---- layer-0 input projection for ALL timesteps, bias folded in (one matmul) ----
    proj_ref[...] = (
        jnp.dot(x_ref[...], wih0_ref[...], preferred_element_type=jnp.float32)
        + b0_ref[...])

    def run_layer(whh_ref):
        """Serial recurrence: only the (BC, Hp)@(Hp, 4Hp) recurrent matmul per step."""
        def step(t, carry):
            h, c = carry
            row = pl.multiple_of(t * BC, BC)          # BC is a multiple of 8
            gates = proj_ref[pl.ds(row, BC), :] + jnp.dot(
                h, whh_ref[...], preferred_element_type=jnp.float32)
            h, c = _lstm_cell_padded(gates, c)
            hall_ref[pl.ds(row, BC), :] = h
            return (h, c)

        z = jnp.zeros((BC, Hp), jnp.float32)
        lax.fori_loop(0, T, step, (z, z), unroll=(T <= 32))

    # ---- layer 0 ----
    run_layer(whh0_ref)
    # ---- layer 1: hoisted batched input projection, then recurrence ----
    proj_ref[...] = (
        jnp.dot(hall_ref[...], wih1_ref[...], preferred_element_type=jnp.float32)
        + b1_ref[...])
    run_layer(whh1_ref)
    # ---- layer 2 ----
    proj_ref[...] = (
        jnp.dot(hall_ref[...], wih2_ref[...], preferred_element_type=jnp.float32)
        + b2_ref[...])
    run_layer(whh2_ref)

    # ---- FC head applied once on all timesteps (batched epilogue) ----
    h = hall_ref[...]                                  # (T*BC, Hp), padded lanes are 0
    h = jnp.maximum(jnp.dot(h, wf0_ref[...], preferred_element_type=jnp.float32)
                    + bf0_ref[...], 0.0)
    h = jnp.maximum(jnp.dot(h, wf1_ref[...], preferred_element_type=jnp.float32)
                    + bf1_ref[...], 0.0)
    h = jnp.maximum(jnp.dot(h, wf2_ref[...], preferred_element_type=jnp.float32)
                    + bf2_ref[...], 0.0)
    h = jnp.maximum(jnp.dot(h, wf3_ref[...], preferred_element_type=jnp.float32)
                    + bf3_ref[...], 0.0)
    mol = jnp.dot(h, wf4_ref[...], preferred_element_type=jnp.float32) + bf4_ref[...]

    # ---- physics layer, vectorized over all (t, b) rows ----
    ts = ts_ref[0, 0]
    mol_ref[...] = mol
    state_ref[...] = _physics_block(mol, x_ref[...], ts)


# ------------------------------ weight layout plumbing ------------------------------
def _gate_pad(w, b):
    """(din, 4H) weight / (1, 4H) bias -> lane-aligned (din, 4*PAD_H) / (1, 4*PAD_H).

    Gate k's H real columns go to lanes [k*PAD_H : k*PAD_H + H]; padded lanes are 0,
    so padded gate pre-activations are exactly 0 and padded c/h stay exactly 0.
    """
    H, Hp = LSTM_UNITS, PAD_H
    din = w.shape[0]
    wp = jnp.zeros((din, 4 * Hp), jnp.float32)
    bp = jnp.zeros((1, 4 * Hp), jnp.float32)
    for k in range(4):
        wp = wp.at[:, k * Hp:k * Hp + H].set(w[:, k * H:(k + 1) * H])
        bp = bp.at[:, k * Hp:k * Hp + H].set(b[:, k * H:(k + 1) * H])
    return wp, bp


def _row_pad(w, rows):
    return jnp.zeros((rows, w.shape[1]), jnp.float32).at[:w.shape[0], :].set(w)


def _prepare_kernel_params(params):
    """Order: wih0, whh0, b0, wih1, whh1, b1, wih2, whh2, b2, wf0, bf0, ..., wf4, bf4."""
    kp = []
    for l in range(LSTM_LAYERS):
        wih, b = _gate_pad(params[f"wih{l}"], params[f"b{l}"])
        whh, _ = _gate_pad(params[f"whh{l}"], params[f"b{l}"])
        if l > 0:
            wih = _row_pad(wih, PAD_H)     # input is the padded h from the layer below
        whh = _row_pad(whh, PAD_H)
        kp += [wih, whh, b]
    kp += [_row_pad(params["wf0"], PAD_H), params["bf0"]]
    for i in range(1, FC_LAYERS):
        kp += [params[f"wf{i}"], params[f"bf{i}"]]
    return kp


# ------------------------------ wrapper ------------------------------
def membrane_forward(x, params, time_step=TIME_STEP, batch_chunk=8):
    """Returns (mol_changes (B,T,4), new_states (B,T,10)) — matches the PyTorch module."""
    B, T, F = x.shape
    assert F == INPUT_SIZE

    BC = max(8, (batch_chunk + 7) // 8 * 8)     # per-program batch chunk, sublane aligned
    Bp = (B + BC - 1) // BC * BC
    C = Bp // BC                                # parallel grid axis (2nd TC on v7x)
    N = T * BC

    xf = x.astype(jnp.float32)
    if Bp != B:                                 # pad batch with benign rows (discarded later)
        xf = jnp.concatenate([xf, jnp.ones((Bp - B, T, F), jnp.float32)], axis=0)

    # layout plumbing in the wrapper: per-chunk t-major flattening -> (C, T*BC, F)
    x_cb = xf.reshape(C, BC, T, F).transpose(0, 2, 1, 3).reshape(C, N, F)

    kparams = _prepare_kernel_params(params)
    ts = jnp.full((1, 1), time_step, jnp.float32)

    in_specs = (
        [pl.BlockSpec((1, 1), lambda c: (0, 0),
                      memory_space=pltpu.MemorySpace.SMEM),               # time_step scalar
         pl.BlockSpec((None, N, INPUT_SIZE), lambda c: (c, 0, 0))]        # per-chunk features
        + [pl.BlockSpec(w.shape, lambda c: (0, 0)) for w in kparams]      # whole weights in VMEM
    )
    out_specs = (pl.BlockSpec((None, N, OUT_MOL), lambda c: (c, 0, 0)),
                 pl.BlockSpec((None, N, INPUT_SIZE), lambda c: (c, 0, 0)))

    grid_spec = pltpu.PrefetchScalarGridSpec(
        num_scalar_prefetch=0,
        grid=(C,),
        in_specs=in_specs,
        out_specs=out_specs,
        scratch_shapes=[pltpu.VMEM((N, 4 * PAD_H), jnp.float32),   # per-layer gate pre-projection
                        pltpu.VMEM((N, PAD_H), jnp.float32)],      # per-layer h for all t
    )

    kernel = functools.partial(_membrane_kernel, T, BC)
    mol_cb, state_cb = pl.pallas_call(
        kernel,
        out_shape=(jax.ShapeDtypeStruct((C, N, OUT_MOL), jnp.float32),
                   jax.ShapeDtypeStruct((C, N, INPUT_SIZE), jnp.float32)),
        grid_spec=grid_spec,
        compiler_params=pltpu.CompilerParams(
            dimension_semantics=("parallel",)),
    )(ts, x_cb, *kparams)

    def unpack(o, D):
        return (o.reshape(C, T, BC, D).transpose(0, 2, 1, 3)
                 .reshape(Bp, T, D)[:B])

    return unpack(mol_cb, OUT_MOL), unpack(state_cb, INPUT_SIZE)


# ------------------------------ parameter init ------------------------------
def init_params(key):
    """Deterministic init mirroring PyTorch default U(-1/sqrt(fan), 1/sqrt(fan))."""
    params = {}
    keys = iter(jax.random.split(key, 64))

    def u(k, shape, bound):
        return jax.random.uniform(k, shape, jnp.float32, -bound, bound)

    lstm_bound = 1.0 / (LSTM_UNITS ** 0.5)
    for l in range(LSTM_LAYERS):
        in_dim = INPUT_SIZE if l == 0 else LSTM_UNITS
        params[f"wih{l}"] = u(next(keys), (in_dim, 4 * LSTM_UNITS), lstm_bound)
        params[f"whh{l}"] = u(next(keys), (LSTM_UNITS, 4 * LSTM_UNITS), lstm_bound)
        b_ih = u(next(keys), (1, 4 * LSTM_UNITS), lstm_bound)
        b_hh = u(next(keys), (1, 4 * LSTM_UNITS), lstm_bound)
        params[f"b{l}"] = b_ih + b_hh  # bias_ih + bias_hh are always summed

    fc_dims = ([(LSTM_UNITS, FC_UNITS)]
               + [(FC_UNITS, FC_UNITS)] * (FC_LAYERS - 2)
               + [(FC_UNITS, OUT_MOL)])
    for i, (din, dout) in enumerate(fc_dims):
        bound = 1.0 / (din ** 0.5)
        params[f"wf{i}"] = u(next(keys), (din, dout), bound)
        params[f"bf{i}"] = u(next(keys), (1, dout), bound)
    return params


# ------------------------------ pure-JAX reference ------------------------------
def reference_forward(x, params, time_step=TIME_STEP):
    """Straightforward per-step LSTM / FC / physics math mirroring the PyTorch module."""
    B, T, _ = x.shape
    H = LSTM_UNITS
    hp = jax.lax.Precision.HIGHEST
    hs = [jnp.zeros((B, H), jnp.float32) for _ in range(LSTM_LAYERS)]
    cs = [jnp.zeros((B, H), jnp.float32) for _ in range(LSTM_LAYERS)]

    mols, states = [], []
    for t in range(T):
        feat = x[:, t, :].astype(jnp.float32)
        inp = feat
        for l in range(LSTM_LAYERS):
            gates = (jnp.dot(inp, params[f"wih{l}"], precision=hp)
                     + jnp.dot(hs[l], params[f"whh{l}"], precision=hp)
                     + params[f"b{l}"])
            i_g = _sigmoid_exact(gates[:, 0:H])
            f_g = _sigmoid_exact(gates[:, H:2 * H])
            g_g = jnp.tanh(gates[:, 2 * H:3 * H])
            o_g = _sigmoid_exact(gates[:, 3 * H:4 * H])
            cs[l] = f_g * cs[l] + i_g * g_g
            hs[l] = o_g * jnp.tanh(cs[l])
            inp = hs[l]
        h = inp
        for k in range(FC_LAYERS - 1):
            h = jnp.maximum(jnp.dot(h, params[f"wf{k}"], precision=hp)
                            + params[f"bf{k}"], 0.0)
        mol = (jnp.dot(h, params[f"wf{FC_LAYERS - 1}"], precision=hp)
               + params[f"bf{FC_LAYERS - 1}"])
        mols.append(mol)
        states.append(_physics_block(mol, feat, time_step))
    return jnp.stack(mols, axis=1), jnp.stack(states, axis=1)


if __name__ == "__main__":
    key = jax.random.PRNGKey(0)
    pkey, xkey = jax.random.split(key)
    params = init_params(pkey)

    B, T = 2, 8  # small batch / sequence; feature dim must be 10 (model input size)
    # keep volumes/concentrations comfortably positive so physics divisions are benign
    x = jax.random.uniform(xkey, (B, T, INPUT_SIZE), jnp.float32, 0.5, 2.0)

    mol, states = membrane_forward(x, params)
    jax.block_until_ready((mol, states))

    mol_ref, states_ref = reference_forward(x, params)
    assert mol.shape == (B, T, OUT_MOL) and states.shape == (B, T, INPUT_SIZE)
    # sigmoid is now exact in-kernel; tolerance only covers MXU f32 matmul rounding
    assert jnp.allclose(mol, mol_ref, atol=2e-3, rtol=2e-3), \
        float(jnp.max(jnp.abs(mol - mol_ref)))
    assert jnp.allclose(states, states_ref, atol=2e-3, rtol=2e-3), \
        float(jnp.max(jnp.abs(states - states_ref)))

    print("KERNEL_OK")
</pallas_src>

<mosaic_0001>
module attributes {stable_mosaic.version = 11 : i64} {
  func.func @_membrane_kernel(%arg0: i32, %arg1: memref<1x1xf32, #tpu.memory_space<smem>>, %arg2: memref<1x64x10xf32, #tpu.memory_space<vmem>>, %arg3: memref<10x512xf32, #tpu.memory_space<vmem>>, %arg4: memref<128x512xf32, #tpu.memory_space<vmem>>, %arg5: memref<1x512xf32, #tpu.memory_space<vmem>>, %arg6: memref<128x512xf32, #tpu.memory_space<vmem>>, %arg7: memref<128x512xf32, #tpu.memory_space<vmem>>, %arg8: memref<1x512xf32, #tpu.memory_space<vmem>>, %arg9: memref<128x512xf32, #tpu.memory_space<vmem>>, %arg10: memref<128x512xf32, #tpu.memory_space<vmem>>, %arg11: memref<1x512xf32, #tpu.memory_space<vmem>>, %arg12: memref<128x64xf32, #tpu.memory_space<vmem>>, %arg13: memref<1x64xf32, #tpu.memory_space<vmem>>, %arg14: memref<64x64xf32, #tpu.memory_space<vmem>>, %arg15: memref<1x64xf32, #tpu.memory_space<vmem>>, %arg16: memref<64x64xf32, #tpu.memory_space<vmem>>, %arg17: memref<1x64xf32, #tpu.memory_space<vmem>>, %arg18: memref<64x64xf32, #tpu.memory_space<vmem>>, %arg19: memref<1x64xf32, #tpu.memory_space<vmem>>, %arg20: memref<64x4xf32, #tpu.memory_space<vmem>>, %arg21: memref<1x4xf32, #tpu.memory_space<vmem>>, %arg22: memref<1x64x4xf32, #tpu.memory_space<vmem>>, %arg23: memref<1x64x10xf32, #tpu.memory_space<vmem>>, %arg24: memref<64x512xf32, #tpu.memory_space<vmem>>, %arg25: memref<64x128xf32, #tpu.memory_space<vmem>>) attributes {dimension_semantics = [#tpu.dimension_semantics<parallel>], iteration_bounds = array<i64: 1>, scalar_prefetch = 0 : i64, scratch_operands = 2 : i64, tpu.core_type = #tpu.core_type<tc>, window_params = [{transform_indices = @transform_0, window_bounds = array<i64: 1, 1>}, {transform_indices = @transform_1, window_bounds = array<i64: 1, 64, 10>}, {pipeline_mode = #tpu.pipeline_mode<synchronous>, transform_indices = @transform_2, window_bounds = array<i64: 10, 512>}, {pipeline_mode = #tpu.pipeline_mode<synchronous>, transform_indices = @transform_3, window_bounds = array<i64: 128, 512>}, {pipeline_mode = #tpu.pipeline_mode<synchronous>, transform_indices = @transform_4, window_bounds = array<i64: 1, 512>}, {pipeline_mode = #tpu.pipeline_mode<synchronous>, transform_indices = @transform_5, window_bounds = array<i64: 128, 512>}, {pipeline_mode = #tpu.pipeline_mode<synchronous>, transform_indices = @transform_6, window_bounds = array<i64: 128, 512>}, {pipeline_mode = #tpu.pipeline_mode<synchronous>, transform_indices = @transform_7, window_bounds = array<i64: 1, 512>}, {pipeline_mode = #tpu.pipeline_mode<synchronous>, transform_indices = @transform_8, window_bounds = array<i64: 128, 512>}, {pipeline_mode = #tpu.pipeline_mode<synchronous>, transform_indices = @transform_9, window_bounds = array<i64: 128, 512>}, {pipeline_mode = #tpu.pipeline_mode<synchronous>, transform_indices = @transform_10, window_bounds = array<i64: 1, 512>}, {pipeline_mode = #tpu.pipeline_mode<synchronous>, transform_indices = @transform_11, window_bounds = array<i64: 128, 64>}, {pipeline_mode = #tpu.pipeline_mode<synchronous>, transform_indices = @transform_12, window_bounds = array<i64: 1, 64>}, {pipeline_mode = #tpu.pipeline_mode<synchronous>, transform_indices = @transform_13, window_bounds = array<i64: 64, 64>}, {pipeline_mode = #tpu.pipeline_mode<synchronous>, transform_indices = @transform_14, window_bounds = array<i64: 1, 64>}, {pipeline_mode = #tpu.pipeline_mode<synchronous>, transform_indices = @transform_15, window_bounds = array<i64: 64, 64>}, {pipeline_mode = #tpu.pipeline_mode<synchronous>, transform_indices = @transform_16, window_bounds = array<i64: 1, 64>}, {pipeline_mode = #tpu.pipeline_mode<synchronous>, transform_indices = @transform_17, window_bounds = array<i64: 64, 64>}, {pipeline_mode = #tpu.pipeline_mode<synchronous>, transform_indices = @transform_18, window_bounds = array<i64: 1, 64>}, {pipeline_mode = #tpu.pipeline_mode<synchronous>, transform_indices = @transform_19, window_bounds = array<i64: 64, 4>}, {pipeline_mode = #tpu.pipeline_mode<synchronous>, transform_indices = @transform_20, window_bounds = array<i64: 1, 4>}, {transform_indices = @transform_21, window_bounds = array<i64: 1, 64, 4>}, {transform_indices = @transform_22, window_bounds = array<i64: 1, 64, 10>}]} {
    %c0 = arith.constant 0 : index
    %c0_0 = arith.constant 0 : index
    %c0_1 = arith.constant 0 : index
    %0 = vector.load %arg2[%c0, %c0_0, %c0_1] : memref<1x64x10xf32, #tpu.memory_space<vmem>>, vector<1x64x10xf32>
    %1 = vector.shape_cast %0 : vector<1x64x10xf32> to vector<64x10xf32>
    %c0_2 = arith.constant 0 : index
    %c0_3 = arith.constant 0 : index
    %2 = vector.load %arg3[%c0_2, %c0_3] : memref<10x512xf32, #tpu.memory_space<vmem>>, vector<10x512xf32>
    %cst = arith.constant dense<0.000000e+00> : vector<64x512xf32>
    %3 = tpu.matmul %1, %2, %cst {dimension_numbers = #tpu.dot_dimension_numbers<[1], [0], [0], [1], [0, 0, 1, 1], [], []>} : vector<64x10xf32>, vector<10x512xf32>, vector<64x512xf32> -> vector<64x512xf32>
    %c0_4 = arith.constant 0 : index
    %c0_5 = arith.constant 0 : index
    %4 = vector.load %arg5[%c0_4, %c0_5] : memref<1x512xf32, #tpu.memory_space<vmem>>, vector<1x512xf32>
    %5 = vector.broadcast %4 : vector<1x512xf32> to vector<64x512xf32>
    %6 = arith.addf %3, %5 : vector<64x512xf32>
    %c0_6 = arith.constant 0 : index
    %c0_7 = arith.constant 0 : index
    %7 = vector.load %arg24[%c0_6, %c0_7] : memref<64x512xf32, #tpu.memory_space<vmem>>, vector<64x512xf32>
    tpu.vector_store %arg24[%c0_6, %c0_7], %6 {strides = array<i32>} : memref<64x512xf32, #tpu.memory_space<vmem>>, vector<64x512xf32>,
    %cst_8 = arith.constant 0.000000e+00 : f32
    %8 = vector.broadcast %cst_8 : f32 to vector<8x128xf32>
    %c0_i32 = arith.constant 0 : i32
    %c8_i32 = arith.constant 8 : i32
    %9 = arith.muli %c0_i32, %c8_i32 : i32
    %10 = tpu.assume_multiple %9, 8 : i32
    %11 = arith.index_cast %10 : i32 to index
    %c0_9 = arith.constant 0 : index
    %12 = vector.load %arg24[%11, %c0_9] : memref<64x512xf32, #tpu.memory_space<vmem>>, vector<8x512xf32>
    %c0_10 = arith.constant 0 : index
    %c0_11 = arith.constant 0 : index
    %13 = vector.load %arg4[%c0_10, %c0_11] : memref<128x512xf32, #tpu.memory_space<vmem>>, vector<128x512xf32>
    %cst_12 = arith.constant dense<0.000000e+00> : vector<8x512xf32>
    %14 = tpu.matmul %8, %13, %cst_12 {dimension_numbers = #tpu.dot_dimension_numbers<[1], [0], [0], [1], [0, 0, 1, 1], [], []>} : vector<8x128xf32>, vector<128x512xf32>, vector<8x512xf32> -> vector<8x512xf32>
    %15 = arith.addf %12, %14 : vector<8x512xf32>
    %16 = vector.extract_strided_slice %15 {offsets = [0, 0], sizes = [8, 128], strides = [1, 1]} : vector<8x512xf32> to vector<8x128xf32>
    %cst_13 = arith.constant 5.000000e-01 : f32
    %17 = vector.broadcast %cst_13 : f32 to vector<8x128xf32>
    %18 = arith.mulf %17, %16 : vector<8x128xf32>
    %19 = math.tanh %18 : vector<8x128xf32>
    %cst_14 = arith.constant 5.000000e-01 : f32
    %20 = vector.broadcast %cst_14 : f32 to vector<8x128xf32>
    %21 = arith.mulf %20, %19 : vector<8x128xf32>
    %cst_15 = arith.constant 5.000000e-01 : f32
    %22 = vector.broadcast %cst_15 : f32 to vector<8x128xf32>
    %23 = arith.addf %21, %22 : vector<8x128xf32>
    %24 = vector.extract_strided_slice %15 {offsets = [0, 128], sizes = [8, 128], strides = [1, 1]} : vector<8x512xf32> to vector<8x128xf32>
    %cst_16 = arith.constant 5.000000e-01 : f32
    %25 = vector.broadcast %cst_16 : f32 to vector<8x128xf32>
    %26 = arith.mulf %25, %24 : vector<8x128xf32>
    %27 = math.tanh %26 : vector<8x128xf32>
    %cst_17 = arith.constant 5.000000e-01 : f32
    %28 = vector.broadcast %cst_17 : f32 to vector<8x128xf32>
    %29 = arith.mulf %28, %27 : vector<8x128xf32>
    %cst_18 = arith.constant 5.000000e-01 : f32
    %30 = vector.broadcast %cst_18 : f32 to vector<8x128xf32>
    %31 = arith.addf %29, %30 : vector<8x128xf32>
    %32 = vector.extract_strided_slice %15 {offsets = [0, 256], sizes = [8, 128], strides = [1, 1]} : vector<8x512xf32> to vector<8x128xf32>
    %33 = math.tanh %32 : vector<8x128xf32>
    %34 = vector.extract_strided_slice %15 {offsets = [0, 384], sizes = [8, 128], strides = [1, 1]} : vector<8x512xf32> to vector<8x128xf32>
    %cst_19 = arith.constant 5.000000e-01 : f32
    %35 = vector.broadcast %cst_19 : f32 to vector<8x128xf32>
    %36 = arith.mulf %35, %34 : vector<8x128xf32>
    %37 = math.tanh %36 : vector<8x128xf32>
    %cst_20 = arith.constant 5.000000e-01 : f32
    %38 = vector.broadcast %cst_20 : f32 to vector<8x128xf32>
    %39 = arith.mulf %38, %37 : vector<8x128xf32>
    %cst_21 = arith.constant 5.000000e-01 : f32
    %40 = vector.broadcast %cst_21 : f32 to vector<8x128xf32>
    %41 = arith.addf %39, %40 : vector<8x128xf32>
    %42 = arith.mulf %31, %8 : vector<8x128xf32>
    %43 = arith.mulf %23, %33 : vector<8x128xf32>
    %44 = arith.addf %42, %43 : vector<8x128xf32>
    %45 = math.tanh %44 : vector<8x128xf32>
    %46 = arith.mulf %41, %45 : vector<8x128xf32>
    %47 = arith.index_cast %10 : i32 to index
    %c0_22 = arith.constant 0 : index
    %48 = vector.load %arg25[%47, %c0_22] : memref<64x128xf32, #tpu.memory_space<vmem>>, vector<8x128xf32>
    tpu.vector_store %arg25[%47, %c0_22], %46 {strides = array<i32>} : memref<64x128xf32, #tpu.memory_space<vmem>>, vector<8x128xf32>,
    %c1_i32 = arith.constant 1 : i32
    %c8_i32_23 = arith.constant 8 : i32
    %49 = arith.muli %c1_i32, %c8_i32_23 : i32
    %50 = tpu.assume_multiple %49, 8 : i32
    %51 = arith.index_cast %50 : i32 to index
    %c0_24 = arith.constant 0 : index
    %52 = vector.load %arg24[%51, %c0_24] : memref<64x512xf32, #tpu.memory_space<vmem>>, vector<8x512xf32>
    %c0_25 = arith.constant 0 : index
    %c0_26 = arith.constant 0 : index
    %53 = vector.load %arg4[%c0_25, %c0_26] : memref<128x512xf32, #tpu.memory_space<vmem>>, vector<128x512xf32>
    %cst_27 = arith.constant dense<0.000000e+00> : vector<8x512xf32>
    %54 = tpu.matmul %46, %53, %cst_27 {dimension_numbers = #tpu.dot_dimension_numbers<[1], [0], [0], [1], [0, 0, 1, 1], [], []>} : vector<8x128xf32>, vector<128x512xf32>, vector<8x512xf32> -> vector<8x512xf32>
    %55 = arith.addf %52, %54 : vector<8x512xf32>
    %56 = vector.extract_strided_slice %55 {offsets = [0, 0], sizes = [8, 128], strides = [1, 1]} : vector<8x512xf32> to vector<8x128xf32>
    %cst_28 = arith.constant 5.000000e-01 : f32
    %57 = vector.broadcast %cst_28 : f32 to vector<8x128xf32>
    %58 = arith.mulf %57, %56 : vector<8x128xf32>
    %59 = math.tanh %58 : vector<8x128xf32>
    %cst_29 = arith.constant 5.000000e-01 : f32
    %60 = vector.broadcast %cst_29 : f32 to vector<8x128xf32>
    %61 = arith.mulf %60, %59 : vector<8x128xf32>
    %cst_30 = arith.constant 5.000000e-01 : f32
    %62 = vector.broadcast %cst_30 : f32 to vector<8x128xf32>
    %63 = arith.addf %61, %62 : vector<8x128xf32>
    %64 = vector.extract_strided_slice %55 {offsets = [0, 128], sizes = [8, 128], strides = [1, 1]} : vector<8x512xf32> to vector<8x128xf32>
    %cst_31 = arith.constant 5.000000e-01 : f32
    %65 = vector.broadcast %cst_31 : f32 to vector<8x128xf32>
    %66 = arith.mulf %65, %64 : vector<8x128xf32>
    %67 = math.tanh %66 : vector<8x128xf32>
    %cst_32 = arith.constant 5.000000e-01 : f32
    %68 = vector.broadcast %cst_32 : f32 to vector<8x128xf32>
    %69 = arith.mulf %68, %67 : vector<8x128xf32>
    %cst_33 = arith.constant 5.000000e-01 : f32
    %70 = vector.broadcast %cst_33 : f32 to vector<8x128xf32>
    %71 = arith.addf %69, %70 : vector<8x128xf32>
    %72 = vector.extract_strided_slice %55 {offsets = [0, 256], sizes = [8, 128], strides = [1, 1]} : vector<8x512xf32> to vector<8x128xf32>
    %73 = math.tanh %72 : vector<8x128xf32>
    %74 = vector.extract_strided_slice %55 {offsets = [0, 384], sizes = [8, 128], strides = [1, 1]} : vector<8x512xf32> to vector<8x128xf32>
    %cst_34 = arith.constant 5.000000e-01 : f32
    %75 = vector.broadcast %cst_34 : f32 to vector<8x128xf32>
    %76 = arith.mulf %75, %74 : vector<8x128xf32>
    %77 = math.tanh %76 : vector<8x128xf32>
    %cst_35 = arith.constant 5.000000e-01 : f32
    %78 = vector.broadcast %cst_35 : f32 to vector<8x128xf32>
    %79 = arith.mulf %78, %77 : vector<8x128xf32>
    %cst_36 = arith.constant 5.000000e-01 : f32
    %80 = vector.broadcast %cst_36 : f32 to vector<8x128xf32>
    %81 = arith.addf %79, %80 : vector<8x128xf32>
    %82 = arith.mulf %71, %44 : vector<8x128xf32>
    %83 = arith.mulf %63, %73 : vector<8x128xf32>
    %84 = arith.addf %82, %83 : vector<8x128xf32>
    %85 = math.tanh %84 : vector<8x128xf32>
    %86 = arith.mulf %81, %85 : vector<8x128xf32>
    %87 = arith.index_cast %50 : i32 to index
    %c0_37 = arith.constant 0 : index
    %88 = vector.load %arg25[%87, %c0_37] : memref<64x128xf32, #tpu.memory_space<vmem>>, vector<8x128xf32>
    tpu.vector_store %arg25[%87, %c0_37], %86 {strides = array<i32>} : memref<64x128xf32, #tpu.memory_space<vmem>>, vector<8x128xf32>,
    %c2_i32 = arith.constant 2 : i32
    %c8_i32_38 = arith.constant 8 : i32
    %89 = arith.muli %c2_i32, %c8_i32_38 : i32
    %90 = tpu.assume_multiple %89, 8 : i32
    %91 = arith.index_cast %90 : i32 to index
    %c0_39 = arith.constant 0 : index
    %92 = vector.load %arg24[%91, %c0_39] : memref<64x512xf32, #tpu.memory_space<vmem>>, vector<8x512xf32>
    %c0_40 = arith.constant 0 : index
    %c0_41 = arith.constant 0 : index
    %93 = vector.load %arg4[%c0_40, %c0_41] : memref<128x512xf32, #tpu.memory_space<vmem>>, vector<128x512xf32>
    %cst_42 = arith.constant dense<0.000000e+00> : vector<8x512xf32>
    %94 = tpu.matmul %86, %93, %cst_42 {dimension_numbers = #tpu.dot_dimension_numbers<[1], [0], [0], [1], [0, 0, 1, 1], [], []>} : vector<8x128xf32>, vector<128x512xf32>, vector<8x512xf32> -> vector<8x512xf32>
    %95 = arith.addf %92, %94 : vector<8x512xf32>
    %96 = vector.extract_strided_slice %95 {offsets = [0, 0], sizes = [8, 128], strides = [1, 1]} : vector<8x512xf32> to vector<8x128xf32>
    %cst_43 = arith.constant 5.000000e-01 : f32
    %97 = vector.broadcast %cst_43 : f32 to vector<8x128xf32>
    %98 = arith.mulf %97, %96 : vector<8x128xf32>
    %99 = math.tanh %98 : vector<8x128xf32>
    %cst_44 = arith.constant 5.000000e-01 : f32
    %100 = vector.broadcast %cst_44 : f32 to vector<8x128xf32>
    %101 = arith.mulf %100, %99 : vector<8x128xf32>
    %cst_45 = arith.constant 5.000000e-01 : f32
    %102 = vector.broadcast %cst_45 : f32 to vector<8x128xf32>
    %103 = arith.addf %101, %102 : vector<8x128xf32>
    %104 = vector.extract_strided_slice %95 {offsets = [0, 128], sizes = [8, 128], strides = [1, 1]} : vector<8x512xf32> to vector<8x128xf32>
    %cst_46 = arith.constant 5.000000e-01 : f32
    %105 = vector.broadcast %cst_46 : f32 to vector<8x128xf32>
    %106 = arith.mulf %105, %104 : vector<8x128xf32>
    %107 = math.tanh %106 : vector<8x128xf32>
    %cst_47 = arith.constant 5.000000e-01 : f32
    %108 = vector.broadcast %cst_47 : f32 to vector<8x128xf32>
    %109 = arith.mulf %108, %107 : vector<8x128xf32>
    %cst_48 = arith.constant 5.000000e-01 : f32
    %110 = vector.broadcast %cst_48 : f32 to vector<8x128xf32>
    %111 = arith.addf %109, %110 : vector<8x128xf32>
    %112 = vector.extract_strided_slice %95 {offsets = [0, 256], sizes = [8, 128], strides = [1, 1]} : vector<8x512xf32> to vector<8x128xf32>
    %113 = math.tanh %112 : vector<8x128xf32>
    %114 = vector.extract_strided_slice %95 {offsets = [0, 384], sizes = [8, 128], strides = [1, 1]} : vector<8x512xf32> to vector<8x128xf32>
    %cst_49 = arith.constant 5.000000e-01 : f32
    %115 = vector.broadcast %cst_49 : f32 to vector<8x128xf32>
    %116 = arith.mulf %115, %114 : vector<8x128xf32>
    %117 = math.tanh %116 : vector<8x128xf32>
    %cst_50 = arith.constant 5.000000e-01 : f32
    %118 = vector.broadcast %cst_50 : f32 to vector<8x128xf32>
    %119 = arith.mulf %118, %117 : vector<8x128xf32>
    %cst_51 = arith.constant 5.000000e-01 : f32
    %120 = vector.broadcast %cst_51 : f32 to vector<8x128xf32>
    %121 = arith.addf %119, %120 : vector<8x128xf32>
    %122 = arith.mulf %111, %84 : vector<8x128xf32>
    %123 = arith.mulf %103, %113 : vector<8x128xf32>
    %124 = arith.addf %122, %123 : vector<8x128xf32>
    %125 = math.tanh %124 : vector<8x128xf32>
    %126 = arith.mulf %121, %125 : vector<8x128xf32>
    %127 = arith.index_cast %90 : i32 to index
    %c0_52 = arith.constant 0 : index
    %128 = vector.load %arg25[%127, %c0_52] : memref<64x128xf32, #tpu.memory_space<vmem>>, vector<8x128xf32>
    tpu.vector_store %arg25[%127, %c0_52], %126 {strides = array<i32>} : memref<64x128xf32, #tpu.memory_space<vmem>>, vector<8x128xf32>,
    %c3_i32 = arith.constant 3 : i32
    %c8_i32_53 = arith.constant 8 : i32
    %129 = arith.muli %c3_i32, %c8_i32_53 : i32
    %130 = tpu.assume_multiple %129, 8 : i32
    %131 = arith.index_cast %130 : i32 to index
    %c0_54 = arith.constant 0 : index
    %132 = vector.load %arg24[%131, %c0_54] : memref<64x512xf32, #tpu.memory_space<vmem>>, vector<8x512xf32>
    %c0_55 = arith.constant 0 : index
    %c0_56 = arith.constant 0 : index
    %133 = vector.load %arg4[%c0_55, %c0_56] : memref<128x512xf32, #tpu.memory_space<vmem>>, vector<128x512xf32>
    %cst_57 = arith.constant dense<0.000000e+00> : vector<8x512xf32>
    %134 = tpu.matmul %126, %133, %cst_57 {dimension_numbers = #tpu.dot_dimension_numbers<[1], [0], [0], [1], [0, 0, 1, 1], [], []>} : vector<8x128xf32>, vector<128x512xf32>, vector<8x512xf32> -> vector<8x512xf32>
    %135 = arith.addf %132, %134 : vector<8x512xf32>
    %136 = vector.extract_strided_slice %135 {offsets = [0, 0], sizes = [8, 128], strides = [1, 1]} : vector<8x512xf32> to vector<8x128xf32>
    %cst_58 = arith.constant 5.000000e-01 : f32
    %137 = vector.broadcast %cst_58 : f32 to vector<8x128xf32>
    %138 = arith.mulf %137, %136 : vector<8x128xf32>
    %139 = math.tanh %138 : vector<8x128xf32>
    %cst_59 = arith.constant 5.000000e-01 : f32
    %140 = vector.broadcast %cst_59 : f32 to vector<8x128xf32>
    %141 = arith.mulf %140, %139 : vector<8x128xf32>
    %cst_60 = arith.constant 5.000000e-01 : f32
    %142 = vector.broadcast %cst_60 : f32 to vector<8x128xf32>
    %143 = arith.addf %141, %142 : vector<8x128xf32>
    %144 = vector.extract_strided_slice %135 {offsets = [0, 128], sizes = [8, 128], strides = [1, 1]} : vector<8x512xf32> to vector<8x128xf32>
    %cst_61 = arith.constant 5.000000e-01 : f32
    %145 = vector.broadcast %cst_61 : f32 to vector<8x128xf32>
    %146 = arith.mulf %145, %144 : vector<8x128xf32>
    %147 = math.tanh %146 : vector<8x128xf32>
    %cst_62 = arith.constant 5.000000e-01 : f32
    %148 = vector.broadcast %cst_62 : f32 to vector<8x128xf32>
    %149 = arith.mulf %148, %147 : vector<8x128xf32>
    %cst_63 = arith.constant 5.000000e-01 : f32
    %150 = vector.broadcast %cst_63 : f32 to vector<8x128xf32>
    %151 = arith.addf %149, %150 : vector<8x128xf32>
    %152 = vector.extract_strided_slice %135 {offsets = [0, 256], sizes = [8, 128], strides = [1, 1]} : vector<8x512xf32> to vector<8x128xf32>
    %153 = math.tanh %152 : vector<8x128xf32>
    %154 = vector.extract_strided_slice %135 {offsets = [0, 384], sizes = [8, 128], strides = [1, 1]} : vector<8x512xf32> to vector<8x128xf32>
    %cst_64 = arith.constant 5.000000e-01 : f32
    %155 = vector.broadcast %cst_64 : f32 to vector<8x128xf32>
    %156 = arith.mulf %155, %154 : vector<8x128xf32>
    %157 = math.tanh %156 : vector<8x128xf32>
    %cst_65 = arith.constant 5.000000e-01 : f32
    %158 = vector.broadcast %cst_65 : f32 to vector<8x128xf32>
    %159 = arith.mulf %158, %157 : vector<8x128xf32>
    %cst_66 = arith.constant 5.000000e-01 : f32
    %160 = vector.broadcast %cst_66 : f32 to vector<8x128xf32>
    %161 = arith.addf %159, %160 : vector<8x128xf32>
    %162 = arith.mulf %151, %124 : vector<8x128xf32>
    %163 = arith.mulf %143, %153 : vector<8x128xf32>
    %164 = arith.addf %162, %163 : vector<8x128xf32>
    %165 = math.tanh %164 : vector<8x128xf32>
    %166 = arith.mulf %161, %165 : vector<8x128xf32>
    %167 = arith.index_cast %130 : i32 to index
    %c0_67 = arith.constant 0 : index
    %168 = vector.load %arg25[%167, %c0_67] : memref<64x128xf32, #tpu.memory_space<vmem>>, vector<8x128xf32>
    tpu.vector_store %arg25[%167, %c0_67], %166 {strides = array<i32>} : memref<64x128xf32, #tpu.memory_space<vmem>>, vector<8x128xf32>,
    %c4_i32 = arith.constant 4 : i32
    %c8_i32_68 = arith.constant 8 : i32
    %169 = arith.muli %c4_i32, %c8_i32_68 : i32
    %170 = tpu.assume_multiple %169, 8 : i32
    %171 = arith.index_cast %170 : i32 to index
    %c0_69 = arith.constant 0 : index
    %172 = vector.load %arg24[%171, %c0_69] : memref<64x512xf32, #tpu.memory_space<vmem>>, vector<8x512xf32>
    %c0_70 = arith.constant 0 : index
    %c0_71 = arith.constant 0 : index
    %173 = vector.load %arg4[%c0_70, %c0_71] : memref<128x512xf32, #tpu.memory_space<vmem>>, vector<128x512xf32>
    %cst_72 = arith.constant dense<0.000000e+00> : vector<8x512xf32>
    %174 = tpu.matmul %166, %173, %cst_72 {dimension_numbers = #tpu.dot_dimension_numbers<[1], [0], [0], [1], [0, 0, 1, 1], [], []>} : vector<8x128xf32>, vector<128x512xf32>, vector<8x512xf32> -> vector<8x512xf32>
    %175 = arith.addf %172, %174 : vector<8x512xf32>
    %176 = vector.extract_strided_slice %175 {offsets = [0, 0], sizes = [8, 128], strides = [1, 1]} : vector<8x512xf32> to vector<8x128xf32>
    %cst_73 = arith.constant 5.000000e-01 : f32
    %177 = vector.broadcast %cst_73 : f32 to vector<8x128xf32>
    %178 = arith.mulf %177, %176 : vector<8x128xf32>
    %179 = math.tanh %178 : vector<8x128xf32>
    %cst_74 = arith.constant 5.000000e-01 : f32
    %180 = vector.broadcast %cst_74 : f32 to vector<8x128xf32>
    %181 = arith.mulf %180, %179 : vector<8x128xf32>
    %cst_75 = arith.constant 5.000000e-01 : f32
    %182 = vector.broadcast %cst_75 : f32 to vector<8x128xf32>
    %183 = arith.addf %181, %182 : vector<8x128xf32>
    %184 = vector.extract_strided_slice %175 {offsets = [0, 128], sizes = [8, 128], strides = [1, 1]} : vector<8x512xf32> to vector<8x128xf32>
    %cst_76 = arith.constant 5.000000e-01 : f32
    %185 = vector.broadcast %cst_76 : f32 to vector<8x128xf32>
    %186 = arith.mulf %185, %184 : vector<8x128xf32>
    %187 = math.tanh %186 : vector<8x128xf32>
    %cst_77 = arith.constant 5.000000e-01 : f32
    %188 = vector.broadcast %cst_77 : f32 to vector<8x128xf32>
    %189 = arith.mulf %188, %187 : vector<8x128xf32>
    %cst_78 = arith.constant 5.000000e-01 : f32
    %190 = vector.broadcast %cst_78 : f32 to vector<8x128xf32>
    %191 = arith.addf %189, %190 : vector<8x128xf32>
    %192 = vector.extract_strided_slice %175 {offsets = [0, 256], sizes = [8, 128], strides = [1, 1]} : vector<8x512xf32> to vector<8x128xf32>
    %193 = math.tanh %192 : vector<8x128xf32>
    %194 = vector.extract_strided_slice %175 {offsets = [0, 384], sizes = [8, 128], strides = [1, 1]} : vector<8x512xf32> to vector<8x128xf32>
    %cst_79 = arith.constant 5.000000e-01 : f32
    %195 = vector.broadcast %cst_79 : f32 to vector<8x128xf32>
    %196 = arith.mulf %195, %194 : vector<8x128xf32>
    %197 = math.tanh %196 : vector<8x128xf32>
    %cst_80 = arith.constant 5.000000e-01 : f32
    %198 = vector.broadcast %cst_80 : f32 to vector<8x128xf32>
    %199 = arith.mulf %198, %197 : vector<8x128xf32>
    %cst_81 = arith.constant 5.000000e-01 : f32
    %200 = vector.broadcast %cst_81 : f32 to vector<8x128xf32>
    %201 = arith.addf %199, %200 : vector<8x128xf32>
    %202 = arith.mulf %191, %164 : vector<8x128xf32>
    %203 = arith.mulf %183, %193 : vector<8x128xf32>
    %204 = arith.addf %202, %203 : vector<8x128xf32>
    %205 = math.tanh %204 : vector<8x128xf32>
    %206 = arith.mulf %201, %205 : vector<8x128xf32>
    %207 = arith.index_cast %170 : i32 to index
    %c0_82 = arith.constant 0 : index
    %208 = vector.load %arg25[%207, %c0_82] : memref<64x128xf32, #tpu.memory_space<vmem>>, vector<8x128xf32>
    tpu.vector_store %arg25[%207, %c0_82], %206 {strides = array<i32>} : memref<64x128xf32, #tpu.memory_space<vmem>>, vector<8x128xf32>,
    %c5_i32 = arith.constant 5 : i32
    %c8_i32_83 = arith.constant 8 : i32
    %209 = arith.muli %c5_i32, %c8_i32_83 : i32
    %210 = tpu.assume_multiple %209, 8 : i32
    %211 = arith.index_cast %210 : i32 to index
    %c0_84 = arith.constant 0 : index
    %212 = vector.load %arg24[%211, %c0_84] : memref<64x512xf32, #tpu.memory_space<vmem>>, vector<8x512xf32>
    %c0_85 = arith.constant 0 : index
    %c0_86 = arith.constant 0 : index
    %213 = vector.load %arg4[%c0_85, %c0_86] : memref<128x512xf32, #tpu.memory_space<vmem>>, vector<128x512xf32>
    %cst_87 = arith.constant dense<0.000000e+00> : vector<8x512xf32>
    %214 = tpu.matmul %206, %213, %cst_87 {dimension_numbers = #tpu.dot_dimension_numbers<[1], [0], [0], [1], [0, 0, 1, 1], [], []>} : vector<8x128xf32>, vector<128x512xf32>, vector<8x512xf32> -> vector<8x512xf32>
    %215 = arith.addf %212, %214 : vector<8x512xf32>
    %216 = vector.extract_strided_slice %215 {offsets = [0, 0], sizes = [8, 128], strides = [1, 1]} : vector<8x512xf32> to vector<8x128xf32>
    %cst_88 = arith.constant 5.000000e-01 : f32
    %217 = vector.broadcast %cst_88 : f32 to vector<8x128xf32>
    %218 = arith.mulf %217, %216 : vector<8x128xf32>
    %219 = math.tanh %218 : vector<8x128xf32>
    %cst_89 = arith.constant 5.000000e-01 : f32
    %220 = vector.broadcast %cst_89 : f32 to vector<8x128xf32>
    %221 = arith.mulf %220, %219 : vector<8x128xf32>
    %cst_90 = arith.constant 5.000000e-01 : f32
    %222 = vector.broadcast %cst_90 : f32 to vector<8x128xf32>
    %223 = arith.addf %221, %222 : vector<8x128xf32>
    %224 = vector.extract_strided_slice %215 {offsets = [0, 128], sizes = [8, 128], strides = [1, 1]} : vector<8x512xf32> to vector<8x128xf32>
    %cst_91 = arith.constant 5.000000e-01 : f32
    %225 = vector.broadcast %cst_91 : f32 to vector<8x128xf32>
    %226 = arith.mulf %225, %224 : vector<8x128xf32>
    %227 = math.tanh %226 : vector<8x128xf32>
    %cst_92 = arith.constant 5.000000e-01 : f32
    %228 = vector.broadcast %cst_92 : f32 to vector<8x128xf32>
    %229 = arith.mulf %228, %227 : vector<8x128xf32>
    %cst_93 = arith.constant 5.000000e-01 : f32
    %230 = vector.broadcast %cst_93 : f32 to vector<8x128xf32>
    %231 = arith.addf %229, %230 : vector<8x128xf32>
    %232 = vector.extract_strided_slice %215 {offsets = [0, 256], sizes = [8, 128], strides = [1, 1]} : vector<8x512xf32> to vector<8x128xf32>
    %233 = math.tanh %232 : vector<8x128xf32>
    %234 = vector.extract_strided_slice %215 {offsets = [0, 384], sizes = [8, 128], strides = [1, 1]} : vector<8x512xf32> to vector<8x128xf32>
    %cst_94 = arith.constant 5.000000e-01 : f32
    %235 = vector.broadcast %cst_94 : f32 to vector<8x128xf32>
    %236 = arith.mulf %235, %234 : vector<8x128xf32>
    %237 = math.tanh %236 : vector<8x128xf32>
    %cst_95 = arith.constant 5.000000e-01 : f32
    %238 = vector.broadcast %cst_95 : f32 to vector<8x128xf32>
    %239 = arith.mulf %238, %237 : vector<8x128xf32>
    %cst_96 = arith.constant 5.000000e-01 : f32
    %240 = vector.broadcast %cst_96 : f32 to vector<8x128xf32>
    %241 = arith.addf %239, %240 : vector<8x128xf32>
    %242 = arith.mulf %231, %204 : vector<8x128xf32>
    %243 = arith.mulf %223, %233 : vector<8x128xf32>
    %244 = arith.addf %242, %243 : vector<8x128xf32>
    %245 = math.tanh %244 : vector<8x128xf32>
    %246 = arith.mulf %241, %245 : vector<8x128xf32>
    %247 = arith.index_cast %210 : i32 to index
    %c0_97 = arith.constant 0 : index
    %248 = vector.load %arg25[%247, %c0_97] : memref<64x128xf32, #tpu.memory_space<vmem>>, vector<8x128xf32>
    tpu.vector_store %arg25[%247, %c0_97], %246 {strides = array<i32>} : memref<64x128xf32, #tpu.memory_space<vmem>>, vector<8x128xf32>,
    %c6_i32 = arith.constant 6 : i32
    %c8_i32_98 = arith.constant 8 : i32
    %249 = arith.muli %c6_i32, %c8_i32_98 : i32
    %250 = tpu.assume_multiple %249, 8 : i32
    %251 = arith.index_cast %250 : i32 to index
    %c0_99 = arith.constant 0 : index
    %252 = vector.load %arg24[%251, %c0_99] : memref<64x512xf32, #tpu.memory_space<vmem>>, vector<8x512xf32>
    %c0_100 = arith.constant 0 : index
    %c0_101 = arith.constant 0 : index
    %253 = vector.load %arg4[%c0_100, %c0_101] : memref<128x512xf32, #tpu.memory_space<vmem>>, vector<128x512xf32>
    %cst_102 = arith.constant dense<0.000000e+00> : vector<8x512xf32>
    %254 = tpu.matmul %246, %253, %cst_102 {dimension_numbers = #tpu.dot_dimension_numbers<[1], [0], [0], [1], [0, 0, 1, 1], [], []>} : vector<8x128xf32>, vector<128x512xf32>, vector<8x512xf32> -> vector<8x512xf32>
    %255 = arith.addf %252, %254 : vector<8x512xf32>
    %256 = vector.extract_strided_slice %255 {offsets = [0, 0], sizes = [8, 128], strides = [1, 1]} : vector<8x512xf32> to vector<8x128xf32>
    %cst_103 = arith.constant 5.000000e-01 : f32
    %257 = vector.broadcast %cst_103 : f32 to vector<8x128xf32>
    %258 = arith.mulf %257, %256 : vector<8x128xf32>
    %259 = math.tanh %258 : vector<8x128xf32>
    %cst_104 = arith.constant 5.000000e-01 : f32
    %260 = vector.broadcast %cst_104 : f32 to vector<8x128xf32>
    %261 = arith.mulf %260, %259 : vector<8x128xf32>
    %cst_105 = arith.constant 5.000000e-01 : f32
    %262 = vector.broadcast %cst_105 : f32 to vector<8x128xf32>
    %263 = arith.addf %261, %262 : vector<8x128xf32>
    %264 = vector.extract_strided_slice %255 {offsets = [0, 128], sizes = [8, 128], strides = [1, 1]} : vector<8x512xf32> to vector<8x128xf32>
    %cst_106 = arith.constant 5.000000e-01 : f32
    %265 = vector.broadcast %cst_106 : f32 to vector<8x128xf32>
    %266 = arith.mulf %265, %264 : vector<8x128xf32>
    %267 = math.tanh %266 : vector<8x128xf32>
    %cst_107 = arith.constant 5.000000e-01 : f32
    %268 = vector.broadcast %cst_107 : f32 to vector<8x128xf32>
    %269 = arith.mulf %268, %267 : vector<8x128xf32>
    %cst_108 = arith.constant 5.000000e-01 : f32
    %270 = vector.broadcast %cst_108 : f32 to vector<8x128xf32>
    %271 = arith.addf %269, %270 : vector<8x128xf32>
    %272 = vector.extract_strided_slice %255 {offsets = [0, 256], sizes = [8, 128], strides = [1, 1]} : vector<8x512xf32> to vector<8x128xf32>
    %273 = math.tanh %272 : vector<8x128xf32>
    %274 = vector.extract_strided_slice %255 {offsets = [0, 384], sizes = [8, 128], strides = [1, 1]} : vector<8x512xf32> to vector<8x128xf32>
    %cst_109 = arith.constant 5.000000e-01 : f32
    %275 = vector.broadcast %cst_109 : f32 to vector<8x128xf32>
    %276 = arith.mulf %275, %274 : vector<8x128xf32>
    %277 = math.tanh %276 : vector<8x128xf32>
    %cst_110 = arith.constant 5.000000e-01 : f32
    %278 = vector.broadcast %cst_110 : f32 to vector<8x128xf32>
    %279 = arith.mulf %278, %277 : vector<8x128xf32>
    %cst_111 = arith.constant 5.000000e-01 : f32
    %280 = vector.broadcast %cst_111 : f32 to vector<8x128xf32>
    %281 = arith.addf %279, %280 : vector<8x128xf32>
    %282 = arith.mulf %271, %244 : vector<8x128xf32>
    %283 = arith.mulf %263, %273 : vector<8x128xf32>
    %284 = arith.addf %282, %283 : vector<8x128xf32>
    %285 = math.tanh %284 : vector<8x128xf32>
    %286 = arith.mulf %281, %285 : vector<8x128xf32>
    %287 = arith.index_cast %250 : i32 to index
    %c0_112 = arith.constant 0 : index
    %288 = vector.load %arg25[%287, %c0_112] : memref<64x128xf32, #tpu.memory_space<vmem>>, vector<8x128xf32>
    tpu.vector_store %arg25[%287, %c0_112], %286 {strides = array<i32>} : memref<64x128xf32, #tpu.memory_space<vmem>>, vector<8x128xf32>,
    %c7_i32 = arith.constant 7 : i32
    %c8_i32_113 = arith.constant 8 : i32
    %289 = arith.muli %c7_i32, %c8_i32_113 : i32
    %290 = tpu.assume_multiple %289, 8 : i32
    %291 = arith.index_cast %290 : i32 to index
    %c0_114 = arith.constant 0 : index
    %292 = vector.load %arg24[%291, %c0_114] : memref<64x512xf32, #tpu.memory_space<vmem>>, vector<8x512xf32>
    %c0_115 = arith.constant 0 : index
    %c0_116 = arith.constant 0 : index
    %293 = vector.load %arg4[%c0_115, %c0_116] : memref<128x512xf32, #tpu.memory_space<vmem>>, vector<128x512xf32>
    %cst_117 = arith.constant dense<0.000000e+00> : vector<8x512xf32>
    %294 = tpu.matmul %286, %293, %cst_117 {dimension_numbers = #tpu.dot_dimension_numbers<[1], [0], [0], [1], [0, 0, 1, 1], [], []>} : vector<8x128xf32>, vector<128x512xf32>, vector<8x512xf32> -> vector<8x512xf32>
    %295 = arith.addf %292, %294 : vector<8x512xf32>
    %296 = vector.extract_strided_slice %295 {offsets = [0, 0], sizes = [8, 128], strides = [1, 1]} : vector<8x512xf32> to vector<8x128xf32>
    %cst_118 = arith.constant 5.000000e-01 : f32
    %297 = vector.broadcast %cst_118 : f32 to vector<8x128xf32>
    %298 = arith.mulf %297, %296 : vector<8x128xf32>
    %299 = math.tanh %298 : vector<8x128xf32>
    %cst_119 = arith.constant 5.000000e-01 : f32
    %300 = vector.broadcast %cst_119 : f32 to vector<8x128xf32>
    %301 = arith.mulf %300, %299 : vector<8x128xf32>
    %cst_120 = arith.constant 5.000000e-01 : f32
    %302 = vector.broadcast %cst_120 : f32 to vector<8x128xf32>
    %303 = arith.addf %301, %302 : vector<8x128xf32>
    %304 = vector.extract_strided_slice %295 {offsets = [0, 128], sizes = [8, 128], strides = [1, 1]} : vector<8x512xf32> to vector<8x128xf32>
    %cst_121 = arith.constant 5.000000e-01 : f32
    %305 = vector.broadcast %cst_121 : f32 to vector<8x128xf32>
    %306 = arith.mulf %305, %304 : vector<8x128xf32>
    %307 = math.tanh %306 : vector<8x128xf32>
    %cst_122 = arith.constant 5.000000e-01 : f32
    %308 = vector.broadcast %cst_122 : f32 to vector<8x128xf32>
    %309 = arith.mulf %308, %307 : vector<8x128xf32>
    %cst_123 = arith.constant 5.000000e-01 : f32
    %310 = vector.broadcast %cst_123 : f32 to vector<8x128xf32>
    %311 = arith.addf %309, %310 : vector<8x128xf32>
    %312 = vector.extract_strided_slice %295 {offsets = [0, 256], sizes = [8, 128], strides = [1, 1]} : vector<8x512xf32> to vector<8x128xf32>
    %313 = math.tanh %312 : vector<8x128xf32>
    %314 = vector.extract_strided_slice %295 {offsets = [0, 384], sizes = [8, 128], strides = [1, 1]} : vector<8x512xf32> to vector<8x128xf32>
    %cst_124 = arith.constant 5.000000e-01 : f32
    %315 = vector.broadcast %cst_124 : f32 to vector<8x128xf32>
    %316 = arith.mulf %315, %314 : vector<8x128xf32>
    %317 = math.tanh %316 : vector<8x128xf32>
    %cst_125 = arith.constant 5.000000e-01 : f32
    %318 = vector.broadcast %cst_125 : f32 to vector<8x128xf32>
    %319 = arith.mulf %318, %317 : vector<8x128xf32>
    %cst_126 = arith.constant 5.000000e-01 : f32
    %320 = vector.broadcast %cst_126 : f32 to vector<8x128xf32>
    %321 = arith.addf %319, %320 : vector<8x128xf32>
    %322 = arith.mulf %311, %284 : vector<8x128xf32>
    %323 = arith.mulf %303, %313 : vector<8x128xf32>
    %324 = arith.addf %322, %323 : vector<8x128xf32>
    %325 = math.tanh %324 : vector<8x128xf32>
    %326 = arith.mulf %321, %325 : vector<8x128xf32>
    %327 = arith.index_cast %290 : i32 to index
    %c0_127 = arith.constant 0 : index
    %328 = vector.load %arg25[%327, %c0_127] : memref<64x128xf32, #tpu.memory_space<vmem>>, vector<8x128xf32>
    tpu.vector_store %arg25[%327, %c0_127], %326 {strides = array<i32>} : memref<64x128xf32, #tpu.memory_space<vmem>>, vector<8x128xf32>,
    %c8_i32_128 = arith.constant 8 : i32
    %c0_129 = arith.constant 0 : index
    %c0_130 = arith.constant 0 : index
    %329 = vector.load %arg25[%c0_129, %c0_130] : memref<64x128xf32, #tpu.memory_space<vmem>>, vector<64x128xf32>
    %c0_131 = arith.constant 0 : index
    %c0_132 = arith.constant 0 : index
    %330 = vector.load %arg6[%c0_131, %c0_132] : memref<128x512xf32, #tpu.memory_space<vmem>>, vector<128x512xf32>
    %cst_133 = arith.constant dense<0.000000e+00> : vector<64x512xf32>
    %331 = tpu.matmul %329, %330, %cst_133 {dimension_numbers = #tpu.dot_dimension_numbers<[1], [0], [0], [1], [0, 0, 1, 1], [], []>} : vector<64x128xf32>, vector<128x512xf32>, vector<64x512xf32> -> vector<64x512xf32>
    %c0_134 = arith.constant 0 : index
    %c0_135 = arith.constant 0 : index
    %332 = vector.load %arg8[%c0_134, %c0_135] : memref<1x512xf32, #tpu.memory_space<vmem>>, vector<1x512xf32>
    %333 = vector.broadcast %332 : vector<1x512xf32> to vector<64x512xf32>
    %334 = arith.addf %331, %333 : vector<64x512xf32>
    %c0_136 = arith.constant 0 : index
    %c0_137 = arith.constant 0 : index
    %335 = vector.load %arg24[%c0_136, %c0_137] : memref<64x512xf32, #tpu.memory_space<vmem>>, vector<64x512xf32>
    tpu.vector_store %arg24[%c0_136, %c0_137], %334 {strides = array<i32>} : memref<64x512xf32, #tpu.memory_space<vmem>>, vector<64x512xf32>,
    %cst_138 = arith.constant 0.000000e+00 : f32
    %336 = vector.broadcast %cst_138 : f32 to vector<8x128xf32>
    %c0_i32_139 = arith.constant 0 : i32
    %c8_i32_140 = arith.constant 8 : i32
    %337 = arith.muli %c0_i32_139, %c8_i32_140 : i32
    %338 = tpu.assume_multiple %337, 8 : i32
    %339 = arith.index_cast %338 : i32 to index
    %c0_141 = arith.constant 0 : index
    %340 = vector.load %arg24[%339, %c0_141] : memref<64x512xf32, #tpu.memory_space<vmem>>, vector<8x512xf32>
    %c0_142 = arith.constant 0 : index
    %c0_143 = arith.constant 0 : index
    %341 = vector.load %arg7[%c0_142, %c0_143] : memref<128x512xf32, #tpu.memory_space<vmem>>, vector<128x512xf32>
    %cst_144 = arith.constant dense<0.000000e+00> : vector<8x512xf32>
    %342 = tpu.matmul %336, %341, %cst_144 {dimension_numbers = #tpu.dot_dimension_numbers<[1], [0], [0], [1], [0, 0, 1, 1], [], []>} : vector<8x128xf32>, vector<128x512xf32>, vector<8x512xf32> -> vector<8x512xf32>
    %343 = arith.addf %340, %342 : vector<8x512xf32>
    %344 = vector.extract_strided_slice %343 {offsets = [0, 0], sizes = [8, 128], strides = [1, 1]} : vector<8x512xf32> to vector<8x128xf32>
    %cst_145 = arith.constant 5.000000e-01 : f32
    %345 = vector.broadcast %cst_145 : f32 to vector<8x128xf32>
    %346 = arith.mulf %345, %344 : vector<8x128xf32>
    %347 = math.tanh %346 : vector<8x128xf32>
    %cst_146 = arith.constant 5.000000e-01 : f32
    %348 = vector.broadcast %cst_146 : f32 to vector<8x128xf32>
    %349 = arith.mulf %348, %347 : vector<8x128xf32>
    %cst_147 = arith.constant 5.000000e-01 : f32
    %350 = vector.broadcast %cst_147 : f32 to vector<8x128xf32>
    %351 = arith.addf %349, %350 : vector<8x128xf32>
    %352 = vector.extract_strided_slice %343 {offsets = [0, 128], sizes = [8, 128], strides = [1, 1]} : vector<8x512xf32> to vector<8x128xf32>
    %cst_148 = arith.constant 5.000000e-01 : f32
    %353 = vector.broadcast %cst_148 : f32 to vector<8x128xf32>
    %354 = arith.mulf %353, %352 : vector<8x128xf32>
    %355 = math.tanh %354 : vector<8x128xf32>
    %cst_149 = arith.constant 5.000000e-01 : f32
    %356 = vector.broadcast %cst_149 : f32 to vector<8x128xf32>
    %357 = arith.mulf %356, %355 : vector<8x128xf32>
    %cst_150 = arith.constant 5.000000e-01 : f32
    %358 = vector.broadcast %cst_150 : f32 to vector<8x128xf32>
    %359 = arith.addf %357, %358 : vector<8x128xf32>
    %360 = vector.extract_strided_slice %343 {offsets = [0, 256], sizes = [8, 128], strides = [1, 1]} : vector<8x512xf32> to vector<8x128xf32>
    %361 = math.tanh %360 : vector<8x128xf32>
    %362 = vector.extract_strided_slice %343 {offsets = [0, 384], sizes = [8, 128], strides = [1, 1]} : vector<8x512xf32> to vector<8x128xf32>
    %cst_151 = arith.constant 5.000000e-01 : f32
    %363 = vector.broadcast %cst_151 : f32 to vector<8x128xf32>
    %364 = arith.mulf %363, %362 : vector<8x128xf32>
    %365 = math.tanh %364 : vector<8x128xf32>
    %cst_152 = arith.constant 5.000000e-01 : f32
    %366 = vector.broadcast %cst_152 : f32 to vector<8x128xf32>
    %367 = arith.mulf %366, %365 : vector<8x128xf32>
    %cst_153 = arith.constant 5.000000e-01 : f32
    %368 = vector.broadcast %cst_153 : f32 to vector<8x128xf32>
    %369 = arith.addf %367, %368 : vector<8x128xf32>
    %370 = arith.mulf %359, %336 : vector<8x128xf32>
    %371 = arith.mulf %351, %361 : vector<8x128xf32>
    %372 = arith.addf %370, %371 : vector<8x128xf32>
    %373 = math.tanh %372 : vector<8x128xf32>
    %374 = arith.mulf %369, %373 : vector<8x128xf32>
    %375 = arith.index_cast %338 : i32 to index
    %c0_154 = arith.constant 0 : index
    %376 = vector.load %arg25[%375, %c0_154] : memref<64x128xf32, #tpu.memory_space<vmem>>, vector<8x128xf32>
    tpu.vector_store %arg25[%375, %c0_154], %374 {strides = array<i32>} : memref<64x128xf32, #tpu.memory_space<vmem>>, vector<8x128xf32>,
    %c1_i32_155 = arith.constant 1 : i32
    %c8_i32_156 = arith.constant 8 : i32
    %377 = arith.muli %c1_i32_155, %c8_i32_156 : i32
    %378 = tpu.assume_multiple %377, 8 : i32
    %379 = arith.index_cast %378 : i32 to index
    %c0_157 = arith.constant 0 : index
    %380 = vector.load %arg24[%379, %c0_157] : memref<64x512xf32, #tpu.memory_space<vmem>>, vector<8x512xf32>
    %c0_158 = arith.constant 0 : index
    %c0_159 = arith.constant 0 : index
    %381 = vector.load %arg7[%c0_158, %c0_159] : memref<128x512xf32, #tpu.memory_space<vmem>>, vector<128x512xf32>
    %cst_160 = arith.constant dense<0.000000e+00> : vector<8x512xf32>
    %382 = tpu.matmul %374, %381, %cst_160 {dimension_numbers = #tpu.dot_dimension_numbers<[1], [0], [0], [1], [0, 0, 1, 1], [], []>} : vector<8x128xf32>, vector<128x512xf32>, vector<8x512xf32> -> vector<8x512xf32>
    %383 = arith.addf %380, %382 : vector<8x512xf32>
    %384 = vector.extract_strided_slice %383 {offsets = [0, 0], sizes = [8, 128], strides = [1, 1]} : vector<8x512xf32> to vector<8x128xf32>
    %cst_161 = arith.constant 5.000000e-01 : f32
    %385 = vector.broadcast %cst_161 : f32 to vector<8x128xf32>
    %386 = arith.mulf %385, %384 : vector<8x128xf32>
    %387 = math.tanh %386 : vector<8x128xf32>
    %cst_162 = arith.constant 5.000000e-01 : f32
    %388 = vector.broadcast %cst_162 : f32 to vector<8x128xf32>
    %389 = arith.mulf %388, %387 : vector<8x128xf32>
    %cst_163 = arith.constant 5.000000e-01 : f32
    %390 = vector.broadcast %cst_163 : f32 to vector<8x128xf32>
    %391 = arith.addf %389, %390 : vector<8x128xf32>
    %392 = vector.extract_strided_slice %383 {offsets = [0, 128], sizes = [8, 128], strides = [1, 1]} : vector<8x512xf32> to vector<8x128xf32>
    %cst_164 = arith.constant 5.000000e-01 : f32
    %393 = vector.broadcast %cst_164 : f32 to vector<8x128xf32>
    %394 = arith.mulf %393, %392 : vector<8x128xf32>
    %395 = math.tanh %394 : vector<8x128xf32>
    %cst_165 = arith.constant 5.000000e-01 : f32
    %396 = vector.broadcast %cst_165 : f32 to vector<8x128xf32>
    %397 = arith.mulf %396, %395 : vector<8x128xf32>
    %cst_166 = arith.constant 5.000000e-01 : f32
    %398 = vector.broadcast %cst_166 : f32 to vector<8x128xf32>
    %399 = arith.addf %397, %398 : vector<8x128xf32>
    %400 = vector.extract_strided_slice %383 {offsets = [0, 256], sizes = [8, 128], strides = [1, 1]} : vector<8x512xf32> to vector<8x128xf32>
    %401 = math.tanh %400 : vector<8x128xf32>
    %402 = vector.extract_strided_slice %383 {offsets = [0, 384], sizes = [8, 128], strides = [1, 1]} : vector<8x512xf32> to vector<8x128xf32>
    %cst_167 = arith.constant 5.000000e-01 : f32
    %403 = vector.broadcast %cst_167 : f32 to vector<8x128xf32>
    %404 = arith.mulf %403, %402 : vector<8x128xf32>
    %405 = math.tanh %404 : vector<8x128xf32>
    %cst_168 = arith.constant 5.000000e-01 : f32
    %406 = vector.broadcast %cst_168 : f32 to vector<8x128xf32>
    %407 = arith.mulf %406, %405 : vector<8x128xf32>
    %cst_169 = arith.constant 5.000000e-01 : f32
    %408 = vector.broadcast %cst_169 : f32 to vector<8x128xf32>
    %409 = arith.addf %407, %408 : vector<8x128xf32>
    %410 = arith.mulf %399, %372 : vector<8x128xf32>
    %411 = arith.mulf %391, %401 : vector<8x128xf32>
    %412 = arith.addf %410, %411 : vector<8x128xf32>
    %413 = math.tanh %412 : vector<8x128xf32>
    %414 = arith.mulf %409, %413 : vector<8x128xf32>
    %415 = arith.index_cast %378 : i32 to index
    %c0_170 = arith.constant 0 : index
    %416 = vector.load %arg25[%415, %c0_170] : memref<64x128xf32, #tpu.memory_space<vmem>>, vector<8x128xf32>
    tpu.vector_store %arg25[%415, %c0_170], %414 {strides = array<i32>} : memref<64x128xf32, #tpu.memory_space<vmem>>, vector<8x128xf32>,
    %c2_i32_171 = arith.constant 2 : i32
    %c8_i32_172 = arith.constant 8 : i32
    %417 = arith.muli %c2_i32_171, %c8_i32_172 : i32
    %418 = tpu.assume_multiple %417, 8 : i32
    %419 = arith.index_cast %418 : i32 to index
    %c0_173 = arith.constant 0 : index
    %420 = vector.load %arg24[%419, %c0_173] : memref<64x512xf32, #tpu.memory_space<vmem>>, vector<8x512xf32>
    %c0_174 = arith.constant 0 : index
    %c0_175 = arith.constant 0 : index
    %421 = vector.load %arg7[%c0_174, %c0_175] : memref<128x512xf32, #tpu.memory_space<vmem>>, vector<128x512xf32>
    %cst_176 = arith.constant dense<0.000000e+00> : vector<8x512xf32>
    %422 = tpu.matmul %414, %421, %cst_176 {dimension_numbers = #tpu.dot_dimension_numbers<[1], [0], [0], [1], [0, 0, 1, 1], [], []>} : vector<8x128xf32>, vector<128x512xf32>, vector<8x512xf32> -> vector<8x512xf32>
    %423 = arith.addf %420, %422 : vector<8x512xf32>
    %424 = vector.extract_strided_slice %423 {offsets = [0, 0], sizes = [8, 128], strides = [1, 1]} : vector<8x512xf32> to vector<8x128xf32>
    %cst_177 = arith.constant 5.000000e-01 : f32
    %425 = vector.broadcast %cst_177 : f32 to vector<8x128xf32>
    %426 = arith.mulf %425, %424 : vector<8x128xf32>
    %427 = math.tanh %426 : vector<8x128xf32>
    %cst_178 = arith.constant 5.000000e-01 : f32
    %428 = vector.broadcast %cst_178 : f32 to vector<8x128xf32>
    %429 = arith.mulf %428, %427 : vector<8x128xf32>
    %cst_179 = arith.constant 5.000000e-01 : f32
    %430 = vector.broadcast %cst_179 : f32 to vector<8x128xf32>
    %431 = arith.addf %429, %430 : vector<8x128xf32>
    %432 = vector.extract_strided_slice %423 {offsets = [0, 128], sizes = [8, 128], strides = [1, 1]} : vector<8x512xf32> to vector<8x128xf32>
    %cst_180 = arith.constant 5.000000e-01 : f32
    %433 = vector.broadcast %cst_180 : f32 to vector<8x128xf32>
    %434 = arith.mulf %433, %432 : vector<8x128xf32>
    %435 = math.tanh %434 : vector<8x128xf32>
    %cst_181 = arith.constant 5.000000e-01 : f32
    %436 = vector.broadcast %cst_181 : f32 to vector<8x128xf32>
    %437 = arith.mulf %436, %435 : vector<8x128xf32>
    %cst_182 = arith.constant 5.000000e-01 : f32
    %438 = vector.broadcast %cst_182 : f32 to vector<8x128xf32>
    %439 = arith.addf %437, %438 : vector<8x128xf32>
    %440 = vector.extract_strided_slice %423 {offsets = [0, 256], sizes = [8, 128], strides = [1, 1]} : vector<8x512xf32> to vector<8x128xf32>
    %441 = math.tanh %440 : vector<8x128xf32>
    %442 = vector.extract_strided_slice %423 {offsets = [0, 384], sizes = [8, 128], strides = [1, 1]} : vector<8x512xf32> to vector<8x128xf32>
    %cst_183 = arith.constant 5.000000e-01 : f32
    %443 = vector.broadcast %cst_183 : f32 to vector<8x128xf32>
    %444 = arith.mulf %443, %442 : vector<8x128xf32>
    %445 = math.tanh %444 : vector<8x128xf32>
    %cst_184 = arith.constant 5.000000e-01 : f32
    %446 = vector.broadcast %cst_184 : f32 to vector<8x128xf32>
    %447 = arith.mulf %446, %445 : vector<8x128xf32>
    %cst_185 = arith.constant 5.000000e-01 : f32
    %448 = vector.broadcast %cst_185 : f32 to vector<8x128xf32>
    %449 = arith.addf %447, %448 : vector<8x128xf32>
    %450 = arith.mulf %439, %412 : vector<8x128xf32>
    %451 = arith.mulf %431, %441 : vector<8x128xf32>
    %452 = arith.addf %450, %451 : vector<8x128xf32>
    %453 = math.tanh %452 : vector<8x128xf32>
    %454 = arith.mulf %449, %453 : vector<8x128xf32>
    %455 = arith.index_cast %418 : i32 to index
    %c0_186 = arith.constant 0 : index
    %456 = vector.load %arg25[%455, %c0_186] : memref<64x128xf32, #tpu.memory_space<vmem>>, vector<8x128xf32>
    tpu.vector_store %arg25[%455, %c0_186], %454 {strides = array<i32>} : memref<64x128xf32, #tpu.memory_space<vmem>>, vector<8x128xf32>,
    %c3_i32_187 = arith.constant 3 : i32
    %c8_i32_188 = arith.constant 8 : i32
    %457 = arith.muli %c3_i32_187, %c8_i32_188 : i32
    %458 = tpu.assume_multiple %457, 8 : i32
    %459 = arith.index_cast %458 : i32 to index
    %c0_189 = arith.constant 0 : index
    %460 = vector.load %arg24[%459, %c0_189] : memref<64x512xf32, #tpu.memory_space<vmem>>, vector<8x512xf32>
    %c0_190 = arith.constant 0 : index
    %c0_191 = arith.constant 0 : index
    %461 = vector.load %arg7[%c0_190, %c0_191] : memref<128x512xf32, #tpu.memory_space<vmem>>, vector<128x512xf32>
    %cst_192 = arith.constant dense<0.000000e+00> : vector<8x512xf32>
    %462 = tpu.matmul %454, %461, %cst_192 {dimension_numbers = #tpu.dot_dimension_numbers<[1], [0], [0], [1], [0, 0, 1, 1], [], []>} : vector<8x128xf32>, vector<128x512xf32>, vector<8x512xf32> -> vector<8x512xf32>
    %463 = arith.addf %460, %462 : vector<8x512xf32>
    %464 = vector.extract_strided_slice %463 {offsets = [0, 0], sizes = [8, 128], strides = [1, 1]} : vector<8x512xf32> to vector<8x128xf32>
    %cst_193 = arith.constant 5.000000e-01 : f32
    %465 = vector.broadcast %cst_193 : f32 to vector<8x128xf32>
    %466 = arith.mulf %465, %464 : vector<8x128xf32>
    %467 = math.tanh %466 : vector<8x128xf32>
    %cst_194 = arith.constant 5.000000e-01 : f32
    %468 = vector.broadcast %cst_194 : f32 to vector<8x128xf32>
    %469 = arith.mulf %468, %467 : vector<8x128xf32>
    %cst_195 = arith.constant 5.000000e-01 : f32
    %470 = vector.broadcast %cst_195 : f32 to vector<8x128xf32>
    %471 = arith.addf %469, %470 : vector<8x128xf32>
    %472 = vector.extract_strided_slice %463 {offsets = [0, 128], sizes = [8, 128], strides = [1, 1]} : vector<8x512xf32> to vector<8x128xf32>
    %cst_196 = arith.constant 5.000000e-01 : f32
    %473 = vector.broadcast %cst_196 : f32 to vector<8x128xf32>
    %474 = arith.mulf %473, %472 : vector<8x128xf32>
    %475 = math.tanh %474 : vector<8x128xf32>
    %cst_197 = arith.constant 5.000000e-01 : f32
    %476 = vector.broadcast %cst_197 : f32 to vector<8x128xf32>
    %477 = arith.mulf %476, %475 : vector<8x128xf32>
    %cst_198 = arith.constant 5.000000e-01 : f32
    %478 = vector.broadcast %cst_198 : f32 to vector<8x128xf32>
    %479 = arith.addf %477, %478 : vector<8x128xf32>
    %480 = vector.extract_strided_slice %463 {offsets = [0, 256], sizes = [8, 128], strides = [1, 1]} : vector<8x512xf32> to vector<8x128xf32>
    %481 = math.tanh %480 : vector<8x128xf32>
    %482 = vector.extract_strided_slice %463 {offsets = [0, 384], sizes = [8, 128], strides = [1, 1]} : vector<8x512xf32> to vector<8x128xf32>
    %cst_199 = arith.constant 5.000000e-01 : f32
    %483 = vector.broadcast %cst_199 : f32 to vector<8x128xf32>
    %484 = arith.mulf %483, %482 : vector<8x128xf32>
    %485 = math.tanh %484 : vector<8x128xf32>
    %cst_200 = arith.constant 5.000000e-01 : f32
    %486 = vector.broadcast %cst_200 : f32 to vector<8x128xf32>
    %487 = arith.mulf %486, %485 : vector<8x128xf32>
    %cst_201 = arith.constant 5.000000e-01 : f32
    %488 = vector.broadcast %cst_201 : f32 to vector<8x128xf32>
    %489 = arith.addf %487, %488 : vector<8x128xf32>
    %490 = arith.mulf %479, %452 : vector<8x128xf32>
    %491 = arith.mulf %471, %481 : vector<8x128xf32>
    %492 = arith.addf %490, %491 : vector<8x128xf32>
    %493 = math.tanh %492 : vector<8x128xf32>
    %494 = arith.mulf %489, %493 : vector<8x128xf32>
    %495 = arith.index_cast %458 : i32 to index
    %c0_202 = arith.constant 0 : index
    %496 = vector.load %arg25[%495, %c0_202] : memref<64x128xf32, #tpu.memory_space<vmem>>, vector<8x128xf32>
    tpu.vector_store %arg25[%495, %c0_202], %494 {strides = array<i32>} : memref<64x128xf32, #tpu.memory_space<vmem>>, vector<8x128xf32>,
    %c4_i32_203 = arith.constant 4 : i32
    %c8_i32_204 = arith.constant 8 : i32
    %497 = arith.muli %c4_i32_203, %c8_i32_204 : i32
    %498 = tpu.assume_multiple %497, 8 : i32
    %499 = arith.index_cast %498 : i32 to index
    %c0_205 = arith.constant 0 : index
    %500 = vector.load %arg24[%499, %c0_205] : memref<64x512xf32, #tpu.memory_space<vmem>>, vector<8x512xf32>
    %c0_206 = arith.constant 0 : index
    %c0_207 = arith.constant 0 : index
    %501 = vector.load %arg7[%c0_206, %c0_207] : memref<128x512xf32, #tpu.memory_space<vmem>>, vector<128x512xf32>
    %cst_208 = arith.constant dense<0.000000e+00> : vector<8x512xf32>
    %502 = tpu.matmul %494, %501, %cst_208 {dimension_numbers = #tpu.dot_dimension_numbers<[1], [0], [0], [1], [0, 0, 1, 1], [], []>} : vector<8x128xf32>, vector<128x512xf32>, vector<8x512xf32> -> vector<8x512xf32>
    %503 = arith.addf %500, %502 : vector<8x512xf32>
    %504 = vector.extract_strided_slice %503 {offsets = [0, 0], sizes = [8, 128], strides = [1, 1]} : vector<8x512xf32> to vector<8x128xf32>
    %cst_209 = arith.constant 5.000000e-01 : f32
    %505 = vector.broadcast %cst_209 : f32 to vector<8x128xf32>
    %506 = arith.mulf %505, %504 : vector<8x128xf32>
    %507 = math.tanh %506 : vector<8x128xf32>
    %cst_210 = arith.constant 5.000000e-01 : f32
    %508 = vector.broadcast %cst_210 : f32 to vector<8x128xf32>
    %509 = arith.mulf %508, %507 : vector<8x128xf32>
    %cst_211 = arith.constant 5.000000e-01 : f32
    %510 = vector.broadcast %cst_211 : f32 to vector<8x128xf32>
    %511 = arith.addf %509, %510 : vector<8x128xf32>
    %512 = vector.extract_strided_slice %503 {offsets = [0, 128], sizes = [8, 128], strides = [1, 1]} : vector<8x512xf32> to vector<8x128xf32>
    %cst_212 = arith.constant 5.000000e-01 : f32
    %513 = vector.broadcast %cst_212 : f32 to vector<8x128xf32>
    %514 = arith.mulf %513, %512 : vector<8x128xf32>
    %515 = math.tanh %514 : vector<8x128xf32>
    %cst_213 = arith.constant 5.000000e-01 : f32
    %516 = vector.broadcast %cst_213 : f32 to vector<8x128xf32>
    %517 = arith.mulf %516, %515 : vector<8x128xf32>
    %cst_214 = arith.constant 5.000000e-01 : f32
    %518 = vector.broadcast %cst_214 : f32 to vector<8x128xf32>
    %519 = arith.addf %517, %518 : vector<8x128xf32>
    %520 = vector.extract_strided_slice %503 {offsets = [0, 256], sizes = [8, 128], strides = [1, 1]} : vector<8x512xf32> to vector<8x128xf32>
    %521 = math.tanh %520 : vector<8x128xf32>
    %522 = vector.extract_strided_slice %503 {offsets = [0, 384], sizes = [8, 128], strides = [1, 1]} : vector<8x512xf32> to vector<8x128xf32>
    %cst_215 = arith.constant 5.000000e-01 : f32
    %523 = vector.broadcast %cst_215 : f32 to vector<8x128xf32>
    %524 = arith.mulf %523, %522 : vector<8x128xf32>
    %525 = math.tanh %524 : vector<8x128xf32>
    %cst_216 = arith.constant 5.000000e-01 : f32
    %526 = vector.broadcast %cst_216 : f32 to vector<8x128xf32>
    %527 = arith.mulf %526, %525 : vector<8x128xf32>
    %cst_217 = arith.constant 5.000000e-01 : f32
    %528 = vector.broadcast %cst_217 : f32 to vector<8x128xf32>
    %529 = arith.addf %527, %528 : vector<8x128xf32>
    %530 = arith.mulf %519, %492 : vector<8x128xf32>
    %531 = arith.mulf %511, %521 : vector<8x128xf32>
    %532 = arith.addf %530, %531 : vector<8x128xf32>
    %533 = math.tanh %532 : vector<8x128xf32>
    %534 = arith.mulf %529, %533 : vector<8x128xf32>
    %535 = arith.index_cast %498 : i32 to index
    %c0_218 = arith.constant 0 : index
    %536 = vector.load %arg25[%535, %c0_218] : memref<64x128xf32, #tpu.memory_space<vmem>>, vector<8x128xf32>
    tpu.vector_store %arg25[%535, %c0_218], %534 {strides = array<i32>} : memref<64x128xf32, #tpu.memory_space<vmem>>, vector<8x128xf32>,
    %c5_i32_219 = arith.constant 5 : i32
    %c8_i32_220 = arith.constant 8 : i32
    %537 = arith.muli %c5_i32_219, %c8_i32_220 : i32
    %538 = tpu.assume_multiple %537, 8 : i32
    %539 = arith.index_cast %538 : i32 to index
    %c0_221 = arith.constant 0 : index
    %540 = vector.load %arg24[%539, %c0_221] : memref<64x512xf32, #tpu.memory_space<vmem>>, vector<8x512xf32>
    %c0_222 = arith.constant 0 : index
    %c0_223 = arith.constant 0 : index
    %541 = vector.load %arg7[%c0_222, %c0_223] : memref<128x512xf32, #tpu.memory_space<vmem>>, vector<128x512xf32>
    %cst_224 = arith.constant dense<0.000000e+00> : vector<8x512xf32>
    %542 = tpu.matmul %534, %541, %cst_224 {dimension_numbers = #tpu.dot_dimension_numbers<[1], [0], [0], [1], [0, 0, 1, 1], [], []>} : vector<8x128xf32>, vector<128x512xf32>, vector<8x512xf32> -> vector<8x512xf32>
    %543 = arith.addf %540, %542 : vector<8x512xf32>
    %544 = vector.extract_strided_slice %543 {offsets = [0, 0], sizes = [8, 128], strides = [1, 1]} : vector<8x512xf32> to vector<8x128xf32>
    %cst_225 = arith.constant 5.000000e-01 : f32
    %545 = vector.broadcast %cst_225 : f32 to vector<8x128xf32>
    %546 = arith.mulf %545, %544 : vector<8x128xf32>
    %547 = math.tanh %546 : vector<8x128xf32>
    %cst_226 = arith.constant 5.000000e-01 : f32
    %548 = vector.broadcast %cst_226 : f32 to vector<8x128xf32>
    %549 = arith.mulf %548, %547 : vector<8x128xf32>
    %cst_227 = arith.constant 5.000000e-01 : f32
    %550 = vector.broadcast %cst_227 : f32 to vector<8x128xf32>
    %551 = arith.addf %549, %550 : vector<8x128xf32>
    %552 = vector.extract_strided_slice %543 {offsets = [0, 128], sizes = [8, 128], strides = [1, 1]} : vector<8x512xf32> to vector<8x128xf32>
    %cst_228 = arith.constant 5.000000e-01 : f32
    %553 = vector.broadcast %cst_228 : f32 to vector<8x128xf32>
    %554 = arith.mulf %553, %552 : vector<8x128xf32>
    %555 = math.tanh %554 : vector<8x128xf32>
    %cst_229 = arith.constant 5.000000e-01 : f32
    %556 = vector.broadcast %cst_229 : f32 to vector<8x128xf32>
    %557 = arith.mulf %556, %555 : vector<8x128xf32>
    %cst_230 = arith.constant 5.000000e-01 : f32
    %558 = vector.broadcast %cst_230 : f32 to vector<8x128xf32>
    %559 = arith.addf %557, %558 : vector<8x128xf32>
    %560 = vector.extract_strided_slice %543 {offsets = [0, 256], sizes = [8, 128], strides = [1, 1]} : vector<8x512xf32> to vector<8x128xf32>
    %561 = math.tanh %560 : vector<8x128xf32>
    %562 = vector.extract_strided_slice %543 {offsets = [0, 384], sizes = [8, 128], strides = [1, 1]} : vector<8x512xf32> to vector<8x128xf32>
    %cst_231 = arith.constant 5.000000e-01 : f32
    %563 = vector.broadcast %cst_231 : f32 to vector<8x128xf32>
    %564 = arith.mulf %563, %562 : vector<8x128xf32>
    %565 = math.tanh %564 : vector<8x128xf32>
    %cst_232 = arith.constant 5.000000e-01 : f32
    %566 = vector.broadcast %cst_232 : f32 to vector<8x128xf32>
    %567 = arith.mulf %566, %565 : vector<8x128xf32>
    %cst_233 = arith.constant 5.000000e-01 : f32
    %568 = vector.broadcast %cst_233 : f32 to vector<8x128xf32>
    %569 = arith.addf %567, %568 : vector<8x128xf32>
    %570 = arith.mulf %559, %532 : vector<8x128xf32>
    %571 = arith.mulf %551, %561 : vector<8x128xf32>
    %572 = arith.addf %570, %571 : vector<8x128xf32>
    %573 = math.tanh %572 : vector<8x128xf32>
    %574 = arith.mulf %569, %573 : vector<8x128xf32>
    %575 = arith.index_cast %538 : i32 to index
    %c0_234 = arith.constant 0 : index
    %576 = vector.load %arg25[%575, %c0_234] : memref<64x128xf32, #tpu.memory_space<vmem>>, vector<8x128xf32>
    tpu.vector_store %arg25[%575, %c0_234], %574 {strides = array<i32>} : memref<64x128xf32, #tpu.memory_space<vmem>>, vector<8x128xf32>,
    %c6_i32_235 = arith.constant 6 : i32
    %c8_i32_236 = arith.constant 8 : i32
    %577 = arith.muli %c6_i32_235, %c8_i32_236 : i32
    %578 = tpu.assume_multiple %577, 8 : i32
    %579 = arith.index_cast %578 : i32 to index
    %c0_237 = arith.constant 0 : index
    %580 = vector.load %arg24[%579, %c0_237] : memref<64x512xf32, #tpu.memory_space<vmem>>, vector<8x512xf32>
    %c0_238 = arith.constant 0 : index
    %c0_239 = arith.constant 0 : index
    %581 = vector.load %arg7[%c0_238, %c0_239] : memref<128x512xf32, #tpu.memory_space<vmem>>, vector<128x512xf32>
    %cst_240 = arith.constant dense<0.000000e+00> : vector<8x512xf32>
    %582 = tpu.matmul %574, %581, %cst_240 {dimension_numbers = #tpu.dot_dimension_numbers<[1], [0], [0], [1], [0, 0, 1, 1], [], []>} : vector<8x128xf32>, vector<128x512xf32>, vector<8x512xf32> -> vector<8x512xf32>
    %583 = arith.addf %580, %582 : vector<8x512xf32>
    %584 = vector.extract_strided_slice %583 {offsets = [0, 0], sizes = [8, 128], strides = [1, 1]} : vector<8x512xf32> to vector<8x128xf32>
    %cst_241 = arith.constant 5.000000e-01 : f32
    %585 = vector.broadcast %cst_241 : f32 to vector<8x128xf32>
    %586 = arith.mulf %585, %584 : vector<8x128xf32>
    %587 = math.tanh %586 : vector<8x128xf32>
    %cst_242 = arith.constant 5.000000e-01 : f32
    %588 = vector.broadcast %cst_242 : f32 to vector<8x128xf32>
    %589 = arith.mulf %588, %587 : vector<8x128xf32>
    %cst_243 = arith.constant 5.000000e-01 : f32
    %590 = vector.broadcast %cst_243 : f32 to vector<8x128xf32>
    %591 = arith.addf %589, %590 : vector<8x128xf32>
    %592 = vector.extract_strided_slice %583 {offsets = [0, 128], sizes = [8, 128], strides = [1, 1]} : vector<8x512xf32> to vector<8x128xf32>
    %cst_244 = arith.constant 5.000000e-01 : f32
    %593 = vector.broadcast %cst_244 : f32 to vector<8x128xf32>
    %594 = arith.mulf %593, %592 : vector<8x128xf32>
    %595 = math.tanh %594 : vector<8x128xf32>
    %cst_245 = arith.constant 5.000000e-01 : f32
    %596 = vector.broadcast %cst_245 : f32 to vector<8x128xf32>
    %597 = arith.mulf %596, %595 : vector<8x128xf32>
    %cst_246 = arith.constant 5.000000e-01 : f32
    %598 = vector.broadcast %cst_246 : f32 to vector<8x128xf32>
    %599 = arith.addf %597, %598 : vector<8x128xf32>
    %600 = vector.extract_strided_slice %583 {offsets = [0, 256], sizes = [8, 128], strides = [1, 1]} : vector<8x512xf32> to vector<8x128xf32>
    %601 = math.tanh %600 : vector<8x128xf32>
    %602 = vector.extract_strided_slice %583 {offsets = [0, 384], sizes = [8, 128], strides = [1, 1]} : vector<8x512xf32> to vector<8x128xf32>
    %cst_247 = arith.constant 5.000000e-01 : f32
    %603 = vector.broadcast %cst_247 : f32 to vector<8x128xf32>
    %604 = arith.mulf %603, %602 : vector<8x128xf32>
    %605 = math.tanh %604 : vector<8x128xf32>
    %cst_248 = arith.constant 5.000000e-01 : f32
    %606 = vector.broadcast %cst_248 : f32 to vector<8x128xf32>
    %607 = arith.mulf %606, %605 : vector<8x128xf32>
    %cst_249 = arith.constant 5.000000e-01 : f32
    %608 = vector.broadcast %cst_249 : f32 to vector<8x128xf32>
    %609 = arith.addf %607, %608 : vector<8x128xf32>
    %610 = arith.mulf %599, %572 : vector<8x128xf32>
    %611 = arith.mulf %591, %601 : vector<8x128xf32>
    %612 = arith.addf %610, %611 : vector<8x128xf32>
    %613 = math.tanh %612 : vector<8x128xf32>
    %614 = arith.mulf %609, %613 : vector<8x128xf32>
    %615 = arith.index_cast %578 : i32 to index
    %c0_250 = arith.constant 0 : index
    %616 = vector.load %arg25[%615, %c0_250] : memref<64x128xf32, #tpu.memory_space<vmem>>, vector<8x128xf32>
    tpu.vector_store %arg25[%615, %c0_250], %614 {strides = array<i32>} : memref<64x128xf32, #tpu.memory_space<vmem>>, vector<8x128xf32>,
    %c7_i32_251 = arith.constant 7 : i32
    %c8_i32_252 = arith.constant 8 : i32
    %617 = arith.muli %c7_i32_251, %c8_i32_252 : i32
    %618 = tpu.assume_multiple %617, 8 : i32
    %619 = arith.index_cast %618 : i32 to index
    %c0_253 = arith.constant 0 : index
    %620 = vector.load %arg24[%619, %c0_253] : memref<64x512xf32, #tpu.memory_space<vmem>>, vector<8x512xf32>
    %c0_254 = arith.constant 0 : index
    %c0_255 = arith.constant 0 : index
    %621 = vector.load %arg7[%c0_254, %c0_255] : memref<128x512xf32, #tpu.memory_space<vmem>>, vector<128x512xf32>
    %cst_256 = arith.constant dense<0.000000e+00> : vector<8x512xf32>
    %622 = tpu.matmul %614, %621, %cst_256 {dimension_numbers = #tpu.dot_dimension_numbers<[1], [0], [0], [1], [0, 0, 1, 1], [], []>} : vector<8x128xf32>, vector<128x512xf32>, vector<8x512xf32> -> vector<8x512xf32>
    %623 = arith.addf %620, %622 : vector<8x512xf32>
    %624 = vector.extract_strided_slice %623 {offsets = [0, 0], sizes = [8, 128], strides = [1, 1]} : vector<8x512xf32> to vector<8x128xf32>
    %cst_257 = arith.constant 5.000000e-01 : f32
    %625 = vector.broadcast %cst_257 : f32 to vector<8x128xf32>
    %626 = arith.mulf %625, %624 : vector<8x128xf32>
    %627 = math.tanh %626 : vector<8x128xf32>
    %cst_258 = arith.constant 5.000000e-01 : f32
    %628 = vector.broadcast %cst_258 : f32 to vector<8x128xf32>
    %629 = arith.mulf %628, %627 : vector<8x128xf32>
    %cst_259 = arith.constant 5.000000e-01 : f32
    %630 = vector.broadcast %cst_259 : f32 to vector<8x128xf32>
    %631 = arith.addf %629, %630 : vector<8x128xf32>
    %632 = vector.extract_strided_slice %623 {offsets = [0, 128], sizes = [8, 128], strides = [1, 1]} : vector<8x512xf32> to vector<8x128xf32>
    %cst_260 = arith.constant 5.000000e-01 : f32
    %633 = vector.broadcast %cst_260 : f32 to vector<8x128xf32>
    %634 = arith.mulf %633, %632 : vector<8x128xf32>
    %635 = math.tanh %634 : vector<8x128xf32>
    %cst_261 = arith.constant 5.000000e-01 : f32
    %636 = vector.broadcast %cst_261 : f32 to vector<8x128xf32>
    %637 = arith.mulf %636, %635 : vector<8x128xf32>
    %cst_262 = arith.constant 5.000000e-01 : f32
    %638 = vector.broadcast %cst_262 : f32 to vector<8x128xf32>
    %639 = arith.addf %637, %638 : vector<8x128xf32>
    %640 = vector.extract_strided_slice %623 {offsets = [0, 256], sizes = [8, 128], strides = [1, 1]} : vector<8x512xf32> to vector<8x128xf32>
    %641 = math.tanh %640 : vector<8x128xf32>
    %642 = vector.extract_strided_slice %623 {offsets = [0, 384], sizes = [8, 128], strides = [1, 1]} : vector<8x512xf32> to vector<8x128xf32>
    %cst_263 = arith.constant 5.000000e-01 : f32
    %643 = vector.broadcast %cst_263 : f32 to vector<8x128xf32>
    %644 = arith.mulf %643, %642 : vector<8x128xf32>
    %645 = math.tanh %644 : vector<8x128xf32>
    %cst_264 = arith.constant 5.000000e-01 : f32
    %646 = vector.broadcast %cst_264 : f32 to vector<8x128xf32>
    %647 = arith.mulf %646, %645 : vector<8x128xf32>
    %cst_265 = arith.constant 5.000000e-01 : f32
    %648 = vector.broadcast %cst_265 : f32 to vector<8x128xf32>
    %649 = arith.addf %647, %648 : vector<8x128xf32>
    %650 = arith.mulf %639, %612 : vector<8x128xf32>
    %651 = arith.mulf %631, %641 : vector<8x128xf32>
    %652 = arith.addf %650, %651 : vector<8x128xf32>
    %653 = math.tanh %652 : vector<8x128xf32>
    %654 = arith.mulf %649, %653 : vector<8x128xf32>
    %655 = arith.index_cast %618 : i32 to index
    %c0_266 = arith.constant 0 : index
    %656 = vector.load %arg25[%655, %c0_266] : memref<64x128xf32, #tpu.memory_space<vmem>>, vector<8x128xf32>
    tpu.vector_store %arg25[%655, %c0_266], %654 {strides = array<i32>} : memref<64x128xf32, #tpu.memory_space<vmem>>, vector<8x128xf32>,
    %c8_i32_267 = arith.constant 8 : i32
    %c0_268 = arith.constant 0 : index
    %c0_269 = arith.constant 0 : index
    %657 = vector.load %arg25[%c0_268, %c0_269] : memref<64x128xf32, #tpu.memory_space<vmem>>, vector<64x128xf32>
    %c0_270 = arith.constant 0 : index
    %c0_271 = arith.constant 0 : index
    %658 = vector.load %arg9[%c0_270, %c0_271] : memref<128x512xf32, #tpu.memory_space<vmem>>, vector<128x512xf32>
    %cst_272 = arith.constant dense<0.000000e+00> : vector<64x512xf32>
    %659 = tpu.matmul %657, %658, %cst_272 {dimension_numbers = #tpu.dot_dimension_numbers<[1], [0], [0], [1], [0, 0, 1, 1], [], []>} : vector<64x128xf32>, vector<128x512xf32>, vector<64x512xf32> -> vector<64x512xf32>
    %c0_273 = arith.constant 0 : index
    %c0_274 = arith.constant 0 : index
    %660 = vector.load %arg11[%c0_273, %c0_274] : memref<1x512xf32, #tpu.memory_space<vmem>>, vector<1x512xf32>
    %661 = vector.broadcast %660 : vector<1x512xf32> to vector<64x512xf32>
    %662 = arith.addf %659, %661 : vector<64x512xf32>
    %c0_275 = arith.constant 0 : index
    %c0_276 = arith.constant 0 : index
    %663 = vector.load %arg24[%c0_275, %c0_276] : memref<64x512xf32, #tpu.memory_space<vmem>>, vector<64x512xf32>
    tpu.vector_store %arg24[%c0_275, %c0_276], %662 {strides = array<i32>} : memref<64x512xf32, #tpu.memory_space<vmem>>, vector<64x512xf32>,
    %cst_277 = arith.constant 0.000000e+00 : f32
    %664 = vector.broadcast %cst_277 : f32 to vector<8x128xf32>
    %c0_i32_278 = arith.constant 0 : i32
    %c8_i32_279 = arith.constant 8 : i32
    %665 = arith.muli %c0_i32_278, %c8_i32_279 : i32
    %666 = tpu.assume_multiple %665, 8 : i32
    %667 = arith.index_cast %666 : i32 to index
    %c0_280 = arith.constant 0 : index
    %668 = vector.load %arg24[%667, %c0_280] : memref<64x512xf32, #tpu.memory_space<vmem>>, vector<8x512xf32>
    %c0_281 = arith.constant 0 : index
    %c0_282 = arith.constant 0 : index
    %669 = vector.load %arg10[%c0_281, %c0_282] : memref<128x512xf32, #tpu.memory_space<vmem>>, vector<128x512xf32>
    %cst_283 = arith.constant dense<0.000000e+00> : vector<8x512xf32>
    %670 = tpu.matmul %664, %669, %cst_283 {dimension_numbers = #tpu.dot_dimension_numbers<[1], [0], [0], [1], [0, 0, 1, 1], [], []>} : vector<8x128xf32>, vector<128x512xf32>, vector<8x512xf32> -> vector<8x512xf32>
    %671 = arith.addf %668, %670 : vector<8x512xf32>
    %672 = vector.extract_strided_slice %671 {offsets = [0, 0], sizes = [8, 128], strides = [1, 1]} : vector<8x512xf32> to vector<8x128xf32>
    %cst_284 = arith.constant 5.000000e-01 : f32
    %673 = vector.broadcast %cst_284 : f32 to vector<8x128xf32>
    %674 = arith.mulf %673, %672 : vector<8x128xf32>
    %675 = math.tanh %674 : vector<8x128xf32>
    %cst_285 = arith.constant 5.000000e-01 : f32
    %676 = vector.broadcast %cst_285 : f32 to vector<8x128xf32>
    %677 = arith.mulf %676, %675 : vector<8x128xf32>
    %cst_286 = arith.constant 5.000000e-01 : f32
    %678 = vector.broadcast %cst_286 : f32 to vector<8x128xf32>
    %679 = arith.addf %677, %678 : vector<8x128xf32>
    %680 = vector.extract_strided_slice %671 {offsets = [0, 128], sizes = [8, 128], strides = [1, 1]} : vector<8x512xf32> to vector<8x128xf32>
    %cst_287 = arith.constant 5.000000e-01 : f32
    %681 = vector.broadcast %cst_287 : f32 to vector<8x128xf32>
    %682 = arith.mulf %681, %680 : vector<8x128xf32>
    %683 = math.tanh %682 : vector<8x128xf32>
    %cst_288 = arith.constant 5.000000e-01 : f32
    %684 = vector.broadcast %cst_288 : f32 to vector<8x128xf32>
    %685 = arith.mulf %684, %683 : vector<8x128xf32>
    %cst_289 = arith.constant 5.000000e-01 : f32
    %686 = vector.broadcast %cst_289 : f32 to vector<8x128xf32>
    %687 = arith.addf %685, %686 : vector<8x128xf32>
    %688 = vector.extract_strided_slice %671 {offsets = [0, 256], sizes = [8, 128], strides = [1, 1]} : vector<8x512xf32> to vector<8x128xf32>
    %689 = math.tanh %688 : vector<8x128xf32>
    %690 = vector.extract_strided_slice %671 {offsets = [0, 384], sizes = [8, 128], strides = [1, 1]} : vector<8x512xf32> to vector<8x128xf32>
    %cst_290 = arith.constant 5.000000e-01 : f32
    %691 = vector.broadcast %cst_290 : f32 to vector<8x128xf32>
    %692 = arith.mulf %691, %690 : vector<8x128xf32>
    %693 = math.tanh %692 : vector<8x128xf32>
    %cst_291 = arith.constant 5.000000e-01 : f32
    %694 = vector.broadcast %cst_291 : f32 to vector<8x128xf32>
    %695 = arith.mulf %694, %693 : vector<8x128xf32>
    %cst_292 = arith.constant 5.000000e-01 : f32
    %696 = vector.broadcast %cst_292 : f32 to vector<8x128xf32>
    %697 = arith.addf %695, %696 : vector<8x128xf32>
    %698 = arith.mulf %687, %664 : vector<8x128xf32>
    %699 = arith.mulf %679, %689 : vector<8x128xf32>
    %700 = arith.addf %698, %699 : vector<8x128xf32>
    %701 = math.tanh %700 : vector<8x128xf32>
    %702 = arith.mulf %697, %701 : vector<8x128xf32>
    %703 = arith.index_cast %666 : i32 to index
    %c0_293 = arith.constant 0 : index
    %704 = vector.load %arg25[%703, %c0_293] : memref<64x128xf32, #tpu.memory_space<vmem>>, vector<8x128xf32>
    tpu.vector_store %arg25[%703, %c0_293], %702 {strides = array<i32>} : memref<64x128xf32, #tpu.memory_space<vmem>>, vector<8x128xf32>,
    %c1_i32_294 = arith.constant 1 : i32
    %c8_i32_295 = arith.constant 8 : i32
    %705 = arith.muli %c1_i32_294, %c8_i32_295 : i32
    %706 = tpu.assume_multiple %705, 8 : i32
    %707 = arith.index_cast %706 : i32 to index
    %c0_296 = arith.constant 0 : index
    %708 = vector.load %arg24[%707, %c0_296] : memref<64x512xf32, #tpu.memory_space<vmem>>, vector<8x512xf32>
    %c0_297 = arith.constant 0 : index
    %c0_298 = arith.constant 0 : index
    %709 = vector.load %arg10[%c0_297, %c0_298] : memref<128x512xf32, #tpu.memory_space<vmem>>, vector<128x512xf32>
    %cst_299 = arith.constant dense<0.000000e+00> : vector<8x512xf32>
    %710 = tpu.matmul %702, %709, %cst_299 {dimension_numbers = #tpu.dot_dimension_numbers<[1], [0], [0], [1], [0, 0, 1, 1], [], []>} : vector<8x128xf32>, vector<128x512xf32>, vector<8x512xf32> -> vector<8x512xf32>
    %711 = arith.addf %708, %710 : vector<8x512xf32>
    %712 = vector.extract_strided_slice %711 {offsets = [0, 0], sizes = [8, 128], strides = [1, 1]} : vector<8x512xf32> to vector<8x128xf32>
    %cst_300 = arith.constant 5.000000e-01 : f32
    %713 = vector.broadcast %cst_300 : f32 to vector<8x128xf32>
    %714 = arith.mulf %713, %712 : vector<8x128xf32>
    %715 = math.tanh %714 : vector<8x128xf32>
    %cst_301 = arith.constant 5.000000e-01 : f32
    %716 = vector.broadcast %cst_301 : f32 to vector<8x128xf32>
    %717 = arith.mulf %716, %715 : vector<8x128xf32>
    %cst_302 = arith.constant 5.000000e-01 : f32
    %718 = vector.broadcast %cst_302 : f32 to vector<8x128xf32>
    %719 = arith.addf %717, %718 : vector<8x128xf32>
    %720 = vector.extract_strided_slice %711 {offsets = [0, 128], sizes = [8, 128], strides = [1, 1]} : vector<8x512xf32> to vector<8x128xf32>
    %cst_303 = arith.constant 5.000000e-01 : f32
    %721 = vector.broadcast %cst_303 : f32 to vector<8x128xf32>
    %722 = arith.mulf %721, %720 : vector<8x128xf32>
    %723 = math.tanh %722 : vector<8x128xf32>
    %cst_304 = arith.constant 5.000000e-01 : f32
    %724 = vector.broadcast %cst_304 : f32 to vector<8x128xf32>
    %725 = arith.mulf %724, %723 : vector<8x128xf32>
    %cst_305 = arith.constant 5.000000e-01 : f32
    %726 = vector.broadcast %cst_305 : f32 to vector<8x128xf32>
    %727 = arith.addf %725, %726 : vector<8x128xf32>
    %728 = vector.extract_strided_slice %711 {offsets = [0, 256], sizes = [8, 128], strides = [1, 1]} : vector<8x512xf32> to vector<8x128xf32>
    %729 = math.tanh %728 : vector<8x128xf32>
    %730 = vector.extract_strided_slice %711 {offsets = [0, 384], sizes = [8, 128], strides = [1, 1]} : vector<8x512xf32> to vector<8x128xf32>
    %cst_306 = arith.constant 5.000000e-01 : f32
    %731 = vector.broadcast %cst_306 : f32 to vector<8x128xf32>
    %732 = arith.mulf %731, %730 : vector<8x128xf32>
    %733 = math.tanh %732 : vector<8x128xf32>
    %cst_307 = arith.constant 5.000000e-01 : f32
    %734 = vector.broadcast %cst_307 : f32 to vector<8x128xf32>
    %735 = arith.mulf %734, %733 : vector<8x128xf32>
    %cst_308 = arith.constant 5.000000e-01 : f32
    %736 = vector.broadcast %cst_308 : f32 to vector<8x128xf32>
    %737 = arith.addf %735, %736 : vector<8x128xf32>
    %738 = arith.mulf %727, %700 : vector<8x128xf32>
    %739 = arith.mulf %719, %729 : vector<8x128xf32>
    %740 = arith.addf %738, %739 : vector<8x128xf32>
    %741 = math.tanh %740 : vector<8x128xf32>
    %742 = arith.mulf %737, %741 : vector<8x128xf32>
    %743 = arith.index_cast %706 : i32 to index
    %c0_309 = arith.constant 0 : index
    %744 = vector.load %arg25[%743, %c0_309] : memref<64x128xf32, #tpu.memory_space<vmem>>, vector<8x128xf32>
    tpu.vector_store %arg25[%743, %c0_309], %742 {strides = array<i32>} : memref<64x128xf32, #tpu.memory_space<vmem>>, vector<8x128xf32>,
    %c2_i32_310 = arith.constant 2 : i32
    %c8_i32_311 = arith.constant 8 : i32
    %745 = arith.muli %c2_i32_310, %c8_i32_311 : i32
    %746 = tpu.assume_multiple %745, 8 : i32
    %747 = arith.index_cast %746 : i32 to index
    %c0_312 = arith.constant 0 : index
    %748 = vector.load %arg24[%747, %c0_312] : memref<64x512xf32, #tpu.memory_space<vmem>>, vector<8x512xf32>
    %c0_313 = arith.constant 0 : index
    %c0_314 = arith.constant 0 : index
    %749 = vector.load %arg10[%c0_313, %c0_314] : memref<128x512xf32, #tpu.memory_space<vmem>>, vector<128x512xf32>
    %cst_315 = arith.constant dense<0.000000e+00> : vector<8x512xf32>
    %750 = tpu.matmul %742, %749, %cst_315 {dimension_numbers = #tpu.dot_dimension_numbers<[1], [0], [0], [1], [0, 0, 1, 1], [], []>} : vector<8x128xf32>, vector<128x512xf32>, vector<8x512xf32> -> vector<8x512xf32>
    %751 = arith.addf %748, %750 : vector<8x512xf32>
    %752 = vector.extract_strided_slice %751 {offsets = [0, 0], sizes = [8, 128], strides = [1, 1]} : vector<8x512xf32> to vector<8x128xf32>
    %cst_316 = arith.constant 5.000000e-01 : f32
    %753 = vector.broadcast %cst_316 : f32 to vector<8x128xf32>
    %754 = arith.mulf %753, %752 : vector<8x128xf32>
    %755 = math.tanh %754 : vector<8x128xf32>
    %cst_317 = arith.constant 5.000000e-01 : f32
    %756 = vector.broadcast %cst_317 : f32 to vector<8x128xf32>
    %757 = arith.mulf %756, %755 : vector<8x128xf32>
    %cst_318 = arith.constant 5.000000e-01 : f32
    %758 = vector.broadcast %cst_318 : f32 to vector<8x128xf32>
    %759 = arith.addf %757, %758 : vector<8x128xf32>
    %760 = vector.extract_strided_slice %751 {offsets = [0, 128], sizes = [8, 128], strides = [1, 1]} : vector<8x512xf32> to vector<8x128xf32>
    %cst_319 = arith.constant 5.000000e-01 : f32
    %761 = vector.broadcast %cst_319 : f32 to vector<8x128xf32>
    %762 = arith.mulf %761, %760 : vector<8x128xf32>
    %763 = math.tanh %762 : vector<8x128xf32>
    %cst_320 = arith.constant 5.000000e-01 : f32
    %764 = vector.broadcast %cst_320 : f32 to vector<8x128xf32>
    %765 = arith.mulf %764, %763 : vector<8x128xf32>
    %cst_321 = arith.constant 5.000000e-01 : f32
    %766 = vector.broadcast %cst_321 : f32 to vector<8x128xf32>
    %767 = arith.addf %765, %766 : vector<8x128xf32>
    %768 = vector.extract_strided_slice %751 {offsets = [0, 256], sizes = [8, 128], strides = [1, 1]} : vector<8x512xf32> to vector<8x128xf32>
    %769 = math.tanh %768 : vector<8x128xf32>
    %770 = vector.extract_strided_slice %751 {offsets = [0, 384], sizes = [8, 128], strides = [1, 1]} : vector<8x512xf32> to vector<8x128xf32>
    %cst_322 = arith.constant 5.000000e-01 : f32
    %771 = vector.broadcast %cst_322 : f32 to vector<8x128xf32>
    %772 = arith.mulf %771, %770 : vector<8x128xf32>
    %773 = math.tanh %772 : vector<8x128xf32>
    %cst_323 = arith.constant 5.000000e-01 : f32
    %774 = vector.broadcast %cst_323 : f32 to vector<8x128xf32>
    %775 = arith.mulf %774, %773 : vector<8x128xf32>
    %cst_324 = arith.constant 5.000000e-01 : f32
    %776 = vector.broadcast %cst_324 : f32 to vector<8x128xf32>
    %777 = arith.addf %775, %776 : vector<8x128xf32>
    %778 = arith.mulf %767, %740 : vector<8x128xf32>
    %779 = arith.mulf %759, %769 : vector<8x128xf32>
    %780 = arith.addf %778, %779 : vector<8x128xf32>
    %781 = math.tanh %780 : vector<8x128xf32>
    %782 = arith.mulf %777, %781 : vector<8x128xf32>
    %783 = arith.index_cast %746 : i32 to index
    %c0_325 = arith.constant 0 : index
    %784 = vector.load %arg25[%783, %c0_325] : memref<64x128xf32, #tpu.memory_space<vmem>>, vector<8x128xf32>
    tpu.vector_store %arg25[%783, %c0_325], %782 {strides = array<i32>} : memref<64x128xf32, #tpu.memory_space<vmem>>, vector<8x128xf32>,
    %c3_i32_326 = arith.constant 3 : i32
    %c8_i32_327 = arith.constant 8 : i32
    %785 = arith.muli %c3_i32_326, %c8_i32_327 : i32
    %786 = tpu.assume_multiple %785, 8 : i32
    %787 = arith.index_cast %786 : i32 to index
    %c0_328 = arith.constant 0 : index
    %788 = vector.load %arg24[%787, %c0_328] : memref<64x512xf32, #tpu.memory_space<vmem>>, vector<8x512xf32>
    %c0_329 = arith.constant 0 : index
    %c0_330 = arith.constant 0 : index
    %789 = vector.load %arg10[%c0_329, %c0_330] : memref<128x512xf32, #tpu.memory_space<vmem>>, vector<128x512xf32>
    %cst_331 = arith.constant dense<0.000000e+00> : vector<8x512xf32>
    %790 = tpu.matmul %782, %789, %cst_331 {dimension_numbers = #tpu.dot_dimension_numbers<[1], [0], [0], [1], [0, 0, 1, 1], [], []>} : vector<8x128xf32>, vector<128x512xf32>, vector<8x512xf32> -> vector<8x512xf32>
    %791 = arith.addf %788, %790 : vector<8x512xf32>
    %792 = vector.extract_strided_slice %791 {offsets = [0, 0], sizes = [8, 128], strides = [1, 1]} : vector<8x512xf32> to vector<8x128xf32>
    %cst_332 = arith.constant 5.000000e-01 : f32
    %793 = vector.broadcast %cst_332 : f32 to vector<8x128xf32>
    %794 = arith.mulf %793, %792 : vector<8x128xf32>
    %795 = math.tanh %794 : vector<8x128xf32>
    %cst_333 = arith.constant 5.000000e-01 : f32
    %796 = vector.broadcast %cst_333 : f32 to vector<8x128xf32>
    %797 = arith.mulf %796, %795 : vector<8x128xf32>
    %cst_334 = arith.constant 5.000000e-01 : f32
    %798 = vector.broadcast %cst_334 : f32 to vector<8x128xf32>
    %799 = arith.addf %797, %798 : vector<8x128xf32>
    %800 = vector.extract_strided_slice %791 {offsets = [0, 128], sizes = [8, 128], strides = [1, 1]} : vector<8x512xf32> to vector<8x128xf32>
    %cst_335 = arith.constant 5.000000e-01 : f32
    %801 = vector.broadcast %cst_335 : f32 to vector<8x128xf32>
    %802 = arith.mulf %801, %800 : vector<8x128xf32>
    %803 = math.tanh %802 : vector<8x128xf32>
    %cst_336 = arith.constant 5.000000e-01 : f32
    %804 = vector.broadcast %cst_336 : f32 to vector<8x128xf32>
    %805 = arith.mulf %804, %803 : vector<8x128xf32>
    %cst_337 = arith.constant 5.000000e-01 : f32
    %806 = vector.broadcast %cst_337 : f32 to vector<8x128xf32>
    %807 = arith.addf %805, %806 : vector<8x128xf32>
    %808 = vector.extract_strided_slice %791 {offsets = [0, 256], sizes = [8, 128], strides = [1, 1]} : vector<8x512xf32> to vector<8x128xf32>
    %809 = math.tanh %808 : vector<8x128xf32>
    %810 = vector.extract_strided_slice %791 {offsets = [0, 384], sizes = [8, 128], strides = [1, 1]} : vector<8x512xf32> to vector<8x128xf32>
    %cst_338 = arith.constant 5.000000e-01 : f32
    %811 = vector.broadcast %cst_338 : f32 to vector<8x128xf32>
    %812 = arith.mulf %811, %810 : vector<8x128xf32>
    %813 = math.tanh %812 : vector<8x128xf32>
    %cst_339 = arith.constant 5.000000e-01 : f32
    %814 = vector.broadcast %cst_339 : f32 to vector<8x128xf32>
    %815 = arith.mulf %814, %813 : vector<8x128xf32>
    %cst_340 = arith.constant 5.000000e-01 : f32
    %816 = vector.broadcast %cst_340 : f32 to vector<8x128xf32>
    %817 = arith.addf %815, %816 : vector<8x128xf32>
    %818 = arith.mulf %807, %780 : vector<8x128xf32>
    %819 = arith.mulf %799, %809 : vector<8x128xf32>
    %820 = arith.addf %818, %819 : vector<8x128xf32>
    %821 = math.tanh %820 : vector<8x128xf32>
    %822 = arith.mulf %817, %821 : vector<8x128xf32>
    %823 = arith.index_cast %786 : i32 to index
    %c0_341 = arith.constant 0 : index
    %824 = vector.load %arg25[%823, %c0_341] : memref<64x128xf32, #tpu.memory_space<vmem>>, vector<8x128xf32>
    tpu.vector_store %arg25[%823, %c0_341], %822 {strides = array<i32>} : memref<64x128xf32, #tpu.memory_space<vmem>>, vector<8x128xf32>,
    %c4_i32_342 = arith.constant 4 : i32
    %c8_i32_343 = arith.constant 8 : i32
    %825 = arith.muli %c4_i32_342, %c8_i32_343 : i32
    %826 = tpu.assume_multiple %825, 8 : i32
    %827 = arith.index_cast %826 : i32 to index
    %c0_344 = arith.constant 0 : index
    %828 = vector.load %arg24[%827, %c0_344] : memref<64x512xf32, #tpu.memory_space<vmem>>, vector<8x512xf32>
    %c0_345 = arith.constant 0 : index
    %c0_346 = arith.constant 0 : index
    %829 = vector.load %arg10[%c0_345, %c0_346] : memref<128x512xf32, #tpu.memory_space<vmem>>, vector<128x512xf32>
    %cst_347 = arith.constant dense<0.000000e+00> : vector<8x512xf32>
    %830 = tpu.matmul %822, %829, %cst_347 {dimension_numbers = #tpu.dot_dimension_numbers<[1], [0], [0], [1], [0, 0, 1, 1], [], []>} : vector<8x128xf32>, vector<128x512xf32>, vector<8x512xf32> -> vector<8x512xf32>
    %831 = arith.addf %828, %830 : vector<8x512xf32>
    %832 = vector.extract_strided_slice %831 {offsets = [0, 0], sizes = [8, 128], strides = [1, 1]} : vector<8x512xf32> to vector<8x128xf32>
    %cst_348 = arith.constant 5.000000e-01 : f32
    %833 = vector.broadcast %cst_348 : f32 to vector<8x128xf32>
    %834 = arith.mulf %833, %832 : vector<8x128xf32>
    %835 = math.tanh %834 : vector<8x128xf32>
    %cst_349 = arith.constant 5.000000e-01 : f32
    %836 = vector.broadcast %cst_349 : f32 to vector<8x128xf32>
    %837 = arith.mulf %836, %835 : vector<8x128xf32>
    %cst_350 = arith.constant 5.000000e-01 : f32
    %838 = vector.broadcast %cst_350 : f32 to vector<8x128xf32>
    %839 = arith.addf %837, %838 : vector<8x128xf32>
    %840 = vector.extract_strided_slice %831 {offsets = [0, 128], sizes = [8, 128], strides = [1, 1]} : vector<8x512xf32> to vector<8x128xf32>
    %cst_351 = arith.constant 5.000000e-01 : f32
    %841 = vector.broadcast %cst_351 : f32 to vector<8x128xf32>
    %842 = arith.mulf %841, %840 : vector<8x128xf32>
    %843 = math.tanh %842 : vector<8x128xf32>
    %cst_352 = arith.constant 5.000000e-01 : f32
    %844 = vector.broadcast %cst_352 : f32 to vector<8x128xf32>
    %845 = arith.mulf %844, %843 : vector<8x128xf32>
    %cst_353 = arith.constant 5.000000e-01 : f32
    %846 = vector.broadcast %cst_353 : f32 to vector<8x128xf32>
    %847 = arith.addf %845, %846 : vector<8x128xf32>
    %848 = vector.extract_strided_slice %831 {offsets = [0, 256], sizes = [8, 128], strides = [1, 1]} : vector<8x512xf32> to vector<8x128xf32>
    %849 = math.tanh %848 : vector<8x128xf32>
    %850 = vector.extract_strided_slice %831 {offsets = [0, 384], sizes = [8, 128], strides = [1, 1]} : vector<8x512xf32> to vector<8x128xf32>
    %cst_354 = arith.constant 5.000000e-01 : f32
    %851 = vector.broadcast %cst_354 : f32 to vector<8x128xf32>
    %852 = arith.mulf %851, %850 : vector<8x128xf32>
    %853 = math.tanh %852 : vector<8x128xf32>
    %cst_355 = arith.constant 5.000000e-01 : f32
    %854 = vector.broadcast %cst_355 : f32 to vector<8x128xf32>
    %855 = arith.mulf %854, %853 : vector<8x128xf32>
    %cst_356 = arith.constant 5.000000e-01 : f32
    %856 = vector.broadcast %cst_356 : f32 to vector<8x128xf32>
    %857 = arith.addf %855, %856 : vector<8x128xf32>
    %858 = arith.mulf %847, %820 : vector<8x128xf32>
    %859 = arith.mulf %839, %849 : vector<8x128xf32>
    %860 = arith.addf %858, %859 : vector<8x128xf32>
    %861 = math.tanh %860 : vector<8x128xf32>
    %862 = arith.mulf %857, %861 : vector<8x128xf32>
    %863 = arith.index_cast %826 : i32 to index
    %c0_357 = arith.constant 0 : index
    %864 = vector.load %arg25[%863, %c0_357] : memref<64x128xf32, #tpu.memory_space<vmem>>, vector<8x128xf32>
    tpu.vector_store %arg25[%863, %c0_357], %862 {strides = array<i32>} : memref<64x128xf32, #tpu.memory_space<vmem>>, vector<8x128xf32>,
    %c5_i32_358 = arith.constant 5 : i32
    %c8_i32_359 = arith.constant 8 : i32
    %865 = arith.muli %c5_i32_358, %c8_i32_359 : i32
    %866 = tpu.assume_multiple %865, 8 : i32
    %867 = arith.index_cast %866 : i32 to index
    %c0_360 = arith.constant 0 : index
    %868 = vector.load %arg24[%867, %c0_360] : memref<64x512xf32, #tpu.memory_space<vmem>>, vector<8x512xf32>
    %c0_361 = arith.constant 0 : index
    %c0_362 = arith.constant 0 : index
    %869 = vector.load %arg10[%c0_361, %c0_362] : memref<128x512xf32, #tpu.memory_space<vmem>>, vector<128x512xf32>
    %cst_363 = arith.constant dense<0.000000e+00> : vector<8x512xf32>
    %870 = tpu.matmul %862, %869, %cst_363 {dimension_numbers = #tpu.dot_dimension_numbers<[1], [0], [0], [1], [0, 0, 1, 1], [], []>} : vector<8x128xf32>, vector<128x512xf32>, vector<8x512xf32> -> vector<8x512xf32>
    %871 = arith.addf %868, %870 : vector<8x512xf32>
    %872 = vector.extract_strided_slice %871 {offsets = [0, 0], sizes = [8, 128], strides = [1, 1]} : vector<8x512xf32> to vector<8x128xf32>
    %cst_364 = arith.constant 5.000000e-01 : f32
    %873 = vector.broadcast %cst_364 : f32 to vector<8x128xf32>
    %874 = arith.mulf %873, %872 : vector<8x128xf32>
    %875 = math.tanh %874 : vector<8x128xf32>
    %cst_365 = arith.constant 5.000000e-01 : f32
    %876 = vector.broadcast %cst_365 : f32 to vector<8x128xf32>
    %877 = arith.mulf %876, %875 : vector<8x128xf32>
    %cst_366 = arith.constant 5.000000e-01 : f32
    %878 = vector.broadcast %cst_366 : f32 to vector<8x128xf32>
    %879 = arith.addf %877, %878 : vector<8x128xf32>
    %880 = vector.extract_strided_slice %871 {offsets = [0, 128], sizes = [8, 128], strides = [1, 1]} : vector<8x512xf32> to vector<8x128xf32>
    %cst_367 = arith.constant 5.000000e-01 : f32
    %881 = vector.broadcast %cst_367 : f32 to vector<8x128xf32>
    %882 = arith.mulf %881, %880 : vector<8x128xf32>
    %883 = math.tanh %882 : vector<8x128xf32>
    %cst_368 = arith.constant 5.000000e-01 : f32
    %884 = vector.broadcast %cst_368 : f32 to vector<8x128xf32>
    %885 = arith.mulf %884, %883 : vector<8x128xf32>
    %cst_369 = arith.constant 5.000000e-01 : f32
    %886 = vector.broadcast %cst_369 : f32 to vector<8x128xf32>
    %887 = arith.addf %885, %886 : vector<8x128xf32>
    %888 = vector.extract_strided_slice %871 {offsets = [0, 256], sizes = [8, 128], strides = [1, 1]} : vector<8x512xf32> to vector<8x128xf32>
    %889 = math.tanh %888 : vector<8x128xf32>
    %890 = vector.extract_strided_slice %871 {offsets = [0, 384], sizes = [8, 128], strides = [1, 1]} : vector<8x512xf32> to vector<8x128xf32>
    %cst_370 = arith.constant 5.000000e-01 : f32
    %891 = vector.broadcast %cst_370 : f32 to vector<8x128xf32>
    %892 = arith.mulf %891, %890 : vector<8x128xf32>
    %893 = math.tanh %892 : vector<8x128xf32>
    %cst_371 = arith.constant 5.000000e-01 : f32
    %894 = vector.broadcast %cst_371 : f32 to vector<8x128xf32>
    %895 = arith.mulf %894, %893 : vector<8x128xf32>
    %cst_372 = arith.constant 5.000000e-01 : f32
    %896 = vector.broadcast %cst_372 : f32 to vector<8x128xf32>
    %897 = arith.addf %895, %896 : vector<8x128xf32>
    %898 = arith.mulf %887, %860 : vector<8x128xf32>
    %899 = arith.mulf %879, %889 : vector<8x128xf32>
    %900 = arith.addf %898, %899 : vector<8x128xf32>
    %901 = math.tanh %900 : vector<8x128xf32>
    %902 = arith.mulf %897, %901 : vector<8x128xf32>
    %903 = arith.index_cast %866 : i32 to index
    %c0_373 = arith.constant 0 : index
    %904 = vector.load %arg25[%903, %c0_373] : memref<64x128xf32, #tpu.memory_space<vmem>>, vector<8x128xf32>
    tpu.vector_store %arg25[%903, %c0_373], %902 {strides = array<i32>} : memref<64x128xf32, #tpu.memory_space<vmem>>, vector<8x128xf32>,
    %c6_i32_374 = arith.constant 6 : i32
    %c8_i32_375 = arith.constant 8 : i32
    %905 = arith.muli %c6_i32_374, %c8_i32_375 : i32
    %906 = tpu.assume_multiple %905, 8 : i32
    %907 = arith.index_cast %906 : i32 to index
    %c0_376 = arith.constant 0 : index
    %908 = vector.load %arg24[%907, %c0_376] : memref<64x512xf32, #tpu.memory_space<vmem>>, vector<8x512xf32>
    %c0_377 = arith.constant 0 : index
    %c0_378 = arith.constant 0 : index
    %909 = vector.load %arg10[%c0_377, %c0_378] : memref<128x512xf32, #tpu.memory_space<vmem>>, vector<128x512xf32>
    %cst_379 = arith.constant dense<0.000000e+00> : vector<8x512xf32>
    %910 = tpu.matmul %902, %909, %cst_379 {dimension_numbers = #tpu.dot_dimension_numbers<[1], [0], [0], [1], [0, 0, 1, 1], [], []>} : vector<8x128xf32>, vector<128x512xf32>, vector<8x512xf32> -> vector<8x512xf32>
    %911 = arith.addf %908, %910 : vector<8x512xf32>
    %912 = vector.extract_strided_slice %911 {offsets = [0, 0], sizes = [8, 128], strides = [1, 1]} : vector<8x512xf32> to vector<8x128xf32>
    %cst_380 = arith.constant 5.000000e-01 : f32
    %913 = vector.broadcast %cst_380 : f32 to vector<8x128xf32>
    %914 = arith.mulf %913, %912 : vector<8x128xf32>
    %915 = math.tanh %914 : vector<8x128xf32>
    %cst_381 = arith.constant 5.000000e-01 : f32
    %916 = vector.broadcast %cst_381 : f32 to vector<8x128xf32>
    %917 = arith.mulf %916, %915 : vector<8x128xf32>
    %cst_382 = arith.constant 5.000000e-01 : f32
    %918 = vector.broadcast %cst_382 : f32 to vector<8x128xf32>
    %919 = arith.addf %917, %918 : vector<8x128xf32>
    %920 = vector.extract_strided_slice %911 {offsets = [0, 128], sizes = [8, 128], strides = [1, 1]} : vector<8x512xf32> to vector<8x128xf32>
    %cst_383 = arith.constant 5.000000e-01 : f32
    %921 = vector.broadcast %cst_383 : f32 to vector<8x128xf32>
    %922 = arith.mulf %921, %920 : vector<8x128xf32>
    %923 = math.tanh %922 : vector<8x128xf32>
    %cst_384 = arith.constant 5.000000e-01 : f32
    %924 = vector.broadcast %cst_384 : f32 to vector<8x128xf32>
    %925 = arith.mulf %924, %923 : vector<8x128xf32>
    %cst_385 = arith.constant 5.000000e-01 : f32
    %926 = vector.broadcast %cst_385 : f32 to vector<8x128xf32>
    %927 = arith.addf %925, %926 : vector<8x128xf32>
    %928 = vector.extract_strided_slice %911 {offsets = [0, 256], sizes = [8, 128], strides = [1, 1]} : vector<8x512xf32> to vector<8x128xf32>
    %929 = math.tanh %928 : vector<8x128xf32>
    %930 = vector.extract_strided_slice %911 {offsets = [0, 384], sizes = [8, 128], strides = [1, 1]} : vector<8x512xf32> to vector<8x128xf32>
    %cst_386 = arith.constant 5.000000e-01 : f32
    %931 = vector.broadcast %cst_386 : f32 to vector<8x128xf32>
    %932 = arith.mulf %931, %930 : vector<8x128xf32>
    %933 = math.tanh %932 : vector<8x128xf32>
    %cst_387 = arith.constant 5.000000e-01 : f32
    %934 = vector.broadcast %cst_387 : f32 to vector<8x128xf32>
    %935 = arith.mulf %934, %933 : vector<8x128xf32>
    %cst_388 = arith.constant 5.000000e-01 : f32
    %936 = vector.broadcast %cst_388 : f32 to vector<8x128xf32>
    %937 = arith.addf %935, %936 : vector<8x128xf32>
    %938 = arith.mulf %927, %900 : vector<8x128xf32>
    %939 = arith.mulf %919, %929 : vector<8x128xf32>
    %940 = arith.addf %938, %939 : vector<8x128xf32>
    %941 = math.tanh %940 : vector<8x128xf32>
    %942 = arith.mulf %937, %941 : vector<8x128xf32>
    %943 = arith.index_cast %906 : i32 to index
    %c0_389 = arith.constant 0 : index
    %944 = vector.load %arg25[%943, %c0_389] : memref<64x128xf32, #tpu.memory_space<vmem>>, vector<8x128xf32>
    tpu.vector_store %arg25[%943, %c0_389], %942 {strides = array<i32>} : memref<64x128xf32, #tpu.memory_space<vmem>>, vector<8x128xf32>,
    %c7_i32_390 = arith.constant 7 : i32
    %c8_i32_391 = arith.constant 8 : i32
    %945 = arith.muli %c7_i32_390, %c8_i32_391 : i32
    %946 = tpu.assume_multiple %945, 8 : i32
    %947 = arith.index_cast %946 : i32 to index
    %c0_392 = arith.constant 0 : index
    %948 = vector.load %arg24[%947, %c0_392] : memref<64x512xf32, #tpu.memory_space<vmem>>, vector<8x512xf32>
    %c0_393 = arith.constant 0 : index
    %c0_394 = arith.constant 0 : index
    %949 = vector.load %arg10[%c0_393, %c0_394] : memref<128x512xf32, #tpu.memory_space<vmem>>, vector<128x512xf32>
    %cst_395 = arith.constant dense<0.000000e+00> : vector<8x512xf32>
    %950 = tpu.matmul %942, %949, %cst_395 {dimension_numbers = #tpu.dot_dimension_numbers<[1], [0], [0], [1], [0, 0, 1, 1], [], []>} : vector<8x128xf32>, vector<128x512xf32>, vector<8x512xf32> -> vector<8x512xf32>
    %951 = arith.addf %948, %950 : vector<8x512xf32>
    %952 = vector.extract_strided_slice %951 {offsets = [0, 0], sizes = [8, 128], strides = [1, 1]} : vector<8x512xf32> to vector<8x128xf32>
    %cst_396 = arith.constant 5.000000e-01 : f32
    %953 = vector.broadcast %cst_396 : f32 to vector<8x128xf32>
    %954 = arith.mulf %953, %952 : vector<8x128xf32>
    %955 = math.tanh %954 : vector<8x128xf32>
    %cst_397 = arith.constant 5.000000e-01 : f32
    %956 = vector.broadcast %cst_397 : f32 to vector<8x128xf32>
    %957 = arith.mulf %956, %955 : vector<8x128xf32>
    %cst_398 = arith.constant 5.000000e-01 : f32
    %958 = vector.broadcast %cst_398 : f32 to vector<8x128xf32>
    %959 = arith.addf %957, %958 : vector<8x128xf32>
    %960 = vector.extract_strided_slice %951 {offsets = [0, 128], sizes = [8, 128], strides = [1, 1]} : vector<8x512xf32> to vector<8x128xf32>
    %cst_399 = arith.constant 5.000000e-01 : f32
    %961 = vector.broadcast %cst_399 : f32 to vector<8x128xf32>
    %962 = arith.mulf %961, %960 : vector<8x128xf32>
    %963 = math.tanh %962 : vector<8x128xf32>
    %cst_400 = arith.constant 5.000000e-01 : f32
    %964 = vector.broadcast %cst_400 : f32 to vector<8x128xf32>
    %965 = arith.mulf %964, %963 : vector<8x128xf32>
    %cst_401 = arith.constant 5.000000e-01 : f32
    %966 = vector.broadcast %cst_401 : f32 to vector<8x128xf32>
    %967 = arith.addf %965, %966 : vector<8x128xf32>
    %968 = vector.extract_strided_slice %951 {offsets = [0, 256], sizes = [8, 128], strides = [1, 1]} : vector<8x512xf32> to vector<8x128xf32>
    %969 = math.tanh %968 : vector<8x128xf32>
    %970 = vector.extract_strided_slice %951 {offsets = [0, 384], sizes = [8, 128], strides = [1, 1]} : vector<8x512xf32> to vector<8x128xf32>
    %cst_402 = arith.constant 5.000000e-01 : f32
    %971 = vector.broadcast %cst_402 : f32 to vector<8x128xf32>
    %972 = arith.mulf %971, %970 : vector<8x128xf32>
    %973 = math.tanh %972 : vector<8x128xf32>
    %cst_403 = arith.constant 5.000000e-01 : f32
    %974 = vector.broadcast %cst_403 : f32 to vector<8x128xf32>
    %975 = arith.mulf %974, %973 : vector<8x128xf32>
    %cst_404 = arith.constant 5.000000e-01 : f32
    %976 = vector.broadcast %cst_404 : f32 to vector<8x128xf32>
    %977 = arith.addf %975, %976 : vector<8x128xf32>
    %978 = arith.mulf %967, %940 : vector<8x128xf32>
    %979 = arith.mulf %959, %969 : vector<8x128xf32>
    %980 = arith.addf %978, %979 : vector<8x128xf32>
    %981 = math.tanh %980 : vector<8x128xf32>
    %982 = arith.mulf %977, %981 : vector<8x128xf32>
    %983 = arith.index_cast %946 : i32 to index
    %c0_405 = arith.constant 0 : index
    %984 = vector.load %arg25[%983, %c0_405] : memref<64x128xf32, #tpu.memory_space<vmem>>, vector<8x128xf32>
    tpu.vector_store %arg25[%983, %c0_405], %982 {strides = array<i32>} : memref<64x128xf32, #tpu.memory_space<vmem>>, vector<8x128xf32>,
    %c8_i32_406 = arith.constant 8 : i32
    %c0_407 = arith.constant 0 : index
    %c0_408 = arith.constant 0 : index
    %985 = vector.load %arg25[%c0_407, %c0_408] : memref<64x128xf32, #tpu.memory_space<vmem>>, vector<64x128xf32>
    %c0_409 = arith.constant 0 : index
    %c0_410 = arith.constant 0 : index
    %986 = vector.load %arg12[%c0_409, %c0_410] : memref<128x64xf32, #tpu.memory_space<vmem>>, vector<128x64xf32>
    %cst_411 = arith.constant dense<0.000000e+00> : vector<64x64xf32>
    %987 = tpu.matmul %985, %986, %cst_411 {dimension_numbers = #tpu.dot_dimension_numbers<[1], [0], [0], [1], [0, 0, 1, 1], [], []>} : vector<64x128xf32>, vector<128x64xf32>, vector<64x64xf32> -> vector<64x64xf32>
    %c0_412 = arith.constant 0 : index
    %c0_413 = arith.constant 0 : index
    %988 = vector.load %arg13[%c0_412, %c0_413] : memref<1x64xf32, #tpu.memory_space<vmem>>, vector<1x64xf32>
    %989 = vector.broadcast %988 : vector<1x64xf32> to vector<64x64xf32>
    %990 = arith.addf %987, %989 : vector<64x64xf32>
    %cst_414 = arith.constant 0.000000e+00 : f32
    %991 = vector.broadcast %cst_414 : f32 to vector<64x64xf32>
    %992 = arith.maximumf %990, %991 : vector<64x64xf32>
    %c0_415 = arith.constant 0 : index
    %c0_416 = arith.constant 0 : index
    %993 = vector.load %arg14[%c0_415, %c0_416] : memref<64x64xf32, #tpu.memory_space<vmem>>, vector<64x64xf32>
    %cst_417 = arith.constant dense<0.000000e+00> : vector<64x64xf32>
    %994 = tpu.matmul %992, %993, %cst_417 {dimension_numbers = #tpu.dot_dimension_numbers<[1], [0], [0], [1], [0, 0, 1, 1], [], []>} : vector<64x64xf32>, vector<64x64xf32>, vector<64x64xf32> -> vector<64x64xf32>
    %c0_418 = arith.constant 0 : index
    %c0_419 = arith.constant 0 : index
    %995 = vector.load %arg15[%c0_418, %c0_419] : memref<1x64xf32, #tpu.memory_space<vmem>>, vector<1x64xf32>
    %996 = vector.broadcast %995 : vector<1x64xf32> to vector<64x64xf32>
    %997 = arith.addf %994, %996 : vector<64x64xf32>
    %cst_420 = arith.constant 0.000000e+00 : f32
    %998 = vector.broadcast %cst_420 : f32 to vector<64x64xf32>
    %999 = arith.maximumf %997, %998 : vector<64x64xf32>
    %c0_421 = arith.constant 0 : index
    %c0_422 = arith.constant 0 : index
    %1000 = vector.load %arg16[%c0_421, %c0_422] : memref<64x64xf32, #tpu.memory_space<vmem>>, vector<64x64xf32>
    %cst_423 = arith.constant dense<0.000000e+00> : vector<64x64xf32>
    %1001 = tpu.matmul %999, %1000, %cst_423 {dimension_numbers = #tpu.dot_dimension_numbers<[1], [0], [0], [1], [0, 0, 1, 1], [], []>} : vector<64x64xf32>, vector<64x64xf32>, vector<64x64xf32> -> vector<64x64xf32>
    %c0_424 = arith.constant 0 : index
    %c0_425 = arith.constant 0 : index
    %1002 = vector.load %arg17[%c0_424, %c0_425] : memref<1x64xf32, #tpu.memory_space<vmem>>, vector<1x64xf32>
    %1003 = vector.broadcast %1002 : vector<1x64xf32> to vector<64x64xf32>
    %1004 = arith.addf %1001, %1003 : vector<64x64xf32>
    %cst_426 = arith.constant 0.000000e+00 : f32
    %1005 = vector.broadcast %cst_426 : f32 to vector<64x64xf32>
    %1006 = arith.maximumf %1004, %1005 : vector<64x64xf32>
    %c0_427 = arith.constant 0 : index
    %c0_428 = arith.constant 0 : index
    %1007 = vector.load %arg18[%c0_427, %c0_428] : memref<64x64xf32, #tpu.memory_space<vmem>>, vector<64x64xf32>
    %cst_429 = arith.constant dense<0.000000e+00> : vector<64x64xf32>
    %1008 = tpu.matmul %1006, %1007, %cst_429 {dimension_numbers = #tpu.dot_dimension_numbers<[1], [0], [0], [1], [0, 0, 1, 1], [], []>} : vector<64x64xf32>, vector<64x64xf32>, vector<64x64xf32> -> vector<64x64xf32>
    %c0_430 = arith.constant 0 : index
    %c0_431 = arith.constant 0 : index
    %1009 = vector.load %arg19[%c0_430, %c0_431] : memref<1x64xf32, #tpu.memory_space<vmem>>, vector<1x64xf32>
    %1010 = vector.broadcast %1009 : vector<1x64xf32> to vector<64x64xf32>
    %1011 = arith.addf %1008, %1010 : vector<64x64xf32>
    %cst_432 = arith.constant 0.000000e+00 : f32
    %1012 = vector.broadcast %cst_432 : f32 to vector<64x64xf32>
    %1013 = arith.maximumf %1011, %1012 : vector<64x64xf32>
    %c0_433 = arith.constant 0 : index
    %c0_434 = arith.constant 0 : index
    %1014 = vector.load %arg20[%c0_433, %c0_434] : memref<64x4xf32, #tpu.memory_space<vmem>>, vector<64x4xf32>
    %cst_435 = arith.constant dense<0.000000e+00> : vector<64x4xf32>
    %1015 = tpu.matmul %1013, %1014, %cst_435 {dimension_numbers = #tpu.dot_dimension_numbers<[1], [0], [0], [1], [0, 0, 1, 1], [], []>} : vector<64x64xf32>, vector<64x4xf32>, vector<64x4xf32> -> vector<64x4xf32>
    %c0_436 = arith.constant 0 : index
    %c0_437 = arith.constant 0 : index
    %1016 = vector.load %arg21[%c0_436, %c0_437] : memref<1x4xf32, #tpu.memory_space<vmem>>, vector<1x4xf32>
    %1017 = vector.broadcast %1016 : vector<1x4xf32> to vector<64x4xf32>
    %1018 = arith.addf %1015, %1017 : vector<64x4xf32>
    %c0_438 = arith.constant 0 : index
    %c0_439 = arith.constant 0 : index
    %1019 = memref.load %arg1[%c0_438, %c0_439] : memref<1x1xf32, #tpu.memory_space<smem>>
    %c0_440 = arith.constant 0 : index
    %c0_441 = arith.constant 0 : index
    %c0_442 = arith.constant 0 : index
    %1020 = vector.load %arg22[%c0_440, %c0_441, %c0_442] : memref<1x64x4xf32, #tpu.memory_space<vmem>>, vector<1x64x4xf32>
    %1021 = vector.shape_cast %1020 : vector<1x64x4xf32> to vector<64x4xf32>
    %1022 = vector.shape_cast %1018 : vector<64x4xf32> to vector<1x64x4xf32>
    tpu.vector_store %arg22[%c0_440, %c0_441, %c0_442], %1022 {strides = array<i32>} : memref<1x64x4xf32, #tpu.memory_space<vmem>>, vector<1x64x4xf32>,
    %c0_443 = arith.constant 0 : index
    %c0_444 = arith.constant 0 : index
    %c0_445 = arith.constant 0 : index
    %1023 = vector.load %arg2[%c0_443, %c0_444, %c0_445] : memref<1x64x10xf32, #tpu.memory_space<vmem>>, vector<1x64x10xf32>
    %1024 = vector.shape_cast %1023 : vector<1x64x10xf32> to vector<64x10xf32>
    %1025 = vector.extract_strided_slice %1024 {offsets = [0, 0], sizes = [64, 1], strides = [1, 1]} : vector<64x10xf32> to vector<64x1xf32>
    %1026 = vector.extract_strided_slice %1024 {offsets = [0, 1], sizes = [64, 1], strides = [1, 1]} : vector<64x10xf32> to vector<64x1xf32>
    %1027 = vector.extract_strided_slice %1024 {offsets = [0, 2], sizes = [64, 1], strides = [1, 1]} : vector<64x10xf32> to vector<64x1xf32>
    %1028 = vector.extract_strided_slice %1024 {offsets = [0, 3], sizes = [64, 1], strides = [1, 1]} : vector<64x10xf32> to vector<64x1xf32>
    %1029 = vector.extract_strided_slice %1024 {offsets = [0, 4], sizes = [64, 1], strides = [1, 1]} : vector<64x10xf32> to vector<64x1xf32>
    %1030 = vector.extract_strided_slice %1024 {offsets = [0, 5], sizes = [64, 1], strides = [1, 1]} : vector<64x10xf32> to vector<64x1xf32>
    %1031 = vector.extract_strided_slice %1024 {offsets = [0, 6], sizes = [64, 1], strides = [1, 1]} : vector<64x10xf32> to vector<64x1xf32>
    %1032 = vector.extract_strided_slice %1024 {offsets = [0, 7], sizes = [64, 1], strides = [1, 1]} : vector<64x10xf32> to vector<64x1xf32>
    %1033 = vector.extract_strided_slice %1024 {offsets = [0, 8], sizes = [64, 1], strides = [1, 1]} : vector<64x10xf32> to vector<64x1xf32>
    %1034 = vector.extract_strided_slice %1024 {offsets = [0, 9], sizes = [64, 1], strides = [1, 1]} : vector<64x10xf32> to vector<64x1xf32>
    %1035 = arith.mulf %1031, %1028 : vector<64x1xf32>
    %1036 = arith.mulf %1032, %1028 : vector<64x1xf32>
    %1037 = arith.mulf %1033, %1029 : vector<64x1xf32>
    %1038 = arith.mulf %1034, %1030 : vector<64x1xf32>
    %1039 = vector.extract_strided_slice %1018 {offsets = [0, 0], sizes = [64, 1], strides = [1, 1]} : vector<64x4xf32> to vector<64x1xf32>
    %1040 = vector.extract_strided_slice %1018 {offsets = [0, 1], sizes = [64, 1], strides = [1, 1]} : vector<64x4xf32> to vector<64x1xf32>
    %1041 = vector.extract_strided_slice %1018 {offsets = [0, 2], sizes = [64, 1], strides = [1, 1]} : vector<64x4xf32> to vector<64x1xf32>
    %1042 = vector.extract_strided_slice %1018 {offsets = [0, 3], sizes = [64, 1], strides = [1, 1]} : vector<64x4xf32> to vector<64x1xf32>
    %1043 = vector.broadcast %1019 : f32 to vector<64x1xf32>
    %1044 = arith.mulf %1039, %1043 : vector<64x1xf32>
    %1045 = vector.broadcast %1019 : f32 to vector<64x1xf32>
    %1046 = arith.mulf %1040, %1045 : vector<64x1xf32>
    %1047 = vector.broadcast %1019 : f32 to vector<64x1xf32>
    %1048 = arith.mulf %1041, %1047 : vector<64x1xf32>
    %1049 = vector.broadcast %1019 : f32 to vector<64x1xf32>
    %1050 = arith.mulf %1042, %1049 : vector<64x1xf32>
    %1051 = arith.subf %1028, %1048 : vector<64x1xf32>
    %1052 = arith.subf %1051, %1050 : vector<64x1xf32>
    %1053 = arith.addf %1029, %1048 : vector<64x1xf32>
    %1054 = arith.addf %1030, %1050 : vector<64x1xf32>
    %1055 = arith.subf %1035, %1044 : vector<64x1xf32>
    %1056 = arith.subf %1036, %1046 : vector<64x1xf32>
    %1057 = arith.addf %1037, %1044 : vector<64x1xf32>
    %1058 = arith.addf %1038, %1046 : vector<64x1xf32>
    %cst_446 = arith.constant 9.99999997E-7 : f32
    %1059 = vector.broadcast %cst_446 : f32 to vector<64x1xf32>
    %1060 = arith.addf %1052, %1059 : vector<64x1xf32>
    %1061 = arith.divf %1055, %1060 : vector<64x1xf32>
    %cst_447 = arith.constant 9.99999997E-7 : f32
    %1062 = vector.broadcast %cst_447 : f32 to vector<64x1xf32>
    %1063 = arith.addf %1052, %1062 : vector<64x1xf32>
    %1064 = arith.divf %1056, %1063 : vector<64x1xf32>
    %cst_448 = arith.constant 9.99999997E-7 : f32
    %1065 = vector.broadcast %cst_448 : f32 to vector<64x1xf32>
    %1066 = arith.addf %1053, %1065 : vector<64x1xf32>
    %1067 = arith.divf %1057, %1066 : vector<64x1xf32>
    %cst_449 = arith.constant 9.99999997E-7 : f32
    %1068 = vector.broadcast %cst_449 : f32 to vector<64x1xf32>
    %1069 = arith.addf %1054, %1068 : vector<64x1xf32>
    %1070 = arith.divf %1058, %1069 : vector<64x1xf32>
    %1071 = tpu.concatenate %1025, %1026, %1027, %1061, %1064, %1067, %1070, %1052, %1053, %1054 in 1 : vector<64x1xf32>, vector<64x1xf32>, vector<64x1xf32>, vector<64x1xf32>, vector<64x1xf32>, vector<64x1xf32>, vector<64x1xf32>, vector<64x1xf32>, vector<64x1xf32>, vector<64x1xf32> -> vector<64x10xf32>
    %c0_450 = arith.constant 0 : index
    %c0_451 = arith.constant 0 : index
    %c0_452 = arith.constant 0 : index
    %1072 = vector.load %arg23[%c0_450, %c0_451, %c0_452] : memref<1x64x10xf32, #tpu.memory_space<vmem>>, vector<1x64x10xf32>
    %1073 = vector.shape_cast %1072 : vector<1x64x10xf32> to vector<64x10xf32>
    %1074 = vector.shape_cast %1071 : vector<64x10xf32> to vector<1x64x10xf32>
    tpu.vector_store %arg23[%c0_450, %c0_451, %c0_452], %1074 {strides = array<i32>} : memref<1x64x10xf32, #tpu.memory_space<vmem>>, vector<1x64x10xf32>,
    return
  }
  func.func @transform_0(%arg0: i32) -> (i32, i32) {
    %c0_i32 = arith.constant 0 : i32
    %c0_i32_0 = arith.constant 0 : i32
    %c0_i32_1 = arith.constant 0 : i32
    return %c0_i32, %c0_i32_0 : i32, i32
  }
  func.func @transform_1(%arg0: i32) -> (i32, i32, i32) {
    %c0_i32 = arith.constant 0 : i32
    %c0_i32_0 = arith.constant 0 : i32
    %c0_i32_1 = arith.constant 0 : i32
    return %arg0, %c0_i32, %c0_i32_0 : i32, i32, i32
  }
  func.func @transform_2(%arg0: i32) -> (i32, i32) {
    %c0_i32 = arith.constant 0 : i32
    %c0_i32_0 = arith.constant 0 : i32
    %c0_i32_1 = arith.constant 0 : i32
    return %c0_i32, %c0_i32_0 : i32, i32
  }
  func.func @transform_3(%arg0: i32) -> (i32, i32) {
    %c0_i32 = arith.constant 0 : i32
    %c0_i32_0 = arith.constant 0 : i32
    %c0_i32_1 = arith.constant 0 : i32
    return %c0_i32, %c0_i32_0 : i32, i32
  }
  func.func @transform_4(%arg0: i32) -> (i32, i32) {
    %c0_i32 = arith.constant 0 : i32
    %c0_i32_0 = arith.constant 0 : i32
    %c0_i32_1 = arith.constant 0 : i32
    return %c0_i32, %c0_i32_0 : i32, i32
  }
  func.func @transform_5(%arg0: i32) -> (i32, i32) {
    %c0_i32 = arith.constant 0 : i32
    %c0_i32_0 = arith.constant 0 : i32
    %c0_i32_1 = arith.constant 0 : i32
    return %c0_i32, %c0_i32_0 : i32, i32
  }
  func.func @transform_6(%arg0: i32) -> (i32, i32) {
    %c0_i32 = arith.constant 0 : i32
    %c0_i32_0 = arith.constant 0 : i32
    %c0_i32_1 = arith.constant 0 : i32
    return %c0_i32, %c0_i32_0 : i32, i32
  }
  func.func @transform_7(%arg0: i32) -> (i32, i32) {
    %c0_i32 = arith.constant 0 : i32
    %c0_i32_0 = arith.constant 0 : i32
    %c0_i32_1 = arith.constant 0 : i32
    return %c0_i32, %c0_i32_0 : i32, i32
  }
  func.func @transform_8(%arg0: i32) -> (i32, i32) {
    %c0_i32 = arith.constant 0 : i32
    %c0_i32_0 = arith.constant 0 : i32
    %c0_i32_1 = arith.constant 0 : i32
    return %c0_i32, %c0_i32_0 : i32, i32
  }
  func.func @transform_9(%arg0: i32) -> (i32, i32) {
    %c0_i32 = arith.constant 0 : i32
    %c0_i32_0 = arith.constant 0 : i32
    %c0_i32_1 = arith.constant 0 : i32
    return %c0_i32, %c0_i32_0 : i32, i32
  }
  func.func @transform_10(%arg0: i32) -> (i32, i32) {
    %c0_i32 = arith.constant 0 : i32
    %c0_i32_0 = arith.constant 0 : i32
    %c0_i32_1 = arith.constant 0 : i32
    return %c0_i32, %c0_i32_0 : i32, i32
  }
  func.func @transform_11(%arg0: i32) -> (i32, i32) {
    %c0_i32 = arith.constant 0 : i32
    %c0_i32_0 = arith.constant 0 : i32
    %c0_i32_1 = arith.constant 0 : i32
    return %c0_i32, %c0_i32_0 : i32, i32
  }
  func.func @transform_12(%arg0: i32) -> (i32, i32) {
    %c0_i32 = arith.constant 0 : i32
    %c0_i32_0 = arith.constant 0 : i32
    %c0_i32_1 = arith.constant 0 : i32
    return %c0_i32, %c0_i32_0 : i32, i32
  }
  func.func @transform_13(%arg0: i32) -> (i32, i32) {
    %c0_i32 = arith.constant 0 : i32
    %c0_i32_0 = arith.constant 0 : i32
    %c0_i32_1 = arith.constant 0 : i32
    return %c0_i32, %c0_i32_0 : i32, i32
  }
  func.func @transform_14(%arg0: i32) -> (i32, i32) {
    %c0_i32 = arith.constant 0 : i32
    %c0_i32_0 = arith.constant 0 : i32
    %c0_i32_1 = arith.constant 0 : i32
    return %c0_i32, %c0_i32_0 : i32, i32
  }
  func.func @transform_15(%arg0: i32) -> (i32, i32) {
    %c0_i32 = arith.constant 0 : i32
    %c0_i32_0 = arith.constant 0 : i32
    %c0_i32_1 = arith.constant 0 : i32
    return %c0_i32, %c0_i32_0 : i32, i32
  }
  func.func @transform_16(%arg0: i32) -> (i32, i32) {
    %c0_i32 = arith.constant 0 : i32
    %c0_i32_0 = arith.constant 0 : i32
    %c0_i32_1 = arith.constant 0 : i32
    return %c0_i32, %c0_i32_0 : i32, i32
  }
  func.func @transform_17(%arg0: i32) -> (i32, i32) {
    %c0_i32 = arith.constant 0 : i32
    %c0_i32_0 = arith.constant 0 : i32
    %c0_i32_1 = arith.constant 0 : i32
    return %c0_i32, %c0_i32_0 : i32, i32
  }
  func.func @transform_18(%arg0: i32) -> (i32, i32) {
    %c0_i32 = arith.constant 0 : i32
    %c0_i32_0 = arith.constant 0 : i32
    %c0_i32_1 = arith.constant 0 : i32
    return %c0_i32, %c0_i32_0 : i32, i32
  }
  func.func @transform_19(%arg0: i32) -> (i32, i32) {
    %c0_i32 = arith.constant 0 : i32
    %c0_i32_0 = arith.constant 0 : i32
    %c0_i32_1 = arith.constant 0 : i32
    return %c0_i32, %c0_i32_0 : i32, i32
  }
  func.func @transform_20(%arg0: i32) -> (i32, i32) {
    %c0_i32 = arith.constant 0 : i32
    %c0_i32_0 = arith.constant 0 : i32
    %c0_i32_1 = arith.constant 0 : i32
    return %c0_i32, %c0_i32_0 : i32, i32
  }
  func.func @transform_21(%arg0: i32) -> (i32, i32, i32) {
    %c0_i32 = arith.constant 0 : i32
    %c0_i32_0 = arith.constant 0 : i32
    %c0_i32_1 = arith.constant 0 : i32
    return %arg0, %c0_i32, %c0_i32_0 : i32, i32, i32
  }
  func.func @transform_22(%arg0: i32) -> (i32, i32, i32) {
    %c0_i32 = arith.constant 0 : i32
    %c0_i32_0 = arith.constant 0 : i32
    %c0_i32_1 = arith.constant 0 : i32
    return %arg0, %c0_i32, %c0_i32_0 : i32, i32, i32
  }
}

</mosaic_0001>

<llo_original>
// kernel: tpu_custom_call.1
$region0: #{tpu_custom_call.1}
  #allocation0 [shape = 'u32[]', space=smem, size = 0x4, offset = 0x4, fixed_abs, tag = 'smem constant byte address 0x4 - core index']
  #allocation1 [shape = 'u32[72,128]{1,0:T(1,128)}', space=vmem, size = 0x9000, scoped, tag = 'internal scratch']
  #allocation2 [shape = 'f32[64,512]{1,0:T(8,128)}', space=vmem, size = 0x20000, scoped, tag = 'scratch operand']
  #allocation3 [shape = 'f32[64,128]{1,0:T(8,128)}', space=vmem, size = 0x8000, scoped, tag = 'scratch operand']
  #allocation4 [shape = 'f32[1,1]{1,0:T(1,128)S(6)}', space=smem, size = 0x200, scoped, tag = 'scoped memory for tpu_custom_call.1']
  %s0 = inlined_call_operand.<no memory space> [shape: f32[1,1], index: 0, kind: input, shape index: {}]
  %s1 = inlined_call_operand.vmem [shape: f32[1,64,10], index: 1, kind: input, shape index: {}]
  %s2 = inlined_call_operand.vmem [shape: f32[10,512], index: 2, kind: input, shape index: {}]
  %s3 = inlined_call_operand.hbm [shape: f32[128,512], index: 3, kind: input, shape index: {}]
  %s4 = inlined_call_operand.vmem [shape: f32[1,512], index: 4, kind: input, shape index: {}]
  %s5 = inlined_call_operand.hbm [shape: f32[128,512], index: 5, kind: input, shape index: {}]
  %s6 = inlined_call_operand.hbm [shape: f32[128,512], index: 6, kind: input, shape index: {}]
  %s7 = inlined_call_operand.vmem [shape: f32[1,512], index: 7, kind: input, shape index: {}]
  %s8 = inlined_call_operand.hbm [shape: f32[128,512], index: 8, kind: input, shape index: {}]
  %s9 = inlined_call_operand.hbm [shape: f32[128,512], index: 9, kind: input, shape index: {}]
  %s10 = inlined_call_operand.vmem [shape: f32[1,512], index: 10, kind: input, shape index: {}]
  %s11 = inlined_call_operand.vmem [shape: f32[128,64], index: 11, kind: input, shape index: {}]
  %s12 = inlined_call_operand.vmem [shape: f32[1,64], index: 12, kind: input, shape index: {}]
  %s13 = inlined_call_operand.vmem [shape: f32[64,64], index: 13, kind: input, shape index: {}]
  %s14 = inlined_call_operand.vmem [shape: f32[1,64], index: 14, kind: input, shape index: {}]
  %s15 = inlined_call_operand.vmem [shape: f32[64,64], index: 15, kind: input, shape index: {}]
  %s16 = inlined_call_operand.vmem [shape: f32[1,64], index: 16, kind: input, shape index: {}]
  %s17 = inlined_call_operand.vmem [shape: f32[64,64], index: 17, kind: input, shape index: {}]
  %s18 = inlined_call_operand.vmem [shape: f32[1,64], index: 18, kind: input, shape index: {}]
  %s19 = inlined_call_operand.vmem [shape: f32[64,4], index: 19, kind: input, shape index: {}]
  %s20 = inlined_call_operand.vmem [shape: f32[1,4], index: 20, kind: input, shape index: {}]
  %s21 = inlined_call_operand.vmem [shape: f32[1,64,4], index: 21, kind: output, shape index: {0}]
  %s22 = inlined_call_operand.vmem [shape: f32[1,64,10], index: 22, kind: output, shape index: {1}]
  %23 = xla_tuple %s21, %s22
  %s24 = sld [smem:[#allocation0]]
  $region122: #{tpu_custom_call.1} parent=0
    _
  %s26 = ssub.s32 1, %s24
  %s27 = scalar_select 0, %s26, %s24
  %28 = sst [smem:[#allocation4]] %s0
  $region1: #{tpu_custom_call.1} parent=0
    #allocation5 [shape = 'u8[262144]{0}', space=vmem, size = 0x40000, scoped, tag = 'input window, operand 3, single buffered']
    #allocation6 [shape = 's32[1]{0}', space=sflag, size = 0x4, scoped, tag = 'scoped memory for tpu_custom_call.1']
    #allocation7 [shape = 'u8[262144]{0}', space=vmem, size = 0x40000, scoped, tag = 'input window, operand 5, single buffered']
    #allocation8 [shape = 's32[1]{0}', space=sflag, size = 0x4, scoped, tag = 'scoped memory for tpu_custom_call.1']
    #allocation9 [shape = 'u8[262144]{0}', space=vmem, size = 0x40000, scoped, tag = 'input window, operand 6, single buffered']
    #allocation10 [shape = 'u8[262144]{0}', space=vmem, size = 0x40000, scoped, tag = 'input window, operand 8, single buffered']
    #allocation11 [shape = 's32[1]{0}', space=sflag, size = 0x4, scoped, tag = 'scoped memory for tpu_custom_call.1']
    #allocation12 [shape = 'u8[262144]{0}', space=vmem, size = 0x40000, scoped, tag = 'input window, operand 9, single buffered']
    %29 = vsyncpa [#allocation6], 0
    %30 = vsyncpa [#allocation8], 0
    %31 = vsyncpa [#allocation11], 0
    // Predicated region
    $region2: #{tpu_custom_call.1} parent=1 // pred_check
      _
    $region3: #{tpu_custom_call.1} parent=1 // pred_check_branch
      %33 = sbr.rel (0) target = $region5
    $region4: #{tpu_custom_call.1} parent=1 // pred_region
      _
    $region5: #{tpu_custom_call.1} parent=1 // pred_fallthru
      _
    // Predicated region
    $region6: #{tpu_custom_call.1} parent=1 // pred_check
      _
    $region7: #{tpu_custom_call.1} parent=1 // pred_check_branch
      %35 = sbr.rel (0) target = $region9
    $region8: #{tpu_custom_call.1} parent=1 // pred_region
      _
    $region9: #{tpu_custom_call.1} parent=1 // pred_fallthru
      _
    // Predicated region
    $region10: #{tpu_custom_call.1} parent=1 // pred_check
      _
    $region11: #{tpu_custom_call.1} parent=1 // pred_check_branch
      %37 = sbr.rel (0) target = $region13
    $region12: #{tpu_custom_call.1} parent=1 // pred_region
      _
    $region13: #{tpu_custom_call.1} parent=1 // pred_fallthru
      _
    // Predicated region
    $region14: #{tpu_custom_call.1} parent=1 // pred_check
      _
    $region15: #{tpu_custom_call.1} parent=1 // pred_check_branch
      %39 = sbr.rel (0) target = $region17
    $region16: #{tpu_custom_call.1} parent=1 // pred_region
      %41 = vsyncadd [#allocation6], 0
      %s42 = sshll.u32 %s3, 4
      %s43 = int_to_ptr.hbm [resolvable:$true] %s42
      %s44 = sshll.u32 [#allocation5], 4
      %s45 = int_to_ptr.vmem [resolvable:$true] %s44
      %50 = dma.hbm_to_vmem [thread:$0]  %s43, 8192, %s45, [#allocation6], 512, 512, 32
    $region17: #{tpu_custom_call.1} parent=1 // pred_fallthru
      _
    // Predicated region
    $region18: #{tpu_custom_call.1} parent=1 // pred_check
      _
    $region19: #{tpu_custom_call.1} parent=1 // pred_check_branch
      %52 = sbr.rel (0) target = $region21
    $region20: #{tpu_custom_call.1} parent=1 // pred_region
      _
    $region21: #{tpu_custom_call.1} parent=1 // pred_fallthru
      _
    // Predicated region
    $region22: #{tpu_custom_call.1} parent=1 // pred_check
      _
    $region23: #{tpu_custom_call.1} parent=1 // pred_check_branch
      %54 = sbr.rel (0) target = $region25
    $region24: #{tpu_custom_call.1} parent=1 // pred_region
      %56 = vsyncadd [#allocation8], 0
      %s57 = sshll.u32 %s5, 4
      %s58 = int_to_ptr.hbm [resolvable:$true] %s57
      %s59 = sshll.u32 [#allocation7], 4
      %s60 = int_to_ptr.vmem [resolvable:$true] %s59
      %65 = dma.hbm_to_vmem [thread:$0]  %s58, 8192, %s60, [#allocation8], 512, 512, 32
    $region25: #{tpu_custom_call.1} parent=1 // pred_fallthru
      _
    // Predicated region
    $region26: #{tpu_custom_call.1} parent=1 // pred_check
      _
    $region27: #{tpu_custom_call.1} parent=1 // pred_check_branch
      %67 = sbr.rel (0) target = $region29
    $region28: #{tpu_custom_call.1} parent=1 // pred_region
      %69 = vsyncadd [#allocation8], 0
      %s70 = sshll.u32 %s6, 4
      %s71 = int_to_ptr.hbm [resolvable:$true] %s70
      %s72 = sshll.u32 [#allocation9], 4
      %s73 = int_to_ptr.vmem [resolvable:$true] %s72
      %78 = dma.hbm_to_vmem [thread:$0]  %s71, 8192, %s73, [#allocation8], 512, 512, 32
    $region29: #{tpu_custom_call.1} parent=1 // pred_fallthru
      _
    // Predicated region
    $region30: #{tpu_custom_call.1} parent=1 // pred_check
      _
    $region31: #{tpu_custom_call.1} parent=1 // pred_check_branch
      %80 = sbr.rel (0) target = $region33
    $region32: #{tpu_custom_call.1} parent=1 // pred_region
      _
    $region33: #{tpu_custom_call.1} parent=1 // pred_fallthru
      _
    // Predicated region
    $region34: #{tpu_custom_call.1} parent=1 // pred_check
      _
    $region35: #{tpu_custom_call.1} parent=1 // pred_check_branch
      %82 = sbr.rel (0) target = $region37
    $region36: #{tpu_custom_call.1} parent=1 // pred_region
      %84 = vsyncadd [#allocation11], 0
      %s85 = sshll.u32 %s8, 4
      %s86 = int_to_ptr.hbm [resolvable:$true] %s85
      %s87 = sshll.u32 [#allocation10], 4
      %s88 = int_to_ptr.vmem [resolvable:$true] %s87
      %93 = dma.hbm_to_vmem [thread:$0]  %s86, 8192, %s88, [#allocation11], 512, 512, 32
    $region37: #{tpu_custom_call.1} parent=1 // pred_fallthru
      _
    // Predicated region
    $region38: #{tpu_custom_call.1} parent=1 // pred_check
      _
    $region39: #{tpu_custom_call.1} parent=1 // pred_check_branch
      %95 = sbr.rel (0) target = $region41
    $region40: #{tpu_custom_call.1} parent=1 // pred_region
      %97 = vsyncadd [#allocation11], 0
      %s98 = sshll.u32 %s9, 4
      %s99 = int_to_ptr.hbm [resolvable:$true] %s98
      %s100 = sshll.u32 [#allocation12], 4
      %s101 = int_to_ptr.vmem [resolvable:$true] %s100
      %106 = dma.hbm_to_vmem [thread:$0]  %s99, 8192, %s101, [#allocation11], 512, 512, 32
    $region41: #{tpu_custom_call.1} parent=1 // pred_fallthru
      _
    // Predicated region
    $region42: #{tpu_custom_call.1} parent=1 // pred_check
      _
    $region43: #{tpu_custom_call.1} parent=1 // pred_check_branch
      %108 = sbr.rel (0) target = $region45
    $region44: #{tpu_custom_call.1} parent=1 // pred_region
      _
    $region45: #{tpu_custom_call.1} parent=1 // pred_fallthru
      _
    // Predicated region
    $region46: #{tpu_custom_call.1} parent=1 // pred_check
      _
    $region47: #{tpu_custom_call.1} parent=1 // pred_check_branch
      %110 = sbr.rel (0) target = $region49
    $region48: #{tpu_custom_call.1} parent=1 // pred_region
      _
    $region49: #{tpu_custom_call.1} parent=1 // pred_fallthru
      _
    // Predicated region
    $region50: #{tpu_custom_call.1} parent=1 // pred_check
      _
    $region51: #{tpu_custom_call.1} parent=1 // pred_check_branch
      %112 = sbr.rel (0) target = $region53
    $region52: #{tpu_custom_call.1} parent=1 // pred_region
      _
    $region53: #{tpu_custom_call.1} parent=1 // pred_fallthru
      _
    // Predicated region
    $region54: #{tpu_custom_call.1} parent=1 // pred_check
      _
    $region55: #{tpu_custom_call.1} parent=1 // pred_check_branch
      %114 = sbr.rel (0) target = $region57
    $region56: #{tpu_custom_call.1} parent=1 // pred_region
      _
    $region57: #{tpu_custom_call.1} parent=1 // pred_fallthru
      _
    // Predicated region
    $region58: #{tpu_custom_call.1} parent=1 // pred_check
      _
    $region59: #{tpu_custom_call.1} parent=1 // pred_check_branch
      %116 = sbr.rel (0) target = $region61
    $region60: #{tpu_custom_call.1} parent=1 // pred_region
      _
    $region61: #{tpu_custom_call.1} parent=1 // pred_fallthru
      _
    // Predicated region
    $region62: #{tpu_custom_call.1} parent=1 // pred_check
      _
    $region63: #{tpu_custom_call.1} parent=1 // pred_check_branch
      %118 = sbr.rel (0) target = $region65
    $region64: #{tpu_custom_call.1} parent=1 // pred_region
      _
    $region65: #{tpu_custom_call.1} parent=1 // pred_fallthru
      _
    // Predicated region
    $region66: #{tpu_custom_call.1} parent=1 // pred_check
      _
    $region67: #{tpu_custom_call.1} parent=1 // pred_check_branch
      %120 = sbr.rel (0) target = $region69
    $region68: #{tpu_custom_call.1} parent=1 // pred_region
      _
    $region69: #{tpu_custom_call.1} parent=1 // pred_fallthru
      _
    // Predicated region
    $region70: #{tpu_custom_call.1} parent=1 // pred_check
      _
    $region71: #{tpu_custom_call.1} parent=1 // pred_check_branch
      %122 = sbr.rel (0) target = $region73
    $region72: #{tpu_custom_call.1} parent=1 // pred_region
      _
    $region73: #{tpu_custom_call.1} parent=1 // pred_fallthru
      _
    // Predicated region
    $region74: #{tpu_custom_call.1} parent=1 // pred_check
      _
    $region75: #{tpu_custom_call.1} parent=1 // pred_check_branch
      %124 = sbr.rel (0) target = $region77
    $region76: #{tpu_custom_call.1} parent=1 // pred_region
      _
    $region77: #{tpu_custom_call.1} parent=1 // pred_fallthru
      _
    // Predicated region
    $region78: #{tpu_custom_call.1} parent=1 // pred_check
      _
    $region79: #{tpu_custom_call.1} parent=1 // pred_check_branch
      %126 = sbr.rel (0) target = $region81
    $region80: #{tpu_custom_call.1} parent=1 // pred_region
      _
    $region81: #{tpu_custom_call.1} parent=1 // pred_fallthru
      _
    // Predicated region
    $region82: #{tpu_custom_call.1} parent=1 // pred_check
      _
    $region83: #{tpu_custom_call.1} parent=1 // pred_check_branch
      %128 = sbr.rel (0) target = $region85
    $region84: #{tpu_custom_call.1} parent=1 // pred_region
      _
    $region85: #{tpu_custom_call.1} parent=1 // pred_fallthru
      _
    // Predicated region
    $region86: #{tpu_custom_call.1} parent=1 // pred_check
      _
    $region87: #{tpu_custom_call.1} parent=1 // pred_check_branch
      %130 = sbr.rel (0) target = $region89
    $region88: #{tpu_custom_call.1} parent=1 // pred_region
      %132 = dma.done [#allocation6], 8192
    $region89: #{tpu_custom_call.1} parent=1 // pred_fallthru
      _
    // Predicated region
    $region90: #{tpu_custom_call.1} parent=1 // pred_check
      _
    $region91: #{tpu_custom_call.1} parent=1 // pred_check_branch
      %134 = sbr.rel (0) target = $region93
    $region92: #{tpu_custom_call.1} parent=1 // pred_region
      %136 = dma.done [#allocation8], 8192
    $region93: #{tpu_custom_call.1} parent=1 // pred_fallthru
      _
    // Predicated region
    $region94: #{tpu_custom_call.1} parent=1 // pred_check
      _
    $region95: #{tpu_custom_call.1} parent=1 // pred_check_branch
      %138 = sbr.rel (0) target = $region97
    $region96: #{tpu_custom_call.1} parent=1 // pred_region
      %140 = dma.done [#allocation8], 8192
    $region97: #{tpu_custom_call.1} parent=1 // pred_fallthru
      _
    // Predicated region
    $region98: #{tpu_custom_call.1} parent=1 // pred_check
      _
    $region99: #{tpu_custom_call.1} parent=1 // pred_check_branch
      %142 = sbr.rel (0) target = $region101
    $region100: #{tpu_custom_call.1} parent=1 // pred_region
      %144 = dma.done [#allocation11], 8192
    $region101: #{tpu_custom_call.1} parent=1 // pred_fallthru
      _
    // Predicated region
    $region102: #{tpu_custom_call.1} parent=1 // pred_check
      _
    $region103: #{tpu_custom_call.1} parent=1 // pred_check_branch
      %146 = sbr.rel (0) target = $region105
    $region104: #{tpu_custom_call.1} parent=1 // pred_region
      %148 = dma.done [#allocation11], 8192
    $region105: #{tpu_custom_call.1} parent=1 // pred_fallthru
      _
    %v149 = vld [vmem:[%s1] sm:$0xff]
    %v150 = vld [vmem:[%s1 + $0x8] sm:$0xff]
    %v151 = vld [vmem:[%s1 + $0x10] sm:$0xff]
    %v152 = vld [vmem:[%s1 + $0x18] sm:$0xff]
    %v153 = vld [vmem:[%s1 + $0x20] sm:$0xff]
    %v154 = vld [vmem:[%s1 + $0x28] sm:$0xff]
    %v155 = vld [vmem:[%s1 + $0x30] sm:$0xff]
    %v156 = vld [vmem:[%s1 + $0x38] sm:$0xff]
    %v157 = vld [vmem:[%s2] sm:$0xff]
    %v158 = vld [vmem:[%s2 + $0x8] sm:$0xff]
    %v159 = vld [vmem:[%s2 + $0x10] sm:$0xff]
    %v160 = vld [vmem:[%s2 + $0x18] sm:$0xff]
    %v161 = vld [vmem:[%s2 + $0x20] sm:$0x3]
    %v162 = vld [vmem:[%s2 + $0x28] sm:$0x3]
    %v163 = vld [vmem:[%s2 + $0x30] sm:$0x3]
    %v164 = vld [vmem:[%s2 + $0x38] sm:$0x3]
    %v165 = vld [vmem:[%s4] sm:$0xf]
    %v167 = vperm.slane %v165, 0
    %v168 = vperm.slane %v165, 1
    %v169 = vperm.slane %v165, 2
    %v170 = vperm.slane %v165, 3
    %vm175 = vcmask 80896
    %v177 = vsel %vm175, %v149, 0
    %v180 = vsel %vm175, %v150, 0
    %v183 = vsel %vm175, %v151, 0
    %v186 = vsel %vm175, %v152, 0
    %v189 = vsel %vm175, %v153, 0
    %v192 = vsel %vm175, %v154, 0
    %v195 = vsel %vm175, %v155, 0
    %v198 = vsel %vm175, %v156, 0
    %vm200 = vcmask 1041408
    %v202 = vsel %vm200, %v161, 0
    %v205 = vsel %vm200, %v162, 0
    %v208 = vsel %vm200, %v163, 0
    %v211 = vsel %vm200, %v164, 0
    %213 = vmatpush.msra.mxu0 0.0
    %214 = vmatpush.msra.mxu0 0.0
    %215 = vmatpush.msra.mxu0 0.0
    %216 = vmatpush.msra.mxu0 0.0
    %217 = vmatpush.msra.mxu0 0.0
    %218 = vmatpush.msra.mxu0 0.0
    %219 = vmatpush.msra.mxu0 0.0
    %220 = vmatpush.msra.mxu0 0.0
    %221 = vmatpush.msra.mxu0 0.0
    %222 = vmatpush.msra.mxu0 0.0
    %223 = vmatpush.msra.mxu0 0.0
    %224 = vmatpush.msra.mxu0 0.0
    %225 = vmatpush.msra.mxu0 0.0
    %226 = vmatpush.msra.mxu0 0.0
    %227 = vmatpush.msra.mxu0 %v202
    %228 = vmatpush.msra.mxu0 %v157
    %229 = vmatmul.f32.gmra.mxu0 %v177
    %v230 = vpop.f32.mrf.mxu0
    %v231 = vadd.f32 %v167, %v230
    %232 = vmatmul.f32.gmra.mxu0 %v180
    %v233 = vpop.f32.mrf.mxu0
    %v234 = vadd.f32 %v167, %v233
    %235 = vmatmul.f32.gmra.mxu0 %v183
    %v236 = vpop.f32.mrf.mxu0
    %v237 = vadd.f32 %v167, %v236
    %238 = vmatmul.f32.gmra.mxu0 %v186
    %v239 = vpop.f32.mrf.mxu0
    %v240 = vadd.f32 %v167, %v239
    %241 = vmatmul.f32.gmra.mxu0 %v189
    %v242 = vpop.f32.mrf.mxu0
    %v243 = vadd.f32 %v167, %v242
    %244 = vmatmul.f32.gmra.mxu0 %v192
    %v245 = vpop.f32.mrf.mxu0
    %v246 = vadd.f32 %v167, %v245
    %247 = vmatmul.f32.gmra.mxu0 %v195
    %v248 = vpop.f32.mrf.mxu0
    %v249 = vadd.f32 %v167, %v248
    %250 = vmatmul.f32.gmra.mxu0 %v198
    %v251 = vpop.f32.mrf.mxu0
    %v252 = vadd.f32 %v167, %v251
    %253 = vdwg.mxu0
    %254 = vmatpush.msra.mxu0 0.0
    %255 = vmatpush.msra.mxu0 0.0
    %256 = vmatpush.msra.mxu0 0.0
    %257 = vmatpush.msra.mxu0 0.0
    %258 = vmatpush.msra.mxu0 0.0
    %259 = vmatpush.msra.mxu0 0.0
    %260 = vmatpush.msra.mxu0 0.0
    %261 = vmatpush.msra.mxu0 0.0
    %262 = vmatpush.msra.mxu0 0.0
    %263 = vmatpush.msra.mxu0 0.0
    %264 = vmatpush.msra.mxu0 0.0
    %265 = vmatpush.msra.mxu0 0.0
    %266 = vmatpush.msra.mxu0 0.0
    %267 = vmatpush.msra.mxu0 0.0
    %268 = vmatpush.msra.mxu0 %v205
    %269 = vmatpush.msra.mxu0 %v158
    %270 = vmatmul.f32.gmra.mxu0 %v177
    %v271 = vpop.f32.mrf.mxu0
    %v272 = vadd.f32 %v168, %v271
    %273 = vmatmul.f32.gmra.mxu0 %v180
    %v274 = vpop.f32.mrf.mxu0
    %v275 = vadd.f32 %v168, %v274
    %276 = vmatmul.f32.gmra.mxu0 %v183
    %v277 = vpop.f32.mrf.mxu0
    %v278 = vadd.f32 %v168, %v277
    %279 = vmatmul.f32.gmra.mxu0 %v186
    %v280 = vpop.f32.mrf.mxu0
    %v281 = vadd.f32 %v168, %v280
    %282 = vmatmul.f32.gmra.mxu0 %v189
    %v283 = vpop.f32.mrf.mxu0
    %v284 = vadd.f32 %v168, %v283
    %285 = vmatmul.f32.gmra.mxu0 %v192
    %v286 = vpop.f32.mrf.mxu0
    %v287 = vadd.f32 %v168, %v286
    %288 = vmatmul.f32.gmra.mxu0 %v195
    %v289 = vpop.f32.mrf.mxu0
    %v290 = vadd.f32 %v168, %v289
    %291 = vmatmul.f32.gmra.mxu0 %v198
    %v292 = vpop.f32.mrf.mxu0
    %v293 = vadd.f32 %v168, %v292
    %294 = vdwg.mxu0
    %295 = vmatpush.msra.mxu0 0.0
    %296 = vmatpush.msra.mxu0 0.0
    %297 = vmatpush.msra.mxu0 0.0
    %298 = vmatpush.msra.mxu0 0.0
    %299 = vmatpush.msra.mxu0 0.0
    %300 = vmatpush.msra.mxu0 0.0
    %301 = vmatpush.msra.mxu0 0.0
    %302 = vmatpush.msra.mxu0 0.0
    %303 = vmatpush.msra.mxu0 0.0
    %304 = vmatpush.msra.mxu0 0.0
    %305 = vmatpush.msra.mxu0 0.0
    %306 = vmatpush.msra.mxu0 0.0
    %307 = vmatpush.msra.mxu0 0.0
    %308 = vmatpush.msra.mxu0 0.0
    %309 = vmatpush.msra.mxu0 %v208
    %310 = vmatpush.msra.mxu0 %v159
    %311 = vmatmul.f32.gmra.mxu0 %v177
    %v312 = vpop.f32.mrf.mxu0
    %v313 = vadd.f32 %v169, %v312
    %314 = vmatmul.f32.gmra.mxu0 %v180
    %v315 = vpop.f32.mrf.mxu0
    %v316 = vadd.f32 %v169, %v315
    %317 = vmatmul.f32.gmra.mxu0 %v183
    %v318 = vpop.f32.mrf.mxu0
    %v319 = vadd.f32 %v169, %v318
    %320 = vmatmul.f32.gmra.mxu0 %v186
    %v321 = vpop.f32.mrf.mxu0
    %v322 = vadd.f32 %v169, %v321
    %323 = vmatmul.f32.gmra.mxu0 %v189
    %v324 = vpop.f32.mrf.mxu0
    %v325 = vadd.f32 %v169, %v324
    %326 = vmatmul.f32.gmra.mxu0 %v192
    %v327 = vpop.f32.mrf.mxu0
    %v328 = vadd.f32 %v169, %v327
    %329 = vmatmul.f32.gmra.mxu0 %v195
    %v330 = vpop.f32.mrf.mxu0
    %v331 = vadd.f32 %v169, %v330
    %332 = vmatmul.f32.gmra.mxu0 %v198
    %v333 = vpop.f32.mrf.mxu0
    %v334 = vadd.f32 %v169, %v333
    %335 = vdwg.mxu0
    %336 = vmatpush.msra.mxu0 0.0
    %337 = vmatpush.msra.mxu0 0.0
    %338 = vmatpush.msra.mxu0 0.0
    %339 = vmatpush.msra.mxu0 0.0
    %340 = vmatpush.msra.mxu0 0.0
    %341 = vmatpush.msra.mxu0 0.0
    %342 = vmatpush.msra.mxu0 0.0
    %343 = vmatpush.msra.mxu0 0.0
    %344 = vmatpush.msra.mxu0 0.0
    %345 = vmatpush.msra.mxu0 0.0
    %346 = vmatpush.msra.mxu0 0.0
    %347 = vmatpush.msra.mxu0 0.0
    %348 = vmatpush.msra.mxu0 0.0
    %349 = vmatpush.msra.mxu0 0.0
    %350 = vmatpush.msra.mxu0 %v211
    %351 = vmatpush.msra.mxu0 %v160
    %352 = vmatmul.f32.gmra.mxu0 %v177
    %v353 = vpop.f32.mrf.mxu0
    %v354 = vadd.f32 %v170, %v353
    %355 = vmatmul.f32.gmra.mxu0 %v180
    %v356 = vpop.f32.mrf.mxu0
    %v357 = vadd.f32 %v170, %v356
    %358 = vmatmul.f32.gmra.mxu0 %v183
    %v359 = vpop.f32.mrf.mxu0
    %v360 = vadd.f32 %v170, %v359
    %361 = vmatmul.f32.gmra.mxu0 %v186
    %v362 = vpop.f32.mrf.mxu0
    %v363 = vadd.f32 %v170, %v362
    %364 = vmatmul.f32.gmra.mxu0 %v189
    %v365 = vpop.f32.mrf.mxu0
    %v366 = vadd.f32 %v170, %v365
    %367 = vmatmul.f32.gmra.mxu0 %v192
    %v368 = vpop.f32.mrf.mxu0
    %v369 = vadd.f32 %v170, %v368
    %370 = vmatmul.f32.gmra.mxu0 %v195
    %v371 = vpop.f32.mrf.mxu0
    %v372 = vadd.f32 %v170, %v371
    %373 = vmatmul.f32.gmra.mxu0 %v198
    %v374 = vpop.f32.mrf.mxu0
    %v375 = vadd.f32 %v170, %v374
    %376 = vdwg.mxu0
    %377 = vst [vmem:[#allocation2] sm:$0xff] %v231
    %378 = vst [vmem:[#allocation2 + $0x8] sm:$0xff] %v272
    %379 = vst [vmem:[#allocation2 + $0x10] sm:$0xff] %v313
    %380 = vst [vmem:[#allocation2 + $0x18] sm:$0xff] %v354
    %381 = vst [vmem:[#allocation2 + $0x20] sm:$0xff] %v234
    %382 = vst [vmem:[#allocation2 + $0x28] sm:$0xff] %v275
    %383 = vst [vmem:[#allocation2 + $0x30] sm:$0xff] %v316
    %384 = vst [vmem:[#allocation2 + $0x38] sm:$0xff] %v357
    %385 = vst [vmem:[#allocation2 + $0x40] sm:$0xff] %v237
    %386 = vst [vmem:[#allocation2 + $0x48] sm:$0xff] %v278
    %387 = vst [vmem:[#allocation2 + $0x50] sm:$0xff] %v319
    %388 = vst [vmem:[#allocation2 + $0x58] sm:$0xff] %v360
    %389 = vst [vmem:[#allocation2 + $0x60] sm:$0xff] %v240
    %390 = vst [vmem:[#allocation2 + $0x68] sm:$0xff] %v281
    %391 = vst [vmem:[#allocation2 + $0x70] sm:$0xff] %v322
    %392 = vst [vmem:[#allocation2 + $0x78] sm:$0xff] %v363
    %393 = vst [vmem:[#allocation2 + $0x80] sm:$0xff] %v243
    %394 = vst [vmem:[#allocation2 + $0x88] sm:$0xff] %v284
    %395 = vst [vmem:[#allocation2 + $0x90] sm:$0xff] %v325
    %396 = vst [vmem:[#allocation2 + $0x98] sm:$0xff] %v366
    %397 = vst [vmem:[#allocation2 + $0xa0] sm:$0xff] %v246
    %398 = vst [vmem:[#allocation2 + $0xa8] sm:$0xff] %v287
    %399 = vst [vmem:[#allocation2 + $0xb0] sm:$0xff] %v328
    %400 = vst [vmem:[#allocation2 + $0xb8] sm:$0xff] %v369
    %401 = vst [vmem:[#allocation2 + $0xc0] sm:$0xff] %v249
    %402 = vst [vmem:[#allocation2 + $0xc8] sm:$0xff] %v290
    %403 = vst [vmem:[#allocation2 + $0xd0] sm:$0xff] %v331
    %404 = vst [vmem:[#allocation2 + $0xd8] sm:$0xff] %v372
    %405 = vst [vmem:[#allocation2 + $0xe0] sm:$0xff] %v252
    %406 = vst [vmem:[#allocation2 + $0xe8] sm:$0xff] %v293
    %407 = vst [vmem:[#allocation2 + $0xf0] sm:$0xff] %v334
    %408 = vst [vmem:[#allocation2 + $0xf8] sm:$0xff] %v375
    %s409 = smul.u32 0, 4
    %s410 = smul.addr %s409, 8
    %s411 = scalar_lea.vmem [#allocation2], %s410
    %v412 = vld [vmem:[%s411] sm:$0xff]
    %v413 = vld [vmem:[%s411 + $0x8] sm:$0xff]
    %v414 = vld [vmem:[%s411 + $0x10] sm:$0xff]
    %v415 = vld [vmem:[%s411 + $0x18] sm:$0xff]
    %v416 = vld [vmem:[#allocation5] sm:$0xff]
    %v417 = vld [vmem:[#allocation5 + $0x8] sm:$0xff]
    %v418 = vld [vmem:[#allocation5 + $0x10] sm:$0xff]
    %v419 = vld [vmem:[#allocation5 + $0x18] sm:$0xff]
    %v420 = vld [vmem:[#allocation5 + $0x20] sm:$0xff]
    %v421 = vld [vmem:[#allocation5 + $0x28] sm:$0xff]
    %v422 = vld [vmem:[#allocation5 + $0x30] sm:$0xff]
    %v423 = vld [vmem:[#allocation5 + $0x38] sm:$0xff]
    %v424 = vld [vmem:[#allocation5 + $0x40] sm:$0xff]
    %v425 = vld [vmem:[#allocation5 + $0x48] sm:$0xff]
    %v426 = vld [vmem:[#allocation5 + $0x50] sm:$0xff]
    %v427 = vld [vmem:[#allocation5 + $0x58] sm:$0xff]
    %v428 = vld [vmem:[#allocation5 + $0x60] sm:$0xff]
    %v429 = vld [vmem:[#allocation5 + $0x68] sm:$0xff]
    %v430 = vld [vmem:[#allocation5 + $0x70] sm:$0xff]
    %v431 = vld [vmem:[#allocation5 + $0x78] sm:$0xff]
    %v432 = vld [vmem:[#allocation5 + $0x80] sm:$0xff]
    %v433 = vld [vmem:[#allocation5 + $0x88] sm:$0xff]
    %v434 = vld [vmem:[#allocation5 + $0x90] sm:$0xff]
    %v435 = vld [vmem:[#allocation5 + $0x98] sm:$0xff]
    %v436 = vld [vmem:[#allocation5 + $0xa0] sm:$0xff]
    %v437 = vld [vmem:[#allocation5 + $0xa8] sm:$0xff]
    %v438 = vld [vmem:[#allocation5 + $0xb0] sm:$0xff]
    %v439 = vld [vmem:[#allocation5 + $0xb8] sm:$0xff]
    %v440 = vld [vmem:[#allocation5 + $0xc0] sm:$0xff]
    %v441 = vld [vmem:[#allocation5 + $0xc8] sm:$0xff]
    %v442 = vld [vmem:[#allocation5 + $0xd0] sm:$0xff]
    %v443 = vld [vmem:[#allocation5 + $0xd8] sm:$0xff]
    %v444 = vld [vmem:[#allocation5 + $0xe0] sm:$0xff]
    %v445 = vld [vmem:[#allocation5 + $0xe8] sm:$0xff]
    %v446 = vld [vmem:[#allocation5 + $0xf0] sm:$0xff]
    %v447 = vld [vmem:[#allocation5 + $0xf8] sm:$0xff]
    %v448 = vld [vmem:[#allocation5 + $0x100] sm:$0xff]
    %v449 = vld [vmem:[#allocation5 + $0x108] sm:$0xff]
    %v450 = vld [vmem:[#allocation5 + $0x110] sm:$0xff]
    %v451 = vld [vmem:[#allocation5 + $0x118] sm:$0xff]
    %v452 = vld [vmem:[#allocation5 + $0x120] sm:$0xff]
    %v453 = vld [vmem:[#allocation5 + $0x128] sm:$0xff]
    %v454 = vld [vmem:[#allocation5 + $0x130] sm:$0xff]
    %v455 = vld [vmem:[#allocation5 + $0x138] sm:$0xff]
    %v456 = vld [vmem:[#allocation5 + $0x140] sm:$0xff]
    %v457 = vld [vmem:[#allocation5 + $0x148] sm:$0xff]
    %v458 = vld [vmem:[#allocation5 + $0x150] sm:$0xff]
    %v459 = vld [vmem:[#allocation5 + $0x158] sm:$0xff]
    %v460 = vld [vmem:[#allocation5 + $0x160] sm:$0xff]
    %v461 = vld [vmem:[#allocation5 + $0x168] sm:$0xff]
    %v462 = vld [vmem:[#allocation5 + $0x170] sm:$0xff]
    %v463 = vld [vmem:[#allocation5 + $0x178] sm:$0xff]
    %v464 = vld [vmem:[#allocation5 + $0x180] sm:$0xff]
    %v465 = vld [vmem:[#allocation5 + $0x188] sm:$0xff]
    %v466 = vld [vmem:[#allocation5 + $0x190] sm:$0xff]
    %v467 = vld [vmem:[#allocation5 + $0x198] sm:$0xff]
    %v468 = vld [vmem:[#allocation5 + $0x1a0] sm:$0xff]
    %v469 = vld [vmem:[#allocation5 + $0x1a8] sm:$0xff]
    %v470 = vld [vmem:[#allocation5 + $0x1b0] sm:$0xff]
    %v471 = vld [vmem:[#allocation5 + $0x1b8] sm:$0xff]
    %v472 = vld [vmem:[#allocation5 + $0x1c0] sm:$0xff]
    %v473 = vld [vmem:[#allocation5 + $0x1c8] sm:$0xff]
    %v474 = vld [vmem:[#allocation5 + $0x1d0] sm:$0xff]
    %v475 = vld [vmem:[#allocation5 + $0x1d8] sm:$0xff]
    %v476 = vld [vmem:[#allocation5 + $0x1e0] sm:$0xff]
    %v477 = vld [vmem:[#allocation5 + $0x1e8] sm:$0xff]
    %v478 = vld [vmem:[#allocation5 + $0x1f0] sm:$0xff]
    %v479 = vld [vmem:[#allocation5 + $0x1f8] sm:$0xff]
    %480 = vmatpush.msra.mxu0 %v476
    %481 = vmatpush.msra.mxu0 %v472
    %482 = vmatpush.msra.mxu0 %v468
    %483 = vmatpush.msra.mxu0 %v464
    %484 = vmatpush.msra.mxu0 %v460
    %485 = vmatpush.msra.mxu0 %v456
    %486 = vmatpush.msra.mxu0 %v452
    %487 = vmatpush.msra.mxu0 %v448
    %488 = vmatpush.msra.mxu0 %v444
    %489 = vmatpush.msra.mxu0 %v440
    %490 = vmatpush.msra.mxu0 %v436
    %491 = vmatpush.msra.mxu0 %v432
    %492 = vmatpush.msra.mxu0 %v428
    %493 = vmatpush.msra.mxu0 %v424
    %494 = vmatpush.msra.mxu0 %v420
    %495 = vmatpush.msra.mxu0 %v416
    %496 = vmatmul.f32.gmra.mxu0 0.0
    %v497 = vpop.f32.mrf.mxu0
    %v498 = vadd.f32 0.0, %v497
    %499 = vdwg.mxu0
    %500 = vmatpush.msra.mxu0 %v477
    %501 = vmatpush.msra.mxu0 %v473
    %502 = vmatpush.msra.mxu0 %v469
    %503 = vmatpush.msra.mxu0 %v465
    %504 = vmatpush.msra.mxu0 %v461
    %505 = vmatpush.msra.mxu0 %v457
    %506 = vmatpush.msra.mxu0 %v453
    %507 = vmatpush.msra.mxu0 %v449
    %508 = vmatpush.msra.mxu0 %v445
    %509 = vmatpush.msra.mxu0 %v441
    %510 = vmatpush.msra.mxu0 %v437
    %511 = vmatpush.msra.mxu0 %v433
    %512 = vmatpush.msra.mxu0 %v429
    %513 = vmatpush.msra.mxu0 %v425
    %514 = vmatpush.msra.mxu0 %v421
    %515 = vmatpush.msra.mxu0 %v417
    %516 = vmatmul.f32.gmra.mxu0 0.0
    %v517 = vpop.f32.mrf.mxu0
    %v518 = vadd.f32 0.0, %v517
    %519 = vdwg.mxu0
    %520 = vmatpush.msra.mxu0 %v478
    %521 = vmatpush.msra.mxu0 %v474
    %522 = vmatpush.msra.mxu0 %v470
    %523 = vmatpush.msra.mxu0 %v466
    %524 = vmatpush.msra.mxu0 %v462
    %525 = vmatpush.msra.mxu0 %v458
    %526 = vmatpush.msra.mxu0 %v454
    %527 = vmatpush.msra.mxu0 %v450
    %528 = vmatpush.msra.mxu0 %v446
    %529 = vmatpush.msra.mxu0 %v442
    %530 = vmatpush.msra.mxu0 %v438
    %531 = vmatpush.msra.mxu0 %v434
    %532 = vmatpush.msra.mxu0 %v430
    %533 = vmatpush.msra.mxu0 %v426
    %534 = vmatpush.msra.mxu0 %v422
    %535 = vmatpush.msra.mxu0 %v418
    %536 = vmatmul.f32.gmra.mxu0 0.0
    %v537 = vpop.f32.mrf.mxu0
    %v538 = vadd.f32 0.0, %v537
    %539 = vdwg.mxu0
    %540 = vmatpush.msra.mxu0 %v479
    %541 = vmatpush.msra.mxu0 %v475
    %542 = vmatpush.msra.mxu0 %v471
    %543 = vmatpush.msra.mxu0 %v467
    %544 = vmatpush.msra.mxu0 %v463
    %545 = vmatpush.msra.mxu0 %v459
    %546 = vmatpush.msra.mxu0 %v455
    %547 = vmatpush.msra.mxu0 %v451
    %548 = vmatpush.msra.mxu0 %v447
    %549 = vmatpush.msra.mxu0 %v443
    %550 = vmatpush.msra.mxu0 %v439
    %551 = vmatpush.msra.mxu0 %v435
    %552 = vmatpush.msra.mxu0 %v431
    %553 = vmatpush.msra.mxu0 %v427
    %554 = vmatpush.msra.mxu0 %v423
    %555 = vmatpush.msra.mxu0 %v419
    %556 = vmatmul.f32.gmra.mxu0 0.0
    %v557 = vpop.f32.mrf.mxu0
    %v558 = vadd.f32 0.0, %v557
    %559 = vdwg.mxu0
    %v560 = vadd.f32 %v412, %v498
    %v561 = vadd.f32 %v413, %v518
    %v562 = vadd.f32 %v414, %v538
    %v563 = vadd.f32 %v415, %v558
    %v564 = vmul.f32 %v560, 0.5
    %v565 = vtanh.pop %v564
    %v566 = vmul.f32 %v565, 0.5
    %v567 = vadd.f32 %v566, 0.5
    %v568 = vmul.f32 %v561, 0.5
    %v569 = vtanh.pop %v568
    %v570 = vmul.f32 %v569, 0.5
    %v571 = vadd.f32 %v570, 0.5
    %v572 = vtanh.pop %v562
    %v573 = vmul.f32 %v563, 0.5
    %v574 = vtanh.pop %v573
    %v575 = vmul.f32 %v574, 0.5
    %v576 = vadd.f32 %v575, 0.5
    %v577 = vmul.f32 %v571, 0.0
    %v578 = vmul.f32 %v567, %v572
    %v579 = vadd.f32 %v577, %v578
    %v580 = vtanh.pop %v579
    %v581 = vmul.f32 %v576, %v580
    %582 = vst [vmem:[#allocation3] sm:$0xff] %v581
    %s583 = smul.u32 1, 4
    %s584 = smul.addr %s583, 8
    %s585 = scalar_lea.vmem [#allocation2], %s584
    %v586 = vld [vmem:[%s585] sm:$0xff]
    %v587 = vld [vmem:[%s585 + $0x8] sm:$0xff]
    %v588 = vld [vmem:[%s585 + $0x10] sm:$0xff]
    %v589 = vld [vmem:[%s585 + $0x18] sm:$0xff]
    %v590 = vld [vmem:[#allocation5] sm:$0xff]
    %v591 = vld [vmem:[#allocation5 + $0x8] sm:$0xff]
    %v592 = vld [vmem:[#allocation5 + $0x10] sm:$0xff]
    %v593 = vld [vmem:[#allocation5 + $0x18] sm:$0xff]
    %v594 = vld [vmem:[#allocation5 + $0x20] sm:$0xff]
    %v595 = vld [vmem:[#allocation5 + $0x28] sm:$0xff]
    %v596 = vld [vmem:[#allocation5 + $0x30] sm:$0xff]
    %v597 = vld [vmem:[#allocation5 + $0x38] sm:$0xff]
    %v598 = vld [vmem:[#allocation5 + $0x40] sm:$0xff]
    %v599 = vld [vmem:[#allocation5 + $0x48] sm:$0xff]
    %v600 = vld [vmem:[#allocation5 + $0x50] sm:$0xff]
    %v601 = vld [vmem:[#allocation5 + $0x58] sm:$0xff]
    %v602 = vld [vmem:[#allocation5 + $0x60] sm:$0xff]
    %v603 = vld [vmem:[#allocation5 + $0x68] sm:$0xff]
    %v604 = vld [vmem:[#allocation5 + $0x70] sm:$0xff]
    %v605 = vld [vmem:[#allocation5 + $0x78] sm:$0xff]
    %v606 = vld [vmem:[#allocation5 + $0x80] sm:$0xff]
    %v607 = vld [vmem:[#allocation5 + $0x88] sm:$0xff]
    %v608 = vld [vmem:[#allocation5 + $0x90] sm:$0xff]
    %v609 = vld [vmem:[#allocation5 + $0x98] sm:$0xff]
    %v610 = vld [vmem:[#allocation5 + $0xa0] sm:$0xff]
    %v611 = vld [vmem:[#allocation5 + $0xa8] sm:$0xff]
    %v612 = vld [vmem:[#allocation5 + $0xb0] sm:$0xff]
    %v613 = vld [vmem:[#allocation5 + $0xb8] sm:$0xff]
    %v614 = vld [vmem:[#allocation5 + $0xc0] sm:$0xff]
    %v615 = vld [vmem:[#allocation5 + $0xc8] sm:$0xff]
    %v616 = vld [vmem:[#allocation5 + $0xd0] sm:$0xff]
    %v617 = vld [vmem:[#allocation5 + $0xd8] sm:$0xff]
    %v618 = vld [vmem:[#allocation5 + $0xe0] sm:$0xff]
    %v619 = vld [vmem:[#allocation5 + $0xe8] sm:$0xff]
    %v620 = vld [vmem:[#allocation5 + $0xf0] sm:$0xff]
    %v621 = vld [vmem:[#allocation5 + $0xf8] sm:$0xff]
    %v622 = vld [vmem:[#allocation5 + $0x100] sm:$0xff]
    %v623 = vld [vmem:[#allocation5 + $0x108] sm:$0xff]
    %v624 = vld [vmem:[#allocation5 + $0x110] sm:$0xff]
    %v625 = vld [vmem:[#allocation5 + $0x118] sm:$0xff]
    %v626 = vld [vmem:[#allocation5 + $0x120] sm:$0xff]
    %v627 = vld [vmem:[#allocation5 + $0x128] sm:$0xff]
    %v628 = vld [vmem:[#allocation5 + $0x130] sm:$0xff]
    %v629 = vld [vmem:[#allocation5 + $0x138] sm:$0xff]
    %v630 = vld [vmem:[#allocation5 + $0x140] sm:$0xff]
    %v631 = vld [vmem:[#allocation5 + $0x148] sm:$0xff]
    %v632 = vld [vmem:[#allocation5 + $0x150] sm:$0xff]
    %v633 = vld [vmem:[#allocation5 + $0x158] sm:$0xff]
    %v634 = vld [vmem:[#allocation5 + $0x160] sm:$0xff]
    %v635 = vld [vmem:[#allocation5 + $0x168] sm:$0xff]
    %v636 = vld [vmem:[#allocation5 + $0x170] sm:$0xff]
    %v637 = vld [vmem:[#allocation5 + $0x178] sm:$0xff]
    %v638 = vld [vmem:[#allocation5 + $0x180] sm:$0xff]
    %v639 = vld [vmem:[#allocation5 + $0x188] sm:$0xff]
    %v640 = vld [vmem:[#allocation5 + $0x190] sm:$0xff]
    %v641 = vld [vmem:[#allocation5 + $0x198] sm:$0xff]
    %v642 = vld [vmem:[#allocation5 + $0x1a0] sm:$0xff]
    %v643 = vld [vmem:[#allocation5 + $0x1a8] sm:$0xff]
    %v644 = vld [vmem:[#allocation5 + $0x1b0] sm:$0xff]
    %v645 = vld [vmem:[#allocation5 + $0x1b8] sm:$0xff]
    %v646 = vld [vmem:[#allocation5 + $0x1c0] sm:$0xff]
    %v647 = vld [vmem:[#allocation5 + $0x1c8] sm:$0xff]
    %v648 = vld [vmem:[#allocation5 + $0x1d0] sm:$0xff]
    %v649 = vld [vmem:[#allocation5 + $0x1d8] sm:$0xff]
    %v650 = vld [vmem:[#allocation5 + $0x1e0] sm:$0xff]
    %v651 = vld [vmem:[#allocation5 + $0x1e8] sm:$0xff]
    %v652 = vld [vmem:[#allocation5 + $0x1f0] sm:$0xff]
    %v653 = vld [vmem:[#allocation5 + $0x1f8] sm:$0xff]
    %654 = vmatpush.msra.mxu0 %v650
    %655 = vmatpush.msra.mxu0 %v646
    %656 = vmatpush.msra.mxu0 %v642
    %657 = vmatpush.msra.mxu0 %v638
    %658 = vmatpush.msra.mxu0 %v634
    %659 = vmatpush.msra.mxu0 %v630
    %660 = vmatpush.msra.mxu0 %v626
    %661 = vmatpush.msra.mxu0 %v622
    %662 = vmatpush.msra.mxu0 %v618
    %663 = vmatpush.msra.mxu0 %v614
    %664 = vmatpush.msra.mxu0 %v610
    %665 = vmatpush.msra.mxu0 %v606
    %666 = vmatpush.msra.mxu0 %v602
    %667 = vmatpush.msra.mxu0 %v598
    %668 = vmatpush.msra.mxu0 %v594
    %669 = vmatpush.msra.mxu0 %v590
    %670 = vmatmul.f32.gmra.mxu0 %v581
    %v671 = vpop.f32.mrf.mxu0
    %v672 = vadd.f32 0.0, %v671
    %673 = vdwg.mxu0
    %674 = vmatpush.msra.mxu0 %v651
    %675 = vmatpush.msra.mxu0 %v647
    %676 = vmatpush.msra.mxu0 %v643
    %677 = vmatpush.msra.mxu0 %v639
    %678 = vmatpush.msra.mxu0 %v635
    %679 = vmatpush.msra.mxu0 %v631
    %680 = vmatpush.msra.mxu0 %v627
    %681 = vmatpush.msra.mxu0 %v623
    %682 = vmatpush.msra.mxu0 %v619
    %683 = vmatpush.msra.mxu0 %v615
    %684 = vmatpush.msra.mxu0 %v611
    %685 = vmatpush.msra.mxu0 %v607
    %686 = vmatpush.msra.mxu0 %v603
    %687 = vmatpush.msra.mxu0 %v599
    %688 = vmatpush.msra.mxu0 %v595
    %689 = vmatpush.msra.mxu0 %v591
    %690 = vmatmul.f32.gmra.mxu0 %v581
    %v691 = vpop.f32.mrf.mxu0
    %v692 = vadd.f32 0.0, %v691
    %693 = vdwg.mxu0
    %694 = vmatpush.msra.mxu0 %v652
    %695 = vmatpush.msra.mxu0 %v648
    %696 = vmatpush.msra.mxu0 %v644
    %697 = vmatpush.msra.mxu0 %v640
    %698 = vmatpush.msra.mxu0 %v636
    %699 = vmatpush.msra.mxu0 %v632
    %700 = vmatpush.msra.mxu0 %v628
    %701 = vmatpush.msra.mxu0 %v624
    %702 = vmatpush.msra.mxu0 %v620
    %703 = vmatpush.msra.mxu0 %v616
    %704 = vmatpush.msra.mxu0 %v612
    %705 = vmatpush.msra.mxu0 %v608
    %706 = vmatpush.msra.mxu0 %v604
    %707 = vmatpush.msra.mxu0 %v600
    %708 = vmatpush.msra.mxu0 %v596
    %709 = vmatpush.msra.mxu0 %v592
    %710 = vmatmul.f32.gmra.mxu0 %v581
    %v711 = vpop.f32.mrf.mxu0
    %v712 = vadd.f32 0.0, %v711
    %713 = vdwg.mxu0
    %714 = vmatpush.msra.mxu0 %v653
    %715 = vmatpush.msra.mxu0 %v649
    %716 = vmatpush.msra.mxu0 %v645
    %717 = vmatpush.msra.mxu0 %v641
    %718 = vmatpush.msra.mxu0 %v637
    %719 = vmatpush.msra.mxu0 %v633
    %720 = vmatpush.msra.mxu0 %v629
    %721 = vmatpush.msra.mxu0 %v625
    %722 = vmatpush.msra.mxu0 %v621
    %723 = vmatpush.msra.mxu0 %v617
    %724 = vmatpush.msra.mxu0 %v613
    %725 = vmatpush.msra.mxu0 %v609
    %726 = vmatpush.msra.mxu0 %v605
    %727 = vmatpush.msra.mxu0 %v601
    %728 = vmatpush.msra.mxu0 %v597
    %729 = vmatpush.msra.mxu0 %v593
    %730 = vmatmul.f32.gmra.mxu0 %v581
    %v731 = vpop.f32.mrf.mxu0
    %v732 = vadd.f32 0.0, %v731
    %733 = vdwg.mxu0
    %v734 = vadd.f32 %v586, %v672
    %v735 = vadd.f32 %v587, %v692
    %v736 = vadd.f32 %v588, %v712
    %v737 = vadd.f32 %v589, %v732
    %v738 = vmul.f32 %v734, 0.5
    %v739 = vtanh.pop %v738
    %v740 = vmul.f32 %v739, 0.5
    %v741 = vadd.f32 %v740, 0.5
    %v742 = vmul.f32 %v735, 0.5
    %v743 = vtanh.pop %v742
    %v744 = vmul.f32 %v743, 0.5
    %v745 = vadd.f32 %v744, 0.5
    %v746 = vtanh.pop %v736
    %v747 = vmul.f32 %v737, 0.5
    %v748 = vtanh.pop %v747
    %v749 = vmul.f32 %v748, 0.5
    %v750 = vadd.f32 %v749, 0.5
    %v751 = vmul.f32 %v745, %v579
    %v752 = vmul.f32 %v741, %v746
    %v753 = vadd.f32 %v751, %v752
    %v754 = vtanh.pop %v753
    %v755 = vmul.f32 %v750, %v754
    %s756 = scalar_lea.vmem [#allocation3], 8
    %757 = vst [vmem:[%s756] sm:$0xff] %v755
    %s758 = smul.u32 2, 4
    %s759 = smul.addr %s758, 8
    %s760 = scalar_lea.vmem [#allocation2], %s759
    %v761 = vld [vmem:[%s760] sm:$0xff]
    %v762 = vld [vmem:[%s760 + $0x8] sm:$0xff]
    %v763 = vld [vmem:[%s760 + $0x10] sm:$0xff]
    %v764 = vld [vmem:[%s760 + $0x18] sm:$0xff]
    %v765 = vld [vmem:[#allocation5] sm:$0xff]
    %v766 = vld [vmem:[#allocation5 + $0x8] sm:$0xff]
    %v767 = vld [vmem:[#allocation5 + $0x10] sm:$0xff]
    %v768 = vld [vmem:[#allocation5 + $0x18] sm:$0xff]
    %v769 = vld [vmem:[#allocation5 + $0x20] sm:$0xff]
    %v770 = vld [vmem:[#allocation5 + $0x28] sm:$0xff]
    %v771 = vld [vmem:[#allocation5 + $0x30] sm:$0xff]
    %v772 = vld [vmem:[#allocation5 + $0x38] sm:$0xff]
    %v773 = vld [vmem:[#allocation5 + $0x40] sm:$0xff]
    %v774 = vld [vmem:[#allocation5 + $0x48] sm:$0xff]
    %v775 = vld [vmem:[#allocation5 + $0x50] sm:$0xff]
    %v776 = vld [vmem:[#allocation5 + $0x58] sm:$0xff]
    %v777 = vld [vmem:[#allocation5 + $0x60] sm:$0xff]
    %v778 = vld [vmem:[#allocation5 + $0x68] sm:$0xff]
    %v779 = vld [vmem:[#allocation5 + $0x70] sm:$0xff]
    %v780 = vld [vmem:[#allocation5 + $0x78] sm:$0xff]
    %v781 = vld [vmem:[#allocation5 + $0x80] sm:$0xff]
    %v782 = vld [vmem:[#allocation5 + $0x88] sm:$0xff]
    %v783 = vld [vmem:[#allocation5 + $0x90] sm:$0xff]
    %v784 = vld [vmem:[#allocation5 + $0x98] sm:$0xff]
    %v785 = vld [vmem:[#allocation5 + $0xa0] sm:$0xff]
    %v786 = vld [vmem:[#allocation5 + $0xa8] sm:$0xff]
    %v787 = vld [vmem:[#allocation5 + $0xb0] sm:$0xff]
    %v788 = vld [vmem:[#allocation5 + $0xb8] sm:$0xff]
    %v789 = vld [vmem:[#allocation5 + $0xc0] sm:$0xff]
    %v790 = vld [vmem:[#allocation5 + $0xc8] sm:$0xff]
    %v791 = vld [vmem:[#allocation5 + $0xd0] sm:$0xff]
    %v792 = vld [vmem:[#allocation5 + $0xd8] sm:$0xff]
    %v793 = vld [vmem:[#allocation5 + $0xe0] sm:$0xff]
    %v794 = vld [vmem:[#allocation5 + $0xe8] sm:$0xff]
    %v795 = vld [vmem:[#allocation5 + $0xf0] sm:$0xff]
    %v796 = vld [vmem:[#allocation5 + $0xf8] sm:$0xff]
    %v797 = vld [vmem:[#allocation5 + $0x100] sm:$0xff]
    %v798 = vld [vmem:[#allocation5 + $0x108] sm:$0xff]
    %v799 = vld [vmem:[#allocation5 + $0x110] sm:$0xff]
    %v800 = vld [vmem:[#allocation5 + $0x118] sm:$0xff]
    %v801 = vld [vmem:[#allocation5 + $0x120] sm:$0xff]
    %v802 = vld [vmem:[#allocation5 + $0x128] sm:$0xff]
    %v803 = vld [vmem:[#allocation5 + $0x130] sm:$0xff]
    %v804 = vld [vmem:[#allocation5 + $0x138] sm:$0xff]
    %v805 = vld [vmem:[#allocation5 + $0x140] sm:$0xff]
    %v806 = vld [vmem:[#allocation5 + $0x148] sm:$0xff]
    %v807 = vld [vmem:[#allocation5 + $0x150] sm:$0xff]
    %v808 = vld [vmem:[#allocation5 + $0x158] sm:$0xff]
    %v809 = vld [vmem:[#allocation5 + $0x160] sm:$0xff]
    %v810 = vld [vmem:[#allocation5 + $0x168] sm:$0xff]
    %v811 = vld [vmem:[#allocation5 + $0x170] sm:$0xff]
    %v812 = vld [vmem:[#allocation5 + $0x178] sm:$0xff]
    %v813 = vld [vmem:[#allocation5 + $0x180] sm:$0xff]
    %v814 = vld [vmem:[#allocation5 + $0x188] sm:$0xff]
    %v815 = vld [vmem:[#allocation5 + $0x190] sm:$0xff]
    %v816 = vld [vmem:[#allocation5 + $0x198] sm:$0xff]
    %v817 = vld [vmem:[#allocation5 + $0x1a0] sm:$0xff]
    %v818 = vld [vmem:[#allocation5 + $0x1a8] sm:$0xff]
    %v819 = vld [vmem:[#allocation5 + $0x1b0] sm:$0xff]
    %v820 = vld [vmem:[#allocation5 + $0x1b8] sm:$0xff]
    %v821 = vld [vmem:[#allocation5 + $0x1c0] sm:$0xff]
    %v822 = vld [vmem:[#allocation5 + $0x1c8] sm:$0xff]
    %v823 = vld [vmem:[#allocation5 + $0x1d0] sm:$0xff]
    %v824 = vld [vmem:[#allocation5 + $0x1d8] sm:$0xff]
    %v825 = vld [vmem:[#allocation5 + $0x1e0] sm:$0xff]
    %v826 = vld [vmem:[#allocation5 + $0x1e8] sm:$0xff]
    %v827 = vld [vmem:[#allocation5 + $0x1f0] sm:$0xff]
    %v828 = vld [vmem:[#allocation5 + $0x1f8] sm:$0xff]
    %829 = vmatpush.msra.mxu0 %v825
    %830 = vmatpush.msra.mxu0 %v821
    %831 = vmatpush.msra.mxu0 %v817
    %832 = vmatpush.msra.mxu0 %v813
    %833 = vmatpush.msra.mxu0 %v809
    %834 = vmatpush.msra.mxu0 %v805
    %835 = vmatpush.msra.mxu0 %v801
    %836 = vmatpush.msra.mxu0 %v797
    %837 = vmatpush.msra.mxu0 %v793
    %838 = vmatpush.msra.mxu0 %v789
    %839 = vmatpush.msra.mxu0 %v785
    %840 = vmatpush.msra.mxu0 %v781
    %841 = vmatpush.msra.mxu0 %v777
    %842 = vmatpush.msra.mxu0 %v773
    %843 = vmatpush.msra.mxu0 %v769
    %844 = vmatpush.msra.mxu0 %v765
    %845 = vmatmul.f32.gmra.mxu0 %v755
    %v846 = vpop.f32.mrf.mxu0
    %v847 = vadd.f32 0.0, %v846
    %848 = vdwg.mxu0
    %849 = vmatpush.msra.mxu0 %v826
    %850 = vmatpush.msra.mxu0 %v822
    %851 = vmatpush.msra.mxu0 %v818
    %852 = vmatpush.msra.mxu0 %v814
    %853 = vmatpush.msra.mxu0 %v810
    %854 = vmatpush.msra.mxu0 %v806
    %855 = vmatpush.msra.mxu0 %v802
    %856 = vmatpush.msra.mxu0 %v798
    %857 = vmatpush.msra.mxu0 %v794
    %858 = vmatpush.msra.mxu0 %v790
    %859 = vmatpush.msra.mxu0 %v786
    %860 = vmatpush.msra.mxu0 %v782
    %861 = vmatpush.msra.mxu0 %v778
    %862 = vmatpush.msra.mxu0 %v774
    %863 = vmatpush.msra.mxu0 %v770
    %864 = vmatpush.msra.mxu0 %v766
    %865 = vmatmul.f32.gmra.mxu0 %v755
    %v866 = vpop.f32.mrf.mxu0
    %v867 = vadd.f32 0.0, %v866
    %868 = vdwg.mxu0
    %869 = vmatpush.msra.mxu0 %v827
    %870 = vmatpush.msra.mxu0 %v823
    %871 = vmatpush.msra.mxu0 %v819
    %872 = vmatpush.msra.mxu0 %v815
    %873 = vmatpush.msra.mxu0 %v811
    %874 = vmatpush.msra.mxu0 %v807
    %875 = vmatpush.msra.mxu0 %v803
    %876 = vmatpush.msra.mxu0 %v799
    %877 = vmatpush.msra.mxu0 %v795
    %878 = vmatpush.msra.mxu0 %v791
    %879 = vmatpush.msra.mxu0 %v787
    %880 = vmatpush.msra.mxu0 %v783
    %881 = vmatpush.msra.mxu0 %v779
    %882 = vmatpush.msra.mxu0 %v775
    %883 = vmatpush.msra.mxu0 %v771
    %884 = vmatpush.msra.mxu0 %v767
    %885 = vmatmul.f32.gmra.mxu0 %v755
    %v886 = vpop.f32.mrf.mxu0
    %v887 = vadd.f32 0.0, %v886
    %888 = vdwg.mxu0
    %889 = vmatpush.msra.mxu0 %v828
    %890 = vmatpush.msra.mxu0 %v824
    %891 = vmatpush.msra.mxu0 %v820
    %892 = vmatpush.msra.mxu0 %v816
    %893 = vmatpush.msra.mxu0 %v812
    %894 = vmatpush.msra.mxu0 %v808
    %895 = vmatpush.msra.mxu0 %v804
    %896 = vmatpush.msra.mxu0 %v800
    %897 = vmatpush.msra.mxu0 %v796
    %898 = vmatpush.msra.mxu0 %v792
    %899 = vmatpush.msra.mxu0 %v788
    %900 = vmatpush.msra.mxu0 %v784
    %901 = vmatpush.msra.mxu0 %v780
    %902 = vmatpush.msra.mxu0 %v776
    %903 = vmatpush.msra.mxu0 %v772
    %904 = vmatpush.msra.mxu0 %v768
    %905 = vmatmul.f32.gmra.mxu0 %v755
    %v906 = vpop.f32.mrf.mxu0
    %v907 = vadd.f32 0.0, %v906
    %908 = vdwg.mxu0
    %v909 = vadd.f32 %v761, %v847
    %v910 = vadd.f32 %v762, %v867
    %v911 = vadd.f32 %v763, %v887
    %v912 = vadd.f32 %v764, %v907
    %v913 = vmul.f32 %v909, 0.5
    %v914 = vtanh.pop %v913
    %v915 = vmul.f32 %v914, 0.5
    %v916 = vadd.f32 %v915, 0.5
    %v917 = vmul.f32 %v910, 0.5
    %v918 = vtanh.pop %v917
    %v919 = vmul.f32 %v918, 0.5
    %v920 = vadd.f32 %v919, 0.5
    %v921 = vtanh.pop %v911
    %v922 = vmul.f32 %v912, 0.5
    %v923 = vtanh.pop %v922
    %v924 = vmul.f32 %v923, 0.5
    %v925 = vadd.f32 %v924, 0.5
    %v926 = vmul.f32 %v920, %v753
    %v927 = vmul.f32 %v916, %v921
    %v928 = vadd.f32 %v926, %v927
    %v929 = vtanh.pop %v928
    %v930 = vmul.f32 %v925, %v929
    %s931 = scalar_lea.vmem [#allocation3], 16
    %932 = vst [vmem:[%s931] sm:$0xff] %v930
    %s933 = smul.u32 3, 4
    %s934 = smul.addr %s933, 8
    %s935 = scalar_lea.vmem [#allocation2], %s934
    %v936 = vld [vmem:[%s935] sm:$0xff]
    %v937 = vld [vmem:[%s935 + $0x8] sm:$0xff]
    %v938 = vld [vmem:[%s935 + $0x10] sm:$0xff]
    %v939 = vld [vmem:[%s935 + $0x18] sm:$0xff]
    %v940 = vld [vmem:[#allocation5] sm:$0xff]
    %v941 = vld [vmem:[#allocation5 + $0x8] sm:$0xff]
    %v942 = vld [vmem:[#allocation5 + $0x10] sm:$0xff]
    %v943 = vld [vmem:[#allocation5 + $0x18] sm:$0xff]
    %v944 = vld [vmem:[#allocation5 + $0x20] sm:$0xff]
    %v945 = vld [vmem:[#allocation5 + $0x28] sm:$0xff]
    %v946 = vld [vmem:[#allocation5 + $0x30] sm:$0xff]
    %v947 = vld [vmem:[#allocation5 + $0x38] sm:$0xff]
    %v948 = vld [vmem:[#allocation5 + $0x40] sm:$0xff]
    %v949 = vld [vmem:[#allocation5 + $0x48] sm:$0xff]
    %v950 = vld [vmem:[#allocation5 + $0x50] sm:$0xff]
    %v951 = vld [vmem:[#allocation5 + $0x58] sm:$0xff]
    %v952 = vld [vmem:[#allocation5 + $0x60] sm:$0xff]
    %v953 = vld [vmem:[#allocation5 + $0x68] sm:$0xff]
    %v954 = vld [vmem:[#allocation5 + $0x70] sm:$0xff]
    %v955 = vld [vmem:[#allocation5 + $0x78] sm:$0xff]
    %v956 = vld [vmem:[#allocation5 + $0x80] sm:$0xff]
    %v957 = vld [vmem:[#allocation5 + $0x88] sm:$0xff]
    %v958 = vld [vmem:[#allocation5 + $0x90] sm:$0xff]
    %v959 = vld [vmem:[#allocation5 + $0x98] sm:$0xff]
    %v960 = vld [vmem:[#allocation5 + $0xa0] sm:$0xff]
    %v961 = vld [vmem:[#allocation5 + $0xa8] sm:$0xff]
    %v962 = vld [vmem:[#allocation5 + $0xb0] sm:$0xff]
    %v963 = vld [vmem:[#allocation5 + $0xb8] sm:$0xff]
    %v964 = vld [vmem:[#allocation5 + $0xc0] sm:$0xff]
    %v965 = vld [vmem:[#allocation5 + $0xc8] sm:$0xff]
    %v966 = vld [vmem:[#allocation5 + $0xd0] sm:$0xff]
    %v967 = vld [vmem:[#allocation5 + $0xd8] sm:$0xff]
    %v968 = vld [vmem:[#allocation5 + $0xe0] sm:$0xff]
    %v969 = vld [vmem:[#allocation5 + $0xe8] sm:$0xff]
    %v970 = vld [vmem:[#allocation5 + $0xf0] sm:$0xff]
    %v971 = vld [vmem:[#allocation5 + $0xf8] sm:$0xff]
    %v972 = vld [vmem:[#allocation5 + $0x100] sm:$0xff]
    %v973 = vld [vmem:[#allocation5 + $0x108] sm:$0xff]
    %v974 = vld [vmem:[#allocation5 + $0x110] sm:$0xff]
    %v975 = vld [vmem:[#allocation5 + $0x118] sm:$0xff]
    %v976 = vld [vmem:[#allocation5 + $0x120] sm:$0xff]
    %v977 = vld [vmem:[#allocation5 + $0x128] sm:$0xff]
    %v978 = vld [vmem:[#allocation5 + $0x130] sm:$0xff]
    %v979 = vld [vmem:[#allocation5 + $0x138] sm:$0xff]
    %v980 = vld [vmem:[#allocation5 + $0x140] sm:$0xff]
    %v981 = vld [vmem:[#allocation5 + $0x148] sm:$0xff]
    %v982 = vld [vmem:[#allocation5 + $0x150] sm:$0xff]
    %v983 = vld [vmem:[#allocation5 + $0x158] sm:$0xff]
    %v984 = vld [vmem:[#allocation5 + $0x160] sm:$0xff]
    %v985 = vld [vmem:[#allocation5 + $0x168] sm:$0xff]
    %v986 = vld [vmem:[#allocation5 + $0x170] sm:$0xff]
    %v987 = vld [vmem:[#allocation5 + $0x178] sm:$0xff]
    %v988 = vld [vmem:[#allocation5 + $0x180] sm:$0xff]
    %v989 = vld [vmem:[#allocation5 + $0x188] sm:$0xff]
    %v990 = vld [vmem:[#allocation5 + $0x190] sm:$0xff]
    %v991 = vld [vmem:[#allocation5 + $0x198] sm:$0xff]
    %v992 = vld [vmem:[#allocation5 + $0x1a0] sm:$0xff]
    %v993 = vld [vmem:[#allocation5 + $0x1a8] sm:$0xff]
    %v994 = vld [vmem:[#allocation5 + $0x1b0] sm:$0xff]
    %v995 = vld [vmem:[#allocation5 + $0x1b8] sm:$0xff]
    %v996 = vld [vmem:[#allocation5 + $0x1c0] sm:$0xff]
    %v997 = vld [vmem:[#allocation5 + $0x1c8] sm:$0xff]
    %v998 = vld [vmem:[#allocation5 + $0x1d0] sm:$0xff]
    %v999 = vld [vmem:[#allocation5 + $0x1d8] sm:$0xff]
    %v1000 = vld [vmem:[#allocation5 + $0x1e0] sm:$0xff]
    %v1001 = vld [vmem:[#allocation5 + $0x1e8] sm:$0xff]
    %v1002 = vld [vmem:[#allocation5 + $0x1f0] sm:$0xff]
    %v1003 = vld [vmem:[#allocation5 + $0x1f8] sm:$0xff]
    %1004 = vmatpush.msra.mxu0 %v1000
    %1005 = vmatpush.msra.mxu0 %v996
    %1006 = vmatpush.msra.mxu0 %v992
    %1007 = vmatpush.msra.mxu0 %v988
    %1008 = vmatpush.msra.mxu0 %v984
    %1009 = vmatpush.msra.mxu0 %v980
    %1010 = vmatpush.msra.mxu0 %v976
    %1011 = vmatpush.msra.mxu0 %v972
    %1012 = vmatpush.msra.mxu0 %v968
    %1013 = vmatpush.msra.mxu0 %v964
    %1014 = vmatpush.msra.mxu0 %v960
    %1015 = vmatpush.msra.mxu0 %v956
    %1016 = vmatpush.msra.mxu0 %v952
    %1017 = vmatpush.msra.mxu0 %v948
    %1018 = vmatpush.msra.mxu0 %v944
    %1019 = vmatpush.msra.mxu0 %v940
    %1020 = vmatmul.f32.gmra.mxu0 %v930
    %v1021 = vpop.f32.mrf.mxu0
    %v1022 = vadd.f32 0.0, %v1021
    %1023 = vdwg.mxu0
    %1024 = vmatpush.msra.mxu0 %v1001
    %1025 = vmatpush.msra.mxu0 %v997
    %1026 = vmatpush.msra.mxu0 %v993
    %1027 = vmatpush.msra.mxu0 %v989
    %1028 = vmatpush.msra.mxu0 %v985
    %1029 = vmatpush.msra.mxu0 %v981
    %1030 = vmatpush.msra.mxu0 %v977
    %1031 = vmatpush.msra.mxu0 %v973
    %1032 = vmatpush.msra.mxu0 %v969
    %1033 = vmatpush.msra.mxu0 %v965
    %1034 = vmatpush.msra.mxu0 %v961
    %1035 = vmatpush.msra.mxu0 %v957
    %1036 = vmatpush.msra.mxu0 %v953
    %1037 = vmatpush.msra.mxu0 %v949
    %1038 = vmatpush.msra.mxu0 %v945
    %1039 = vmatpush.msra.mxu0 %v941
    %1040 = vmatmul.f32.gmra.mxu0 %v930
    %v1041 = vpop.f32.mrf.mxu0
    %v1042 = vadd.f32 0.0, %v1041
    %1043 = vdwg.mxu0
    %1044 = vmatpush.msra.mxu0 %v1002
    %1045 = vmatpush.msra.mxu0 %v998
    %1046 = vmatpush.msra.mxu0 %v994
    %1047 = vmatpush.msra.mxu0 %v990
    %1048 = vmatpush.msra.mxu0 %v986
    %1049 = vmatpush.msra.mxu0 %v982
    %1050 = vmatpush.msra.mxu0 %v978
    %1051 = vmatpush.msra.mxu0 %v974
    %1052 = vmatpush.msra.mxu0 %v970
    %1053 = vmatpush.msra.mxu0 %v966
    %1054 = vmatpush.msra.mxu0 %v962
    %1055 = vmatpush.msra.mxu0 %v958
    %1056 = vmatpush.msra.mxu0 %v954
    %1057 = vmatpush.msra.mxu0 %v950
    %1058 = vmatpush.msra.mxu0 %v946
    %1059 = vmatpush.msra.mxu0 %v942
    %1060 = vmatmul.f32.gmra.mxu0 %v930
    %v1061 = vpop.f32.mrf.mxu0
    %v1062 = vadd.f32 0.0, %v1061
    %1063 = vdwg.mxu0
    %1064 = vmatpush.msra.mxu0 %v1003
    %1065 = vmatpush.msra.mxu0 %v999
    %1066 = vmatpush.msra.mxu0 %v995
    %1067 = vmatpush.msra.mxu0 %v991
    %1068 = vmatpush.msra.mxu0 %v987
    %1069 = vmatpush.msra.mxu0 %v983
    %1070 = vmatpush.msra.mxu0 %v979
    %1071 = vmatpush.msra.mxu0 %v975
    %1072 = vmatpush.msra.mxu0 %v971
    %1073 = vmatpush.msra.mxu0 %v967
    %1074 = vmatpush.msra.mxu0 %v963
    %1075 = vmatpush.msra.mxu0 %v959
    %1076 = vmatpush.msra.mxu0 %v955
    %1077 = vmatpush.msra.mxu0 %v951
    %1078 = vmatpush.msra.mxu0 %v947
    %1079 = vmatpush.msra.mxu0 %v943
    %1080 = vmatmul.f32.gmra.mxu0 %v930
    %v1081 = vpop.f32.mrf.mxu0
    %v1082 = vadd.f32 0.0, %v1081
    %1083 = vdwg.mxu0
    %v1084 = vadd.f32 %v936, %v1022
    %v1085 = vadd.f32 %v937, %v1042
    %v1086 = vadd.f32 %v938, %v1062
    %v1087 = vadd.f32 %v939, %v1082
    %v1088 = vmul.f32 %v1084, 0.5
    %v1089 = vtanh.pop %v1088
    %v1090 = vmul.f32 %v1089, 0.5
    %v1091 = vadd.f32 %v1090, 0.5
    %v1092 = vmul.f32 %v1085, 0.5
    %v1093 = vtanh.pop %v1092
    %v1094 = vmul.f32 %v1093, 0.5
    %v1095 = vadd.f32 %v1094, 0.5
    %v1096 = vtanh.pop %v1086
    %v1097 = vmul.f32 %v1087, 0.5
    %v1098 = vtanh.pop %v1097
    %v1099 = vmul.f32 %v1098, 0.5
    %v1100 = vadd.f32 %v1099, 0.5
    %v1101 = vmul.f32 %v1095, %v928
    %v1102 = vmul.f32 %v1091, %v1096
    %v1103 = vadd.f32 %v1101, %v1102
    %v1104 = vtanh.pop %v1103
    %v1105 = vmul.f32 %v1100, %v1104
    %s1106 = scalar_lea.vmem [#allocation3], 24
    %1107 = vst [vmem:[%s1106] sm:$0xff] %v1105
    %s1108 = smul.u32 4, 4
    %s1109 = smul.addr %s1108, 8
    %s1110 = scalar_lea.vmem [#allocation2], %s1109
    %v1111 = vld [vmem:[%s1110] sm:$0xff]
    %v1112 = vld [vmem:[%s1110 + $0x8] sm:$0xff]
    %v1113 = vld [vmem:[%s1110 + $0x10] sm:$0xff]
    %v1114 = vld [vmem:[%s1110 + $0x18] sm:$0xff]
    %v1115 = vld [vmem:[#allocation5] sm:$0xff]
    %v1116 = vld [vmem:[#allocation5 + $0x8] sm:$0xff]
    %v1117 = vld [vmem:[#allocation5 + $0x10] sm:$0xff]
    %v1118 = vld [vmem:[#allocation5 + $0x18] sm:$0xff]
    %v1119 = vld [vmem:[#allocation5 + $0x20] sm:$0xff]
    %v1120 = vld [vmem:[#allocation5 + $0x28] sm:$0xff]
    %v1121 = vld [vmem:[#allocation5 + $0x30] sm:$0xff]
    %v1122 = vld [vmem:[#allocation5 + $0x38] sm:$0xff]
    %v1123 = vld [vmem:[#allocation5 + $0x40] sm:$0xff]
    %v1124 = vld [vmem:[#allocation5 + $0x48] sm:$0xff]
    %v1125 = vld [vmem:[#allocation5 + $0x50] sm:$0xff]
    %v1126 = vld [vmem:[#allocation5 + $0x58] sm:$0xff]
    %v1127 = vld [vmem:[#allocation5 + $0x60] sm:$0xff]
    %v1128 = vld [vmem:[#allocation5 + $0x68] sm:$0xff]
    %v1129 = vld [vmem:[#allocation5 + $0x70] sm:$0xff]
    %v1130 = vld [vmem:[#allocation5 + $0x78] sm:$0xff]
    %v1131 = vld [vmem:[#allocation5 + $0x80] sm:$0xff]
    %v1132 = vld [vmem:[#allocation5 + $0x88] sm:$0xff]
    %v1133 = vld [vmem:[#allocation5 + $0x90] sm:$0xff]
    %v1134 = vld [vmem:[#allocation5 + $0x98] sm:$0xff]
    %v1135 = vld [vmem:[#allocation5 + $0xa0] sm:$0xff]
    %v1136 = vld [vmem:[#allocation5 + $0xa8] sm:$0xff]
    %v1137 = vld [vmem:[#allocation5 + $0xb0] sm:$0xff]
    %v1138 = vld [vmem:[#allocation5 + $0xb8] sm:$0xff]
    %v1139 = vld [vmem:[#allocation5 + $0xc0] sm:$0xff]
    %v1140 = vld [vmem:[#allocation5 + $0xc8] sm:$0xff]
    %v1141 = vld [vmem:[#allocation5 + $0xd0] sm:$0xff]
    %v1142 = vld [vmem:[#allocation5 + $0xd8] sm:$0xff]
    %v1143 = vld [vmem:[#allocation5 + $0xe0] sm:$0xff]
    %v1144 = vld [vmem:[#allocation5 + $0xe8] sm:$0xff]
    %v1145 = vld [vmem:[#allocation5 + $0xf0] sm:$0xff]
    %v1146 = vld [vmem:[#allocation5 + $0xf8] sm:$0xff]
    %v1147 = vld [vmem:[#allocation5 + $0x100] sm:$0xff]
    %v1148 = vld [vmem:[#allocation5 + $0x108] sm:$0xff]
    %v1149 = vld [vmem:[#allocation5 + $0x110] sm:$0xff]
    %v1150 = vld [vmem:[#allocation5 + $0x118] sm:$0xff]
    %v1151 = vld [vmem:[#allocation5 + $0x120] sm:$0xff]
    %v1152 = vld [vmem:[#allocation5 + $0x128] sm:$0xff]
    %v1153 = vld [vmem:[#allocation5 + $0x130] sm:$0xff]
    %v1154 = vld [vmem:[#allocation5 + $0x138] sm:$0xff]
    %v1155 = vld [vmem:[#allocation5 + $0x140] sm:$0xff]
    %v1156 = vld [vmem:[#allocation5 + $0x148] sm:$0xff]
    %v1157 = vld [vmem:[#allocation5 + $0x150] sm:$0xff]
    %v1158 = vld [vmem:[#allocation5 + $0x158] sm:$0xff]
    %v1159 = vld [vmem:[#allocation5 + $0x160] sm:$0xff]
    %v1160 = vld [vmem:[#allocation5 + $0x168] sm:$0xff]
    %v1161 = vld [vmem:[#allocation5 + $0x170] sm:$0xff]
    %v1162 = vld [vmem:[#allocation5 + $0x178] sm:$0xff]
    %v1163 = vld [vmem:[#allocation5 + $0x180] sm:$0xff]
    %v1164 = vld [vmem:[#allocation5 + $0x188] sm:$0xff]
    %v1165 = vld [vmem:[#allocation5 + $0x190] sm:$0xff]
    %v1166 = vld [vmem:[#allocation5 + $0x198] sm:$0xff]
    %v1167 = vld [vmem:[#allocation5 + $0x1a0] sm:$0xff]
    %v1168 = vld [vmem:[#allocation5 + $0x1a8] sm:$0xff]
    %v1169 = vld [vmem:[#allocation5 + $0x1b0] sm:$0xff]
    %v1170 = vld [vmem:[#allocation5 + $0x1b8] sm:$0xff]
    %v1171 = vld [vmem:[#allocation5 + $0x1c0] sm:$0xff]
    %v1172 = vld [vmem:[#allocation5 + $0x1c8] sm:$0xff]
    %v1173 = vld [vmem:[#allocation5 + $0x1d0] sm:$0xff]
    %v1174 = vld [vmem:[#allocation5 + $0x1d8] sm:$0xff]
    %v1175 = vld [vmem:[#allocation5 + $0x1e0] sm:$0xff]
    %v1176 = vld [vmem:[#allocation5 + $0x1e8] sm:$0xff]
    %v1177 = vld [vmem:[#allocation5 + $0x1f0] sm:$0xff]
    %v1178 = vld [vmem:[#allocation5 + $0x1f8] sm:$0xff]
    %1179 = vmatpush.msra.mxu0 %v1175
    %1180 = vmatpush.msra.mxu0 %v1171
    %1181 = vmatpush.msra.mxu0 %v1167
    %1182 = vmatpush.msra.mxu0 %v1163
    %1183 = vmatpush.msra.mxu0 %v1159
    %1184 = vmatpush.msra.mxu0 %v1155
    %1185 = vmatpush.msra.mxu0 %v1151
    %1186 = vmatpush.msra.mxu0 %v1147
    %1187 = vmatpush.msra.mxu0 %v1143
    %1188 = vmatpush.msra.mxu0 %v1139
    %1189 = vmatpush.msra.mxu0 %v1135
    %1190 = vmatpush.msra.mxu0 %v1131
    %1191 = vmatpush.msra.mxu0 %v1127
    %1192 = vmatpush.msra.mxu0 %v1123
    %1193 = vmatpush.msra.mxu0 %v1119
    %1194 = vmatpush.msra.mxu0 %v1115
    %1195 = vmatmul.f32.gmra.mxu0 %v1105
    %v1196 = vpop.f32.mrf.mxu0
    %v1197 = vadd.f32 0.0, %v1196
    %1198 = vdwg.mxu0
    %1199 = vmatpush.msra.mxu0 %v1176
    %1200 = vmatpush.msra.mxu0 %v1172
    %1201 = vmatpush.msra.mxu0 %v1168
    %1202 = vmatpush.msra.mxu0 %v1164
    %1203 = vmatpush.msra.mxu0 %v1160
    %1204 = vmatpush.msra.mxu0 %v1156
    %1205 = vmatpush.msra.mxu0 %v1152
    %1206 = vmatpush.msra.mxu0 %v1148
    %1207 = vmatpush.msra.mxu0 %v1144
    %1208 = vmatpush.msra.mxu0 %v1140
    %1209 = vmatpush.msra.mxu0 %v1136
    %1210 = vmatpush.msra.mxu0 %v1132
    %1211 = vmatpush.msra.mxu0 %v1128
    %1212 = vmatpush.msra.mxu0 %v1124
    %1213 = vmatpush.msra.mxu0 %v1120
    %1214 = vmatpush.msra.mxu0 %v1116
    %1215 = vmatmul.f32.gmra.mxu0 %v1105
    %v1216 = vpop.f32.mrf.mxu0
    %v1217 = vadd.f32 0.0, %v1216
    %1218 = vdwg.mxu0
    %1219 = vmatpush.msra.mxu0 %v1177
    %1220 = vmatpush.msra.mxu0 %v1173
    %1221 = vmatpush.msra.mxu0 %v1169
    %1222 = vmatpush.msra.mxu0 %v1165
    %1223 = vmatpush.msra.mxu0 %v1161
    %1224 = vmatpush.msra.mxu0 %v1157
    %1225 = vmatpush.msra.mxu0 %v1153
    %1226 = vmatpush.msra.mxu0 %v1149
    %1227 = vmatpush.msra.mxu0 %v1145
    %1228 = vmatpush.msra.mxu0 %v1141
    %1229 = vmatpush.msra.mxu0 %v1137
    %1230 = vmatpush.msra.mxu0 %v1133
    %1231 = vmatpush.msra.mxu0 %v1129
    %1232 = vmatpush.msra.mxu0 %v1125
    %1233 = vmatpush.msra.mxu0 %v1121
    %1234 = vmatpush.msra.mxu0 %v1117
    %1235 = vmatmul.f32.gmra.mxu0 %v1105
    %v1236 = vpop.f32.mrf.mxu0
    %v1237 = vadd.f32 0.0, %v1236
    %1238 = vdwg.mxu0
    %1239 = vmatpush.msra.mxu0 %v1178
    %1240 = vmatpush.msra.mxu0 %v1174
    %1241 = vmatpush.msra.mxu0 %v1170
    %1242 = vmatpush.msra.mxu0 %v1166
    %1243 = vmatpush.msra.mxu0 %v1162
    %1244 = vmatpush.msra.mxu0 %v1158
    %1245 = vmatpush.msra.mxu0 %v1154
    %1246 = vmatpush.msra.mxu0 %v1150
    %1247 = vmatpush.msra.mxu0 %v1146
    %1248 = vmatpush.msra.mxu0 %v1142
    %1249 = vmatpush.msra.mxu0 %v1138
    %1250 = vmatpush.msra.mxu0 %v1134
    %1251 = vmatpush.msra.mxu0 %v1130
    %1252 = vmatpush.msra.mxu0 %v1126
    %1253 = vmatpush.msra.mxu0 %v1122
    %1254 = vmatpush.msra.mxu0 %v1118
    %1255 = vmatmul.f32.gmra.mxu0 %v1105
    %v1256 = vpop.f32.mrf.mxu0
    %v1257 = vadd.f32 0.0, %v1256
    %1258 = vdwg.mxu0
    %v1259 = vadd.f32 %v1111, %v1197
    %v1260 = vadd.f32 %v1112, %v1217
    %v1261 = vadd.f32 %v1113, %v1237
    %v1262 = vadd.f32 %v1114, %v1257
    %v1263 = vmul.f32 %v1259, 0.5
    %v1264 = vtanh.pop %v1263
    %v1265 = vmul.f32 %v1264, 0.5
    %v1266 = vadd.f32 %v1265, 0.5
    %v1267 = vmul.f32 %v1260, 0.5
    %v1268 = vtanh.pop %v1267
    %v1269 = vmul.f32 %v1268, 0.5
    %v1270 = vadd.f32 %v1269, 0.5
    %v1271 = vtanh.pop %v1261
    %v1272 = vmul.f32 %v1262, 0.5
    %v1273 = vtanh.pop %v1272
    %v1274 = vmul.f32 %v1273, 0.5
    %v1275 = vadd.f32 %v1274, 0.5
    %v1276 = vmul.f32 %v1270, %v1103
    %v1277 = vmul.f32 %v1266, %v1271
    %v1278 = vadd.f32 %v1276, %v1277
    %v1279 = vtanh.pop %v1278
    %v1280 = vmul.f32 %v1275, %v1279
    %s1281 = scalar_lea.vmem [#allocation3], 32
    %1282 = vst [vmem:[%s1281] sm:$0xff] %v1280
    %s1283 = smul.u32 5, 4
    %s1284 = smul.addr %s1283, 8
    %s1285 = scalar_lea.vmem [#allocation2], %s1284
    %v1286 = vld [vmem:[%s1285] sm:$0xff]
    %v1287 = vld [vmem:[%s1285 + $0x8] sm:$0xff]
    %v1288 = vld [vmem:[%s1285 + $0x10] sm:$0xff]
    %v1289 = vld [vmem:[%s1285 + $0x18] sm:$0xff]
    %v1290 = vld [vmem:[#allocation5] sm:$0xff]
    %v1291 = vld [vmem:[#allocation5 + $0x8] sm:$0xff]
    %v1292 = vld [vmem:[#allocation5 + $0x10] sm:$0xff]
    %v1293 = vld [vmem:[#allocation5 + $0x18] sm:$0xff]
    %v1294 = vld [vmem:[#allocation5 + $0x20] sm:$0xff]
    %v1295 = vld [vmem:[#allocation5 + $0x28] sm:$0xff]
    %v1296 = vld [vmem:[#allocation5 + $0x30] sm:$0xff]
    %v1297 = vld [vmem:[#allocation5 + $0x38] sm:$0xff]
    %v1298 = vld [vmem:[#allocation5 + $0x40] sm:$0xff]
    %v1299 = vld [vmem:[#allocation5 + $0x48] sm:$0xff]
    %v1300 = vld [vmem:[#allocation5 + $0x50] sm:$0xff]
    %v1301 = vld [vmem:[#allocation5 + $0x58] sm:$0xff]
    %v1302 = vld [vmem:[#allocation5 + $0x60] sm:$0xff]
    %v1303 = vld [vmem:[#allocation5 + $0x68] sm:$0xff]
    %v1304 = vld [vmem:[#allocation5 + $0x70] sm:$0xff]
    %v1305 = vld [vmem:[#allocation5 + $0x78] sm:$0xff]
    %v1306 = vld [vmem:[#allocation5 + $0x80] sm:$0xff]
    %v1307 = vld [vmem:[#allocation5 + $0x88] sm:$0xff]
    %v1308 = vld [vmem:[#allocation5 + $0x90] sm:$0xff]
    %v1309 = vld [vmem:[#allocation5 + $0x98] sm:$0xff]
    %v1310 = vld [vmem:[#allocation5 + $0xa0] sm:$0xff]
    %v1311 = vld [vmem:[#allocation5 + $0xa8] sm:$0xff]
    %v1312 = vld [vmem:[#allocation5 + $0xb0] sm:$0xff]
    %v1313 = vld [vmem:[#allocation5 + $0xb8] sm:$0xff]
    %v1314 = vld [vmem:[#allocation5 + $0xc0] sm:$0xff]
    %v1315 = vld [vmem:[#allocation5 + $0xc8] sm:$0xff]
    %v1316 = vld [vmem:[#allocation5 + $0xd0] sm:$0xff]
    %v1317 = vld [vmem:[#allocation5 + $0xd8] sm:$0xff]
    %v1318 = vld [vmem:[#allocation5 + $0xe0] sm:$0xff]
    %v1319 = vld [vmem:[#allocation5 + $0xe8] sm:$0xff]
    %v1320 = vld [vmem:[#allocation5 + $0xf0] sm:$0xff]
    %v1321 = vld [vmem:[#allocation5 + $0xf8] sm:$0xff]
    %v1322 = vld [vmem:[#allocation5 + $0x100] sm:$0xff]
    %v1323 = vld [vmem:[#allocation5 + $0x108] sm:$0xff]
    %v1324 = vld [vmem:[#allocation5 + $0x110] sm:$0xff]
    %v1325 = vld [vmem:[#allocation5 + $0x118] sm:$0xff]
    %v1326 = vld [vmem:[#allocation5 + $0x120] sm:$0xff]
    %v1327 = vld [vmem:[#allocation5 + $0x128] sm:$0xff]
    %v1328 = vld [vmem:[#allocation5 + $0x130] sm:$0xff]
    %v1329 = vld [vmem:[#allocation5 + $0x138] sm:$0xff]
    %v1330 = vld [vmem:[#allocation5 + $0x140] sm:$0xff]
    %v1331 = vld [vmem:[#allocation5 + $0x148] sm:$0xff]
    %v1332 = vld [vmem:[#allocation5 + $0x150] sm:$0xff]
    %v1333 = vld [vmem:[#allocation5 + $0x158] sm:$0xff]
    %v1334 = vld [vmem:[#allocation5 + $0x160] sm:$0xff]
    %v1335 = vld [vmem:[#allocation5 + $0x168] sm:$0xff]
    %v1336 = vld [vmem:[#allocation5 + $0x170] sm:$0xff]
    %v1337 = vld [vmem:[#allocation5 + $0x178] sm:$0xff]
    %v1338 = vld [vmem:[#allocation5 + $0x180] sm:$0xff]
    %v1339 = vld [vmem:[#allocation5 + $0x188] sm:$0xff]
    %v1340 = vld [vmem:[#allocation5 + $0x190] sm:$0xff]
    %v1341 = vld [vmem:[#allocation5 + $0x198] sm:$0xff]
    %v1342 = vld [vmem:[#allocation5 + $0x1a0] sm:$0xff]
    %v1343 = vld [vmem:[#allocation5 + $0x1a8] sm:$0xff]
    %v1344 = vld [vmem:[#allocation5 + $0x1b0] sm:$0xff]
    %v1345 = vld [vmem:[#allocation5 + $0x1b8] sm:$0xff]
    %v1346 = vld [vmem:[#allocation5 + $0x1c0] sm:$0xff]
    %v1347 = vld [vmem:[#allocation5 + $0x1c8] sm:$0xff]
    %v1348 = vld [vmem:[#allocation5 + $0x1d0] sm:$0xff]
    %v1349 = vld [vmem:[#allocation5 + $0x1d8] sm:$0xff]
    %v1350 = vld [vmem:[#allocation5 + $0x1e0] sm:$0xff]
    %v1351 = vld [vmem:[#allocation5 + $0x1e8] sm:$0xff]
    %v1352 = vld [vmem:[#allocation5 + $0x1f0] sm:$0xff]
    %v1353 = vld [vmem:[#allocation5 + $0x1f8] sm:$0xff]
    %1354 = vmatpush.msra.mxu0 %v1350
    %1355 = vmatpush.msra.mxu0 %v1346
    %1356 = vmatpush.msra.mxu0 %v1342
    %1357 = vmatpush.msra.mxu0 %v1338
    %1358 = vmatpush.msra.mxu0 %v1334
    %1359 = vmatpush.msra.mxu0 %v1330
    %1360 = vmatpush.msra.mxu0 %v1326
    %1361 = vmatpush.msra.mxu0 %v1322
    %1362 = vmatpush.msra.mxu0 %v1318
    %1363 = vmatpush.msra.mxu0 %v1314
    %1364 = vmatpush.msra.mxu0 %v1310
    %1365 = vmatpush.msra.mxu0 %v1306
    %1366 = vmatpush.msra.mxu0 %v1302
    %1367 = vmatpush.msra.mxu0 %v1298
    %1368 = vmatpush.msra.mxu0 %v1294
    %1369 = vmatpush.msra.mxu0 %v1290
    %1370 = vmatmul.f32.gmra.mxu0 %v1280
    %v1371 = vpop.f32.mrf.mxu0
    %v1372 = vadd.f32 0.0, %v1371
    %1373 = vdwg.mxu0
    %1374 = vmatpush.msra.mxu0 %v1351
    %1375 = vmatpush.msra.mxu0 %v1347
    %1376 = vmatpush.msra.mxu0 %v1343
    %1377 = vmatpush.msra.mxu0 %v1339
    %1378 = vmatpush.msra.mxu0 %v1335
    %1379 = vmatpush.msra.mxu0 %v1331
    %1380 = vmatpush.msra.mxu0 %v1327
    %1381 = vmatpush.msra.mxu0 %v1323
    %1382 = vmatpush.msra.mxu0 %v1319
    %1383 = vmatpush.msra.mxu0 %v1315
    %1384 = vmatpush.msra.mxu0 %v1311
    %1385 = vmatpush.msra.mxu0 %v1307
    %1386 = vmatpush.msra.mxu0 %v1303
    %1387 = vmatpush.msra.mxu0 %v1299
    %1388 = vmatpush.msra.mxu0 %v1295
    %1389 = vmatpush.msra.mxu0 %v1291
    %1390 = vmatmul.f32.gmra.mxu0 %v1280
    %v1391 = vpop.f32.mrf.mxu0
    %v1392 = vadd.f32 0.0, %v1391
    %1393 = vdwg.mxu0
    %1394 = vmatpush.msra.mxu0 %v1352
    %1395 = vmatpush.msra.mxu0 %v1348
    %1396 = vmatpush.msra.mxu0 %v1344
    %1397 = vmatpush.msra.mxu0 %v1340
    %1398 = vmatpush.msra.mxu0 %v1336
    %1399 = vmatpush.msra.mxu0 %v1332
    %1400 = vmatpush.msra.mxu0 %v1328
    %1401 = vmatpush.msra.mxu0 %v1324
    %1402 = vmatpush.msra.mxu0 %v1320
    %1403 = vmatpush.msra.mxu0 %v1316
    %1404 = vmatpush.msra.mxu0 %v1312
    %1405 = vmatpush.msra.mxu0 %v1308
    %1406 = vmatpush.msra.mxu0 %v1304
    %1407 = vmatpush.msra.mxu0 %v1300
    %1408 = vmatpush.msra.mxu0 %v1296
    %1409 = vmatpush.msra.mxu0 %v1292
    %1410 = vmatmul.f32.gmra.mxu0 %v1280
    %v1411 = vpop.f32.mrf.mxu0
    %v1412 = vadd.f32 0.0, %v1411
    %1413 = vdwg.mxu0
    %1414 = vmatpush.msra.mxu0 %v1353
    %1415 = vmatpush.msra.mxu0 %v1349
    %1416 = vmatpush.msra.mxu0 %v1345
    %1417 = vmatpush.msra.mxu0 %v1341
    %1418 = vmatpush.msra.mxu0 %v1337
    %1419 = vmatpush.msra.mxu0 %v1333
    %1420 = vmatpush.msra.mxu0 %v1329
    %1421 = vmatpush.msra.mxu0 %v1325
    %1422 = vmatpush.msra.mxu0 %v1321
    %1423 = vmatpush.msra.mxu0 %v1317
    %1424 = vmatpush.msra.mxu0 %v1313
    %1425 = vmatpush.msra.mxu0 %v1309
    %1426 = vmatpush.msra.mxu0 %v1305
    %1427 = vmatpush.msra.mxu0 %v1301
    %1428 = vmatpush.msra.mxu0 %v1297
    %1429 = vmatpush.msra.mxu0 %v1293
    %1430 = vmatmul.f32.gmra.mxu0 %v1280
    %v1431 = vpop.f32.mrf.mxu0
    %v1432 = vadd.f32 0.0, %v1431
    %1433 = vdwg.mxu0
    %v1434 = vadd.f32 %v1286, %v1372
    %v1435 = vadd.f32 %v1287, %v1392
    %v1436 = vadd.f32 %v1288, %v1412
    %v1437 = vadd.f32 %v1289, %v1432
    %v1438 = vmul.f32 %v1434, 0.5
    %v1439 = vtanh.pop %v1438
    %v1440 = vmul.f32 %v1439, 0.5
    %v1441 = vadd.f32 %v1440, 0.5
    %v1442 = vmul.f32 %v1435, 0.5
    %v1443 = vtanh.pop %v1442
    %v1444 = vmul.f32 %v1443, 0.5
    %v1445 = vadd.f32 %v1444, 0.5
    %v1446 = vtanh.pop %v1436
    %v1447 = vmul.f32 %v1437, 0.5
    %v1448 = vtanh.pop %v1447
    %v1449 = vmul.f32 %v1448, 0.5
    %v1450 = vadd.f32 %v1449, 0.5
    %v1451 = vmul.f32 %v1445, %v1278
    %v1452 = vmul.f32 %v1441, %v1446
    %v1453 = vadd.f32 %v1451, %v1452
    %v1454 = vtanh.pop %v1453
    %v1455 = vmul.f32 %v1450, %v1454
    %s1456 = scalar_lea.vmem [#allocation3], 40
    %1457 = vst [vmem:[%s1456] sm:$0xff] %v1455
    %s1458 = smul.u32 6, 4
    %s1459 = smul.addr %s1458, 8
    %s1460 = scalar_lea.vmem [#allocation2], %s1459
    %v1461 = vld [vmem:[%s1460] sm:$0xff]
    %v1462 = vld [vmem:[%s1460 + $0x8] sm:$0xff]
    %v1463 = vld [vmem:[%s1460 + $0x10] sm:$0xff]
    %v1464 = vld [vmem:[%s1460 + $0x18] sm:$0xff]
    %v1465 = vld [vmem:[#allocation5] sm:$0xff]
    %v1466 = vld [vmem:[#allocation5 + $0x8] sm:$0xff]
    %v1467 = vld [vmem:[#allocation5 + $0x10] sm:$0xff]
    %v1468 = vld [vmem:[#allocation5 + $0x18] sm:$0xff]
    %v1469 = vld [vmem:[#allocation5 + $0x20] sm:$0xff]
    %v1470 = vld [vmem:[#allocation5 + $0x28] sm:$0xff]
    %v1471 = vld [vmem:[#allocation5 + $0x30] sm:$0xff]
    %v1472 = vld [vmem:[#allocation5 + $0x38] sm:$0xff]
    %v1473 = vld [vmem:[#allocation5 + $0x40] sm:$0xff]
    %v1474 = vld [vmem:[#allocation5 + $0x48] sm:$0xff]
    %v1475 = vld [vmem:[#allocation5 + $0x50] sm:$0xff]
    %v1476 = vld [vmem:[#allocation5 + $0x58] sm:$0xff]
    %v1477 = vld [vmem:[#allocation5 + $0x60] sm:$0xff]
    %v1478 = vld [vmem:[#allocation5 + $0x68] sm:$0xff]
    %v1479 = vld [vmem:[#allocation5 + $0x70] sm:$0xff]
    %v1480 = vld [vmem:[#allocation5 + $0x78] sm:$0xff]
    %v1481 = vld [vmem:[#allocation5 + $0x80] sm:$0xff]
    %v1482 = vld [vmem:[#allocation5 + $0x88] sm:$0xff]
    %v1483 = vld [vmem:[#allocation5 + $0x90] sm:$0xff]
    %v1484 = vld [vmem:[#allocation5 + $0x98] sm:$0xff]
    %v1485 = vld [vmem:[#allocation5 + $0xa0] sm:$0xff]
    %v1486 = vld [vmem:[#allocation5 + $0xa8] sm:$0xff]
    %v1487 = vld [vmem:[#allocation5 + $0xb0] sm:$0xff]
    %v1488 = vld [vmem:[#allocation5 + $0xb8] sm:$0xff]
    %v1489 = vld [vmem:[#allocation5 + $0xc0] sm:$0xff]
    %v1490 = vld [vmem:[#allocation5 + $0xc8] sm:$0xff]
    %v1491 = vld [vmem:[#allocation5 + $0xd0] sm:$0xff]
    %v1492 = vld [vmem:[#allocation5 + $0xd8] sm:$0xff]
    %v1493 = vld [vmem:[#allocation5 + $0xe0] sm:$0xff]
    %v1494 = vld [vmem:[#allocation5 + $0xe8] sm:$0xff]
    %v1495 = vld [vmem:[#allocation5 + $0xf0] sm:$0xff]
    %v1496 = vld [vmem:[#allocation5 + $0xf8] sm:$0xff]
    %v1497 = vld [vmem:[#allocation5 + $0x100] sm:$0xff]
    %v1498 = vld [vmem:[#allocation5 + $0x108] sm:$0xff]
    %v1499 = vld [vmem:[#allocation5 + $0x110] sm:$0xff]
    %v1500 = vld [vmem:[#allocation5 + $0x118] sm:$0xff]
    %v1501 = vld [vmem:[#allocation5 + $0x120] sm:$0xff]
    %v1502 = vld [vmem:[#allocation5 + $0x128] sm:$0xff]
    %v1503 = vld [vmem:[#allocation5 + $0x130] sm:$0xff]
    %v1504 = vld [vmem:[#allocation5 + $0x138] sm:$0xff]
    %v1505 = vld [vmem:[#allocation5 + $0x140] sm:$0xff]
    %v1506 = vld [vmem:[#allocation5 + $0x148] sm:$0xff]
    %v1507 = vld [vmem:[#allocation5 + $0x150] sm:$0xff]
    %v1508 = vld [vmem:[#allocation5 + $0x158] sm:$0xff]
    %v1509 = vld [vmem:[#allocation5 + $0x160] sm:$0xff]
    %v1510 = vld [vmem:[#allocation5 + $0x168] sm:$0xff]
    %v1511 = vld [vmem:[#allocation5 + $0x170] sm:$0xff]
    %v1512 = vld [vmem:[#allocation5 + $0x178] sm:$0xff]
    %v1513 = vld [vmem:[#allocation5 + $0x180] sm:$0xff]
    %v1514 = vld [vmem:[#allocation5 + $0x188] sm:$0xff]
    %v1515 = vld [vmem:[#allocation5 + $0x190] sm:$0xff]
    %v1516 = vld [vmem:[#allocation5 + $0x198] sm:$0xff]
    %v1517 = vld [vmem:[#allocation5 + $0x1a0] sm:$0xff]
    %v1518 = vld [vmem:[#allocation5 + $0x1a8] sm:$0xff]
    %v1519 = vld [vmem:[#allocation5 + $0x1b0] sm:$0xff]
    %v1520 = vld [vmem:[#allocation5 + $0x1b8] sm:$0xff]
    %v1521 = vld [vmem:[#allocation5 + $0x1c0] sm:$0xff]
    %v1522 = vld [vmem:[#allocation5 + $0x1c8] sm:$0xff]
    %v1523 = vld [vmem:[#allocation5 + $0x1d0] sm:$0xff]
    %v1524 = vld [vmem:[#allocation5 + $0x1d8] sm:$0xff]
    %v1525 = vld [vmem:[#allocation5 + $0x1e0] sm:$0xff]
    %v1526 = vld [vmem:[#allocation5 + $0x1e8] sm:$0xff]
    %v1527 = vld [vmem:[#allocation5 + $0x1f0] sm:$0xff]
    %v1528 = vld [vmem:[#allocation5 + $0x1f8] sm:$0xff]
    %1529 = vmatpush.msra.mxu0 %v1525
    %1530 = vmatpush.msra.mxu0 %v1521
    %1531 = vmatpush.msra.mxu0 %v1517
    %1532 = vmatpush.msra.mxu0 %v1513
    %1533 = vmatpush.msra.mxu0 %v1509
    %1534 = vmatpush.msra.mxu0 %v1505
    %1535 = vmatpush.msra.mxu0 %v1501
    %1536 = vmatpush.msra.mxu0 %v1497
    %1537 = vmatpush.msra.mxu0 %v1493
    %1538 = vmatpush.msra.mxu0 %v1489
    %1539 = vmatpush.msra.mxu0 %v1485
    %1540 = vmatpush.msra.mxu0 %v1481
    %1541 = vmatpush.msra.mxu0 %v1477
    %1542 = vmatpush.msra.mxu0 %v1473
    %1543 = vmatpush.msra.mxu0 %v1469
    %1544 = vmatpush.msra.mxu0 %v1465
    %1545 = vmatmul.f32.gmra.mxu0 %v1455
    %v1546 = vpop.f32.mrf.mxu0
    %v1547 = vadd.f32 0.0, %v1546
    %1548 = vdwg.mxu0
    %1549 = vmatpush.msra.mxu0 %v1526
    %1550 = vmatpush.msra.mxu0 %v1522
    %1551 = vmatpush.msra.mxu0 %v1518
    %1552 = vmatpush.msra.mxu0 %v1514
    %1553 = vmatpush.msra.mxu0 %v1510
    %1554 = vmatpush.msra.mxu0 %v1506
    %1555 = vmatpush.msra.mxu0 %v1502
    %1556 = vmatpush.msra.mxu0 %v1498
    %1557 = vmatpush.msra.mxu0 %v1494
    %1558 = vmatpush.msra.mxu0 %v1490
    %1559 = vmatpush.msra.mxu0 %v1486
    %1560 = vmatpush.msra.mxu0 %v1482
    %1561 = vmatpush.msra.mxu0 %v1478
    %1562 = vmatpush.msra.mxu0 %v1474
    %1563 = vmatpush.msra.mxu0 %v1470
    %1564 = vmatpush.msra.mxu0 %v1466
    %1565 = vmatmul.f32.gmra.mxu0 %v1455
    %v1566 = vpop.f32.mrf.mxu0
    %v1567 = vadd.f32 0.0, %v1566
    %1568 = vdwg.mxu0
    %1569 = vmatpush.msra.mxu0 %v1527
    %1570 = vmatpush.msra.mxu0 %v1523
    %1571 = vmatpush.msra.mxu0 %v1519
    %1572 = vmatpush.msra.mxu0 %v1515
    %1573 = vmatpush.msra.mxu0 %v1511
    %1574 = vmatpush.msra.mxu0 %v1507
    %1575 = vmatpush.msra.mxu0 %v1503
    %1576 = vmatpush.msra.mxu0 %v1499
    %1577 = vmatpush.msra.mxu0 %v1495
    %1578 = vmatpush.msra.mxu0 %v1491
    %1579 = vmatpush.msra.mxu0 %v1487
    %1580 = vmatpush.msra.mxu0 %v1483
    %1581 = vmatpush.msra.mxu0 %v1479
    %1582 = vmatpush.msra.mxu0 %v1475
    %1583 = vmatpush.msra.mxu0 %v1471
    %1584 = vmatpush.msra.mxu0 %v1467
    %1585 = vmatmul.f32.gmra.mxu0 %v1455
    %v1586 = vpop.f32.mrf.mxu0
    %v1587 = vadd.f32 0.0, %v1586
    %1588 = vdwg.mxu0
    %1589 = vmatpush.msra.mxu0 %v1528
    %1590 = vmatpush.msra.mxu0 %v1524
    %1591 = vmatpush.msra.mxu0 %v1520
    %1592 = vmatpush.msra.mxu0 %v1516
    %1593 = vmatpush.msra.mxu0 %v1512
    %1594 = vmatpush.msra.mxu0 %v1508
    %1595 = vmatpush.msra.mxu0 %v1504
    %1596 = vmatpush.msra.mxu0 %v1500
    %1597 = vmatpush.msra.mxu0 %v1496
    %1598 = vmatpush.msra.mxu0 %v1492
    %1599 = vmatpush.msra.mxu0 %v1488
    %1600 = vmatpush.msra.mxu0 %v1484
    %1601 = vmatpush.msra.mxu0 %v1480
    %1602 = vmatpush.msra.mxu0 %v1476
    %1603 = vmatpush.msra.mxu0 %v1472
    %1604 = vmatpush.msra.mxu0 %v1468
    %1605 = vmatmul.f32.gmra.mxu0 %v1455
    %v1606 = vpop.f32.mrf.mxu0
    %v1607 = vadd.f32 0.0, %v1606
    %1608 = vdwg.mxu0
    %v1609 = vadd.f32 %v1461, %v1547
    %v1610 = vadd.f32 %v1462, %v1567
    %v1611 = vadd.f32 %v1463, %v1587
    %v1612 = vadd.f32 %v1464, %v1607
    %v1613 = vmul.f32 %v1609, 0.5
    %v1614 = vtanh.pop %v1613
    %v1615 = vmul.f32 %v1614, 0.5
    %v1616 = vadd.f32 %v1615, 0.5
    %v1617 = vmul.f32 %v1610, 0.5
    %v1618 = vtanh.pop %v1617
    %v1619 = vmul.f32 %v1618, 0.5
    %v1620 = vadd.f32 %v1619, 0.5
    %v1621 = vtanh.pop %v1611
    %v1622 = vmul.f32 %v1612, 0.5
    %v1623 = vtanh.pop %v1622
    %v1624 = vmul.f32 %v1623, 0.5
    %v1625 = vadd.f32 %v1624, 0.5
    %v1626 = vmul.f32 %v1620, %v1453
    %v1627 = vmul.f32 %v1616, %v1621
    %v1628 = vadd.f32 %v1626, %v1627
    %v1629 = vtanh.pop %v1628
    %v1630 = vmul.f32 %v1625, %v1629
    %s1631 = scalar_lea.vmem [#allocation3], 48
    %1632 = vst [vmem:[%s1631] sm:$0xff] %v1630
    %s1633 = smul.u32 7, 4
    %s1634 = smul.addr %s1633, 8
    %s1635 = scalar_lea.vmem [#allocation2], %s1634
    %v1636 = vld [vmem:[%s1635] sm:$0xff]
    %v1637 = vld [vmem:[%s1635 + $0x8] sm:$0xff]
    %v1638 = vld [vmem:[%s1635 + $0x10] sm:$0xff]
    %v1639 = vld [vmem:[%s1635 + $0x18] sm:$0xff]
    %v1640 = vld [vmem:[#allocation5] sm:$0xff]
    %v1641 = vld [vmem:[#allocation5 + $0x8] sm:$0xff]
    %v1642 = vld [vmem:[#allocation5 + $0x10] sm:$0xff]
    %v1643 = vld [vmem:[#allocation5 + $0x18] sm:$0xff]
    %v1644 = vld [vmem:[#allocation5 + $0x20] sm:$0xff]
    %v1645 = vld [vmem:[#allocation5 + $0x28] sm:$0xff]
    %v1646 = vld [vmem:[#allocation5 + $0x30] sm:$0xff]
    %v1647 = vld [vmem:[#allocation5 + $0x38] sm:$0xff]
    %v1648 = vld [vmem:[#allocation5 + $0x40] sm:$0xff]
    %v1649 = vld [vmem:[#allocation5 + $0x48] sm:$0xff]
    %v1650 = vld [vmem:[#allocation5 + $0x50] sm:$0xff]
    %v1651 = vld [vmem:[#allocation5 + $0x58] sm:$0xff]
    %v1652 = vld [vmem:[#allocation5 + $0x60] sm:$0xff]
    %v1653 = vld [vmem:[#allocation5 + $0x68] sm:$0xff]
    %v1654 = vld [vmem:[#allocation5 + $0x70] sm:$0xff]
    %v1655 = vld [vmem:[#allocation5 + $0x78] sm:$0xff]
    %v1656 = vld [vmem:[#allocation5 + $0x80] sm:$0xff]
    %v1657 = vld [vmem:[#allocation5 + $0x88] sm:$0xff]
    %v1658 = vld [vmem:[#allocation5 + $0x90] sm:$0xff]
    %v1659 = vld [vmem:[#allocation5 + $0x98] sm:$0xff]
    %v1660 = vld [vmem:[#allocation5 + $0xa0] sm:$0xff]
    %v1661 = vld [vmem:[#allocation5 + $0xa8] sm:$0xff]
    %v1662 = vld [vmem:[#allocation5 + $0xb0] sm:$0xff]
    %v1663 = vld [vmem:[#allocation5 + $0xb8] sm:$0xff]
    %v1664 = vld [vmem:[#allocation5 + $0xc0] sm:$0xff]
    %v1665 = vld [vmem:[#allocation5 + $0xc8] sm:$0xff]
    %v1666 = vld [vmem:[#allocation5 + $0xd0] sm:$0xff]
    %v1667 = vld [vmem:[#allocation5 + $0xd8] sm:$0xff]
    %v1668 = vld [vmem:[#allocation5 + $0xe0] sm:$0xff]
    %v1669 = vld [vmem:[#allocation5 + $0xe8] sm:$0xff]
    %v1670 = vld [vmem:[#allocation5 + $0xf0] sm:$0xff]
    %v1671 = vld [vmem:[#allocation5 + $0xf8] sm:$0xff]
    %v1672 = vld [vmem:[#allocation5 + $0x100] sm:$0xff]
    %v1673 = vld [vmem:[#allocation5 + $0x108] sm:$0xff]
    %v1674 = vld [vmem:[#allocation5 + $0x110] sm:$0xff]
    %v1675 = vld [vmem:[#allocation5 + $0x118] sm:$0xff]
    %v1676 = vld [vmem:[#allocation5 + $0x120] sm:$0xff]
    %v1677 = vld [vmem:[#allocation5 + $0x128] sm:$0xff]
    %v1678 = vld [vmem:[#allocation5 + $0x130] sm:$0xff]
    %v1679 = vld [vmem:[#allocation5 + $0x138] sm:$0xff]
    %v1680 = vld [vmem:[#allocation5 + $0x140] sm:$0xff]
    %v1681 = vld [vmem:[#allocation5 + $0x148] sm:$0xff]
    %v1682 = vld [vmem:[#allocation5 + $0x150] sm:$0xff]
    %v1683 = vld [vmem:[#allocation5 + $0x158] sm:$0xff]
    %v1684 = vld [vmem:[#allocation5 + $0x160] sm:$0xff]
    %v1685 = vld [vmem:[#allocation5 + $0x168] sm:$0xff]
    %v1686 = vld [vmem:[#allocation5 + $0x170] sm:$0xff]
    %v1687 = vld [vmem:[#allocation5 + $0x178] sm:$0xff]
    %v1688 = vld [vmem:[#allocation5 + $0x180] sm:$0xff]
    %v1689 = vld [vmem:[#allocation5 + $0x188] sm:$0xff]
    %v1690 = vld [vmem:[#allocation5 + $0x190] sm:$0xff]
    %v1691 = vld [vmem:[#allocation5 + $0x198] sm:$0xff]
    %v1692 = vld [vmem:[#allocation5 + $0x1a0] sm:$0xff]
    %v1693 = vld [vmem:[#allocation5 + $0x1a8] sm:$0xff]
    %v1694 = vld [vmem:[#allocation5 + $0x1b0] sm:$0xff]
    %v1695 = vld [vmem:[#allocation5 + $0x1b8] sm:$0xff]
    %v1696 = vld [vmem:[#allocation5 + $0x1c0] sm:$0xff]
    %v1697 = vld [vmem:[#allocation5 + $0x1c8] sm:$0xff]
    %v1698 = vld [vmem:[#allocation5 + $0x1d0] sm:$0xff]
    %v1699 = vld [vmem:[#allocation5 + $0x1d8] sm:$0xff]
    %v1700 = vld [vmem:[#allocation5 + $0x1e0] sm:$0xff]
    %v1701 = vld [vmem:[#allocation5 + $0x1e8] sm:$0xff]
    %v1702 = vld [vmem:[#allocation5 + $0x1f0] sm:$0xff]
    %v1703 = vld [vmem:[#allocation5 + $0x1f8] sm:$0xff]
    %1704 = vmatpush.msra.mxu0 %v1700
    %1705 = vmatpush.msra.mxu0 %v1696
    %1706 = vmatpush.msra.mxu0 %v1692
    %1707 = vmatpush.msra.mxu0 %v1688
    %1708 = vmatpush.msra.mxu0 %v1684
    %1709 = vmatpush.msra.mxu0 %v1680
    %1710 = vmatpush.msra.mxu0 %v1676
    %1711 = vmatpush.msra.mxu0 %v1672
    %1712 = vmatpush.msra.mxu0 %v1668
    %1713 = vmatpush.msra.mxu0 %v1664
    %1714 = vmatpush.msra.mxu0 %v1660
    %1715 = vmatpush.msra.mxu0 %v1656
    %1716 = vmatpush.msra.mxu0 %v1652
    %1717 = vmatpush.msra.mxu0 %v1648
    %1718 = vmatpush.msra.mxu0 %v1644
    %1719 = vmatpush.msra.mxu0 %v1640
    %1720 = vmatmul.f32.gmra.mxu0 %v1630
    %v1721 = vpop.f32.mrf.mxu0
    %v1722 = vadd.f32 0.0, %v1721
    %1723 = vdwg.mxu0
    %1724 = vmatpush.msra.mxu0 %v1701
    %1725 = vmatpush.msra.mxu0 %v1697
    %1726 = vmatpush.msra.mxu0 %v1693
    %1727 = vmatpush.msra.mxu0 %v1689
    %1728 = vmatpush.msra.mxu0 %v1685
    %1729 = vmatpush.msra.mxu0 %v1681
    %1730 = vmatpush.msra.mxu0 %v1677
    %1731 = vmatpush.msra.mxu0 %v1673
    %1732 = vmatpush.msra.mxu0 %v1669
    %1733 = vmatpush.msra.mxu0 %v1665
    %1734 = vmatpush.msra.mxu0 %v1661
    %1735 = vmatpush.msra.mxu0 %v1657
    %1736 = vmatpush.msra.mxu0 %v1653
    %1737 = vmatpush.msra.mxu0 %v1649
    %1738 = vmatpush.msra.mxu0 %v1645
    %1739 = vmatpush.msra.mxu0 %v1641
    %1740 = vmatmul.f32.gmra.mxu0 %v1630
    %v1741 = vpop.f32.mrf.mxu0
    %v1742 = vadd.f32 0.0, %v1741
    %1743 = vdwg.mxu0
    %1744 = vmatpush.msra.mxu0 %v1702
    %1745 = vmatpush.msra.mxu0 %v1698
    %1746 = vmatpush.msra.mxu0 %v1694
    %1747 = vmatpush.msra.mxu0 %v1690
    %1748 = vmatpush.msra.mxu0 %v1686
    %1749 = vmatpush.msra.mxu0 %v1682
    %1750 = vmatpush.msra.mxu0 %v1678
    %1751 = vmatpush.msra.mxu0 %v1674
    %1752 = vmatpush.msra.mxu0 %v1670
    %1753 = vmatpush.msra.mxu0 %v1666
    %1754 = vmatpush.msra.mxu0 %v1662
    %1755 = vmatpush.msra.mxu0 %v1658
    %1756 = vmatpush.msra.mxu0 %v1654
    %1757 = vmatpush.msra.mxu0 %v1650
    %1758 = vmatpush.msra.mxu0 %v1646
    %1759 = vmatpush.msra.mxu0 %v1642
    %1760 = vmatmul.f32.gmra.mxu0 %v1630
    %v1761 = vpop.f32.mrf.mxu0
    %v1762 = vadd.f32 0.0, %v1761
    %1763 = vdwg.mxu0
    %1764 = vmatpush.msra.mxu0 %v1703
    %1765 = vmatpush.msra.mxu0 %v1699
    %1766 = vmatpush.msra.mxu0 %v1695
    %1767 = vmatpush.msra.mxu0 %v1691
    %1768 = vmatpush.msra.mxu0 %v1687
    %1769 = vmatpush.msra.mxu0 %v1683
    %1770 = vmatpush.msra.mxu0 %v1679
    %1771 = vmatpush.msra.mxu0 %v1675
    %1772 = vmatpush.msra.mxu0 %v1671
    %1773 = vmatpush.msra.mxu0 %v1667
    %1774 = vmatpush.msra.mxu0 %v1663
    %1775 = vmatpush.msra.mxu0 %v1659
    %1776 = vmatpush.msra.mxu0 %v1655
    %1777 = vmatpush.msra.mxu0 %v1651
    %1778 = vmatpush.msra.mxu0 %v1647
    %1779 = vmatpush.msra.mxu0 %v1643
    %1780 = vmatmul.f32.gmra.mxu0 %v1630
    %v1781 = vpop.f32.mrf.mxu0
    %v1782 = vadd.f32 0.0, %v1781
    %1783 = vdwg.mxu0
    %v1784 = vadd.f32 %v1636, %v1722
    %v1785 = vadd.f32 %v1637, %v1742
    %v1786 = vadd.f32 %v1638, %v1762
    %v1787 = vadd.f32 %v1639, %v1782
    %v1788 = vmul.f32 %v1784, 0.5
    %v1789 = vtanh.pop %v1788
    %v1790 = vmul.f32 %v1789, 0.5
    %v1791 = vadd.f32 %v1790, 0.5
    %v1792 = vmul.f32 %v1785, 0.5
    %v1793 = vtanh.pop %v1792
    %v1794 = vmul.f32 %v1793, 0.5
    %v1795 = vadd.f32 %v1794, 0.5
    %v1796 = vtanh.pop %v1786
    %v1797 = vmul.f32 %v1787, 0.5
    %v1798 = vtanh.pop %v1797
    %v1799 = vmul.f32 %v1798, 0.5
    %v1800 = vadd.f32 %v1799, 0.5
    %v1801 = vmul.f32 %v1795, %v1628
    %v1802 = vmul.f32 %v1791, %v1796
    %v1803 = vadd.f32 %v1801, %v1802
    %v1804 = vtanh.pop %v1803
    %v1805 = vmul.f32 %v1800, %v1804
    %s1806 = scalar_lea.vmem [#allocation3], 56
    %1807 = vst [vmem:[%s1806] sm:$0xff] %v1805
    %v1808 = vld [vmem:[#allocation3] sm:$0xff]
    %v1809 = vld [vmem:[#allocation3 + $0x8] sm:$0xff]
    %v1810 = vld [vmem:[#allocation3 + $0x10] sm:$0xff]
    %v1811 = vld [vmem:[#allocation3 + $0x18] sm:$0xff]
    %v1812 = vld [vmem:[#allocation3 + $0x20] sm:$0xff]
    %v1813 = vld [vmem:[#allocation3 + $0x28] sm:$0xff]
    %v1814 = vld [vmem:[#allocation3 + $0x30] sm:$0xff]
    %v1815 = vld [vmem:[#allocation3 + $0x38] sm:$0xff]
    %v1816 = vld [vmem:[#allocation7] sm:$0xff]
    %v1817 = vld [vmem:[#allocation7 + $0x8] sm:$0xff]
    %v1818 = vld [vmem:[#allocation7 + $0x10] sm:$0xff]
    %v1819 = vld [vmem:[#allocation7 + $0x18] sm:$0xff]
    %v1820 = vld [vmem:[#allocation7 + $0x20] sm:$0xff]
    %v1821 = vld [vmem:[#allocation7 + $0x28] sm:$0xff]
    %v1822 = vld [vmem:[#allocation7 + $0x30] sm:$0xff]
    %v1823 = vld [vmem:[#allocation7 + $0x38] sm:$0xff]
    %v1824 = vld [vmem:[#allocation7 + $0x40] sm:$0xff]
    %v1825 = vld [vmem:[#allocation7 + $0x48] sm:$0xff]
    %v1826 = vld [vmem:[#allocation7 + $0x50] sm:$0xff]
    %v1827 = vld [vmem:[#allocation7 + $0x58] sm:$0xff]
    %v1828 = vld [vmem:[#allocation7 + $0x60] sm:$0xff]
    %v1829 = vld [vmem:[#allocation7 + $0x68] sm:$0xff]
    %v1830 = vld [vmem:[#allocation7 + $0x70] sm:$0xff]
    %v1831 = vld [vmem:[#allocation7 + $0x78] sm:$0xff]
    %v1832 = vld [vmem:[#allocation7 + $0x80] sm:$0xff]
    %v1833 = vld [vmem:[#allocation7 + $0x88] sm:$0xff]
    %v1834 = vld [vmem:[#allocation7 + $0x90] sm:$0xff]
    %v1835 = vld [vmem:[#allocation7 + $0x98] sm:$0xff]
    %v1836 = vld [vmem:[#allocation7 + $0xa0] sm:$0xff]
    %v1837 = vld [vmem:[#allocation7 + $0xa8] sm:$0xff]
    %v1838 = vld [vmem:[#allocation7 + $0xb0] sm:$0xff]
    %v1839 = vld [vmem:[#allocation7 + $0xb8] sm:$0xff]
    %v1840 = vld [vmem:[#allocation7 + $0xc0] sm:$0xff]
    %v1841 = vld [vmem:[#allocation7 + $0xc8] sm:$0xff]
    %v1842 = vld [vmem:[#allocation7 + $0xd0] sm:$0xff]
    %v1843 = vld [vmem:[#allocation7 + $0xd8] sm:$0xff]
    %v1844 = vld [vmem:[#allocation7 + $0xe0] sm:$0xff]
    %v1845 = vld [vmem:[#allocation7 + $0xe8] sm:$0xff]
    %v1846 = vld [vmem:[#allocation7 + $0xf0] sm:$0xff]
    %v1847 = vld [vmem:[#allocation7 + $0xf8] sm:$0xff]
    %v1848 = vld [vmem:[#allocation7 + $0x100] sm:$0xff]
    %v1849 = vld [vmem:[#allocation7 + $0x108] sm:$0xff]
    %v1850 = vld [vmem:[#allocation7 + $0x110] sm:$0xff]
    %v1851 = vld [vmem:[#allocation7 + $0x118] sm:$0xff]
    %v1852 = vld [vmem:[#allocation7 + $0x120] sm:$0xff]
    %v1853 = vld [vmem:[#allocation7 + $0x128] sm:$0xff]
    %v1854 = vld [vmem:[#allocation7 + $0x130] sm:$0xff]
    %v1855 = vld [vmem:[#allocation7 + $0x138] sm:$0xff]
    %v1856 = vld [vmem:[#allocation7 + $0x140] sm:$0xff]
    %v1857 = vld [vmem:[#allocation7 + $0x148] sm:$0xff]
    %v1858 = vld [vmem:[#allocation7 + $0x150] sm:$0xff]
    %v1859 = vld [vmem:[#allocation7 + $0x158] sm:$0xff]
    %v1860 = vld [vmem:[#allocation7 + $0x160] sm:$0xff]
    %v1861 = vld [vmem:[#allocation7 + $0x168] sm:$0xff]
    %v1862 = vld [vmem:[#allocation7 + $0x170] sm:$0xff]
    %v1863 = vld [vmem:[#allocation7 + $0x178] sm:$0xff]
    %v1864 = vld [vmem:[#allocation7 + $0x180] sm:$0xff]
    %v1865 = vld [vmem:[#allocation7 + $0x188] sm:$0xff]
    %v1866 = vld [vmem:[#allocation7 + $0x190] sm:$0xff]
    %v1867 = vld [vmem:[#allocation7 + $0x198] sm:$0xff]
    %v1868 = vld [vmem:[#allocation7 + $0x1a0] sm:$0xff]
    %v1869 = vld [vmem:[#allocation7 + $0x1a8] sm:$0xff]
    %v1870 = vld [vmem:[#allocation7 + $0x1b0] sm:$0xff]
    %v1871 = vld [vmem:[#allocation7 + $0x1b8] sm:$0xff]
    %v1872 = vld [vmem:[#allocation7 + $0x1c0] sm:$0xff]
    %v1873 = vld [vmem:[#allocation7 + $0x1c8] sm:$0xff]
    %v1874 = vld [vmem:[#allocation7 + $0x1d0] sm:$0xff]
    %v1875 = vld [vmem:[#allocation7 + $0x1d8] sm:$0xff]
    %v1876 = vld [vmem:[#allocation7 + $0x1e0] sm:$0xff]
    %v1877 = vld [vmem:[#allocation7 + $0x1e8] sm:$0xff]
    %v1878 = vld [vmem:[#allocation7 + $0x1f0] sm:$0xff]
    %v1879 = vld [vmem:[#allocation7 + $0x1f8] sm:$0xff]
    %v1880 = vld [vmem:[%s7] sm:$0xf]
    %v1882 = vperm.slane %v1880, 0
    %v1883 = vperm.slane %v1880, 1
    %v1884 = vperm.slane %v1880, 2
    %v1885 = vperm.slane %v1880, 3
    %1890 = vmatpush.msra.mxu0 %v1876
    %1891 = vmatpush.msra.mxu0 %v1872
    %1892 = vmatpush.msra.mxu0 %v1868
    %1893 = vmatpush.msra.mxu0 %v1864
    %1894 = vmatpush.msra.mxu0 %v1860
    %1895 = vmatpush.msra.mxu0 %v1856
    %1896 = vmatpush.msra.mxu0 %v1852
    %1897 = vmatpush.msra.mxu0 %v1848
    %1898 = vmatpush.msra.mxu0 %v1844
    %1899 = vmatpush.msra.mxu0 %v1840
    %1900 = vmatpush.msra.mxu0 %v1836
    %1901 = vmatpush.msra.mxu0 %v1832
    %1902 = vmatpush.msra.mxu0 %v1828
    %1903 = vmatpush.msra.mxu0 %v1824
    %1904 = vmatpush.msra.mxu0 %v1820
    %1905 = vmatpush.msra.mxu0 %v1816
    %1906 = vmatmul.f32.gmra.mxu0 %v1808
    %v1907 = vpop.f32.mrf.mxu0
    %v1908 = vadd.f32 %v1882, %v1907
    %1909 = vmatmul.f32.gmra.mxu0 %v1809
    %v1910 = vpop.f32.mrf.mxu0
    %v1911 = vadd.f32 %v1882, %v1910
    %1912 = vmatmul.f32.gmra.mxu0 %v1810
    %v1913 = vpop.f32.mrf.mxu0
    %v1914 = vadd.f32 %v1882, %v1913
    %1915 = vmatmul.f32.gmra.mxu0 %v1811
    %v1916 = vpop.f32.mrf.mxu0
    %v1917 = vadd.f32 %v1882, %v1916
    %1918 = vmatmul.f32.gmra.mxu0 %v1812
    %v1919 = vpop.f32.mrf.mxu0
    %v1920 = vadd.f32 %v1882, %v1919
    %1921 = vmatmul.f32.gmra.mxu0 %v1813
    %v1922 = vpop.f32.mrf.mxu0
    %v1923 = vadd.f32 %v1882, %v1922
    %1924 = vmatmul.f32.gmra.mxu0 %v1814
    %v1925 = vpop.f32.mrf.mxu0
    %v1926 = vadd.f32 %v1882, %v1925
    %1927 = vmatmul.f32.gmra.mxu0 %v1815
    %v1928 = vpop.f32.mrf.mxu0
    %v1929 = vadd.f32 %v1882, %v1928
    %1930 = vdwg.mxu0
    %1931 = vmatpush.msra.mxu0 %v1877
    %1932 = vmatpush.msra.mxu0 %v1873
    %1933 = vmatpush.msra.mxu0 %v1869
    %1934 = vmatpush.msra.mxu0 %v1865
    %1935 = vmatpush.msra.mxu0 %v1861
    %1936 = vmatpush.msra.mxu0 %v1857
    %1937 = vmatpush.msra.mxu0 %v1853
    %1938 = vmatpush.msra.mxu0 %v1849
    %1939 = vmatpush.msra.mxu0 %v1845
    %1940 = vmatpush.msra.mxu0 %v1841
    %1941 = vmatpush.msra.mxu0 %v1837
    %1942 = vmatpush.msra.mxu0 %v1833
    %1943 = vmatpush.msra.mxu0 %v1829
    %1944 = vmatpush.msra.mxu0 %v1825
    %1945 = vmatpush.msra.mxu0 %v1821
    %1946 = vmatpush.msra.mxu0 %v1817
    %1947 = vmatmul.f32.gmra.mxu0 %v1808
    %v1948 = vpop.f32.mrf.mxu0
    %v1949 = vadd.f32 %v1883, %v1948
    %1950 = vmatmul.f32.gmra.mxu0 %v1809
    %v1951 = vpop.f32.mrf.mxu0
    %v1952 = vadd.f32 %v1883, %v1951
    %1953 = vmatmul.f32.gmra.mxu0 %v1810
    %v1954 = vpop.f32.mrf.mxu0
    %v1955 = vadd.f32 %v1883, %v1954
    %1956 = vmatmul.f32.gmra.mxu0 %v1811
    %v1957 = vpop.f32.mrf.mxu0
    %v1958 = vadd.f32 %v1883, %v1957
    %1959 = vmatmul.f32.gmra.mxu0 %v1812
    %v1960 = vpop.f32.mrf.mxu0
    %v1961 = vadd.f32 %v1883, %v1960
    %1962 = vmatmul.f32.gmra.mxu0 %v1813
    %v1963 = vpop.f32.mrf.mxu0
    %v1964 = vadd.f32 %v1883, %v1963
    %1965 = vmatmul.f32.gmra.mxu0 %v1814
    %v1966 = vpop.f32.mrf.mxu0
    %v1967 = vadd.f32 %v1883, %v1966
    %1968 = vmatmul.f32.gmra.mxu0 %v1815
    %v1969 = vpop.f32.mrf.mxu0
    %v1970 = vadd.f32 %v1883, %v1969
    %1971 = vdwg.mxu0
    %1972 = vmatpush.msra.mxu0 %v1878
    %1973 = vmatpush.msra.mxu0 %v1874
    %1974 = vmatpush.msra.mxu0 %v1870
    %1975 = vmatpush.msra.mxu0 %v1866
    %1976 = vmatpush.msra.mxu0 %v1862
    %1977 = vmatpush.msra.mxu0 %v1858
    %1978 = vmatpush.msra.mxu0 %v1854
    %1979 = vmatpush.msra.mxu0 %v1850
    %1980 = vmatpush.msra.mxu0 %v1846
    %1981 = vmatpush.msra.mxu0 %v1842
    %1982 = vmatpush.msra.mxu0 %v1838
    %1983 = vmatpush.msra.mxu0 %v1834
    %1984 = vmatpush.msra.mxu0 %v1830
    %1985 = vmatpush.msra.mxu0 %v1826
    %1986 = vmatpush.msra.mxu0 %v1822
    %1987 = vmatpush.msra.mxu0 %v1818
    %1988 = vmatmul.f32.gmra.mxu0 %v1808
    %v1989 = vpop.f32.mrf.mxu0
    %v1990 = vadd.f32 %v1884, %v1989
    %1991 = vmatmul.f32.gmra.mxu0 %v1809
    %v1992 = vpop.f32.mrf.mxu0
    %v1993 = vadd.f32 %v1884, %v1992
    %1994 = vmatmul.f32.gmra.mxu0 %v1810
    %v1995 = vpop.f32.mrf.mxu0
    %v1996 = vadd.f32 %v1884, %v1995
    %1997 = vmatmul.f32.gmra.mxu0 %v1811
    %v1998 = vpop.f32.mrf.mxu0
    %v1999 = vadd.f32 %v1884, %v1998
    %2000 = vmatmul.f32.gmra.mxu0 %v1812
    %v2001 = vpop.f32.mrf.mxu0
    %v2002 = vadd.f32 %v1884, %v2001
    %2003 = vmatmul.f32.gmra.mxu0 %v1813
    %v2004 = vpop.f32.mrf.mxu0
    %v2005 = vadd.f32 %v1884, %v2004
    %2006 = vmatmul.f32.gmra.mxu0 %v1814
    %v2007 = vpop.f32.mrf.mxu0
    %v2008 = vadd.f32 %v1884, %v2007
    %2009 = vmatmul.f32.gmra.mxu0 %v1815
    %v2010 = vpop.f32.mrf.mxu0
    %v2011 = vadd.f32 %v1884, %v2010
    %2012 = vdwg.mxu0
    %2013 = vmatpush.msra.mxu0 %v1879
    %2014 = vmatpush.msra.mxu0 %v1875
    %2015 = vmatpush.msra.mxu0 %v1871
    %2016 = vmatpush.msra.mxu0 %v1867
    %2017 = vmatpush.msra.mxu0 %v1863
    %2018 = vmatpush.msra.mxu0 %v1859
    %2019 = vmatpush.msra.mxu0 %v1855
    %2020 = vmatpush.msra.mxu0 %v1851
    %2021 = vmatpush.msra.mxu0 %v1847
    %2022 = vmatpush.msra.mxu0 %v1843
    %2023 = vmatpush.msra.mxu0 %v1839
    %2024 = vmatpush.msra.mxu0 %v1835
    %2025 = vmatpush.msra.mxu0 %v1831
    %2026 = vmatpush.msra.mxu0 %v1827
    %2027 = vmatpush.msra.mxu0 %v1823
    %2028 = vmatpush.msra.mxu0 %v1819
    %2029 = vmatmul.f32.gmra.mxu0 %v1808
    %v2030 = vpop.f32.mrf.mxu0
    %v2031 = vadd.f32 %v1885, %v2030
    %2032 = vmatmul.f32.gmra.mxu0 %v1809
    %v2033 = vpop.f32.mrf.mxu0
    %v2034 = vadd.f32 %v1885, %v2033
    %2035 = vmatmul.f32.gmra.mxu0 %v1810
    %v2036 = vpop.f32.mrf.mxu0
    %v2037 = vadd.f32 %v1885, %v2036
    %2038 = vmatmul.f32.gmra.mxu0 %v1811
    %v2039 = vpop.f32.mrf.mxu0
    %v2040 = vadd.f32 %v1885, %v2039
    %2041 = vmatmul.f32.gmra.mxu0 %v1812
    %v2042 = vpop.f32.mrf.mxu0
    %v2043 = vadd.f32 %v1885, %v2042
    %2044 = vmatmul.f32.gmra.mxu0 %v1813
    %v2045 = vpop.f32.mrf.mxu0
    %v2046 = vadd.f32 %v1885, %v2045
    %2047 = vmatmul.f32.gmra.mxu0 %v1814
    %v2048 = vpop.f32.mrf.mxu0
    %v2049 = vadd.f32 %v1885, %v2048
    %2050 = vmatmul.f32.gmra.mxu0 %v1815
    %v2051 = vpop.f32.mrf.mxu0
    %v2052 = vadd.f32 %v1885, %v2051
    %2053 = vdwg.mxu0
    %2054 = vst [vmem:[#allocation2] sm:$0xff] %v1908
    %2055 = vst [vmem:[#allocation2 + $0x8] sm:$0xff] %v1949
    %2056 = vst [vmem:[#allocation2 + $0x10] sm:$0xff] %v1990
    %2057 = vst [vmem:[#allocation2 + $0x18] sm:$0xff] %v2031
    %2058 = vst [vmem:[#allocation2 + $0x20] sm:$0xff] %v1911
    %2059 = vst [vmem:[#allocation2 + $0x28] sm:$0xff] %v1952
    %2060 = vst [vmem:[#allocation2 + $0x30] sm:$0xff] %v1993
    %2061 = vst [vmem:[#allocation2 + $0x38] sm:$0xff] %v2034
    %2062 = vst [vmem:[#allocation2 + $0x40] sm:$0xff] %v1914
    %2063 = vst [vmem:[#allocation2 + $0x48] sm:$0xff] %v1955
    %2064 = vst [vmem:[#allocation2 + $0x50] sm:$0xff] %v1996
    %2065 = vst [vmem:[#allocation2 + $0x58] sm:$0xff] %v2037
    %2066 = vst [vmem:[#allocation2 + $0x60] sm:$0xff] %v1917
    %2067 = vst [vmem:[#allocation2 + $0x68] sm:$0xff] %v1958
    %2068 = vst [vmem:[#allocation2 + $0x70] sm:$0xff] %v1999
    %2069 = vst [vmem:[#allocation2 + $0x78] sm:$0xff] %v2040
    %2070 = vst [vmem:[#allocation2 + $0x80] sm:$0xff] %v1920
    %2071 = vst [vmem:[#allocation2 + $0x88] sm:$0xff] %v1961
    %2072 = vst [vmem:[#allocation2 + $0x90] sm:$0xff] %v2002
    %2073 = vst [vmem:[#allocation2 + $0x98] sm:$0xff] %v2043
    %2074 = vst [vmem:[#allocation2 + $0xa0] sm:$0xff] %v1923
    %2075 = vst [vmem:[#allocation2 + $0xa8] sm:$0xff] %v1964
    %2076 = vst [vmem:[#allocation2 + $0xb0] sm:$0xff] %v2005
    %2077 = vst [vmem:[#allocation2 + $0xb8] sm:$0xff] %v2046
    %2078 = vst [vmem:[#allocation2 + $0xc0] sm:$0xff] %v1926
    %2079 = vst [vmem:[#allocation2 + $0xc8] sm:$0xff] %v1967
    %2080 = vst [vmem:[#allocation2 + $0xd0] sm:$0xff] %v2008
    %2081 = vst [vmem:[#allocation2 + $0xd8] sm:$0xff] %v2049
    %2082 = vst [vmem:[#allocation2 + $0xe0] sm:$0xff] %v1929
    %2083 = vst [vmem:[#allocation2 + $0xe8] sm:$0xff] %v1970
    %2084 = vst [vmem:[#allocation2 + $0xf0] sm:$0xff] %v2011
    %2085 = vst [vmem:[#allocation2 + $0xf8] sm:$0xff] %v2052
    %v2086 = vld [vmem:[%s411] sm:$0xff]
    %v2087 = vld [vmem:[%s411 + $0x8] sm:$0xff]
    %v2088 = vld [vmem:[%s411 + $0x10] sm:$0xff]
    %v2089 = vld [vmem:[%s411 + $0x18] sm:$0xff]
    %v2090 = vld [vmem:[#allocation9] sm:$0xff]
    %v2091 = vld [vmem:[#allocation9 + $0x8] sm:$0xff]
    %v2092 = vld [vmem:[#allocation9 + $0x10] sm:$0xff]
    %v2093 = vld [vmem:[#allocation9 + $0x18] sm:$0xff]
    %v2094 = vld [vmem:[#allocation9 + $0x20] sm:$0xff]
    %v2095 = vld [vmem:[#allocation9 + $0x28] sm:$0xff]
    %v2096 = vld [vmem:[#allocation9 + $0x30] sm:$0xff]
    %v2097 = vld [vmem:[#allocation9 + $0x38] sm:$0xff]
    %v2098 = vld [vmem:[#allocation9 + $0x40] sm:$0xff]
    %v2099 = vld [vmem:[#allocation9 + $0x48] sm:$0xff]
    %v2100 = vld [vmem:[#allocation9 + $0x50] sm:$0xff]
    %v2101 = vld [vmem:[#allocation9 + $0x58] sm:$0xff]
    %v2102 = vld [vmem:[#allocation9 + $0x60] sm:$0xff]
    %v2103 = vld [vmem:[#allocation9 + $0x68] sm:$0xff]
    %v2104 = vld [vmem:[#allocation9 + $0x70] sm:$0xff]
    %v2105 = vld [vmem:[#allocation9 + $0x78] sm:$0xff]
    %v2106 = vld [vmem:[#allocation9 + $0x80] sm:$0xff]
    %v2107 = vld [vmem:[#allocation9 + $0x88] sm:$0xff]
    %v2108 = vld [vmem:[#allocation9 + $0x90] sm:$0xff]
    %v2109 = vld [vmem:[#allocation9 + $0x98] sm:$0xff]
    %v2110 = vld [vmem:[#allocation9 + $0xa0] sm:$0xff]
    %v2111 = vld [vmem:[#allocation9 + $0xa8] sm:$0xff]
    %v2112 = vld [vmem:[#allocation9 + $0xb0] sm:$0xff]
    %v2113 = vld [vmem:[#allocation9 + $0xb8] sm:$0xff]
    %v2114 = vld [vmem:[#allocation9 + $0xc0] sm:$0xff]
    %v2115 = vld [vmem:[#allocation9 + $0xc8] sm:$0xff]
    %v2116 = vld [vmem:[#allocation9 + $0xd0] sm:$0xff]
    %v2117 = vld [vmem:[#allocation9 + $0xd8] sm:$0xff]
    %v2118 = vld [vmem:[#allocation9 + $0xe0] sm:$0xff]
    %v2119 = vld [vmem:[#allocation9 + $0xe8] sm:$0xff]
    %v2120 = vld [vmem:[#allocation9 + $0xf0] sm:$0xff]
    %v2121 = vld [vmem:[#allocation9 + $0xf8] sm:$0xff]
    %v2122 = vld [vmem:[#allocation9 + $0x100] sm:$0xff]
    %v2123 = vld [vmem:[#allocation9 + $0x108] sm:$0xff]
    %v2124 = vld [vmem:[#allocation9 + $0x110] sm:$0xff]
    %v2125 = vld [vmem:[#allocation9 + $0x118] sm:$0xff]
    %v2126 = vld [vmem:[#allocation9 + $0x120] sm:$0xff]
    %v2127 = vld [vmem:[#allocation9 + $0x128] sm:$0xff]
    %v2128 = vld [vmem:[#allocation9 + $0x130] sm:$0xff]
    %v2129 = vld [vmem:[#allocation9 + $0x138] sm:$0xff]
    %v2130 = vld [vmem:[#allocation9 + $0x140] sm:$0xff]
    %v2131 = vld [vmem:[#allocation9 + $0x148] sm:$0xff]
    %v2132 = vld [vmem:[#allocation9 + $0x150] sm:$0xff]
    %v2133 = vld [vmem:[#allocation9 + $0x158] sm:$0xff]
    %v2134 = vld [vmem:[#allocation9 + $0x160] sm:$0xff]
    %v2135 = vld [vmem:[#allocation9 + $0x168] sm:$0xff]
    %v2136 = vld [vmem:[#allocation9 + $0x170] sm:$0xff]
    %v2137 = vld [vmem:[#allocation9 + $0x178] sm:$0xff]
    %v2138 = vld [vmem:[#allocation9 + $0x180] sm:$0xff]
    %v2139 = vld [vmem:[#allocation9 + $0x188] sm:$0xff]
    %v2140 = vld [vmem:[#allocation9 + $0x190] sm:$0xff]
    %v2141 = vld [vmem:[#allocation9 + $0x198] sm:$0xff]
    %v2142 = vld [vmem:[#allocation9 + $0x1a0] sm:$0xff]
    %v2143 = vld [vmem:[#allocation9 + $0x1a8] sm:$0xff]
    %v2144 = vld [vmem:[#allocation9 + $0x1b0] sm:$0xff]
    %v2145 = vld [vmem:[#allocation9 + $0x1b8] sm:$0xff]
    %v2146 = vld [vmem:[#allocation9 + $0x1c0] sm:$0xff]
    %v2147 = vld [vmem:[#allocation9 + $0x1c8] sm:$0xff]
    %v2148 = vld [vmem:[#allocation9 + $0x1d0] sm:$0xff]
    %v2149 = vld [vmem:[#allocation9 + $0x1d8] sm:$0xff]
    %v2150 = vld [vmem:[#allocation9 + $0x1e0] sm:$0xff]
    %v2151 = vld [vmem:[#allocation9 + $0x1e8] sm:$0xff]
    %v2152 = vld [vmem:[#allocation9 + $0x1f0] sm:$0xff]
    %v2153 = vld [vmem:[#allocation9 + $0x1f8] sm:$0xff]
    %2154 = vmatpush.msra.mxu0 %v2150
    %2155 = vmatpush.msra.mxu0 %v2146
    %2156 = vmatpush.msra.mxu0 %v2142
    %2157 = vmatpush.msra.mxu0 %v2138
    %2158 = vmatpush.msra.mxu0 %v2134
    %2159 = vmatpush.msra.mxu0 %v2130
    %2160 = vmatpush.msra.mxu0 %v2126
    %2161 = vmatpush.msra.mxu0 %v2122
    %2162 = vmatpush.msra.mxu0 %v2118
    %2163 = vmatpush.msra.mxu0 %v2114
    %2164 = vmatpush.msra.mxu0 %v2110
    %2165 = vmatpush.msra.mxu0 %v2106
    %2166 = vmatpush.msra.mxu0 %v2102
    %2167 = vmatpush.msra.mxu0 %v2098
    %2168 = vmatpush.msra.mxu0 %v2094
    %2169 = vmatpush.msra.mxu0 %v2090
    %2170 = vmatmul.f32.gmra.mxu0 0.0
    %v2171 = vpop.f32.mrf.mxu0
    %v2172 = vadd.f32 0.0, %v2171
    %2173 = vdwg.mxu0
    %2174 = vmatpush.msra.mxu0 %v2151
    %2175 = vmatpush.msra.mxu0 %v2147
    %2176 = vmatpush.msra.mxu0 %v2143
    %2177 = vmatpush.msra.mxu0 %v2139
    %2178 = vmatpush.msra.mxu0 %v2135
    %2179 = vmatpush.msra.mxu0 %v2131
    %2180 = vmatpush.msra.mxu0 %v2127
    %2181 = vmatpush.msra.mxu0 %v2123
    %2182 = vmatpush.msra.mxu0 %v2119
    %2183 = vmatpush.msra.mxu0 %v2115
    %2184 = vmatpush.msra.mxu0 %v2111
    %2185 = vmatpush.msra.mxu0 %v2107
    %2186 = vmatpush.msra.mxu0 %v2103
    %2187 = vmatpush.msra.mxu0 %v2099
    %2188 = vmatpush.msra.mxu0 %v2095
    %2189 = vmatpush.msra.mxu0 %v2091
    %2190 = vmatmul.f32.gmra.mxu0 0.0
    %v2191 = vpop.f32.mrf.mxu0
    %v2192 = vadd.f32 0.0, %v2191
    %2193 = vdwg.mxu0
    %2194 = vmatpush.msra.mxu0 %v2152
    %2195 = vmatpush.msra.mxu0 %v2148
    %2196 = vmatpush.msra.mxu0 %v2144
    %2197 = vmatpush.msra.mxu0 %v2140
    %2198 = vmatpush.msra.mxu0 %v2136
    %2199 = vmatpush.msra.mxu0 %v2132
    %2200 = vmatpush.msra.mxu0 %v2128
    %2201 = vmatpush.msra.mxu0 %v2124
    %2202 = vmatpush.msra.mxu0 %v2120
    %2203 = vmatpush.msra.mxu0 %v2116
    %2204 = vmatpush.msra.mxu0 %v2112
    %2205 = vmatpush.msra.mxu0 %v2108
    %2206 = vmatpush.msra.mxu0 %v2104
    %2207 = vmatpush.msra.mxu0 %v2100
    %2208 = vmatpush.msra.mxu0 %v2096
    %2209 = vmatpush.msra.mxu0 %v2092
    %2210 = vmatmul.f32.gmra.mxu0 0.0
    %v2211 = vpop.f32.mrf.mxu0
    %v2212 = vadd.f32 0.0, %v2211
    %2213 = vdwg.mxu0
    %2214 = vmatpush.msra.mxu0 %v2153
    %2215 = vmatpush.msra.mxu0 %v2149
    %2216 = vmatpush.msra.mxu0 %v2145
    %2217 = vmatpush.msra.mxu0 %v2141
    %2218 = vmatpush.msra.mxu0 %v2137
    %2219 = vmatpush.msra.mxu0 %v2133
    %2220 = vmatpush.msra.mxu0 %v2129
    %2221 = vmatpush.msra.mxu0 %v2125
    %2222 = vmatpush.msra.mxu0 %v2121
    %2223 = vmatpush.msra.mxu0 %v2117
    %2224 = vmatpush.msra.mxu0 %v2113
    %2225 = vmatpush.msra.mxu0 %v2109
    %2226 = vmatpush.msra.mxu0 %v2105
    %2227 = vmatpush.msra.mxu0 %v2101
    %2228 = vmatpush.msra.mxu0 %v2097
    %2229 = vmatpush.msra.mxu0 %v2093
    %2230 = vmatmul.f32.gmra.mxu0 0.0
    %v2231 = vpop.f32.mrf.mxu0
    %v2232 = vadd.f32 0.0, %v2231
    %2233 = vdwg.mxu0
    %v2234 = vadd.f32 %v2086, %v2172
    %v2235 = vadd.f32 %v2087, %v2192
    %v2236 = vadd.f32 %v2088, %v2212
    %v2237 = vadd.f32 %v2089, %v2232
    %v2238 = vmul.f32 %v2234, 0.5
    %v2239 = vtanh.pop %v2238
    %v2240 = vmul.f32 %v2239, 0.5
    %v2241 = vadd.f32 %v2240, 0.5
    %v2242 = vmul.f32 %v2235, 0.5
    %v2243 = vtanh.pop %v2242
    %v2244 = vmul.f32 %v2243, 0.5
    %v2245 = vadd.f32 %v2244, 0.5
    %v2246 = vtanh.pop %v2236
    %v2247 = vmul.f32 %v2237, 0.5
    %v2248 = vtanh.pop %v2247
    %v2249 = vmul.f32 %v2248, 0.5
    %v2250 = vadd.f32 %v2249, 0.5
    %v2251 = vmul.f32 %v2245, 0.0
    %v2252 = vmul.f32 %v2241, %v2246
    %v2253 = vadd.f32 %v2251, %v2252
    %v2254 = vtanh.pop %v2253
    %v2255 = vmul.f32 %v2250, %v2254
    %2256 = vst [vmem:[#allocation3] sm:$0xff] %v2255
    %v2257 = vld [vmem:[%s585] sm:$0xff]
    %v2258 = vld [vmem:[%s585 + $0x8] sm:$0xff]
    %v2259 = vld [vmem:[%s585 + $0x10] sm:$0xff]
    %v2260 = vld [vmem:[%s585 + $0x18] sm:$0xff]
    %v2261 = vld [vmem:[#allocation9] sm:$0xff]
    %v2262 = vld [vmem:[#allocation9 + $0x8] sm:$0xff]
    %v2263 = vld [vmem:[#allocation9 + $0x10] sm:$0xff]
    %v2264 = vld [vmem:[#allocation9 + $0x18] sm:$0xff]
    %v2265 = vld [vmem:[#allocation9 + $0x20] sm:$0xff]
    %v2266 = vld [vmem:[#allocation9 + $0x28] sm:$0xff]
    %v2267 = vld [vmem:[#allocation9 + $0x30] sm:$0xff]
    %v2268 = vld [vmem:[#allocation9 + $0x38] sm:$0xff]
    %v2269 = vld [vmem:[#allocation9 + $0x40] sm:$0xff]
    %v2270 = vld [vmem:[#allocation9 + $0x48] sm:$0xff]
    %v2271 = vld [vmem:[#allocation9 + $0x50] sm:$0xff]
    %v2272 = vld [vmem:[#allocation9 + $0x58] sm:$0xff]
    %v2273 = vld [vmem:[#allocation9 + $0x60] sm:$0xff]
    %v2274 = vld [vmem:[#allocation9 + $0x68] sm:$0xff]
    %v2275 = vld [vmem:[#allocation9 + $0x70] sm:$0xff]
    %v2276 = vld [vmem:[#allocation9 + $0x78] sm:$0xff]
    %v2277 = vld [vmem:[#allocation9 + $0x80] sm:$0xff]
    %v2278 = vld [vmem:[#allocation9 + $0x88] sm:$0xff]
    %v2279 = vld [vmem:[#allocation9 + $0x90] sm:$0xff]
    %v2280 = vld [vmem:[#allocation9 + $0x98] sm:$0xff]
    %v2281 = vld [vmem:[#allocation9 + $0xa0] sm:$0xff]
    %v2282 = vld [vmem:[#allocation9 + $0xa8] sm:$0xff]
    %v2283 = vld [vmem:[#allocation9 + $0xb0] sm:$0xff]
    %v2284 = vld [vmem:[#allocation9 + $0xb8] sm:$0xff]
    %v2285 = vld [vmem:[#allocation9 + $0xc0] sm:$0xff]
    %v2286 = vld [vmem:[#allocation9 + $0xc8] sm:$0xff]
    %v2287 = vld [vmem:[#allocation9 + $0xd0] sm:$0xff]
    %v2288 = vld [vmem:[#allocation9 + $0xd8] sm:$0xff]
    %v2289 = vld [vmem:[#allocation9 + $0xe0] sm:$0xff]
    %v2290 = vld [vmem:[#allocation9 + $0xe8] sm:$0xff]
    %v2291 = vld [vmem:[#allocation9 + $0xf0] sm:$0xff]
    %v2292 = vld [vmem:[#allocation9 + $0xf8] sm:$0xff]
    %v2293 = vld [vmem:[#allocation9 + $0x100] sm:$0xff]
    %v2294 = vld [vmem:[#allocation9 + $0x108] sm:$0xff]
    %v2295 = vld [vmem:[#allocation9 + $0x110] sm:$0xff]
    %v2296 = vld [vmem:[#allocation9 + $0x118] sm:$0xff]
    %v2297 = vld [vmem:[#allocation9 + $0x120] sm:$0xff]
    %v2298 = vld [vmem:[#allocation9 + $0x128] sm:$0xff]
    %v2299 = vld [vmem:[#allocation9 + $0x130] sm:$0xff]
    %v2300 = vld [vmem:[#allocation9 + $0x138] sm:$0xff]
    %v2301 = vld [vmem:[#allocation9 + $0x140] sm:$0xff]
    %v2302 = vld [vmem:[#allocation9 + $0x148] sm:$0xff]
    %v2303 = vld [vmem:[#allocation9 + $0x150] sm:$0xff]
    %v2304 = vld [vmem:[#allocation9 + $0x158] sm:$0xff]
    %v2305 = vld [vmem:[#allocation9 + $0x160] sm:$0xff]
    %v2306 = vld [vmem:[#allocation9 + $0x168] sm:$0xff]
    %v2307 = vld [vmem:[#allocation9 + $0x170] sm:$0xff]
    %v2308 = vld [vmem:[#allocation9 + $0x178] sm:$0xff]
    %v2309 = vld [vmem:[#allocation9 + $0x180] sm:$0xff]
    %v2310 = vld [vmem:[#allocation9 + $0x188] sm:$0xff]
    %v2311 = vld [vmem:[#allocation9 + $0x190] sm:$0xff]
    %v2312 = vld [vmem:[#allocation9 + $0x198] sm:$0xff]
    %v2313 = vld [vmem:[#allocation9 + $0x1a0] sm:$0xff]
    %v2314 = vld [vmem:[#allocation9 + $0x1a8] sm:$0xff]
    %v2315 = vld [vmem:[#allocation9 + $0x1b0] sm:$0xff]
    %v2316 = vld [vmem:[#allocation9 + $0x1b8] sm:$0xff]
    %v2317 = vld [vmem:[#allocation9 + $0x1c0] sm:$0xff]
    %v2318 = vld [vmem:[#allocation9 + $0x1c8] sm:$0xff]
    %v2319 = vld [vmem:[#allocation9 + $0x1d0] sm:$0xff]
    %v2320 = vld [vmem:[#allocation9 + $0x1d8] sm:$0xff]
    %v2321 = vld [vmem:[#allocation9 + $0x1e0] sm:$0xff]
    %v2322 = vld [vmem:[#allocation9 + $0x1e8] sm:$0xff]
    %v2323 = vld [vmem:[#allocation9 + $0x1f0] sm:$0xff]
    %v2324 = vld [vmem:[#allocation9 + $0x1f8] sm:$0xff]
    %2325 = vmatpush.msra.mxu0 %v2321
    %2326 = vmatpush.msra.mxu0 %v2317
    %2327 = vmatpush.msra.mxu0 %v2313
    %2328 = vmatpush.msra.mxu0 %v2309
    %2329 = vmatpush.msra.mxu0 %v2305
    %2330 = vmatpush.msra.mxu0 %v2301
    %2331 = vmatpush.msra.mxu0 %v2297
    %2332 = vmatpush.msra.mxu0 %v2293
    %2333 = vmatpush.msra.mxu0 %v2289
    %2334 = vmatpush.msra.mxu0 %v2285
    %2335 = vmatpush.msra.mxu0 %v2281
    %2336 = vmatpush.msra.mxu0 %v2277
    %2337 = vmatpush.msra.mxu0 %v2273
    %2338 = vmatpush.msra.mxu0 %v2269
    %2339 = vmatpush.msra.mxu0 %v2265
    %2340 = vmatpush.msra.mxu0 %v2261
    %2341 = vmatmul.f32.gmra.mxu0 %v2255
    %v2342 = vpop.f32.mrf.mxu0
    %v2343 = vadd.f32 0.0, %v2342
    %2344 = vdwg.mxu0
    %2345 = vmatpush.msra.mxu0 %v2322
    %2346 = vmatpush.msra.mxu0 %v2318
    %2347 = vmatpush.msra.mxu0 %v2314
    %2348 = vmatpush.msra.mxu0 %v2310
    %2349 = vmatpush.msra.mxu0 %v2306
    %2350 = vmatpush.msra.mxu0 %v2302
    %2351 = vmatpush.msra.mxu0 %v2298
    %2352 = vmatpush.msra.mxu0 %v2294
    %2353 = vmatpush.msra.mxu0 %v2290
    %2354 = vmatpush.msra.mxu0 %v2286
    %2355 = vmatpush.msra.mxu0 %v2282
    %2356 = vmatpush.msra.mxu0 %v2278
    %2357 = vmatpush.msra.mxu0 %v2274
    %2358 = vmatpush.msra.mxu0 %v2270
    %2359 = vmatpush.msra.mxu0 %v2266
    %2360 = vmatpush.msra.mxu0 %v2262
    %2361 = vmatmul.f32.gmra.mxu0 %v2255
    %v2362 = vpop.f32.mrf.mxu0
    %v2363 = vadd.f32 0.0, %v2362
    %2364 = vdwg.mxu0
    %2365 = vmatpush.msra.mxu0 %v2323
    %2366 = vmatpush.msra.mxu0 %v2319
    %2367 = vmatpush.msra.mxu0 %v2315
    %2368 = vmatpush.msra.mxu0 %v2311
    %2369 = vmatpush.msra.mxu0 %v2307
    %2370 = vmatpush.msra.mxu0 %v2303
    %2371 = vmatpush.msra.mxu0 %v2299
    %2372 = vmatpush.msra.mxu0 %v2295
    %2373 = vmatpush.msra.mxu0 %v2291
    %2374 = vmatpush.msra.mxu0 %v2287
    %2375 = vmatpush.msra.mxu0 %v2283
    %2376 = vmatpush.msra.mxu0 %v2279
    %2377 = vmatpush.msra.mxu0 %v2275
    %2378 = vmatpush.msra.mxu0 %v2271
    %2379 = vmatpush.msra.mxu0 %v2267
    %2380 = vmatpush.msra.mxu0 %v2263
    %2381 = vmatmul.f32.gmra.mxu0 %v2255
    %v2382 = vpop.f32.mrf.mxu0
    %v2383 = vadd.f32 0.0, %v2382
    %2384 = vdwg.mxu0
    %2385 = vmatpush.msra.mxu0 %v2324
    %2386 = vmatpush.msra.mxu0 %v2320
    %2387 = vmatpush.msra.mxu0 %v2316
    %2388 = vmatpush.msra.mxu0 %v2312
    %2389 = vmatpush.msra.mxu0 %v2308
    %2390 = vmatpush.msra.mxu0 %v2304
    %2391 = vmatpush.msra.mxu0 %v2300
    %2392 = vmatpush.msra.mxu0 %v2296
    %2393 = vmatpush.msra.mxu0 %v2292
    %2394 = vmatpush.msra.mxu0 %v2288
    %2395 = vmatpush.msra.mxu0 %v2284
    %2396 = vmatpush.msra.mxu0 %v2280
    %2397 = vmatpush.msra.mxu0 %v2276
    %2398 = vmatpush.msra.mxu0 %v2272
    %2399 = vmatpush.msra.mxu0 %v2268
    %2400 = vmatpush.msra.mxu0 %v2264
    %2401 = vmatmul.f32.gmra.mxu0 %v2255
    %v2402 = vpop.f32.mrf.mxu0
    %v2403 = vadd.f32 0.0, %v2402
    %2404 = vdwg.mxu0
    %v2405 = vadd.f32 %v2257, %v2343
    %v2406 = vadd.f32 %v2258, %v2363
    %v2407 = vadd.f32 %v2259, %v2383
    %v2408 = vadd.f32 %v2260, %v2403
    %v2409 = vmul.f32 %v2405, 0.5
    %v2410 = vtanh.pop %v2409
    %v2411 = vmul.f32 %v2410, 0.5
    %v2412 = vadd.f32 %v2411, 0.5
    %v2413 = vmul.f32 %v2406, 0.5
    %v2414 = vtanh.pop %v2413
    %v2415 = vmul.f32 %v2414, 0.5
    %v2416 = vadd.f32 %v2415, 0.5
    %v2417 = vtanh.pop %v2407
    %v2418 = vmul.f32 %v2408, 0.5
    %v2419 = vtanh.pop %v2418
    %v2420 = vmul.f32 %v2419, 0.5
    %v2421 = vadd.f32 %v2420, 0.5
    %v2422 = vmul.f32 %v2416, %v2253
    %v2423 = vmul.f32 %v2412, %v2417
    %v2424 = vadd.f32 %v2422, %v2423
    %v2425 = vtanh.pop %v2424
    %v2426 = vmul.f32 %v2421, %v2425
    %2427 = vst [vmem:[%s756] sm:$0xff] %v2426
    %v2428 = vld [vmem:[%s760] sm:$0xff]
    %v2429 = vld [vmem:[%s760 + $0x8] sm:$0xff]
    %v2430 = vld [vmem:[%s760 + $0x10] sm:$0xff]
    %v2431 = vld [vmem:[%s760 + $0x18] sm:$0xff]
    %v2432 = vld [vmem:[#allocation9] sm:$0xff]
    %v2433 = vld [vmem:[#allocation9 + $0x8] sm:$0xff]
    %v2434 = vld [vmem:[#allocation9 + $0x10] sm:$0xff]
    %v2435 = vld [vmem:[#allocation9 + $0x18] sm:$0xff]
    %v2436 = vld [vmem:[#allocation9 + $0x20] sm:$0xff]
    %v2437 = vld [vmem:[#allocation9 + $0x28] sm:$0xff]
    %v2438 = vld [vmem:[#allocation9 + $0x30] sm:$0xff]
    %v2439 = vld [vmem:[#allocation9 + $0x38] sm:$0xff]
    %v2440 = vld [vmem:[#allocation9 + $0x40] sm:$0xff]
    %v2441 = vld [vmem:[#allocation9 + $0x48] sm:$0xff]
    %v2442 = vld [vmem:[#allocation9 + $0x50] sm:$0xff]
    %v2443 = vld [vmem:[#allocation9 + $0x58] sm:$0xff]
    %v2444 = vld [vmem:[#allocation9 + $0x60] sm:$0xff]
    %v2445 = vld [vmem:[#allocation9 + $0x68] sm:$0xff]
    %v2446 = vld [vmem:[#allocation9 + $0x70] sm:$0xff]
    %v2447 = vld [vmem:[#allocation9 + $0x78] sm:$0xff]
    %v2448 = vld [vmem:[#allocation9 + $0x80] sm:$0xff]
    %v2449 = vld [vmem:[#allocation9 + $0x88] sm:$0xff]
    %v2450 = vld [vmem:[#allocation9 + $0x90] sm:$0xff]
    %v2451 = vld [vmem:[#allocation9 + $0x98] sm:$0xff]
    %v2452 = vld [vmem:[#allocation9 + $0xa0] sm:$0xff]
    %v2453 = vld [vmem:[#allocation9 + $0xa8] sm:$0xff]
    %v2454 = vld [vmem:[#allocation9 + $0xb0] sm:$0xff]
    %v2455 = vld [vmem:[#allocation9 + $0xb8] sm:$0xff]
    %v2456 = vld [vmem:[#allocation9 + $0xc0] sm:$0xff]
    %v2457 = vld [vmem:[#allocation9 + $0xc8] sm:$0xff]
    %v2458 = vld [vmem:[#allocation9 + $0xd0] sm:$0xff]
    %v2459 = vld [vmem:[#allocation9 + $0xd8] sm:$0xff]
    %v2460 = vld [vmem:[#allocation9 + $0xe0] sm:$0xff]
    %v2461 = vld [vmem:[#allocation9 + $0xe8] sm:$0xff]
    %v2462 = vld [vmem:[#allocation9 + $0xf0] sm:$0xff]
    %v2463 = vld [vmem:[#allocation9 + $0xf8] sm:$0xff]
    %v2464 = vld [vmem:[#allocation9 + $0x100] sm:$0xff]
    %v2465 = vld [vmem:[#allocation9 + $0x108] sm:$0xff]
    %v2466 = vld [vmem:[#allocation9 + $0x110] sm:$0xff]
    %v2467 = vld [vmem:[#allocation9 + $0x118] sm:$0xff]
    %v2468 = vld [vmem:[#allocation9 + $0x120] sm:$0xff]
    %v2469 = vld [vmem:[#allocation9 + $0x128] sm:$0xff]
    %v2470 = vld [vmem:[#allocation9 + $0x130] sm:$0xff]
    %v2471 = vld [vmem:[#allocation9 + $0x138] sm:$0xff]
    %v2472 = vld [vmem:[#allocation9 + $0x140] sm:$0xff]
    %v2473 = vld [vmem:[#allocation9 + $0x148] sm:$0xff]
    %v2474 = vld [vmem:[#allocation9 + $0x150] sm:$0xff]
    %v2475 = vld [vmem:[#allocation9 + $0x158] sm:$0xff]
    %v2476 = vld [vmem:[#allocation9 + $0x160] sm:$0xff]
    %v2477 = vld [vmem:[#allocation9 + $0x168] sm:$0xff]
    %v2478 = vld [vmem:[#allocation9 + $0x170] sm:$0xff]
    %v2479 = vld [vmem:[#allocation9 + $0x178] sm:$0xff]
    %v2480 = vld [vmem:[#allocation9 + $0x180] sm:$0xff]
    %v2481 = vld [vmem:[#allocation9 + $0x188] sm:$0xff]
    %v2482 = vld [vmem:[#allocation9 + $0x190] sm:$0xff]
    %v2483 = vld [vmem:[#allocation9 + $0x198] sm:$0xff]
    %v2484 = vld [vmem:[#allocation9 + $0x1a0] sm:$0xff]
    %v2485 = vld [vmem:[#allocation9 + $0x1a8] sm:$0xff]
    %v2486 = vld [vmem:[#allocation9 + $0x1b0] sm:$0xff]
    %v2487 = vld [vmem:[#allocation9 + $0x1b8] sm:$0xff]
    %v2488 = vld [vmem:[#allocation9 + $0x1c0] sm:$0xff]
    %v2489 = vld [vmem:[#allocation9 + $0x1c8] sm:$0xff]
    %v2490 = vld [vmem:[#allocation9 + $0x1d0] sm:$0xff]
    %v2491 = vld [vmem:[#allocation9 + $0x1d8] sm:$0xff]
    %v2492 = vld [vmem:[#allocation9 + $0x1e0] sm:$0xff]
    %v2493 = vld [vmem:[#allocation9 + $0x1e8] sm:$0xff]
    %v2494 = vld [vmem:[#allocation9 + $0x1f0] sm:$0xff]
    %v2495 = vld [vmem:[#allocation9 + $0x1f8] sm:$0xff]
    %2496 = vmatpush.msra.mxu0 %v2492
    %2497 = vmatpush.msra.mxu0 %v2488
    %2498 = vmatpush.msra.mxu0 %v2484
    %2499 = vmatpush.msra.mxu0 %v2480
    %2500 = vmatpush.msra.mxu0 %v2476
    %2501 = vmatpush.msra.mxu0 %v2472
    %2502 = vmatpush.msra.mxu0 %v2468
    %2503 = vmatpush.msra.mxu0 %v2464
    %2504 = vmatpush.msra.mxu0 %v2460
    %2505 = vmatpush.msra.mxu0 %v2456
    %2506 = vmatpush.msra.mxu0 %v2452
    %2507 = vmatpush.msra.mxu0 %v2448
    %2508 = vmatpush.msra.mxu0 %v2444
    %2509 = vmatpush.msra.mxu0 %v2440
    %2510 = vmatpush.msra.mxu0 %v2436
    %2511 = vmatpush.msra.mxu0 %v2432
    %2512 = vmatmul.f32.gmra.mxu0 %v2426
    %v2513 = vpop.f32.mrf.mxu0
    %v2514 = vadd.f32 0.0, %v2513
    %2515 = vdwg.mxu0
    %2516 = vmatpush.msra.mxu0 %v2493
    %2517 = vmatpush.msra.mxu0 %v2489
    %2518 = vmatpush.msra.mxu0 %v2485
    %2519 = vmatpush.msra.mxu0 %v2481
    %2520 = vmatpush.msra.mxu0 %v2477
    %2521 = vmatpush.msra.mxu0 %v2473
    %2522 = vmatpush.msra.mxu0 %v2469
    %2523 = vmatpush.msra.mxu0 %v2465
    %2524 = vmatpush.msra.mxu0 %v2461
    %2525 = vmatpush.msra.mxu0 %v2457
    %2526 = vmatpush.msra.mxu0 %v2453
    %2527 = vmatpush.msra.mxu0 %v2449
    %2528 = vmatpush.msra.mxu0 %v2445
    %2529 = vmatpush.msra.mxu0 %v2441
    %2530 = vmatpush.msra.mxu0 %v2437
    %2531 = vmatpush.msra.mxu0 %v2433
    %2532 = vmatmul.f32.gmra.mxu0 %v2426
    %v2533 = vpop.f32.mrf.mxu0
    %v2534 = vadd.f32 0.0, %v2533
    %2535 = vdwg.mxu0
    %2536 = vmatpush.msra.mxu0 %v2494
    %2537 = vmatpush.msra.mxu0 %v2490
    %2538 = vmatpush.msra.mxu0 %v2486
    %2539 = vmatpush.msra.mxu0 %v2482
    %2540 = vmatpush.msra.mxu0 %v2478
    %2541 = vmatpush.msra.mxu0 %v2474
    %2542 = vmatpush.msra.mxu0 %v2470
    %2543 = vmatpush.msra.mxu0 %v2466
    %2544 = vmatpush.msra.mxu0 %v2462
    %2545 = vmatpush.msra.mxu0 %v2458
    %2546 = vmatpush.msra.mxu0 %v2454
    %2547 = vmatpush.msra.mxu0 %v2450
    %2548 = vmatpush.msra.mxu0 %v2446
    %2549 = vmatpush.msra.mxu0 %v2442
    %2550 = vmatpush.msra.mxu0 %v2438
    %2551 = vmatpush.msra.mxu0 %v2434
    %2552 = vmatmul.f32.gmra.mxu0 %v2426
    %v2553 = vpop.f32.mrf.mxu0
    %v2554 = vadd.f32 0.0, %v2553
    %2555 = vdwg.mxu0
    %2556 = vmatpush.msra.mxu0 %v2495
    %2557 = vmatpush.msra.mxu0 %v2491
    %2558 = vmatpush.msra.mxu0 %v2487
    %2559 = vmatpush.msra.mxu0 %v2483
    %2560 = vmatpush.msra.mxu0 %v2479
    %2561 = vmatpush.msra.mxu0 %v2475
    %2562 = vmatpush.msra.mxu0 %v2471
    %2563 = vmatpush.msra.mxu0 %v2467
    %2564 = vmatpush.msra.mxu0 %v2463
    %2565 = vmatpush.msra.mxu0 %v2459
    %2566 = vmatpush.msra.mxu0 %v2455
    %2567 = vmatpush.msra.mxu0 %v2451
    %2568 = vmatpush.msra.mxu0 %v2447
    %2569 = vmatpush.msra.mxu0 %v2443
    %2570 = vmatpush.msra.mxu0 %v2439
    %2571 = vmatpush.msra.mxu0 %v2435
    %2572 = vmatmul.f32.gmra.mxu0 %v2426
    %v2573 = vpop.f32.mrf.mxu0
    %v2574 = vadd.f32 0.0, %v2573
    %2575 = vdwg.mxu0
    %v2576 = vadd.f32 %v2428, %v2514
    %v2577 = vadd.f32 %v2429, %v2534
    %v2578 = vadd.f32 %v2430, %v2554
    %v2579 = vadd.f32 %v2431, %v2574
    %v2580 = vmul.f32 %v2576, 0.5
    %v2581 = vtanh.pop %v2580
    %v2582 = vmul.f32 %v2581, 0.5
    %v2583 = vadd.f32 %v2582, 0.5
    %v2584 = vmul.f32 %v2577, 0.5
    %v2585 = vtanh.pop %v2584
    %v2586 = vmul.f32 %v2585, 0.5
    %v2587 = vadd.f32 %v2586, 0.5
    %v2588 = vtanh.pop %v2578
    %v2589 = vmul.f32 %v2579, 0.5
    %v2590 = vtanh.pop %v2589
    %v2591 = vmul.f32 %v2590, 0.5
    %v2592 = vadd.f32 %v2591, 0.5
    %v2593 = vmul.f32 %v2587, %v2424
    %v2594 = vmul.f32 %v2583, %v2588
    %v2595 = vadd.f32 %v2593, %v2594
    %v2596 = vtanh.pop %v2595
    %v2597 = vmul.f32 %v2592, %v2596
    %2598 = vst [vmem:[%s931] sm:$0xff] %v2597
    %v2599 = vld [vmem:[%s935] sm:$0xff]
    %v2600 = vld [vmem:[%s935 + $0x8] sm:$0xff]
    %v2601 = vld [vmem:[%s935 + $0x10] sm:$0xff]
    %v2602 = vld [vmem:[%s935 + $0x18] sm:$0xff]
    %v2603 = vld [vmem:[#allocation9] sm:$0xff]
    %v2604 = vld [vmem:[#allocation9 + $0x8] sm:$0xff]
    %v2605 = vld [vmem:[#allocation9 + $0x10] sm:$0xff]
    %v2606 = vld [vmem:[#allocation9 + $0x18] sm:$0xff]
    %v2607 = vld [vmem:[#allocation9 + $0x20] sm:$0xff]
    %v2608 = vld [vmem:[#allocation9 + $0x28] sm:$0xff]
    %v2609 = vld [vmem:[#allocation9 + $0x30] sm:$0xff]
    %v2610 = vld [vmem:[#allocation9 + $0x38] sm:$0xff]
    %v2611 = vld [vmem:[#allocation9 + $0x40] sm:$0xff]
    %v2612 = vld [vmem:[#allocation9 + $0x48] sm:$0xff]
    %v2613 = vld [vmem:[#allocation9 + $0x50] sm:$0xff]
    %v2614 = vld [vmem:[#allocation9 + $0x58] sm:$0xff]
    %v2615 = vld [vmem:[#allocation9 + $0x60] sm:$0xff]
    %v2616 = vld [vmem:[#allocation9 + $0x68] sm:$0xff]
    %v2617 = vld [vmem:[#allocation9 + $0x70] sm:$0xff]
    %v2618 = vld [vmem:[#allocation9 + $0x78] sm:$0xff]
    %v2619 = vld [vmem:[#allocation9 + $0x80] sm:$0xff]
    %v2620 = vld [vmem:[#allocation9 + $0x88] sm:$0xff]
    %v2621 = vld [vmem:[#allocation9 + $0x90] sm:$0xff]
    %v2622 = vld [vmem:[#allocation9 + $0x98] sm:$0xff]
    %v2623 = vld [vmem:[#allocation9 + $0xa0] sm:$0xff]
    %v2624 = vld [vmem:[#allocation9 + $0xa8] sm:$0xff]
    %v2625 = vld [vmem:[#allocation9 + $0xb0] sm:$0xff]
    %v2626 = vld [vmem:[#allocation9 + $0xb8] sm:$0xff]
    %v2627 = vld [vmem:[#allocation9 + $0xc0] sm:$0xff]
    %v2628 = vld [vmem:[#allocation9 + $0xc8] sm:$0xff]
    %v2629 = vld [vmem:[#allocation9 + $0xd0] sm:$0xff]
    %v2630 = vld [vmem:[#allocation9 + $0xd8] sm:$0xff]
    %v2631 = vld [vmem:[#allocation9 + $0xe0] sm:$0xff]
    %v2632 = vld [vmem:[#allocation9 + $0xe8] sm:$0xff]
    %v2633 = vld [vmem:[#allocation9 + $0xf0] sm:$0xff]
    %v2634 = vld [vmem:[#allocation9 + $0xf8] sm:$0xff]
    %v2635 = vld [vmem:[#allocation9 + $0x100] sm:$0xff]
    %v2636 = vld [vmem:[#allocation9 + $0x108] sm:$0xff]
    %v2637 = vld [vmem:[#allocation9 + $0x110] sm:$0xff]
    %v2638 = vld [vmem:[#allocation9 + $0x118] sm:$0xff]
    %v2639 = vld [vmem:[#allocation9 + $0x120] sm:$0xff]
    %v2640 = vld [vmem:[#allocation9 + $0x128] sm:$0xff]
    %v2641 = vld [vmem:[#allocation9 + $0x130] sm:$0xff]
    %v2642 = vld [vmem:[#allocation9 + $0x138] sm:$0xff]
    %v2643 = vld [vmem:[#allocation9 + $0x140] sm:$0xff]
    %v2644 = vld [vmem:[#allocation9 + $0x148] sm:$0xff]
    %v2645 = vld [vmem:[#allocation9 + $0x150] sm:$0xff]
    %v2646 = vld [vmem:[#allocation9 + $0x158] sm:$0xff]
    %v2647 = vld [vmem:[#allocation9 + $0x160] sm:$0xff]
    %v2648 = vld [vmem:[#allocation9 + $0x168] sm:$0xff]
    %v2649 = vld [vmem:[#allocation9 + $0x170] sm:$0xff]
    %v2650 = vld [vmem:[#allocation9 + $0x178] sm:$0xff]
    %v2651 = vld [vmem:[#allocation9 + $0x180] sm:$0xff]
    %v2652 = vld [vmem:[#allocation9 + $0x188] sm:$0xff]
    %v2653 = vld [vmem:[#allocation9 + $0x190] sm:$0xff]
    %v2654 = vld [vmem:[#allocation9 + $0x198] sm:$0xff]
    %v2655 = vld [vmem:[#allocation9 + $0x1a0] sm:$0xff]
    %v2656 = vld [vmem:[#allocation9 + $0x1a8] sm:$0xff]
    %v2657 = vld [vmem:[#allocation9 + $0x1b0] sm:$0xff]
    %v2658 = vld [vmem:[#allocation9 + $0x1b8] sm:$0xff]
    %v2659 = vld [vmem:[#allocation9 + $0x1c0] sm:$0xff]
    %v2660 = vld [vmem:[#allocation9 + $0x1c8] sm:$0xff]
    %v2661 = vld [vmem:[#allocation9 + $0x1d0] sm:$0xff]
    %v2662 = vld [vmem:[#allocation9 + $0x1d8] sm:$0xff]
    %v2663 = vld [vmem:[#allocation9 + $0x1e0] sm:$0xff]
    %v2664 = vld [vmem:[#allocation9 + $0x1e8] sm:$0xff]
    %v2665 = vld [vmem:[#allocation9 + $0x1f0] sm:$0xff]
    %v2666 = vld [vmem:[#allocation9 + $0x1f8] sm:$0xff]
    %2667 = vmatpush.msra.mxu0 %v2663
    %2668 = vmatpush.msra.mxu0 %v2659
    %2669 = vmatpush.msra.mxu0 %v2655
    %2670 = vmatpush.msra.mxu0 %v2651
    %2671 = vmatpush.msra.mxu0 %v2647
    %2672 = vmatpush.msra.mxu0 %v2643
    %2673 = vmatpush.msra.mxu0 %v2639
    %2674 = vmatpush.msra.mxu0 %v2635
    %2675 = vmatpush.msra.mxu0 %v2631
    %2676 = vmatpush.msra.mxu0 %v2627
    %2677 = vmatpush.msra.mxu0 %v2623
    %2678 = vmatpush.msra.mxu0 %v2619
    %2679 = vmatpush.msra.mxu0 %v2615
    %2680 = vmatpush.msra.mxu0 %v2611
    %2681 = vmatpush.msra.mxu0 %v2607
    %2682 = vmatpush.msra.mxu0 %v2603
    %2683 = vmatmul.f32.gmra.mxu0 %v2597
    %v2684 = vpop.f32.mrf.mxu0
    %v2685 = vadd.f32 0.0, %v2684
    %2686 = vdwg.mxu0
    %2687 = vmatpush.msra.mxu0 %v2664
    %2688 = vmatpush.msra.mxu0 %v2660
    %2689 = vmatpush.msra.mxu0 %v2656
    %2690 = vmatpush.msra.mxu0 %v2652
    %2691 = vmatpush.msra.mxu0 %v2648
    %2692 = vmatpush.msra.mxu0 %v2644
    %2693 = vmatpush.msra.mxu0 %v2640
    %2694 = vmatpush.msra.mxu0 %v2636
    %2695 = vmatpush.msra.mxu0 %v2632
    %2696 = vmatpush.msra.mxu0 %v2628
    %2697 = vmatpush.msra.mxu0 %v2624
    %2698 = vmatpush.msra.mxu0 %v2620
    %2699 = vmatpush.msra.mxu0 %v2616
    %2700 = vmatpush.msra.mxu0 %v2612
    %2701 = vmatpush.msra.mxu0 %v2608
    %2702 = vmatpush.msra.mxu0 %v2604
    %2703 = vmatmul.f32.gmra.mxu0 %v2597
    %v2704 = vpop.f32.mrf.mxu0
    %v2705 = vadd.f32 0.0, %v2704
    %2706 = vdwg.mxu0
    %2707 = vmatpush.msra.mxu0 %v2665
    %2708 = vmatpush.msra.mxu0 %v2661
    %2709 = vmatpush.msra.mxu0 %v2657
    %2710 = vmatpush.msra.mxu0 %v2653
    %2711 = vmatpush.msra.mxu0 %v2649
    %2712 = vmatpush.msra.mxu0 %v2645
    %2713 = vmatpush.msra.mxu0 %v2641
    %2714 = vmatpush.msra.mxu0 %v2637
    %2715 = vmatpush.msra.mxu0 %v2633
    %2716 = vmatpush.msra.mxu0 %v2629
    %2717 = vmatpush.msra.mxu0 %v2625
    %2718 = vmatpush.msra.mxu0 %v2621
    %2719 = vmatpush.msra.mxu0 %v2617
    %2720 = vmatpush.msra.mxu0 %v2613
    %2721 = vmatpush.msra.mxu0 %v2609
    %2722 = vmatpush.msra.mxu0 %v2605
    %2723 = vmatmul.f32.gmra.mxu0 %v2597
    %v2724 = vpop.f32.mrf.mxu0
    %v2725 = vadd.f32 0.0, %v2724
    %2726 = vdwg.mxu0
    %2727 = vmatpush.msra.mxu0 %v2666
    %2728 = vmatpush.msra.mxu0 %v2662
    %2729 = vmatpush.msra.mxu0 %v2658
    %2730 = vmatpush.msra.mxu0 %v2654
    %2731 = vmatpush.msra.mxu0 %v2650
    %2732 = vmatpush.msra.mxu0 %v2646
    %2733 = vmatpush.msra.mxu0 %v2642
    %2734 = vmatpush.msra.mxu0 %v2638
    %2735 = vmatpush.msra.mxu0 %v2634
    %2736 = vmatpush.msra.mxu0 %v2630
    %2737 = vmatpush.msra.mxu0 %v2626
    %2738 = vmatpush.msra.mxu0 %v2622
    %2739 = vmatpush.msra.mxu0 %v2618
    %2740 = vmatpush.msra.mxu0 %v2614
    %2741 = vmatpush.msra.mxu0 %v2610
    %2742 = vmatpush.msra.mxu0 %v2606
    %2743 = vmatmul.f32.gmra.mxu0 %v2597
    %v2744 = vpop.f32.mrf.mxu0
    %v2745 = vadd.f32 0.0, %v2744
    %2746 = vdwg.mxu0
    %v2747 = vadd.f32 %v2599, %v2685
    %v2748 = vadd.f32 %v2600, %v2705
    %v2749 = vadd.f32 %v2601, %v2725
    %v2750 = vadd.f32 %v2602, %v2745
    %v2751 = vmul.f32 %v2747, 0.5
    %v2752 = vtanh.pop %v2751
    %v2753 = vmul.f32 %v2752, 0.5
    %v2754 = vadd.f32 %v2753, 0.5
    %v2755 = vmul.f32 %v2748, 0.5
    %v2756 = vtanh.pop %v2755
    %v2757 = vmul.f32 %v2756, 0.5
    %v2758 = vadd.f32 %v2757, 0.5
    %v2759 = vtanh.pop %v2749
    %v2760 = vmul.f32 %v2750, 0.5
    %v2761 = vtanh.pop %v2760
    %v2762 = vmul.f32 %v2761, 0.5
    %v2763 = vadd.f32 %v2762, 0.5
    %v2764 = vmul.f32 %v2758, %v2595
    %v2765 = vmul.f32 %v2754, %v2759
    %v2766 = vadd.f32 %v2764, %v2765
    %v2767 = vtanh.pop %v2766
    %v2768 = vmul.f32 %v2763, %v2767
    %2769 = vst [vmem:[%s1106] sm:$0xff] %v2768
    %v2770 = vld [vmem:[%s1110] sm:$0xff]
    %v2771 = vld [vmem:[%s1110 + $0x8] sm:$0xff]
    %v2772 = vld [vmem:[%s1110 + $0x10] sm:$0xff]
    %v2773 = vld [vmem:[%s1110 + $0x18] sm:$0xff]
    %v2774 = vld [vmem:[#allocation9] sm:$0xff]
    %v2775 = vld [vmem:[#allocation9 + $0x8] sm:$0xff]
    %v2776 = vld [vmem:[#allocation9 + $0x10] sm:$0xff]
    %v2777 = vld [vmem:[#allocation9 + $0x18] sm:$0xff]
    %v2778 = vld [vmem:[#allocation9 + $0x20] sm:$0xff]
    %v2779 = vld [vmem:[#allocation9 + $0x28] sm:$0xff]
    %v2780 = vld [vmem:[#allocation9 + $0x30] sm:$0xff]
    %v2781 = vld [vmem:[#allocation9 + $0x38] sm:$0xff]
    %v2782 = vld [vmem:[#allocation9 + $0x40] sm:$0xff]
    %v2783 = vld [vmem:[#allocation9 + $0x48] sm:$0xff]
    %v2784 = vld [vmem:[#allocation9 + $0x50] sm:$0xff]
    %v2785 = vld [vmem:[#allocation9 + $0x58] sm:$0xff]
    %v2786 = vld [vmem:[#allocation9 + $0x60] sm:$0xff]
    %v2787 = vld [vmem:[#allocation9 + $0x68] sm:$0xff]
    %v2788 = vld [vmem:[#allocation9 + $0x70] sm:$0xff]
    %v2789 = vld [vmem:[#allocation9 + $0x78] sm:$0xff]
    %v2790 = vld [vmem:[#allocation9 + $0x80] sm:$0xff]
    %v2791 = vld [vmem:[#allocation9 + $0x88] sm:$0xff]
    %v2792 = vld [vmem:[#allocation9 + $0x90] sm:$0xff]
    %v2793 = vld [vmem:[#allocation9 + $0x98] sm:$0xff]
    %v2794 = vld [vmem:[#allocation9 + $0xa0] sm:$0xff]
    %v2795 = vld [vmem:[#allocation9 + $0xa8] sm:$0xff]
    %v2796 = vld [vmem:[#allocation9 + $0xb0] sm:$0xff]
    %v2797 = vld [vmem:[#allocation9 + $0xb8] sm:$0xff]
    %v2798 = vld [vmem:[#allocation9 + $0xc0] sm:$0xff]
    %v2799 = vld [vmem:[#allocation9 + $0xc8] sm:$0xff]
    %v2800 = vld [vmem:[#allocation9 + $0xd0] sm:$0xff]
    %v2801 = vld [vmem:[#allocation9 + $0xd8] sm:$0xff]
    %v2802 = vld [vmem:[#allocation9 + $0xe0] sm:$0xff]
    %v2803 = vld [vmem:[#allocation9 + $0xe8] sm:$0xff]
    %v2804 = vld [vmem:[#allocation9 + $0xf0] sm:$0xff]
    %v2805 = vld [vmem:[#allocation9 + $0xf8] sm:$0xff]
    %v2806 = vld [vmem:[#allocation9 + $0x100] sm:$0xff]
    %v2807 = vld [vmem:[#allocation9 + $0x108] sm:$0xff]
    %v2808 = vld [vmem:[#allocation9 + $0x110] sm:$0xff]
    %v2809 = vld [vmem:[#allocation9 + $0x118] sm:$0xff]
    %v2810 = vld [vmem:[#allocation9 + $0x120] sm:$0xff]
    %v2811 = vld [vmem:[#allocation9 + $0x128] sm:$0xff]
    %v2812 = vld [vmem:[#allocation9 + $0x130] sm:$0xff]
    %v2813 = vld [vmem:[#allocation9 + $0x138] sm:$0xff]
    %v2814 = vld [vmem:[#allocation9 + $0x140] sm:$0xff]
    %v2815 = vld [vmem:[#allocation9 + $0x148] sm:$0xff]
    %v2816 = vld [vmem:[#allocation9 + $0x150] sm:$0xff]
    %v2817 = vld [vmem:[#allocation9 + $0x158] sm:$0xff]
    %v2818 = vld [vmem:[#allocation9 + $0x160] sm:$0xff]
    %v2819 = vld [vmem:[#allocation9 + $0x168] sm:$0xff]
    %v2820 = vld [vmem:[#allocation9 + $0x170] sm:$0xff]
    %v2821 = vld [vmem:[#allocation9 + $0x178] sm:$0xff]
    %v2822 = vld [vmem:[#allocation9 + $0x180] sm:$0xff]
    %v2823 = vld [vmem:[#allocation9 + $0x188] sm:$0xff]
    %v2824 = vld [vmem:[#allocation9 + $0x190] sm:$0xff]
    %v2825 = vld [vmem:[#allocation9 + $0x198] sm:$0xff]
    %v2826 = vld [vmem:[#allocation9 + $0x1a0] sm:$0xff]
    %v2827 = vld [vmem:[#allocation9 + $0x1a8] sm:$0xff]
    %v2828 = vld [vmem:[#allocation9 + $0x1b0] sm:$0xff]
    %v2829 = vld [vmem:[#allocation9 + $0x1b8] sm:$0xff]
    %v2830 = vld [vmem:[#allocation9 + $0x1c0] sm:$0xff]
    %v2831 = vld [vmem:[#allocation9 + $0x1c8] sm:$0xff]
    %v2832 = vld [vmem:[#allocation9 + $0x1d0] sm:$0xff]
    %v2833 = vld [vmem:[#allocation9 + $0x1d8] sm:$0xff]
    %v2834 = vld [vmem:[#allocation9 + $0x1e0] sm:$0xff]
    %v2835 = vld [vmem:[#allocation9 + $0x1e8] sm:$0xff]
    %v2836 = vld [vmem:[#allocation9 + $0x1f0] sm:$0xff]
    %v2837 = vld [vmem:[#allocation9 + $0x1f8] sm:$0xff]
    %2838 = vmatpush.msra.mxu0 %v2834
    %2839 = vmatpush.msra.mxu0 %v2830
    %2840 = vmatpush.msra.mxu0 %v2826
    %2841 = vmatpush.msra.mxu0 %v2822
    %2842 = vmatpush.msra.mxu0 %v2818
    %2843 = vmatpush.msra.mxu0 %v2814
    %2844 = vmatpush.msra.mxu0 %v2810
    %2845 = vmatpush.msra.mxu0 %v2806
    %2846 = vmatpush.msra.mxu0 %v2802
    %2847 = vmatpush.msra.mxu0 %v2798
    %2848 = vmatpush.msra.mxu0 %v2794
    %2849 = vmatpush.msra.mxu0 %v2790
    %2850 = vmatpush.msra.mxu0 %v2786
    %2851 = vmatpush.msra.mxu0 %v2782
    %2852 = vmatpush.msra.mxu0 %v2778
    %2853 = vmatpush.msra.mxu0 %v2774
    %2854 = vmatmul.f32.gmra.mxu0 %v2768
    %v2855 = vpop.f32.mrf.mxu0
    %v2856 = vadd.f32 0.0, %v2855
    %2857 = vdwg.mxu0
    %2858 = vmatpush.msra.mxu0 %v2835
    %2859 = vmatpush.msra.mxu0 %v2831
    %2860 = vmatpush.msra.mxu0 %v2827
    %2861 = vmatpush.msra.mxu0 %v2823
    %2862 = vmatpush.msra.mxu0 %v2819
    %2863 = vmatpush.msra.mxu0 %v2815
    %2864 = vmatpush.msra.mxu0 %v2811
    %2865 = vmatpush.msra.mxu0 %v2807
    %2866 = vmatpush.msra.mxu0 %v2803
    %2867 = vmatpush.msra.mxu0 %v2799
    %2868 = vmatpush.msra.mxu0 %v2795
    %2869 = vmatpush.msra.mxu0 %v2791
    %2870 = vmatpush.msra.mxu0 %v2787
    %2871 = vmatpush.msra.mxu0 %v2783
    %2872 = vmatpush.msra.mxu0 %v2779
    %2873 = vmatpush.msra.mxu0 %v2775
    %2874 = vmatmul.f32.gmra.mxu0 %v2768
    %v2875 = vpop.f32.mrf.mxu0
    %v2876 = vadd.f32 0.0, %v2875
    %2877 = vdwg.mxu0
    %2878 = vmatpush.msra.mxu0 %v2836
    %2879 = vmatpush.msra.mxu0 %v2832
    %2880 = vmatpush.msra.mxu0 %v2828
    %2881 = vmatpush.msra.mxu0 %v2824
    %2882 = vmatpush.msra.mxu0 %v2820
    %2883 = vmatpush.msra.mxu0 %v2816
    %2884 = vmatpush.msra.mxu0 %v2812
    %2885 = vmatpush.msra.mxu0 %v2808
    %2886 = vmatpush.msra.mxu0 %v2804
    %2887 = vmatpush.msra.mxu0 %v2800
    %2888 = vmatpush.msra.mxu0 %v2796
    %2889 = vmatpush.msra.mxu0 %v2792
    %2890 = vmatpush.msra.mxu0 %v2788
    %2891 = vmatpush.msra.mxu0 %v2784
    %2892 = vmatpush.msra.mxu0 %v2780
    %2893 = vmatpush.msra.mxu0 %v2776
    %2894 = vmatmul.f32.gmra.mxu0 %v2768
    %v2895 = vpop.f32.mrf.mxu0
    %v2896 = vadd.f32 0.0, %v2895
    %2897 = vdwg.mxu0
    %2898 = vmatpush.msra.mxu0 %v2837
    %2899 = vmatpush.msra.mxu0 %v2833
    %2900 = vmatpush.msra.mxu0 %v2829
    %2901 = vmatpush.msra.mxu0 %v2825
    %2902 = vmatpush.msra.mxu0 %v2821
    %2903 = vmatpush.msra.mxu0 %v2817
    %2904 = vmatpush.msra.mxu0 %v2813
    %2905 = vmatpush.msra.mxu0 %v2809
    %2906 = vmatpush.msra.mxu0 %v2805
    %2907 = vmatpush.msra.mxu0 %v2801
    %2908 = vmatpush.msra.mxu0 %v2797
    %2909 = vmatpush.msra.mxu0 %v2793
    %2910 = vmatpush.msra.mxu0 %v2789
    %2911 = vmatpush.msra.mxu0 %v2785
    %2912 = vmatpush.msra.mxu0 %v2781
    %2913 = vmatpush.msra.mxu0 %v2777
    %2914 = vmatmul.f32.gmra.mxu0 %v2768
    %v2915 = vpop.f32.mrf.mxu0
    %v2916 = vadd.f32 0.0, %v2915
    %2917 = vdwg.mxu0
    %v2918 = vadd.f32 %v2770, %v2856
    %v2919 = vadd.f32 %v2771, %v2876
    %v2920 = vadd.f32 %v2772, %v2896
    %v2921 = vadd.f32 %v2773, %v2916
    %v2922 = vmul.f32 %v2918, 0.5
    %v2923 = vtanh.pop %v2922
    %v2924 = vmul.f32 %v2923, 0.5
    %v2925 = vadd.f32 %v2924, 0.5
    %v2926 = vmul.f32 %v2919, 0.5
    %v2927 = vtanh.pop %v2926
    %v2928 = vmul.f32 %v2927, 0.5
    %v2929 = vadd.f32 %v2928, 0.5
    %v2930 = vtanh.pop %v2920
    %v2931 = vmul.f32 %v2921, 0.5
    %v2932 = vtanh.pop %v2931
    %v2933 = vmul.f32 %v2932, 0.5
    %v2934 = vadd.f32 %v2933, 0.5
    %v2935 = vmul.f32 %v2929, %v2766
    %v2936 = vmul.f32 %v2925, %v2930
    %v2937 = vadd.f32 %v2935, %v2936
    %v2938 = vtanh.pop %v2937
    %v2939 = vmul.f32 %v2934, %v2938
    %2940 = vst [vmem:[%s1281] sm:$0xff] %v2939
    %v2941 = vld [vmem:[%s1285] sm:$0xff]
    %v2942 = vld [vmem:[%s1285 + $0x8] sm:$0xff]
    %v2943 = vld [vmem:[%s1285 + $0x10] sm:$0xff]
    %v2944 = vld [vmem:[%s1285 + $0x18] sm:$0xff]
    %v2945 = vld [vmem:[#allocation9] sm:$0xff]
    %v2946 = vld [vmem:[#allocation9 + $0x8] sm:$0xff]
    %v2947 = vld [vmem:[#allocation9 + $0x10] sm:$0xff]
    %v2948 = vld [vmem:[#allocation9 + $0x18] sm:$0xff]
    %v2949 = vld [vmem:[#allocation9 + $0x20] sm:$0xff]
    %v2950 = vld [vmem:[#allocation9 + $0x28] sm:$0xff]
    %v2951 = vld [vmem:[#allocation9 + $0x30] sm:$0xff]
    %v2952 = vld [vmem:[#allocation9 + $0x38] sm:$0xff]
    %v2953 = vld [vmem:[#allocation9 + $0x40] sm:$0xff]
    %v2954 = vld [vmem:[#allocation9 + $0x48] sm:$0xff]
    %v2955 = vld [vmem:[#allocation9 + $0x50] sm:$0xff]
    %v2956 = vld [vmem:[#allocation9 + $0x58] sm:$0xff]
    %v2957 = vld [vmem:[#allocation9 + $0x60] sm:$0xff]
    %v2958 = vld [vmem:[#allocation9 + $0x68] sm:$0xff]
    %v2959 = vld [vmem:[#allocation9 + $0x70] sm:$0xff]
    %v2960 = vld [vmem:[#allocation9 + $0x78] sm:$0xff]
    %v2961 = vld [vmem:[#allocation9 + $0x80] sm:$0xff]
    %v2962 = vld [vmem:[#allocation9 + $0x88] sm:$0xff]
    %v2963 = vld [vmem:[#allocation9 + $0x90] sm:$0xff]
    %v2964 = vld [vmem:[#allocation9 + $0x98] sm:$0xff]
    %v2965 = vld [vmem:[#allocation9 + $0xa0] sm:$0xff]
    %v2966 = vld [vmem:[#allocation9 + $0xa8] sm:$0xff]
    %v2967 = vld [vmem:[#allocation9 + $0xb0] sm:$0xff]
    %v2968 = vld [vmem:[#allocation9 + $0xb8] sm:$0xff]
    %v2969 = vld [vmem:[#allocation9 + $0xc0] sm:$0xff]
    %v2970 = vld [vmem:[#allocation9 + $0xc8] sm:$0xff]
    %v2971 = vld [vmem:[#allocation9 + $0xd0] sm:$0xff]
    %v2972 = vld [vmem:[#allocation9 + $0xd8] sm:$0xff]
    %v2973 = vld [vmem:[#allocation9 + $0xe0] sm:$0xff]
    %v2974 = vld [vmem:[#allocation9 + $0xe8] sm:$0xff]
    %v2975 = vld [vmem:[#allocation9 + $0xf0] sm:$0xff]
    %v2976 = vld [vmem:[#allocation9 + $0xf8] sm:$0xff]
    %v2977 = vld [vmem:[#allocation9 + $0x100] sm:$0xff]
    %v2978 = vld [vmem:[#allocation9 + $0x108] sm:$0xff]
    %v2979 = vld [vmem:[#allocation9 + $0x110] sm:$0xff]
    %v2980 = vld [vmem:[#allocation9 + $0x118] sm:$0xff]
    %v2981 = vld [vmem:[#allocation9 + $0x120] sm:$0xff]
    %v2982 = vld [vmem:[#allocation9 + $0x128] sm:$0xff]
    %v2983 = vld [vmem:[#allocation9 + $0x130] sm:$0xff]
    %v2984 = vld [vmem:[#allocation9 + $0x138] sm:$0xff]
    %v2985 = vld [vmem:[#allocation9 + $0x140] sm:$0xff]
    %v2986 = vld [vmem:[#allocation9 + $0x148] sm:$0xff]
    %v2987 = vld [vmem:[#allocation9 + $0x150] sm:$0xff]
    %v2988 = vld [vmem:[#allocation9 + $0x158] sm:$0xff]
    %v2989 = vld [vmem:[#allocation9 + $0x160] sm:$0xff]
    %v2990 = vld [vmem:[#allocation9 + $0x168] sm:$0xff]
    %v2991 = vld [vmem:[#allocation9 + $0x170] sm:$0xff]
    %v2992 = vld [vmem:[#allocation9 + $0x178] sm:$0xff]
    %v2993 = vld [vmem:[#allocation9 + $0x180] sm:$0xff]
    %v2994 = vld [vmem:[#allocation9 + $0x188] sm:$0xff]
    %v2995 = vld [vmem:[#allocation9 + $0x190] sm:$0xff]
    %v2996 = vld [vmem:[#allocation9 + $0x198] sm:$0xff]
    %v2997 = vld [vmem:[#allocation9 + $0x1a0] sm:$0xff]
    %v2998 = vld [vmem:[#allocation9 + $0x1a8] sm:$0xff]
    %v2999 = vld [vmem:[#allocation9 + $0x1b0] sm:$0xff]
    %v3000 = vld [vmem:[#allocation9 + $0x1b8] sm:$0xff]
    %v3001 = vld [vmem:[#allocation9 + $0x1c0] sm:$0xff]
    %v3002 = vld [vmem:[#allocation9 + $0x1c8] sm:$0xff]
    %v3003 = vld [vmem:[#allocation9 + $0x1d0] sm:$0xff]
    %v3004 = vld [vmem:[#allocation9 + $0x1d8] sm:$0xff]
    %v3005 = vld [vmem:[#allocation9 + $0x1e0] sm:$0xff]
    %v3006 = vld [vmem:[#allocation9 + $0x1e8] sm:$0xff]
    %v3007 = vld [vmem:[#allocation9 + $0x1f0] sm:$0xff]
    %v3008 = vld [vmem:[#allocation9 + $0x1f8] sm:$0xff]
    %3009 = vmatpush.msra.mxu0 %v3005
    %3010 = vmatpush.msra.mxu0 %v3001
    %3011 = vmatpush.msra.mxu0 %v2997
    %3012 = vmatpush.msra.mxu0 %v2993
    %3013 = vmatpush.msra.mxu0 %v2989
    %3014 = vmatpush.msra.mxu0 %v2985
    %3015 = vmatpush.msra.mxu0 %v2981
    %3016 = vmatpush.msra.mxu0 %v2977
    %3017 = vmatpush.msra.mxu0 %v2973
    %3018 = vmatpush.msra.mxu0 %v2969
    %3019 = vmatpush.msra.mxu0 %v2965
    %3020 = vmatpush.msra.mxu0 %v2961
    %3021 = vmatpush.msra.mxu0 %v2957
    %3022 = vmatpush.msra.mxu0 %v2953
    %3023 = vmatpush.msra.mxu0 %v2949
    %3024 = vmatpush.msra.mxu0 %v2945
    %3025 = vmatmul.f32.gmra.mxu0 %v2939
    %v3026 = vpop.f32.mrf.mxu0
    %v3027 = vadd.f32 0.0, %v3026
    %3028 = vdwg.mxu0
    %3029 = vmatpush.msra.mxu0 %v3006
    %3030 = vmatpush.msra.mxu0 %v3002
    %3031 = vmatpush.msra.mxu0 %v2998
    %3032 = vmatpush.msra.mxu0 %v2994
    %3033 = vmatpush.msra.mxu0 %v2990
    %3034 = vmatpush.msra.mxu0 %v2986
    %3035 = vmatpush.msra.mxu0 %v2982
    %3036 = vmatpush.msra.mxu0 %v2978
    %3037 = vmatpush.msra.mxu0 %v2974
    %3038 = vmatpush.msra.mxu0 %v2970
    %3039 = vmatpush.msra.mxu0 %v2966
    %3040 = vmatpush.msra.mxu0 %v2962
    %3041 = vmatpush.msra.mxu0 %v2958
    %3042 = vmatpush.msra.mxu0 %v2954
    %3043 = vmatpush.msra.mxu0 %v2950
    %3044 = vmatpush.msra.mxu0 %v2946
    %3045 = vmatmul.f32.gmra.mxu0 %v2939
    %v3046 = vpop.f32.mrf.mxu0
    %v3047 = vadd.f32 0.0, %v3046
    %3048 = vdwg.mxu0
    %3049 = vmatpush.msra.mxu0 %v3007
    %3050 = vmatpush.msra.mxu0 %v3003
    %3051 = vmatpush.msra.mxu0 %v2999
    %3052 = vmatpush.msra.mxu0 %v2995
    %3053 = vmatpush.msra.mxu0 %v2991
    %3054 = vmatpush.msra.mxu0 %v2987
    %3055 = vmatpush.msra.mxu0 %v2983
    %3056 = vmatpush.msra.mxu0 %v2979
    %3057 = vmatpush.msra.mxu0 %v2975
    %3058 = vmatpush.msra.mxu0 %v2971
    %3059 = vmatpush.msra.mxu0 %v2967
    %3060 = vmatpush.msra.mxu0 %v2963
    %3061 = vmatpush.msra.mxu0 %v2959
    %3062 = vmatpush.msra.mxu0 %v2955
    %3063 = vmatpush.msra.mxu0 %v2951
    %3064 = vmatpush.msra.mxu0 %v2947
    %3065 = vmatmul.f32.gmra.mxu0 %v2939
    %v3066 = vpop.f32.mrf.mxu0
    %v3067 = vadd.f32 0.0, %v3066
    %3068 = vdwg.mxu0
    %3069 = vmatpush.msra.mxu0 %v3008
    %3070 = vmatpush.msra.mxu0 %v3004
    %3071 = vmatpush.msra.mxu0 %v3000
    %3072 = vmatpush.msra.mxu0 %v2996
    %3073 = vmatpush.msra.mxu0 %v2992
    %3074 = vmatpush.msra.mxu0 %v2988
    %3075 = vmatpush.msra.mxu0 %v2984
    %3076 = vmatpush.msra.mxu0 %v2980
    %3077 = vmatpush.msra.mxu0 %v2976
    %3078 = vmatpush.msra.mxu0 %v2972
    %3079 = vmatpush.msra.mxu0 %v2968
    %3080 = vmatpush.msra.mxu0 %v2964
    %3081 = vmatpush.msra.mxu0 %v2960
    %3082 = vmatpush.msra.mxu0 %v2956
    %3083 = vmatpush.msra.mxu0 %v2952
    %3084 = vmatpush.msra.mxu0 %v2948
    %3085 = vmatmul.f32.gmra.mxu0 %v2939
    %v3086 = vpop.f32.mrf.mxu0
    %v3087 = vadd.f32 0.0, %v3086
    %3088 = vdwg.mxu0
    %v3089 = vadd.f32 %v2941, %v3027
    %v3090 = vadd.f32 %v2942, %v3047
    %v3091 = vadd.f32 %v2943, %v3067
    %v3092 = vadd.f32 %v2944, %v3087
    %v3093 = vmul.f32 %v3089, 0.5
    %v3094 = vtanh.pop %v3093
    %v3095 = vmul.f32 %v3094, 0.5
    %v3096 = vadd.f32 %v3095, 0.5
    %v3097 = vmul.f32 %v3090, 0.5
    %v3098 = vtanh.pop %v3097
    %v3099 = vmul.f32 %v3098, 0.5
    %v3100 = vadd.f32 %v3099, 0.5
    %v3101 = vtanh.pop %v3091
    %v3102 = vmul.f32 %v3092, 0.5
    %v3103 = vtanh.pop %v3102
    %v3104 = vmul.f32 %v3103, 0.5
    %v3105 = vadd.f32 %v3104, 0.5
    %v3106 = vmul.f32 %v3100, %v2937
    %v3107 = vmul.f32 %v3096, %v3101
    %v3108 = vadd.f32 %v3106, %v3107
    %v3109 = vtanh.pop %v3108
    %v3110 = vmul.f32 %v3105, %v3109
    %3111 = vst [vmem:[%s1456] sm:$0xff] %v3110
    %v3112 = vld [vmem:[%s1460] sm:$0xff]
    %v3113 = vld [vmem:[%s1460 + $0x8] sm:$0xff]
    %v3114 = vld [vmem:[%s1460 + $0x10] sm:$0xff]
    %v3115 = vld [vmem:[%s1460 + $0x18] sm:$0xff]
    %v3116 = vld [vmem:[#allocation9] sm:$0xff]
    %v3117 = vld [vmem:[#allocation9 + $0x8] sm:$0xff]
    %v3118 = vld [vmem:[#allocation9 + $0x10] sm:$0xff]
    %v3119 = vld [vmem:[#allocation9 + $0x18] sm:$0xff]
    %v3120 = vld [vmem:[#allocation9 + $0x20] sm:$0xff]
    %v3121 = vld [vmem:[#allocation9 + $0x28] sm:$0xff]
    %v3122 = vld [vmem:[#allocation9 + $0x30] sm:$0xff]
    %v3123 = vld [vmem:[#allocation9 + $0x38] sm:$0xff]
    %v3124 = vld [vmem:[#allocation9 + $0x40] sm:$0xff]
    %v3125 = vld [vmem:[#allocation9 + $0x48] sm:$0xff]
    %v3126 = vld [vmem:[#allocation9 + $0x50] sm:$0xff]
    %v3127 = vld [vmem:[#allocation9 + $0x58] sm:$0xff]
    %v3128 = vld [vmem:[#allocation9 + $0x60] sm:$0xff]
    %v3129 = vld [vmem:[#allocation9 + $0x68] sm:$0xff]
    %v3130 = vld [vmem:[#allocation9 + $0x70] sm:$0xff]
    %v3131 = vld [vmem:[#allocation9 + $0x78] sm:$0xff]
    %v3132 = vld [vmem:[#allocation9 + $0x80] sm:$0xff]
    %v3133 = vld [vmem:[#allocation9 + $0x88] sm:$0xff]
    %v3134 = vld [vmem:[#allocation9 + $0x90] sm:$0xff]
    %v3135 = vld [vmem:[#allocation9 + $0x98] sm:$0xff]
    %v3136 = vld [vmem:[#allocation9 + $0xa0] sm:$0xff]
    %v3137 = vld [vmem:[#allocation9 + $0xa8] sm:$0xff]
    %v3138 = vld [vmem:[#allocation9 + $0xb0] sm:$0xff]
    %v3139 = vld [vmem:[#allocation9 + $0xb8] sm:$0xff]
    %v3140 = vld [vmem:[#allocation9 + $0xc0] sm:$0xff]
    %v3141 = vld [vmem:[#allocation9 + $0xc8] sm:$0xff]
    %v3142 = vld [vmem:[#allocation9 + $0xd0] sm:$0xff]
    %v3143 = vld [vmem:[#allocation9 + $0xd8] sm:$0xff]
    %v3144 = vld [vmem:[#allocation9 + $0xe0] sm:$0xff]
    %v3145 = vld [vmem:[#allocation9 + $0xe8] sm:$0xff]
    %v3146 = vld [vmem:[#allocation9 + $0xf0] sm:$0xff]
    %v3147 = vld [vmem:[#allocation9 + $0xf8] sm:$0xff]
    %v3148 = vld [vmem:[#allocation9 + $0x100] sm:$0xff]
    %v3149 = vld [vmem:[#allocation9 + $0x108] sm:$0xff]
    %v3150 = vld [vmem:[#allocation9 + $0x110] sm:$0xff]
    %v3151 = vld [vmem:[#allocation9 + $0x118] sm:$0xff]
    %v3152 = vld [vmem:[#allocation9 + $0x120] sm:$0xff]
    %v3153 = vld [vmem:[#allocation9 + $0x128] sm:$0xff]
    %v3154 = vld [vmem:[#allocation9 + $0x130] sm:$0xff]
    %v3155 = vld [vmem:[#allocation9 + $0x138] sm:$0xff]
    %v3156 = vld [vmem:[#allocation9 + $0x140] sm:$0xff]
    %v3157 = vld [vmem:[#allocation9 + $0x148] sm:$0xff]
    %v3158 = vld [vmem:[#allocation9 + $0x150] sm:$0xff]
    %v3159 = vld [vmem:[#allocation9 + $0x158] sm:$0xff]
    %v3160 = vld [vmem:[#allocation9 + $0x160] sm:$0xff]
    %v3161 = vld [vmem:[#allocation9 + $0x168] sm:$0xff]
    %v3162 = vld [vmem:[#allocation9 + $0x170] sm:$0xff]
    %v3163 = vld [vmem:[#allocation9 + $0x178] sm:$0xff]
    %v3164 = vld [vmem:[#allocation9 + $0x180] sm:$0xff]
    %v3165 = vld [vmem:[#allocation9 + $0x188] sm:$0xff]
    %v3166 = vld [vmem:[#allocation9 + $0x190] sm:$0xff]
    %v3167 = vld [vmem:[#allocation9 + $0x198] sm:$0xff]
    %v3168 = vld [vmem:[#allocation9 + $0x1a0] sm:$0xff]
    %v3169 = vld [vmem:[#allocation9 + $0x1a8] sm:$0xff]
    %v3170 = vld [vmem:[#allocation9 + $0x1b0] sm:$0xff]
    %v3171 = vld [vmem:[#allocation9 + $0x1b8] sm:$0xff]
    %v3172 = vld [vmem:[#allocation9 + $0x1c0] sm:$0xff]
    %v3173 = vld [vmem:[#allocation9 + $0x1c8] sm:$0xff]
    %v3174 = vld [vmem:[#allocation9 + $0x1d0] sm:$0xff]
    %v3175 = vld [vmem:[#allocation9 + $0x1d8] sm:$0xff]
    %v3176 = vld [vmem:[#allocation9 + $0x1e0] sm:$0xff]
    %v3177 = vld [vmem:[#allocation9 + $0x1e8] sm:$0xff]
    %v3178 = vld [vmem:[#allocation9 + $0x1f0] sm:$0xff]
    %v3179 = vld [vmem:[#allocation9 + $0x1f8] sm:$0xff]
    %3180 = vmatpush.msra.mxu0 %v3176
    %3181 = vmatpush.msra.mxu0 %v3172
    %3182 = vmatpush.msra.mxu0 %v3168
    %3183 = vmatpush.msra.mxu0 %v3164
    %3184 = vmatpush.msra.mxu0 %v3160
    %3185 = vmatpush.msra.mxu0 %v3156
    %3186 = vmatpush.msra.mxu0 %v3152
    %3187 = vmatpush.msra.mxu0 %v3148
    %3188 = vmatpush.msra.mxu0 %v3144
    %3189 = vmatpush.msra.mxu0 %v3140
    %3190 = vmatpush.msra.mxu0 %v3136
    %3191 = vmatpush.msra.mxu0 %v3132
    %3192 = vmatpush.msra.mxu0 %v3128
    %3193 = vmatpush.msra.mxu0 %v3124
    %3194 = vmatpush.msra.mxu0 %v3120
    %3195 = vmatpush.msra.mxu0 %v3116
    %3196 = vmatmul.f32.gmra.mxu0 %v3110
    %v3197 = vpop.f32.mrf.mxu0
    %v3198 = vadd.f32 0.0, %v3197
    %3199 = vdwg.mxu0
    %3200 = vmatpush.msra.mxu0 %v3177
    %3201 = vmatpush.msra.mxu0 %v3173
    %3202 = vmatpush.msra.mxu0 %v3169
    %3203 = vmatpush.msra.mxu0 %v3165
    %3204 = vmatpush.msra.mxu0 %v3161
    %3205 = vmatpush.msra.mxu0 %v3157
    %3206 = vmatpush.msra.mxu0 %v3153
    %3207 = vmatpush.msra.mxu0 %v3149
    %3208 = vmatpush.msra.mxu0 %v3145
    %3209 = vmatpush.msra.mxu0 %v3141
    %3210 = vmatpush.msra.mxu0 %v3137
    %3211 = vmatpush.msra.mxu0 %v3133
    %3212 = vmatpush.msra.mxu0 %v3129
    %3213 = vmatpush.msra.mxu0 %v3125
    %3214 = vmatpush.msra.mxu0 %v3121
    %3215 = vmatpush.msra.mxu0 %v3117
    %3216 = vmatmul.f32.gmra.mxu0 %v3110
    %v3217 = vpop.f32.mrf.mxu0
    %v3218 = vadd.f32 0.0, %v3217
    %3219 = vdwg.mxu0
    %3220 = vmatpush.msra.mxu0 %v3178
    %3221 = vmatpush.msra.mxu0 %v3174
    %3222 = vmatpush.msra.mxu0 %v3170
    %3223 = vmatpush.msra.mxu0 %v3166
    %3224 = vmatpush.msra.mxu0 %v3162
    %3225 = vmatpush.msra.mxu0 %v3158
    %3226 = vmatpush.msra.mxu0 %v3154
    %3227 = vmatpush.msra.mxu0 %v3150
    %3228 = vmatpush.msra.mxu0 %v3146
    %3229 = vmatpush.msra.mxu0 %v3142
    %3230 = vmatpush.msra.mxu0 %v3138
    %3231 = vmatpush.msra.mxu0 %v3134
    %3232 = vmatpush.msra.mxu0 %v3130
    %3233 = vmatpush.msra.mxu0 %v3126
    %3234 = vmatpush.msra.mxu0 %v3122
    %3235 = vmatpush.msra.mxu0 %v3118
    %3236 = vmatmul.f32.gmra.mxu0 %v3110
    %v3237 = vpop.f32.mrf.mxu0
    %v3238 = vadd.f32 0.0, %v3237
    %3239 = vdwg.mxu0
    %3240 = vmatpush.msra.mxu0 %v3179
    %3241 = vmatpush.msra.mxu0 %v3175
    %3242 = vmatpush.msra.mxu0 %v3171
    %3243 = vmatpush.msra.mxu0 %v3167
    %3244 = vmatpush.msra.mxu0 %v3163
    %3245 = vmatpush.msra.mxu0 %v3159
    %3246 = vmatpush.msra.mxu0 %v3155
    %3247 = vmatpush.msra.mxu0 %v3151
    %3248 = vmatpush.msra.mxu0 %v3147
    %3249 = vmatpush.msra.mxu0 %v3143
    %3250 = vmatpush.msra.mxu0 %v3139
    %3251 = vmatpush.msra.mxu0 %v3135
    %3252 = vmatpush.msra.mxu0 %v3131
    %3253 = vmatpush.msra.mxu0 %v3127
    %3254 = vmatpush.msra.mxu0 %v3123
    %3255 = vmatpush.msra.mxu0 %v3119
    %3256 = vmatmul.f32.gmra.mxu0 %v3110
    %v3257 = vpop.f32.mrf.mxu0
    %v3258 = vadd.f32 0.0, %v3257
    %3259 = vdwg.mxu0
    %v3260 = vadd.f32 %v3112, %v3198
    %v3261 = vadd.f32 %v3113, %v3218
    %v3262 = vadd.f32 %v3114, %v3238
    %v3263 = vadd.f32 %v3115, %v3258
    %v3264 = vmul.f32 %v3260, 0.5
    %v3265 = vtanh.pop %v3264
    %v3266 = vmul.f32 %v3265, 0.5
    %v3267 = vadd.f32 %v3266, 0.5
    %v3268 = vmul.f32 %v3261, 0.5
    %v3269 = vtanh.pop %v3268
    %v3270 = vmul.f32 %v3269, 0.5
    %v3271 = vadd.f32 %v3270, 0.5
    %v3272 = vtanh.pop %v3262
    %v3273 = vmul.f32 %v3263, 0.5
    %v3274 = vtanh.pop %v3273
    %v3275 = vmul.f32 %v3274, 0.5
    %v3276 = vadd.f32 %v3275, 0.5
    %v3277 = vmul.f32 %v3271, %v3108
    %v3278 = vmul.f32 %v3267, %v3272
    %v3279 = vadd.f32 %v3277, %v3278
    %v3280 = vtanh.pop %v3279
    %v3281 = vmul.f32 %v3276, %v3280
    %3282 = vst [vmem:[%s1631] sm:$0xff] %v3281
    %v3283 = vld [vmem:[%s1635] sm:$0xff]
    %v3284 = vld [vmem:[%s1635 + $0x8] sm:$0xff]
    %v3285 = vld [vmem:[%s1635 + $0x10] sm:$0xff]
    %v3286 = vld [vmem:[%s1635 + $0x18] sm:$0xff]
    %v3287 = vld [vmem:[#allocation9] sm:$0xff]
    %v3288 = vld [vmem:[#allocation9 + $0x8] sm:$0xff]
    %v3289 = vld [vmem:[#allocation9 + $0x10] sm:$0xff]
    %v3290 = vld [vmem:[#allocation9 + $0x18] sm:$0xff]
    %v3291 = vld [vmem:[#allocation9 + $0x20] sm:$0xff]
    %v3292 = vld [vmem:[#allocation9 + $0x28] sm:$0xff]
    %v3293 = vld [vmem:[#allocation9 + $0x30] sm:$0xff]
    %v3294 = vld [vmem:[#allocation9 + $0x38] sm:$0xff]
    %v3295 = vld [vmem:[#allocation9 + $0x40] sm:$0xff]
    %v3296 = vld [vmem:[#allocation9 + $0x48] sm:$0xff]
    %v3297 = vld [vmem:[#allocation9 + $0x50] sm:$0xff]
    %v3298 = vld [vmem:[#allocation9 + $0x58] sm:$0xff]
    %v3299 = vld [vmem:[#allocation9 + $0x60] sm:$0xff]
    %v3300 = vld [vmem:[#allocation9 + $0x68] sm:$0xff]
    %v3301 = vld [vmem:[#allocation9 + $0x70] sm:$0xff]
    %v3302 = vld [vmem:[#allocation9 + $0x78] sm:$0xff]
    %v3303 = vld [vmem:[#allocation9 + $0x80] sm:$0xff]
    %v3304 = vld [vmem:[#allocation9 + $0x88] sm:$0xff]
    %v3305 = vld [vmem:[#allocation9 + $0x90] sm:$0xff]
    %v3306 = vld [vmem:[#allocation9 + $0x98] sm:$0xff]
    %v3307 = vld [vmem:[#allocation9 + $0xa0] sm:$0xff]
    %v3308 = vld [vmem:[#allocation9 + $0xa8] sm:$0xff]
    %v3309 = vld [vmem:[#allocation9 + $0xb0] sm:$0xff]
    %v3310 = vld [vmem:[#allocation9 + $0xb8] sm:$0xff]
    %v3311 = vld [vmem:[#allocation9 + $0xc0] sm:$0xff]
    %v3312 = vld [vmem:[#allocation9 + $0xc8] sm:$0xff]
    %v3313 = vld [vmem:[#allocation9 + $0xd0] sm:$0xff]
    %v3314 = vld [vmem:[#allocation9 + $0xd8] sm:$0xff]
    %v3315 = vld [vmem:[#allocation9 + $0xe0] sm:$0xff]
    %v3316 = vld [vmem:[#allocation9 + $0xe8] sm:$0xff]
    %v3317 = vld [vmem:[#allocation9 + $0xf0] sm:$0xff]
    %v3318 = vld [vmem:[#allocation9 + $0xf8] sm:$0xff]
    %v3319 = vld [vmem:[#allocation9 + $0x100] sm:$0xff]
    %v3320 = vld [vmem:[#allocation9 + $0x108] sm:$0xff]
    %v3321 = vld [vmem:[#allocation9 + $0x110] sm:$0xff]
    %v3322 = vld [vmem:[#allocation9 + $0x118] sm:$0xff]
    %v3323 = vld [vmem:[#allocation9 + $0x120] sm:$0xff]
    %v3324 = vld [vmem:[#allocation9 + $0x128] sm:$0xff]
    %v3325 = vld [vmem:[#allocation9 + $0x130] sm:$0xff]
    %v3326 = vld [vmem:[#allocation9 + $0x138] sm:$0xff]
    %v3327 = vld [vmem:[#allocation9 + $0x140] sm:$0xff]
    %v3328 = vld [vmem:[#allocation9 + $0x148] sm:$0xff]
    %v3329 = vld [vmem:[#allocation9 + $0x150] sm:$0xff]
    %v3330 = vld [vmem:[#allocation9 + $0x158] sm:$0xff]
    %v3331 = vld [vmem:[#allocation9 + $0x160] sm:$0xff]
    %v3332 = vld [vmem:[#allocation9 + $0x168] sm:$0xff]
    %v3333 = vld [vmem:[#allocation9 + $0x170] sm:$0xff]
    %v3334 = vld [vmem:[#allocation9 + $0x178] sm:$0xff]
    %v3335 = vld [vmem:[#allocation9 + $0x180] sm:$0xff]
    %v3336 = vld [vmem:[#allocation9 + $0x188] sm:$0xff]
    %v3337 = vld [vmem:[#allocation9 + $0x190] sm:$0xff]
    %v3338 = vld [vmem:[#allocation9 + $0x198] sm:$0xff]
    %v3339 = vld [vmem:[#allocation9 + $0x1a0] sm:$0xff]
    %v3340 = vld [vmem:[#allocation9 + $0x1a8] sm:$0xff]
    %v3341 = vld [vmem:[#allocation9 + $0x1b0] sm:$0xff]
    %v3342 = vld [vmem:[#allocation9 + $0x1b8] sm:$0xff]
    %v3343 = vld [vmem:[#allocation9 + $0x1c0] sm:$0xff]
    %v3344 = vld [vmem:[#allocation9 + $0x1c8] sm:$0xff]
    %v3345 = vld [vmem:[#allocation9 + $0x1d0] sm:$0xff]
    %v3346 = vld [vmem:[#allocation9 + $0x1d8] sm:$0xff]
    %v3347 = vld [vmem:[#allocation9 + $0x1e0] sm:$0xff]
    %v3348 = vld [vmem:[#allocation9 + $0x1e8] sm:$0xff]
    %v3349 = vld [vmem:[#allocation9 + $0x1f0] sm:$0xff]
    %v3350 = vld [vmem:[#allocation9 + $0x1f8] sm:$0xff]
    %3351 = vmatpush.msra.mxu0 %v3347
    %3352 = vmatpush.msra.mxu0 %v3343
    %3353 = vmatpush.msra.mxu0 %v3339
    %3354 = vmatpush.msra.mxu0 %v3335
    %3355 = vmatpush.msra.mxu0 %v3331
    %3356 = vmatpush.msra.mxu0 %v3327
    %3357 = vmatpush.msra.mxu0 %v3323
    %3358 = vmatpush.msra.mxu0 %v3319
    %3359 = vmatpush.msra.mxu0 %v3315
    %3360 = vmatpush.msra.mxu0 %v3311
    %3361 = vmatpush.msra.mxu0 %v3307
    %3362 = vmatpush.msra.mxu0 %v3303
    %3363 = vmatpush.msra.mxu0 %v3299
    %3364 = vmatpush.msra.mxu0 %v3295
    %3365 = vmatpush.msra.mxu0 %v3291
    %3366 = vmatpush.msra.mxu0 %v3287
    %3367 = vmatmul.f32.gmra.mxu0 %v3281
    %v3368 = vpop.f32.mrf.mxu0
    %v3369 = vadd.f32 0.0, %v3368
    %3370 = vdwg.mxu0
    %3371 = vmatpush.msra.mxu0 %v3348
    %3372 = vmatpush.msra.mxu0 %v3344
    %3373 = vmatpush.msra.mxu0 %v3340
    %3374 = vmatpush.msra.mxu0 %v3336
    %3375 = vmatpush.msra.mxu0 %v3332
    %3376 = vmatpush.msra.mxu0 %v3328
    %3377 = vmatpush.msra.mxu0 %v3324
    %3378 = vmatpush.msra.mxu0 %v3320
    %3379 = vmatpush.msra.mxu0 %v3316
    %3380 = vmatpush.msra.mxu0 %v3312
    %3381 = vmatpush.msra.mxu0 %v3308
    %3382 = vmatpush.msra.mxu0 %v3304
    %3383 = vmatpush.msra.mxu0 %v3300
    %3384 = vmatpush.msra.mxu0 %v3296
    %3385 = vmatpush.msra.mxu0 %v3292
    %3386 = vmatpush.msra.mxu0 %v3288
    %3387 = vmatmul.f32.gmra.mxu0 %v3281
    %v3388 = vpop.f32.mrf.mxu0
    %v3389 = vadd.f32 0.0, %v3388
    %3390 = vdwg.mxu0
    %3391 = vmatpush.msra.mxu0 %v3349
    %3392 = vmatpush.msra.mxu0 %v3345
    %3393 = vmatpush.msra.mxu0 %v3341
    %3394 = vmatpush.msra.mxu0 %v3337
    %3395 = vmatpush.msra.mxu0 %v3333
    %3396 = vmatpush.msra.mxu0 %v3329
    %3397 = vmatpush.msra.mxu0 %v3325
    %3398 = vmatpush.msra.mxu0 %v3321
    %3399 = vmatpush.msra.mxu0 %v3317
    %3400 = vmatpush.msra.mxu0 %v3313
    %3401 = vmatpush.msra.mxu0 %v3309
    %3402 = vmatpush.msra.mxu0 %v3305
    %3403 = vmatpush.msra.mxu0 %v3301
    %3404 = vmatpush.msra.mxu0 %v3297
    %3405 = vmatpush.msra.mxu0 %v3293
    %3406 = vmatpush.msra.mxu0 %v3289
    %3407 = vmatmul.f32.gmra.mxu0 %v3281
    %v3408 = vpop.f32.mrf.mxu0
    %v3409 = vadd.f32 0.0, %v3408
    %3410 = vdwg.mxu0
    %3411 = vmatpush.msra.mxu0 %v3350
    %3412 = vmatpush.msra.mxu0 %v3346
    %3413 = vmatpush.msra.mxu0 %v3342
    %3414 = vmatpush.msra.mxu0 %v3338
    %3415 = vmatpush.msra.mxu0 %v3334
    %3416 = vmatpush.msra.mxu0 %v3330
    %3417 = vmatpush.msra.mxu0 %v3326
    %3418 = vmatpush.msra.mxu0 %v3322
    %3419 = vmatpush.msra.mxu0 %v3318
    %3420 = vmatpush.msra.mxu0 %v3314
    %3421 = vmatpush.msra.mxu0 %v3310
    %3422 = vmatpush.msra.mxu0 %v3306
    %3423 = vmatpush.msra.mxu0 %v3302
    %3424 = vmatpush.msra.mxu0 %v3298
    %3425 = vmatpush.msra.mxu0 %v3294
    %3426 = vmatpush.msra.mxu0 %v3290
    %3427 = vmatmul.f32.gmra.mxu0 %v3281
    %v3428 = vpop.f32.mrf.mxu0
    %v3429 = vadd.f32 0.0, %v3428
    %3430 = vdwg.mxu0
    %v3431 = vadd.f32 %v3283, %v3369
    %v3432 = vadd.f32 %v3284, %v3389
    %v3433 = vadd.f32 %v3285, %v3409
    %v3434 = vadd.f32 %v3286, %v3429
    %v3435 = vmul.f32 %v3431, 0.5
    %v3436 = vtanh.pop %v3435
    %v3437 = vmul.f32 %v3436, 0.5
    %v3438 = vadd.f32 %v3437, 0.5
    %v3439 = vmul.f32 %v3432, 0.5
    %v3440 = vtanh.pop %v3439
    %v3441 = vmul.f32 %v3440, 0.5
    %v3442 = vadd.f32 %v3441, 0.5
    %v3443 = vtanh.pop %v3433
    %v3444 = vmul.f32 %v3434, 0.5
    %v3445 = vtanh.pop %v3444
    %v3446 = vmul.f32 %v3445, 0.5
    %v3447 = vadd.f32 %v3446, 0.5
    %v3448 = vmul.f32 %v3442, %v3279
    %v3449 = vmul.f32 %v3438, %v3443
    %v3450 = vadd.f32 %v3448, %v3449
    %v3451 = vtanh.pop %v3450
    %v3452 = vmul.f32 %v3447, %v3451
    %3453 = vst [vmem:[%s1806] sm:$0xff] %v3452
    %v3454 = vld [vmem:[#allocation3] sm:$0xff]
    %v3455 = vld [vmem:[#allocation3 + $0x8] sm:$0xff]
    %v3456 = vld [vmem:[#allocation3 + $0x10] sm:$0xff]
    %v3457 = vld [vmem:[#allocation3 + $0x18] sm:$0xff]
    %v3458 = vld [vmem:[#allocation3 + $0x20] sm:$0xff]
    %v3459 = vld [vmem:[#allocation3 + $0x28] sm:$0xff]
    %v3460 = vld [vmem:[#allocation3 + $0x30] sm:$0xff]
    %v3461 = vld [vmem:[#allocation3 + $0x38] sm:$0xff]
    %v3462 = vld [vmem:[#allocation10] sm:$0xff]
    %v3463 = vld [vmem:[#allocation10 + $0x8] sm:$0xff]
    %v3464 = vld [vmem:[#allocation10 + $0x10] sm:$0xff]
    %v3465 = vld [vmem:[#allocation10 + $0x18] sm:$0xff]
    %v3466 = vld [vmem:[#allocation10 + $0x20] sm:$0xff]
    %v3467 = vld [vmem:[#allocation10 + $0x28] sm:$0xff]
    %v3468 = vld [vmem:[#allocation10 + $0x30] sm:$0xff]
    %v3469 = vld [vmem:[#allocation10 + $0x38] sm:$0xff]
    %v3470 = vld [vmem:[#allocation10 + $0x40] sm:$0xff]
    %v3471 = vld [vmem:[#allocation10 + $0x48] sm:$0xff]
    %v3472 = vld [vmem:[#allocation10 + $0x50] sm:$0xff]
    %v3473 = vld [vmem:[#allocation10 + $0x58] sm:$0xff]
    %v3474 = vld [vmem:[#allocation10 + $0x60] sm:$0xff]
    %v3475 = vld [vmem:[#allocation10 + $0x68] sm:$0xff]
    %v3476 = vld [vmem:[#allocation10 + $0x70] sm:$0xff]
    %v3477 = vld [vmem:[#allocation10 + $0x78] sm:$0xff]
    %v3478 = vld [vmem:[#allocation10 + $0x80] sm:$0xff]
    %v3479 = vld [vmem:[#allocation10 + $0x88] sm:$0xff]
    %v3480 = vld [vmem:[#allocation10 + $0x90] sm:$0xff]
    %v3481 = vld [vmem:[#allocation10 + $0x98] sm:$0xff]
    %v3482 = vld [vmem:[#allocation10 + $0xa0] sm:$0xff]
    %v3483 = vld [vmem:[#allocation10 + $0xa8] sm:$0xff]
    %v3484 = vld [vmem:[#allocation10 + $0xb0] sm:$0xff]
    %v3485 = vld [vmem:[#allocation10 + $0xb8] sm:$0xff]
    %v3486 = vld [vmem:[#allocation10 + $0xc0] sm:$0xff]
    %v3487 = vld [vmem:[#allocation10 + $0xc8] sm:$0xff]
    %v3488 = vld [vmem:[#allocation10 + $0xd0] sm:$0xff]
    %v3489 = vld [vmem:[#allocation10 + $0xd8] sm:$0xff]
    %v3490 = vld [vmem:[#allocation10 + $0xe0] sm:$0xff]
    %v3491 = vld [vmem:[#allocation10 + $0xe8] sm:$0xff]
    %v3492 = vld [vmem:[#allocation10 + $0xf0] sm:$0xff]
    %v3493 = vld [vmem:[#allocation10 + $0xf8] sm:$0xff]
    %v3494 = vld [vmem:[#allocation10 + $0x100] sm:$0xff]
    %v3495 = vld [vmem:[#allocation10 + $0x108] sm:$0xff]
    %v3496 = vld [vmem:[#allocation10 + $0x110] sm:$0xff]
    %v3497 = vld [vmem:[#allocation10 + $0x118] sm:$0xff]
    %v3498 = vld [vmem:[#allocation10 + $0x120] sm:$0xff]
    %v3499 = vld [vmem:[#allocation10 + $0x128] sm:$0xff]
    %v3500 = vld [vmem:[#allocation10 + $0x130] sm:$0xff]
    %v3501 = vld [vmem:[#allocation10 + $0x138] sm:$0xff]
    %v3502 = vld [vmem:[#allocation10 + $0x140] sm:$0xff]
    %v3503 = vld [vmem:[#allocation10 + $0x148] sm:$0xff]
    %v3504 = vld [vmem:[#allocation10 + $0x150] sm:$0xff]
    %v3505 = vld [vmem:[#allocation10 + $0x158] sm:$0xff]
    %v3506 = vld [vmem:[#allocation10 + $0x160] sm:$0xff]
    %v3507 = vld [vmem:[#allocation10 + $0x168] sm:$0xff]
    %v3508 = vld [vmem:[#allocation10 + $0x170] sm:$0xff]
    %v3509 = vld [vmem:[#allocation10 + $0x178] sm:$0xff]
    %v3510 = vld [vmem:[#allocation10 + $0x180] sm:$0xff]
    %v3511 = vld [vmem:[#allocation10 + $0x188] sm:$0xff]
    %v3512 = vld [vmem:[#allocation10 + $0x190] sm:$0xff]
    %v3513 = vld [vmem:[#allocation10 + $0x198] sm:$0xff]
    %v3514 = vld [vmem:[#allocation10 + $0x1a0] sm:$0xff]
    %v3515 = vld [vmem:[#allocation10 + $0x1a8] sm:$0xff]
    %v3516 = vld [vmem:[#allocation10 + $0x1b0] sm:$0xff]
    %v3517 = vld [vmem:[#allocation10 + $0x1b8] sm:$0xff]
    %v3518 = vld [vmem:[#allocation10 + $0x1c0] sm:$0xff]
    %v3519 = vld [vmem:[#allocation10 + $0x1c8] sm:$0xff]
    %v3520 = vld [vmem:[#allocation10 + $0x1d0] sm:$0xff]
    %v3521 = vld [vmem:[#allocation10 + $0x1d8] sm:$0xff]
    %v3522 = vld [vmem:[#allocation10 + $0x1e0] sm:$0xff]
    %v3523 = vld [vmem:[#allocation10 + $0x1e8] sm:$0xff]
    %v3524 = vld [vmem:[#allocation10 + $0x1f0] sm:$0xff]
    %v3525 = vld [vmem:[#allocation10 + $0x1f8] sm:$0xff]
    %v3526 = vld [vmem:[%s10] sm:$0xf]
    %v3528 = vperm.slane %v3526, 0
    %v3529 = vperm.slane %v3526, 1
    %v3530 = vperm.slane %v3526, 2
    %v3531 = vperm.slane %v3526, 3
    %3536 = vmatpush.msra.mxu0 %v3522
    %3537 = vmatpush.msra.mxu0 %v3518
    %3538 = vmatpush.msra.mxu0 %v3514
    %3539 = vmatpush.msra.mxu0 %v3510
    %3540 = vmatpush.msra.mxu0 %v3506
    %3541 = vmatpush.msra.mxu0 %v3502
    %3542 = vmatpush.msra.mxu0 %v3498
    %3543 = vmatpush.msra.mxu0 %v3494
    %3544 = vmatpush.msra.mxu0 %v3490
    %3545 = vmatpush.msra.mxu0 %v3486
    %3546 = vmatpush.msra.mxu0 %v3482
    %3547 = vmatpush.msra.mxu0 %v3478
    %3548 = vmatpush.msra.mxu0 %v3474
    %3549 = vmatpush.msra.mxu0 %v3470
    %3550 = vmatpush.msra.mxu0 %v3466
    %3551 = vmatpush.msra.mxu0 %v3462
    %3552 = vmatmul.f32.gmra.mxu0 %v3454
    %v3553 = vpop.f32.mrf.mxu0
    %v3554 = vadd.f32 %v3528, %v3553
    %3555 = vmatmul.f32.gmra.mxu0 %v3455
    %v3556 = vpop.f32.mrf.mxu0
    %v3557 = vadd.f32 %v3528, %v3556
    %3558 = vmatmul.f32.gmra.mxu0 %v3456
    %v3559 = vpop.f32.mrf.mxu0
    %v3560 = vadd.f32 %v3528, %v3559
    %3561 = vmatmul.f32.gmra.mxu0 %v3457
    %v3562 = vpop.f32.mrf.mxu0
    %v3563 = vadd.f32 %v3528, %v3562
    %3564 = vmatmul.f32.gmra.mxu0 %v3458
    %v3565 = vpop.f32.mrf.mxu0
    %v3566 = vadd.f32 %v3528, %v3565
    %3567 = vmatmul.f32.gmra.mxu0 %v3459
    %v3568 = vpop.f32.mrf.mxu0
    %v3569 = vadd.f32 %v3528, %v3568
    %3570 = vmatmul.f32.gmra.mxu0 %v3460
    %v3571 = vpop.f32.mrf.mxu0
    %v3572 = vadd.f32 %v3528, %v3571
    %3573 = vmatmul.f32.gmra.mxu0 %v3461
    %v3574 = vpop.f32.mrf.mxu0
    %v3575 = vadd.f32 %v3528, %v3574
    %3576 = vdwg.mxu0
    %3577 = vmatpush.msra.mxu0 %v3523
    %3578 = vmatpush.msra.mxu0 %v3519
    %3579 = vmatpush.msra.mxu0 %v3515
    %3580 = vmatpush.msra.mxu0 %v3511
    %3581 = vmatpush.msra.mxu0 %v3507
    %3582 = vmatpush.msra.mxu0 %v3503
    %3583 = vmatpush.msra.mxu0 %v3499
    %3584 = vmatpush.msra.mxu0 %v3495
    %3585 = vmatpush.msra.mxu0 %v3491
    %3586 = vmatpush.msra.mxu0 %v3487
    %3587 = vmatpush.msra.mxu0 %v3483
    %3588 = vmatpush.msra.mxu0 %v3479
    %3589 = vmatpush.msra.mxu0 %v3475
    %3590 = vmatpush.msra.mxu0 %v3471
    %3591 = vmatpush.msra.mxu0 %v3467
    %3592 = vmatpush.msra.mxu0 %v3463
    %3593 = vmatmul.f32.gmra.mxu0 %v3454
    %v3594 = vpop.f32.mrf.mxu0
    %v3595 = vadd.f32 %v3529, %v3594
    %3596 = vmatmul.f32.gmra.mxu0 %v3455
    %v3597 = vpop.f32.mrf.mxu0
    %v3598 = vadd.f32 %v3529, %v3597
    %3599 = vmatmul.f32.gmra.mxu0 %v3456
    %v3600 = vpop.f32.mrf.mxu0
    %v3601 = vadd.f32 %v3529, %v3600
    %3602 = vmatmul.f32.gmra.mxu0 %v3457
    %v3603 = vpop.f32.mrf.mxu0
    %v3604 = vadd.f32 %v3529, %v3603
    %3605 = vmatmul.f32.gmra.mxu0 %v3458
    %v3606 = vpop.f32.mrf.mxu0
    %v3607 = vadd.f32 %v3529, %v3606
    %3608 = vmatmul.f32.gmra.mxu0 %v3459
    %v3609 = vpop.f32.mrf.mxu0
    %v3610 = vadd.f32 %v3529, %v3609
    %3611 = vmatmul.f32.gmra.mxu0 %v3460
    %v3612 = vpop.f32.mrf.mxu0
    %v3613 = vadd.f32 %v3529, %v3612
    %3614 = vmatmul.f32.gmra.mxu0 %v3461
    %v3615 = vpop.f32.mrf.mxu0
    %v3616 = vadd.f32 %v3529, %v3615
    %3617 = vdwg.mxu0
    %3618 = vmatpush.msra.mxu0 %v3524
    %3619 = vmatpush.msra.mxu0 %v3520
    %3620 = vmatpush.msra.mxu0 %v3516
    %3621 = vmatpush.msra.mxu0 %v3512
    %3622 = vmatpush.msra.mxu0 %v3508
    %3623 = vmatpush.msra.mxu0 %v3504
    %3624 = vmatpush.msra.mxu0 %v3500
    %3625 = vmatpush.msra.mxu0 %v3496
    %3626 = vmatpush.msra.mxu0 %v3492
    %3627 = vmatpush.msra.mxu0 %v3488
    %3628 = vmatpush.msra.mxu0 %v3484
    %3629 = vmatpush.msra.mxu0 %v3480
    %3630 = vmatpush.msra.mxu0 %v3476
    %3631 = vmatpush.msra.mxu0 %v3472
    %3632 = vmatpush.msra.mxu0 %v3468
    %3633 = vmatpush.msra.mxu0 %v3464
    %3634 = vmatmul.f32.gmra.mxu0 %v3454
    %v3635 = vpop.f32.mrf.mxu0
    %v3636 = vadd.f32 %v3530, %v3635
    %3637 = vmatmul.f32.gmra.mxu0 %v3455
    %v3638 = vpop.f32.mrf.mxu0
    %v3639 = vadd.f32 %v3530, %v3638
    %3640 = vmatmul.f32.gmra.mxu0 %v3456
    %v3641 = vpop.f32.mrf.mxu0
    %v3642 = vadd.f32 %v3530, %v3641
    %3643 = vmatmul.f32.gmra.mxu0 %v3457
    %v3644 = vpop.f32.mrf.mxu0
    %v3645 = vadd.f32 %v3530, %v3644
    %3646 = vmatmul.f32.gmra.mxu0 %v3458
    %v3647 = vpop.f32.mrf.mxu0
    %v3648 = vadd.f32 %v3530, %v3647
    %3649 = vmatmul.f32.gmra.mxu0 %v3459
    %v3650 = vpop.f32.mrf.mxu0
    %v3651 = vadd.f32 %v3530, %v3650
    %3652 = vmatmul.f32.gmra.mxu0 %v3460
    %v3653 = vpop.f32.mrf.mxu0
    %v3654 = vadd.f32 %v3530, %v3653
    %3655 = vmatmul.f32.gmra.mxu0 %v3461
    %v3656 = vpop.f32.mrf.mxu0
    %v3657 = vadd.f32 %v3530, %v3656
    %3658 = vdwg.mxu0
    %3659 = vmatpush.msra.mxu0 %v3525
    %3660 = vmatpush.msra.mxu0 %v3521
    %3661 = vmatpush.msra.mxu0 %v3517
    %3662 = vmatpush.msra.mxu0 %v3513
    %3663 = vmatpush.msra.mxu0 %v3509
    %3664 = vmatpush.msra.mxu0 %v3505
    %3665 = vmatpush.msra.mxu0 %v3501
    %3666 = vmatpush.msra.mxu0 %v3497
    %3667 = vmatpush.msra.mxu0 %v3493
    %3668 = vmatpush.msra.mxu0 %v3489
    %3669 = vmatpush.msra.mxu0 %v3485
    %3670 = vmatpush.msra.mxu0 %v3481
    %3671 = vmatpush.msra.mxu0 %v3477
    %3672 = vmatpush.msra.mxu0 %v3473
    %3673 = vmatpush.msra.mxu0 %v3469
    %3674 = vmatpush.msra.mxu0 %v3465
    %3675 = vmatmul.f32.gmra.mxu0 %v3454
    %v3676 = vpop.f32.mrf.mxu0
    %v3677 = vadd.f32 %v3531, %v3676
    %3678 = vmatmul.f32.gmra.mxu0 %v3455
    %v3679 = vpop.f32.mrf.mxu0
    %v3680 = vadd.f32 %v3531, %v3679
    %3681 = vmatmul.f32.gmra.mxu0 %v3456
    %v3682 = vpop.f32.mrf.mxu0
    %v3683 = vadd.f32 %v3531, %v3682
    %3684 = vmatmul.f32.gmra.mxu0 %v3457
    %v3685 = vpop.f32.mrf.mxu0
    %v3686 = vadd.f32 %v3531, %v3685
    %3687 = vmatmul.f32.gmra.mxu0 %v3458
    %v3688 = vpop.f32.mrf.mxu0
    %v3689 = vadd.f32 %v3531, %v3688
    %3690 = vmatmul.f32.gmra.mxu0 %v3459
    %v3691 = vpop.f32.mrf.mxu0
    %v3692 = vadd.f32 %v3531, %v3691
    %3693 = vmatmul.f32.gmra.mxu0 %v3460
    %v3694 = vpop.f32.mrf.mxu0
    %v3695 = vadd.f32 %v3531, %v3694
    %3696 = vmatmul.f32.gmra.mxu0 %v3461
    %v3697 = vpop.f32.mrf.mxu0
    %v3698 = vadd.f32 %v3531, %v3697
    %3699 = vdwg.mxu0
    %3700 = vst [vmem:[#allocation2] sm:$0xff] %v3554
    %3701 = vst [vmem:[#allocation2 + $0x8] sm:$0xff] %v3595
    %3702 = vst [vmem:[#allocation2 + $0x10] sm:$0xff] %v3636
    %3703 = vst [vmem:[#allocation2 + $0x18] sm:$0xff] %v3677
    %3704 = vst [vmem:[#allocation2 + $0x20] sm:$0xff] %v3557
    %3705 = vst [vmem:[#allocation2 + $0x28] sm:$0xff] %v3598
    %3706 = vst [vmem:[#allocation2 + $0x30] sm:$0xff] %v3639
    %3707 = vst [vmem:[#allocation2 + $0x38] sm:$0xff] %v3680
    %3708 = vst [vmem:[#allocation2 + $0x40] sm:$0xff] %v3560
    %3709 = vst [vmem:[#allocation2 + $0x48] sm:$0xff] %v3601
    %3710 = vst [vmem:[#allocation2 + $0x50] sm:$0xff] %v3642
    %3711 = vst [vmem:[#allocation2 + $0x58] sm:$0xff] %v3683
    %3712 = vst [vmem:[#allocation2 + $0x60] sm:$0xff] %v3563
    %3713 = vst [vmem:[#allocation2 + $0x68] sm:$0xff] %v3604
    %3714 = vst [vmem:[#allocation2 + $0x70] sm:$0xff] %v3645
    %3715 = vst [vmem:[#allocation2 + $0x78] sm:$0xff] %v3686
    %3716 = vst [vmem:[#allocation2 + $0x80] sm:$0xff] %v3566
    %3717 = vst [vmem:[#allocation2 + $0x88] sm:$0xff] %v3607
    %3718 = vst [vmem:[#allocation2 + $0x90] sm:$0xff] %v3648
    %3719 = vst [vmem:[#allocation2 + $0x98] sm:$0xff] %v3689
    %3720 = vst [vmem:[#allocation2 + $0xa0] sm:$0xff] %v3569
    %3721 = vst [vmem:[#allocation2 + $0xa8] sm:$0xff] %v3610
    %3722 = vst [vmem:[#allocation2 + $0xb0] sm:$0xff] %v3651
    %3723 = vst [vmem:[#allocation2 + $0xb8] sm:$0xff] %v3692
    %3724 = vst [vmem:[#allocation2 + $0xc0] sm:$0xff] %v3572
    %3725 = vst [vmem:[#allocation2 + $0xc8] sm:$0xff] %v3613
    %3726 = vst [vmem:[#allocation2 + $0xd0] sm:$0xff] %v3654
    %3727 = vst [vmem:[#allocation2 + $0xd8] sm:$0xff] %v3695
    %3728 = vst [vmem:[#allocation2 + $0xe0] sm:$0xff] %v3575
    %3729 = vst [vmem:[#allocation2 + $0xe8] sm:$0xff] %v3616
    %3730 = vst [vmem:[#allocation2 + $0xf0] sm:$0xff] %v3657
    %3731 = vst [vmem:[#allocation2 + $0xf8] sm:$0xff] %v3698
    %v3732 = vld [vmem:[%s411] sm:$0xff]
    %v3733 = vld [vmem:[%s411 + $0x8] sm:$0xff]
    %v3734 = vld [vmem:[%s411 + $0x10] sm:$0xff]
    %v3735 = vld [vmem:[%s411 + $0x18] sm:$0xff]
    %v3736 = vld [vmem:[#allocation12] sm:$0xff]
    %v3737 = vld [vmem:[#allocation12 + $0x8] sm:$0xff]
    %v3738 = vld [vmem:[#allocation12 + $0x10] sm:$0xff]
    %v3739 = vld [vmem:[#allocation12 + $0x18] sm:$0xff]
    %v3740 = vld [vmem:[#allocation12 + $0x20] sm:$0xff]
    %v3741 = vld [vmem:[#allocation12 + $0x28] sm:$0xff]
    %v3742 = vld [vmem:[#allocation12 + $0x30] sm:$0xff]
    %v3743 = vld [vmem:[#allocation12 + $0x38] sm:$0xff]
    %v3744 = vld [vmem:[#allocation12 + $0x40] sm:$0xff]
    %v3745 = vld [vmem:[#allocation12 + $0x48] sm:$0xff]
    %v3746 = vld [vmem:[#allocation12 + $0x50] sm:$0xff]
    %v3747 = vld [vmem:[#allocation12 + $0x58] sm:$0xff]
    %v3748 = vld [vmem:[#allocation12 + $0x60] sm:$0xff]
    %v3749 = vld [vmem:[#allocation12 + $0x68] sm:$0xff]
    %v3750 = vld [vmem:[#allocation12 + $0x70] sm:$0xff]
    %v3751 = vld [vmem:[#allocation12 + $0x78] sm:$0xff]
    %v3752 = vld [vmem:[#allocation12 + $0x80] sm:$0xff]
    %v3753 = vld [vmem:[#allocation12 + $0x88] sm:$0xff]
    %v3754 = vld [vmem:[#allocation12 + $0x90] sm:$0xff]
    %v3755 = vld [vmem:[#allocation12 + $0x98] sm:$0xff]
    %v3756 = vld [vmem:[#allocation12 + $0xa0] sm:$0xff]
    %v3757 = vld [vmem:[#allocation12 + $0xa8] sm:$0xff]
    %v3758 = vld [vmem:[#allocation12 + $0xb0] sm:$0xff]
    %v3759 = vld [vmem:[#allocation12 + $0xb8] sm:$0xff]
    %v3760 = vld [vmem:[#allocation12 + $0xc0] sm:$0xff]
    %v3761 = vld [vmem:[#allocation12 + $0xc8] sm:$0xff]
    %v3762 = vld [vmem:[#allocation12 + $0xd0] sm:$0xff]
    %v3763 = vld [vmem:[#allocation12 + $0xd8] sm:$0xff]
    %v3764 = vld [vmem:[#allocation12 + $0xe0] sm:$0xff]
    %v3765 = vld [vmem:[#allocation12 + $0xe8] sm:$0xff]
    %v3766 = vld [vmem:[#allocation12 + $0xf0] sm:$0xff]
    %v3767 = vld [vmem:[#allocation12 + $0xf8] sm:$0xff]
    %v3768 = vld [vmem:[#allocation12 + $0x100] sm:$0xff]
    %v3769 = vld [vmem:[#allocation12 + $0x108] sm:$0xff]
    %v3770 = vld [vmem:[#allocation12 + $0x110] sm:$0xff]
    %v3771 = vld [vmem:[#allocation12 + $0x118] sm:$0xff]
    %v3772 = vld [vmem:[#allocation12 + $0x120] sm:$0xff]
    %v3773 = vld [vmem:[#allocation12 + $0x128] sm:$0xff]
    %v3774 = vld [vmem:[#allocation12 + $0x130] sm:$0xff]
    %v3775 = vld [vmem:[#allocation12 + $0x138] sm:$0xff]
    %v3776 = vld [vmem:[#allocation12 + $0x140] sm:$0xff]
    %v3777 = vld [vmem:[#allocation12 + $0x148] sm:$0xff]
    %v3778 = vld [vmem:[#allocation12 + $0x150] sm:$0xff]
    %v3779 = vld [vmem:[#allocation12 + $0x158] sm:$0xff]
    %v3780 = vld [vmem:[#allocation12 + $0x160] sm:$0xff]
    %v3781 = vld [vmem:[#allocation12 + $0x168] sm:$0xff]
    %v3782 = vld [vmem:[#allocation12 + $0x170] sm:$0xff]
    %v3783 = vld [vmem:[#allocation12 + $0x178] sm:$0xff]
    %v3784 = vld [vmem:[#allocation12 + $0x180] sm:$0xff]
    %v3785 = vld [vmem:[#allocation12 + $0x188] sm:$0xff]
    %v3786 = vld [vmem:[#allocation12 + $0x190] sm:$0xff]
    %v3787 = vld [vmem:[#allocation12 + $0x198] sm:$0xff]
    %v3788 = vld [vmem:[#allocation12 + $0x1a0] sm:$0xff]
    %v3789 = vld [vmem:[#allocation12 + $0x1a8] sm:$0xff]
    %v3790 = vld [vmem:[#allocation12 + $0x1b0] sm:$0xff]
    %v3791 = vld [vmem:[#allocation12 + $0x1b8] sm:$0xff]
    %v3792 = vld [vmem:[#allocation12 + $0x1c0] sm:$0xff]
    %v3793 = vld [vmem:[#allocation12 + $0x1c8] sm:$0xff]
    %v3794 = vld [vmem:[#allocation12 + $0x1d0] sm:$0xff]
    %v3795 = vld [vmem:[#allocation12 + $0x1d8] sm:$0xff]
    %v3796 = vld [vmem:[#allocation12 + $0x1e0] sm:$0xff]
    %v3797 = vld [vmem:[#allocation12 + $0x1e8] sm:$0xff]
    %v3798 = vld [vmem:[#allocation12 + $0x1f0] sm:$0xff]
    %v3799 = vld [vmem:[#allocation12 + $0x1f8] sm:$0xff]
    %3800 = vmatpush.msra.mxu0 %v3796
    %3801 = vmatpush.msra.mxu0 %v3792
    %3802 = vmatpush.msra.mxu0 %v3788
    %3803 = vmatpush.msra.mxu0 %v3784
    %3804 = vmatpush.msra.mxu0 %v3780
    %3805 = vmatpush.msra.mxu0 %v3776
    %3806 = vmatpush.msra.mxu0 %v3772
    %3807 = vmatpush.msra.mxu0 %v3768
    %3808 = vmatpush.msra.mxu0 %v3764
    %3809 = vmatpush.msra.mxu0 %v3760
    %3810 = vmatpush.msra.mxu0 %v3756
    %3811 = vmatpush.msra.mxu0 %v3752
    %3812 = vmatpush.msra.mxu0 %v3748
    %3813 = vmatpush.msra.mxu0 %v3744
    %3814 = vmatpush.msra.mxu0 %v3740
    %3815 = vmatpush.msra.mxu0 %v3736
    %3816 = vmatmul.f32.gmra.mxu0 0.0
    %v3817 = vpop.f32.mrf.mxu0
    %v3818 = vadd.f32 0.0, %v3817
    %3819 = vdwg.mxu0
    %3820 = vmatpush.msra.mxu0 %v3797
    %3821 = vmatpush.msra.mxu0 %v3793
    %3822 = vmatpush.msra.mxu0 %v3789
    %3823 = vmatpush.msra.mxu0 %v3785
    %3824 = vmatpush.msra.mxu0 %v3781
    %3825 = vmatpush.msra.mxu0 %v3777
    %3826 = vmatpush.msra.mxu0 %v3773
    %3827 = vmatpush.msra.mxu0 %v3769
    %3828 = vmatpush.msra.mxu0 %v3765
    %3829 = vmatpush.msra.mxu0 %v3761
    %3830 = vmatpush.msra.mxu0 %v3757
    %3831 = vmatpush.msra.mxu0 %v3753
    %3832 = vmatpush.msra.mxu0 %v3749
    %3833 = vmatpush.msra.mxu0 %v3745
    %3834 = vmatpush.msra.mxu0 %v3741
    %3835 = vmatpush.msra.mxu0 %v3737
    %3836 = vmatmul.f32.gmra.mxu0 0.0
    %v3837 = vpop.f32.mrf.mxu0
    %v3838 = vadd.f32 0.0, %v3837
    %3839 = vdwg.mxu0
    %3840 = vmatpush.msra.mxu0 %v3798
    %3841 = vmatpush.msra.mxu0 %v3794
    %3842 = vmatpush.msra.mxu0 %v3790
    %3843 = vmatpush.msra.mxu0 %v3786
    %3844 = vmatpush.msra.mxu0 %v3782
    %3845 = vmatpush.msra.mxu0 %v3778
    %3846 = vmatpush.msra.mxu0 %v3774
    %3847 = vmatpush.msra.mxu0 %v3770
    %3848 = vmatpush.msra.mxu0 %v3766
    %3849 = vmatpush.msra.mxu0 %v3762
    %3850 = vmatpush.msra.mxu0 %v3758
    %3851 = vmatpush.msra.mxu0 %v3754
    %3852 = vmatpush.msra.mxu0 %v3750
    %3853 = vmatpush.msra.mxu0 %v3746
    %3854 = vmatpush.msra.mxu0 %v3742
    %3855 = vmatpush.msra.mxu0 %v3738
    %3856 = vmatmul.f32.gmra.mxu0 0.0
    %v3857 = vpop.f32.mrf.mxu0
    %v3858 = vadd.f32 0.0, %v3857
    %3859 = vdwg.mxu0
    %3860 = vmatpush.msra.mxu0 %v3799
    %3861 = vmatpush.msra.mxu0 %v3795
    %3862 = vmatpush.msra.mxu0 %v3791
    %3863 = vmatpush.msra.mxu0 %v3787
    %3864 = vmatpush.msra.mxu0 %v3783
    %3865 = vmatpush.msra.mxu0 %v3779
    %3866 = vmatpush.msra.mxu0 %v3775
    %3867 = vmatpush.msra.mxu0 %v3771
    %3868 = vmatpush.msra.mxu0 %v3767
    %3869 = vmatpush.msra.mxu0 %v3763
    %3870 = vmatpush.msra.mxu0 %v3759
    %3871 = vmatpush.msra.mxu0 %v3755
    %3872 = vmatpush.msra.mxu0 %v3751
    %3873 = vmatpush.msra.mxu0 %v3747
    %3874 = vmatpush.msra.mxu0 %v3743
    %3875 = vmatpush.msra.mxu0 %v3739
    %3876 = vmatmul.f32.gmra.mxu0 0.0
    %v3877 = vpop.f32.mrf.mxu0
    %v3878 = vadd.f32 0.0, %v3877
    %3879 = vdwg.mxu0
    %v3880 = vadd.f32 %v3732, %v3818
    %v3881 = vadd.f32 %v3733, %v3838
    %v3882 = vadd.f32 %v3734, %v3858
    %v3883 = vadd.f32 %v3735, %v3878
    %v3884 = vmul.f32 %v3880, 0.5
    %v3885 = vtanh.pop %v3884
    %v3886 = vmul.f32 %v3885, 0.5
    %v3887 = vadd.f32 %v3886, 0.5
    %v3888 = vmul.f32 %v3881, 0.5
    %v3889 = vtanh.pop %v3888
    %v3890 = vmul.f32 %v3889, 0.5
    %v3891 = vadd.f32 %v3890, 0.5
    %v3892 = vtanh.pop %v3882
    %v3893 = vmul.f32 %v3883, 0.5
    %v3894 = vtanh.pop %v3893
    %v3895 = vmul.f32 %v3894, 0.5
    %v3896 = vadd.f32 %v3895, 0.5
    %v3897 = vmul.f32 %v3891, 0.0
    %v3898 = vmul.f32 %v3887, %v3892
    %v3899 = vadd.f32 %v3897, %v3898
    %v3900 = vtanh.pop %v3899
    %v3901 = vmul.f32 %v3896, %v3900
    %3902 = vst [vmem:[#allocation3] sm:$0xff] %v3901
    %v3903 = vld [vmem:[%s585] sm:$0xff]
    %v3904 = vld [vmem:[%s585 + $0x8] sm:$0xff]
    %v3905 = vld [vmem:[%s585 + $0x10] sm:$0xff]
    %v3906 = vld [vmem:[%s585 + $0x18] sm:$0xff]
    %v3907 = vld [vmem:[#allocation12] sm:$0xff]
    %v3908 = vld [vmem:[#allocation12 + $0x8] sm:$0xff]
    %v3909 = vld [vmem:[#allocation12 + $0x10] sm:$0xff]
    %v3910 = vld [vmem:[#allocation12 + $0x18] sm:$0xff]
    %v3911 = vld [vmem:[#allocation12 + $0x20] sm:$0xff]
    %v3912 = vld [vmem:[#allocation12 + $0x28] sm:$0xff]
    %v3913 = vld [vmem:[#allocation12 + $0x30] sm:$0xff]
    %v3914 = vld [vmem:[#allocation12 + $0x38] sm:$0xff]
    %v3915 = vld [vmem:[#allocation12 + $0x40] sm:$0xff]
    %v3916 = vld [vmem:[#allocation12 + $0x48] sm:$0xff]
    %v3917 = vld [vmem:[#allocation12 + $0x50] sm:$0xff]
    %v3918 = vld [vmem:[#allocation12 + $0x58] sm:$0xff]
    %v3919 = vld [vmem:[#allocation12 + $0x60] sm:$0xff]
    %v3920 = vld [vmem:[#allocation12 + $0x68] sm:$0xff]
    %v3921 = vld [vmem:[#allocation12 + $0x70] sm:$0xff]
    %v3922 = vld [vmem:[#allocation12 + $0x78] sm:$0xff]
    %v3923 = vld [vmem:[#allocation12 + $0x80] sm:$0xff]
    %v3924 = vld [vmem:[#allocation12 + $0x88] sm:$0xff]
    %v3925 = vld [vmem:[#allocation12 + $0x90] sm:$0xff]
    %v3926 = vld [vmem:[#allocation12 + $0x98] sm:$0xff]
    %v3927 = vld [vmem:[#allocation12 + $0xa0] sm:$0xff]
    %v3928 = vld [vmem:[#allocation12 + $0xa8] sm:$0xff]
    %v3929 = vld [vmem:[#allocation12 + $0xb0] sm:$0xff]
    %v3930 = vld [vmem:[#allocation12 + $0xb8] sm:$0xff]
    %v3931 = vld [vmem:[#allocation12 + $0xc0] sm:$0xff]
    %v3932 = vld [vmem:[#allocation12 + $0xc8] sm:$0xff]
    %v3933 = vld [vmem:[#allocation12 + $0xd0] sm:$0xff]
    %v3934 = vld [vmem:[#allocation12 + $0xd8] sm:$0xff]
    %v3935 = vld [vmem:[#allocation12 + $0xe0] sm:$0xff]
    %v3936 = vld [vmem:[#allocation12 + $0xe8] sm:$0xff]
    %v3937 = vld [vmem:[#allocation12 + $0xf0] sm:$0xff]
    %v3938 = vld [vmem:[#allocation12 + $0xf8] sm:$0xff]
    %v3939 = vld [vmem:[#allocation12 + $0x100] sm:$0xff]
    %v3940 = vld [vmem:[#allocation12 + $0x108] sm:$0xff]
    %v3941 = vld [vmem:[#allocation12 + $0x110] sm:$0xff]
    %v3942 = vld [vmem:[#allocation12 + $0x118] sm:$0xff]
    %v3943 = vld [vmem:[#allocation12 + $0x120] sm:$0xff]
    %v3944 = vld [vmem:[#allocation12 + $0x128] sm:$0xff]
    %v3945 = vld [vmem:[#allocation12 + $0x130] sm:$0xff]
    %v3946 = vld [vmem:[#allocation12 + $0x138] sm:$0xff]
    %v3947 = vld [vmem:[#allocation12 + $0x140] sm:$0xff]
    %v3948 = vld [vmem:[#allocation12 + $0x148] sm:$0xff]
    %v3949 = vld [vmem:[#allocation12 + $0x150] sm:$0xff]
    %v3950 = vld [vmem:[#allocation12 + $0x158] sm:$0xff]
    %v3951 = vld [vmem:[#allocation12 + $0x160] sm:$0xff]
    %v3952 = vld [vmem:[#allocation12 + $0x168] sm:$0xff]
    %v3953 = vld [vmem:[#allocation12 + $0x170] sm:$0xff]
    %v3954 = vld [vmem:[#allocation12 + $0x178] sm:$0xff]
    %v3955 = vld [vmem:[#allocation12 + $0x180] sm:$0xff]
    %v3956 = vld [vmem:[#allocation12 + $0x188] sm:$0xff]
    %v3957 = vld [vmem:[#allocation12 + $0x190] sm:$0xff]
    %v3958 = vld [vmem:[#allocation12 + $0x198] sm:$0xff]
    %v3959 = vld [vmem:[#allocation12 + $0x1a0] sm:$0xff]
    %v3960 = vld [vmem:[#allocation12 + $0x1a8] sm:$0xff]
    %v3961 = vld [vmem:[#allocation12 + $0x1b0] sm:$0xff]
    %v3962 = vld [vmem:[#allocation12 + $0x1b8] sm:$0xff]
    %v3963 = vld [vmem:[#allocation12 + $0x1c0] sm:$0xff]
    %v3964 = vld [vmem:[#allocation12 + $0x1c8] sm:$0xff]
    %v3965 = vld [vmem:[#allocation12 + $0x1d0] sm:$0xff]
    %v3966 = vld [vmem:[#allocation12 + $0x1d8] sm:$0xff]
    %v3967 = vld [vmem:[#allocation12 + $0x1e0] sm:$0xff]
    %v3968 = vld [vmem:[#allocation12 + $0x1e8] sm:$0xff]
    %v3969 = vld [vmem:[#allocation12 + $0x1f0] sm:$0xff]
    %v3970 = vld [vmem:[#allocation12 + $0x1f8] sm:$0xff]
    %3971 = vmatpush.msra.mxu0 %v3967
    %3972 = vmatpush.msra.mxu0 %v3963
    %3973 = vmatpush.msra.mxu0 %v3959
    %3974 = vmatpush.msra.mxu0 %v3955
    %3975 = vmatpush.msra.mxu0 %v3951
    %3976 = vmatpush.msra.mxu0 %v3947
    %3977 = vmatpush.msra.mxu0 %v3943
    %3978 = vmatpush.msra.mxu0 %v3939
    %3979 = vmatpush.msra.mxu0 %v3935
    %3980 = vmatpush.msra.mxu0 %v3931
    %3981 = vmatpush.msra.mxu0 %v3927
    %3982 = vmatpush.msra.mxu0 %v3923
    %3983 = vmatpush.msra.mxu0 %v3919
    %3984 = vmatpush.msra.mxu0 %v3915
    %3985 = vmatpush.msra.mxu0 %v3911
    %3986 = vmatpush.msra.mxu0 %v3907
    %3987 = vmatmul.f32.gmra.mxu0 %v3901
    %v3988 = vpop.f32.mrf.mxu0
    %v3989 = vadd.f32 0.0, %v3988
    %3990 = vdwg.mxu0
    %3991 = vmatpush.msra.mxu0 %v3968
    %3992 = vmatpush.msra.mxu0 %v3964
    %3993 = vmatpush.msra.mxu0 %v3960
    %3994 = vmatpush.msra.mxu0 %v3956
    %3995 = vmatpush.msra.mxu0 %v3952
    %3996 = vmatpush.msra.mxu0 %v3948
    %3997 = vmatpush.msra.mxu0 %v3944
    %3998 = vmatpush.msra.mxu0 %v3940
    %3999 = vmatpush.msra.mxu0 %v3936
    %4000 = vmatpush.msra.mxu0 %v3932
    %4001 = vmatpush.msra.mxu0 %v3928
    %4002 = vmatpush.msra.mxu0 %v3924
    %4003 = vmatpush.msra.mxu0 %v3920
    %4004 = vmatpush.msra.mxu0 %v3916
    %4005 = vmatpush.msra.mxu0 %v3912
    %4006 = vmatpush.msra.mxu0 %v3908
    %4007 = vmatmul.f32.gmra.mxu0 %v3901
    %v4008 = vpop.f32.mrf.mxu0
    %v4009 = vadd.f32 0.0, %v4008
    %4010 = vdwg.mxu0
    %4011 = vmatpush.msra.mxu0 %v3969
    %4012 = vmatpush.msra.mxu0 %v3965
    %4013 = vmatpush.msra.mxu0 %v3961
    %4014 = vmatpush.msra.mxu0 %v3957
    %4015 = vmatpush.msra.mxu0 %v3953
    %4016 = vmatpush.msra.mxu0 %v3949
    %4017 = vmatpush.msra.mxu0 %v3945
    %4018 = vmatpush.msra.mxu0 %v3941
    %4019 = vmatpush.msra.mxu0 %v3937
    %4020 = vmatpush.msra.mxu0 %v3933
    %4021 = vmatpush.msra.mxu0 %v3929
    %4022 = vmatpush.msra.mxu0 %v3925
    %4023 = vmatpush.msra.mxu0 %v3921
    %4024 = vmatpush.msra.mxu0 %v3917
    %4025 = vmatpush.msra.mxu0 %v3913
    %4026 = vmatpush.msra.mxu0 %v3909
    %4027 = vmatmul.f32.gmra.mxu0 %v3901
    %v4028 = vpop.f32.mrf.mxu0
    %v4029 = vadd.f32 0.0, %v4028
    %4030 = vdwg.mxu0
    %4031 = vmatpush.msra.mxu0 %v3970
    %4032 = vmatpush.msra.mxu0 %v3966
    %4033 = vmatpush.msra.mxu0 %v3962
    %4034 = vmatpush.msra.mxu0 %v3958
    %4035 = vmatpush.msra.mxu0 %v3954
    %4036 = vmatpush.msra.mxu0 %v3950
    %4037 = vmatpush.msra.mxu0 %v3946
    %4038 = vmatpush.msra.mxu0 %v3942
    %4039 = vmatpush.msra.mxu0 %v3938
    %4040 = vmatpush.msra.mxu0 %v3934
    %4041 = vmatpush.msra.mxu0 %v3930
    %4042 = vmatpush.msra.mxu0 %v3926
    %4043 = vmatpush.msra.mxu0 %v3922
    %4044 = vmatpush.msra.mxu0 %v3918
    %4045 = vmatpush.msra.mxu0 %v3914
    %4046 = vmatpush.msra.mxu0 %v3910
    %4047 = vmatmul.f32.gmra.mxu0 %v3901
    %v4048 = vpop.f32.mrf.mxu0
    %v4049 = vadd.f32 0.0, %v4048
    %4050 = vdwg.mxu0
    %v4051 = vadd.f32 %v3903, %v3989
    %v4052 = vadd.f32 %v3904, %v4009
    %v4053 = vadd.f32 %v3905, %v4029
    %v4054 = vadd.f32 %v3906, %v4049
    %v4055 = vmul.f32 %v4051, 0.5
    %v4056 = vtanh.pop %v4055
    %v4057 = vmul.f32 %v4056, 0.5
    %v4058 = vadd.f32 %v4057, 0.5
    %v4059 = vmul.f32 %v4052, 0.5
    %v4060 = vtanh.pop %v4059
    %v4061 = vmul.f32 %v4060, 0.5
    %v4062 = vadd.f32 %v4061, 0.5
    %v4063 = vtanh.pop %v4053
    %v4064 = vmul.f32 %v4054, 0.5
    %v4065 = vtanh.pop %v4064
    %v4066 = vmul.f32 %v4065, 0.5
    %v4067 = vadd.f32 %v4066, 0.5
    %v4068 = vmul.f32 %v4062, %v3899
    %v4069 = vmul.f32 %v4058, %v4063
    %v4070 = vadd.f32 %v4068, %v4069
    %v4071 = vtanh.pop %v4070
    %v4072 = vmul.f32 %v4067, %v4071
    %4073 = vst [vmem:[%s756] sm:$0xff] %v4072
    %v4074 = vld [vmem:[%s760] sm:$0xff]
    %v4075 = vld [vmem:[%s760 + $0x8] sm:$0xff]
    %v4076 = vld [vmem:[%s760 + $0x10] sm:$0xff]
    %v4077 = vld [vmem:[%s760 + $0x18] sm:$0xff]
    %v4078 = vld [vmem:[#allocation12] sm:$0xff]
    %v4079 = vld [vmem:[#allocation12 + $0x8] sm:$0xff]
    %v4080 = vld [vmem:[#allocation12 + $0x10] sm:$0xff]
    %v4081 = vld [vmem:[#allocation12 + $0x18] sm:$0xff]
    %v4082 = vld [vmem:[#allocation12 + $0x20] sm:$0xff]
    %v4083 = vld [vmem:[#allocation12 + $0x28] sm:$0xff]
    %v4084 = vld [vmem:[#allocation12 + $0x30] sm:$0xff]
    %v4085 = vld [vmem:[#allocation12 + $0x38] sm:$0xff]
    %v4086 = vld [vmem:[#allocation12 + $0x40] sm:$0xff]
    %v4087 = vld [vmem:[#allocation12 + $0x48] sm:$0xff]
    %v4088 = vld [vmem:[#allocation12 + $0x50] sm:$0xff]
    %v4089 = vld [vmem:[#allocation12 + $0x58] sm:$0xff]
    %v4090 = vld [vmem:[#allocation12 + $0x60] sm:$0xff]
    %v4091 = vld [vmem:[#allocation12 + $0x68] sm:$0xff]
    %v4092 = vld [vmem:[#allocation12 + $0x70] sm:$0xff]
    %v4093 = vld [vmem:[#allocation12 + $0x78] sm:$0xff]
    %v4094 = vld [vmem:[#allocation12 + $0x80] sm:$0xff]
    %v4095 = vld [vmem:[#allocation12 + $0x88] sm:$0xff]
    %v4096 = vld [vmem:[#allocation12 + $0x90] sm:$0xff]
    %v4097 = vld [vmem:[#allocation12 + $0x98] sm:$0xff]
    %v4098 = vld [vmem:[#allocation12 + $0xa0] sm:$0xff]
    %v4099 = vld [vmem:[#allocation12 + $0xa8] sm:$0xff]
    %v4100 = vld [vmem:[#allocation12 + $0xb0] sm:$0xff]
    %v4101 = vld [vmem:[#allocation12 + $0xb8] sm:$0xff]
    %v4102 = vld [vmem:[#allocation12 + $0xc0] sm:$0xff]
    %v4103 = vld [vmem:[#allocation12 + $0xc8] sm:$0xff]
    %v4104 = vld [vmem:[#allocation12 + $0xd0] sm:$0xff]
    %v4105 = vld [vmem:[#allocation12 + $0xd8] sm:$0xff]
    %v4106 = vld [vmem:[#allocation12 + $0xe0] sm:$0xff]
    %v4107 = vld [vmem:[#allocation12 + $0xe8] sm:$0xff]
    %v4108 = vld [vmem:[#allocation12 + $0xf0] sm:$0xff]
    %v4109 = vld [vmem:[#allocation12 + $0xf8] sm:$0xff]
    %v4110 = vld [vmem:[#allocation12 + $0x100] sm:$0xff]
    %v4111 = vld [vmem:[#allocation12 + $0x108] sm:$0xff]
    %v4112 = vld [vmem:[#allocation12 + $0x110] sm:$0xff]
    %v4113 = vld [vmem:[#allocation12 + $0x118] sm:$0xff]
    %v4114 = vld [vmem:[#allocation12 + $0x120] sm:$0xff]
    %v4115 = vld [vmem:[#allocation12 + $0x128] sm:$0xff]
    %v4116 = vld [vmem:[#allocation12 + $0x130] sm:$0xff]
    %v4117 = vld [vmem:[#allocation12 + $0x138] sm:$0xff]
    %v4118 = vld [vmem:[#allocation12 + $0x140] sm:$0xff]
    %v4119 = vld [vmem:[#allocation12 + $0x148] sm:$0xff]
    %v4120 = vld [vmem:[#allocation12 + $0x150] sm:$0xff]
    %v4121 = vld [vmem:[#allocation12 + $0x158] sm:$0xff]
    %v4122 = vld [vmem:[#allocation12 + $0x160] sm:$0xff]
    %v4123 = vld [vmem:[#allocation12 + $0x168] sm:$0xff]
    %v4124 = vld [vmem:[#allocation12 + $0x170] sm:$0xff]
    %v4125 = vld [vmem:[#allocation12 + $0x178] sm:$0xff]
    %v4126 = vld [vmem:[#allocation12 + $0x180] sm:$0xff]
    %v4127 = vld [vmem:[#allocation12 + $0x188] sm:$0xff]
    %v4128 = vld [vmem:[#allocation12 + $0x190] sm:$0xff]
    %v4129 = vld [vmem:[#allocation12 + $0x198] sm:$0xff]
    %v4130 = vld [vmem:[#allocation12 + $0x1a0] sm:$0xff]
    %v4131 = vld [vmem:[#allocation12 + $0x1a8] sm:$0xff]
    %v4132 = vld [vmem:[#allocation12 + $0x1b0] sm:$0xff]
    %v4133 = vld [vmem:[#allocation12 + $0x1b8] sm:$0xff]
    %v4134 = vld [vmem:[#allocation12 + $0x1c0] sm:$0xff]
    %v4135 = vld [vmem:[#allocation12 + $0x1c8] sm:$0xff]
    %v4136 = vld [vmem:[#allocation12 + $0x1d0] sm:$0xff]
    %v4137 = vld [vmem:[#allocation12 + $0x1d8] sm:$0xff]
    %v4138 = vld [vmem:[#allocation12 + $0x1e0] sm:$0xff]
    %v4139 = vld [vmem:[#allocation12 + $0x1e8] sm:$0xff]
    %v4140 = vld [vmem:[#allocation12 + $0x1f0] sm:$0xff]
    %v4141 = vld [vmem:[#allocation12 + $0x1f8] sm:$0xff]
    %4142 = vmatpush.msra.mxu0 %v4138
    %4143 = vmatpush.msra.mxu0 %v4134
    %4144 = vmatpush.msra.mxu0 %v4130
    %4145 = vmatpush.msra.mxu0 %v4126
    %4146 = vmatpush.msra.mxu0 %v4122
    %4147 = vmatpush.msra.mxu0 %v4118
    %4148 = vmatpush.msra.mxu0 %v4114
    %4149 = vmatpush.msra.mxu0 %v4110
    %4150 = vmatpush.msra.mxu0 %v4106
    %4151 = vmatpush.msra.mxu0 %v4102
    %4152 = vmatpush.msra.mxu0 %v4098
    %4153 = vmatpush.msra.mxu0 %v4094
    %4154 = vmatpush.msra.mxu0 %v4090
    %4155 = vmatpush.msra.mxu0 %v4086
    %4156 = vmatpush.msra.mxu0 %v4082
    %4157 = vmatpush.msra.mxu0 %v4078
    %4158 = vmatmul.f32.gmra.mxu0 %v4072
    %v4159 = vpop.f32.mrf.mxu0
    %v4160 = vadd.f32 0.0, %v4159
    %4161 = vdwg.mxu0
    %4162 = vmatpush.msra.mxu0 %v4139
    %4163 = vmatpush.msra.mxu0 %v4135
    %4164 = vmatpush.msra.mxu0 %v4131
    %4165 = vmatpush.msra.mxu0 %v4127
    %4166 = vmatpush.msra.mxu0 %v4123
    %4167 = vmatpush.msra.mxu0 %v4119
    %4168 = vmatpush.msra.mxu0 %v4115
    %4169 = vmatpush.msra.mxu0 %v4111
    %4170 = vmatpush.msra.mxu0 %v4107
    %4171 = vmatpush.msra.mxu0 %v4103
    %4172 = vmatpush.msra.mxu0 %v4099
    %4173 = vmatpush.msra.mxu0 %v4095
    %4174 = vmatpush.msra.mxu0 %v4091
    %4175 = vmatpush.msra.mxu0 %v4087
    %4176 = vmatpush.msra.mxu0 %v4083
    %4177 = vmatpush.msra.mxu0 %v4079
    %4178 = vmatmul.f32.gmra.mxu0 %v4072
    %v4179 = vpop.f32.mrf.mxu0
    %v4180 = vadd.f32 0.0, %v4179
    %4181 = vdwg.mxu0
    %4182 = vmatpush.msra.mxu0 %v4140
    %4183 = vmatpush.msra.mxu0 %v4136
    %4184 = vmatpush.msra.mxu0 %v4132
    %4185 = vmatpush.msra.mxu0 %v4128
    %4186 = vmatpush.msra.mxu0 %v4124
    %4187 = vmatpush.msra.mxu0 %v4120
    %4188 = vmatpush.msra.mxu0 %v4116
    %4189 = vmatpush.msra.mxu0 %v4112
    %4190 = vmatpush.msra.mxu0 %v4108
    %4191 = vmatpush.msra.mxu0 %v4104
    %4192 = vmatpush.msra.mxu0 %v4100
    %4193 = vmatpush.msra.mxu0 %v4096
    %4194 = vmatpush.msra.mxu0 %v4092
    %4195 = vmatpush.msra.mxu0 %v4088
    %4196 = vmatpush.msra.mxu0 %v4084
    %4197 = vmatpush.msra.mxu0 %v4080
    %4198 = vmatmul.f32.gmra.mxu0 %v4072
    %v4199 = vpop.f32.mrf.mxu0
    %v4200 = vadd.f32 0.0, %v4199
    %4201 = vdwg.mxu0
    %4202 = vmatpush.msra.mxu0 %v4141
    %4203 = vmatpush.msra.mxu0 %v4137
    %4204 = vmatpush.msra.mxu0 %v4133
    %4205 = vmatpush.msra.mxu0 %v4129
    %4206 = vmatpush.msra.mxu0 %v4125
    %4207 = vmatpush.msra.mxu0 %v4121
    %4208 = vmatpush.msra.mxu0 %v4117
    %4209 = vmatpush.msra.mxu0 %v4113
    %4210 = vmatpush.msra.mxu0 %v4109
    %4211 = vmatpush.msra.mxu0 %v4105
    %4212 = vmatpush.msra.mxu0 %v4101
    %4213 = vmatpush.msra.mxu0 %v4097
    %4214 = vmatpush.msra.mxu0 %v4093
    %4215 = vmatpush.msra.mxu0 %v4089
    %4216 = vmatpush.msra.mxu0 %v4085
    %4217 = vmatpush.msra.mxu0 %v4081
    %4218 = vmatmul.f32.gmra.mxu0 %v4072
    %v4219 = vpop.f32.mrf.mxu0
    %v4220 = vadd.f32 0.0, %v4219
    %4221 = vdwg.mxu0
    %v4222 = vadd.f32 %v4074, %v4160
    %v4223 = vadd.f32 %v4075, %v4180
    %v4224 = vadd.f32 %v4076, %v4200
    %v4225 = vadd.f32 %v4077, %v4220
    %v4226 = vmul.f32 %v4222, 0.5
    %v4227 = vtanh.pop %v4226
    %v4228 = vmul.f32 %v4227, 0.5
    %v4229 = vadd.f32 %v4228, 0.5
    %v4230 = vmul.f32 %v4223, 0.5
    %v4231 = vtanh.pop %v4230
    %v4232 = vmul.f32 %v4231, 0.5
    %v4233 = vadd.f32 %v4232, 0.5
    %v4234 = vtanh.pop %v4224
    %v4235 = vmul.f32 %v4225, 0.5
    %v4236 = vtanh.pop %v4235
    %v4237 = vmul.f32 %v4236, 0.5
    %v4238 = vadd.f32 %v4237, 0.5
    %v4239 = vmul.f32 %v4233, %v4070
    %v4240 = vmul.f32 %v4229, %v4234
    %v4241 = vadd.f32 %v4239, %v4240
    %v4242 = vtanh.pop %v4241
    %v4243 = vmul.f32 %v4238, %v4242
    %4244 = vst [vmem:[%s931] sm:$0xff] %v4243
    %v4245 = vld [vmem:[%s935] sm:$0xff]
    %v4246 = vld [vmem:[%s935 + $0x8] sm:$0xff]
    %v4247 = vld [vmem:[%s935 + $0x10] sm:$0xff]
    %v4248 = vld [vmem:[%s935 + $0x18] sm:$0xff]
    %v4249 = vld [vmem:[#allocation12] sm:$0xff]
    %v4250 = vld [vmem:[#allocation12 + $0x8] sm:$0xff]
    %v4251 = vld [vmem:[#allocation12 + $0x10] sm:$0xff]
    %v4252 = vld [vmem:[#allocation12 + $0x18] sm:$0xff]
    %v4253 = vld [vmem:[#allocation12 + $0x20] sm:$0xff]
    %v4254 = vld [vmem:[#allocation12 + $0x28] sm:$0xff]
    %v4255 = vld [vmem:[#allocation12 + $0x30] sm:$0xff]
    %v4256 = vld [vmem:[#allocation12 + $0x38] sm:$0xff]
    %v4257 = vld [vmem:[#allocation12 + $0x40] sm:$0xff]
    %v4258 = vld [vmem:[#allocation12 + $0x48] sm:$0xff]
    %v4259 = vld [vmem:[#allocation12 + $0x50] sm:$0xff]
    %v4260 = vld [vmem:[#allocation12 + $0x58] sm:$0xff]
    %v4261 = vld [vmem:[#allocation12 + $0x60] sm:$0xff]
    %v4262 = vld [vmem:[#allocation12 + $0x68] sm:$0xff]
    %v4263 = vld [vmem:[#allocation12 + $0x70] sm:$0xff]
    %v4264 = vld [vmem:[#allocation12 + $0x78] sm:$0xff]
    %v4265 = vld [vmem:[#allocation12 + $0x80] sm:$0xff]
    %v4266 = vld [vmem:[#allocation12 + $0x88] sm:$0xff]
    %v4267 = vld [vmem:[#allocation12 + $0x90] sm:$0xff]
    %v4268 = vld [vmem:[#allocation12 + $0x98] sm:$0xff]
    %v4269 = vld [vmem:[#allocation12 + $0xa0] sm:$0xff]
    %v4270 = vld [vmem:[#allocation12 + $0xa8] sm:$0xff]
    %v4271 = vld [vmem:[#allocation12 + $0xb0] sm:$0xff]
    %v4272 = vld [vmem:[#allocation12 + $0xb8] sm:$0xff]
    %v4273 = vld [vmem:[#allocation12 + $0xc0] sm:$0xff]
    %v4274 = vld [vmem:[#allocation12 + $0xc8] sm:$0xff]
    %v4275 = vld [vmem:[#allocation12 + $0xd0] sm:$0xff]
    %v4276 = vld [vmem:[#allocation12 + $0xd8] sm:$0xff]
    %v4277 = vld [vmem:[#allocation12 + $0xe0] sm:$0xff]
    %v4278 = vld [vmem:[#allocation12 + $0xe8] sm:$0xff]
    %v4279 = vld [vmem:[#allocation12 + $0xf0] sm:$0xff]
    %v4280 = vld [vmem:[#allocation12 + $0xf8] sm:$0xff]
    %v4281 = vld [vmem:[#allocation12 + $0x100] sm:$0xff]
    %v4282 = vld [vmem:[#allocation12 + $0x108] sm:$0xff]
    %v4283 = vld [vmem:[#allocation12 + $0x110] sm:$0xff]
    %v4284 = vld [vmem:[#allocation12 + $0x118] sm:$0xff]
    %v4285 = vld [vmem:[#allocation12 + $0x120] sm:$0xff]
    %v4286 = vld [vmem:[#allocation12 + $0x128] sm:$0xff]
    %v4287 = vld [vmem:[#allocation12 + $0x130] sm:$0xff]
    %v4288 = vld [vmem:[#allocation12 + $0x138] sm:$0xff]
    %v4289 = vld [vmem:[#allocation12 + $0x140] sm:$0xff]
    %v4290 = vld [vmem:[#allocation12 + $0x148] sm:$0xff]
    %v4291 = vld [vmem:[#allocation12 + $0x150] sm:$0xff]
    %v4292 = vld [vmem:[#allocation12 + $0x158] sm:$0xff]
    %v4293 = vld [vmem:[#allocation12 + $0x160] sm:$0xff]
    %v4294 = vld [vmem:[#allocation12 + $0x168] sm:$0xff]
    %v4295 = vld [vmem:[#allocation12 + $0x170] sm:$0xff]
    %v4296 = vld [vmem:[#allocation12 + $0x178] sm:$0xff]
    %v4297 = vld [vmem:[#allocation12 + $0x180] sm:$0xff]
    %v4298 = vld [vmem:[#allocation12 + $0x188] sm:$0xff]
    %v4299 = vld [vmem:[#allocation12 + $0x190] sm:$0xff]
    %v4300 = vld [vmem:[#allocation12 + $0x198] sm:$0xff]
    %v4301 = vld [vmem:[#allocation12 + $0x1a0] sm:$0xff]
    %v4302 = vld [vmem:[#allocation12 + $0x1a8] sm:$0xff]
    %v4303 = vld [vmem:[#allocation12 + $0x1b0] sm:$0xff]
    %v4304 = vld [vmem:[#allocation12 + $0x1b8] sm:$0xff]
    %v4305 = vld [vmem:[#allocation12 + $0x1c0] sm:$0xff]
    %v4306 = vld [vmem:[#allocation12 + $0x1c8] sm:$0xff]
    %v4307 = vld [vmem:[#allocation12 + $0x1d0] sm:$0xff]
    %v4308 = vld [vmem:[#allocation12 + $0x1d8] sm:$0xff]
    %v4309 = vld [vmem:[#allocation12 + $0x1e0] sm:$0xff]
    %v4310 = vld [vmem:[#allocation12 + $0x1e8] sm:$0xff]
    %v4311 = vld [vmem:[#allocation12 + $0x1f0] sm:$0xff]
    %v4312 = vld [vmem:[#allocation12 + $0x1f8] sm:$0xff]
    %4313 = vmatpush.msra.mxu0 %v4309
    %4314 = vmatpush.msra.mxu0 %v4305
    %4315 = vmatpush.msra.mxu0 %v4301
    %4316 = vmatpush.msra.mxu0 %v4297
    %4317 = vmatpush.msra.mxu0 %v4293
    %4318 = vmatpush.msra.mxu0 %v4289
    %4319 = vmatpush.msra.mxu0 %v4285
    %4320 = vmatpush.msra.mxu0 %v4281
    %4321 = vmatpush.msra.mxu0 %v4277
    %4322 = vmatpush.msra.mxu0 %v4273
    %4323 = vmatpush.msra.mxu0 %v4269
    %4324 = vmatpush.msra.mxu0 %v4265
    %4325 = vmatpush.msra.mxu0 %v4261
    %4326 = vmatpush.msra.mxu0 %v4257
    %4327 = vmatpush.msra.mxu0 %v4253
    %4328 = vmatpush.msra.mxu0 %v4249
    %4329 = vmatmul.f32.gmra.mxu0 %v4243
    %v4330 = vpop.f32.mrf.mxu0
    %v4331 = vadd.f32 0.0, %v4330
    %4332 = vdwg.mxu0
    %4333 = vmatpush.msra.mxu0 %v4310
    %4334 = vmatpush.msra.mxu0 %v4306
    %4335 = vmatpush.msra.mxu0 %v4302
    %4336 = vmatpush.msra.mxu0 %v4298
    %4337 = vmatpush.msra.mxu0 %v4294
    %4338 = vmatpush.msra.mxu0 %v4290
    %4339 = vmatpush.msra.mxu0 %v4286
    %4340 = vmatpush.msra.mxu0 %v4282
    %4341 = vmatpush.msra.mxu0 %v4278
    %4342 = vmatpush.msra.mxu0 %v4274
    %4343 = vmatpush.msra.mxu0 %v4270
    %4344 = vmatpush.msra.mxu0 %v4266
    %4345 = vmatpush.msra.mxu0 %v4262
    %4346 = vmatpush.msra.mxu0 %v4258
    %4347 = vmatpush.msra.mxu0 %v4254
    %4348 = vmatpush.msra.mxu0 %v4250
    %4349 = vmatmul.f32.gmra.mxu0 %v4243
    %v4350 = vpop.f32.mrf.mxu0
    %v4351 = vadd.f32 0.0, %v4350
    %4352 = vdwg.mxu0
    %4353 = vmatpush.msra.mxu0 %v4311
    %4354 = vmatpush.msra.mxu0 %v4307
    %4355 = vmatpush.msra.mxu0 %v4303
    %4356 = vmatpush.msra.mxu0 %v4299
    %4357 = vmatpush.msra.mxu0 %v4295
    %4358 = vmatpush.msra.mxu0 %v4291
    %4359 = vmatpush.msra.mxu0 %v4287
    %4360 = vmatpush.msra.mxu0 %v4283
    %4361 = vmatpush.msra.mxu0 %v4279
    %4362 = vmatpush.msra.mxu0 %v4275
    %4363 = vmatpush.msra.mxu0 %v4271
    %4364 = vmatpush.msra.mxu0 %v4267
    %4365 = vmatpush.msra.mxu0 %v4263
    %4366 = vmatpush.msra.mxu0 %v4259
    %4367 = vmatpush.msra.mxu0 %v4255
    %4368 = vmatpush.msra.mxu0 %v4251
    %4369 = vmatmul.f32.gmra.mxu0 %v4243
    %v4370 = vpop.f32.mrf.mxu0
    %v4371 = vadd.f32 0.0, %v4370
    %4372 = vdwg.mxu0
    %4373 = vmatpush.msra.mxu0 %v4312
    %4374 = vmatpush.msra.mxu0 %v4308
    %4375 = vmatpush.msra.mxu0 %v4304
    %4376 = vmatpush.msra.mxu0 %v4300
    %4377 = vmatpush.msra.mxu0 %v4296
    %4378 = vmatpush.msra.mxu0 %v4292
    %4379 = vmatpush.msra.mxu0 %v4288
    %4380 = vmatpush.msra.mxu0 %v4284
    %4381 = vmatpush.msra.mxu0 %v4280
    %4382 = vmatpush.msra.mxu0 %v4276
    %4383 = vmatpush.msra.mxu0 %v4272
    %4384 = vmatpush.msra.mxu0 %v4268
    %4385 = vmatpush.msra.mxu0 %v4264
    %4386 = vmatpush.msra.mxu0 %v4260
    %4387 = vmatpush.msra.mxu0 %v4256
    %4388 = vmatpush.msra.mxu0 %v4252
    %4389 = vmatmul.f32.gmra.mxu0 %v4243
    %v4390 = vpop.f32.mrf.mxu0
    %v4391 = vadd.f32 0.0, %v4390
    %4392 = vdwg.mxu0
    %v4393 = vadd.f32 %v4245, %v4331
    %v4394 = vadd.f32 %v4246, %v4351
    %v4395 = vadd.f32 %v4247, %v4371
    %v4396 = vadd.f32 %v4248, %v4391
    %v4397 = vmul.f32 %v4393, 0.5
    %v4398 = vtanh.pop %v4397
    %v4399 = vmul.f32 %v4398, 0.5
    %v4400 = vadd.f32 %v4399, 0.5
    %v4401 = vmul.f32 %v4394, 0.5
    %v4402 = vtanh.pop %v4401
    %v4403 = vmul.f32 %v4402, 0.5
    %v4404 = vadd.f32 %v4403, 0.5
    %v4405 = vtanh.pop %v4395
    %v4406 = vmul.f32 %v4396, 0.5
    %v4407 = vtanh.pop %v4406
    %v4408 = vmul.f32 %v4407, 0.5
    %v4409 = vadd.f32 %v4408, 0.5
    %v4410 = vmul.f32 %v4404, %v4241
    %v4411 = vmul.f32 %v4400, %v4405
    %v4412 = vadd.f32 %v4410, %v4411
    %v4413 = vtanh.pop %v4412
    %v4414 = vmul.f32 %v4409, %v4413
    %4415 = vst [vmem:[%s1106] sm:$0xff] %v4414
    %v4416 = vld [vmem:[%s1110] sm:$0xff]
    %v4417 = vld [vmem:[%s1110 + $0x8] sm:$0xff]
    %v4418 = vld [vmem:[%s1110 + $0x10] sm:$0xff]
    %v4419 = vld [vmem:[%s1110 + $0x18] sm:$0xff]
    %v4420 = vld [vmem:[#allocation12] sm:$0xff]
    %v4421 = vld [vmem:[#allocation12 + $0x8] sm:$0xff]
    %v4422 = vld [vmem:[#allocation12 + $0x10] sm:$0xff]
    %v4423 = vld [vmem:[#allocation12 + $0x18] sm:$0xff]
    %v4424 = vld [vmem:[#allocation12 + $0x20] sm:$0xff]
    %v4425 = vld [vmem:[#allocation12 + $0x28] sm:$0xff]
    %v4426 = vld [vmem:[#allocation12 + $0x30] sm:$0xff]
    %v4427 = vld [vmem:[#allocation12 + $0x38] sm:$0xff]
    %v4428 = vld [vmem:[#allocation12 + $0x40] sm:$0xff]
    %v4429 = vld [vmem:[#allocation12 + $0x48] sm:$0xff]
    %v4430 = vld [vmem:[#allocation12 + $0x50] sm:$0xff]
    %v4431 = vld [vmem:[#allocation12 + $0x58] sm:$0xff]
    %v4432 = vld [vmem:[#allocation12 + $0x60] sm:$0xff]
    %v4433 = vld [vmem:[#allocation12 + $0x68] sm:$0xff]
    %v4434 = vld [vmem:[#allocation12 + $0x70] sm:$0xff]
    %v4435 = vld [vmem:[#allocation12 + $0x78] sm:$0xff]
    %v4436 = vld [vmem:[#allocation12 + $0x80] sm:$0xff]
    %v4437 = vld [vmem:[#allocation12 + $0x88] sm:$0xff]
    %v4438 = vld [vmem:[#allocation12 + $0x90] sm:$0xff]
    %v4439 = vld [vmem:[#allocation12 + $0x98] sm:$0xff]
    %v4440 = vld [vmem:[#allocation12 + $0xa0] sm:$0xff]
    %v4441 = vld [vmem:[#allocation12 + $0xa8] sm:$0xff]
    %v4442 = vld [vmem:[#allocation12 + $0xb0] sm:$0xff]
    %v4443 = vld [vmem:[#allocation12 + $0xb8] sm:$0xff]
    %v4444 = vld [vmem:[#allocation12 + $0xc0] sm:$0xff]
    %v4445 = vld [vmem:[#allocation12 + $0xc8] sm:$0xff]
    %v4446 = vld [vmem:[#allocation12 + $0xd0] sm:$0xff]
    %v4447 = vld [vmem:[#allocation12 + $0xd8] sm:$0xff]
    %v4448 = vld [vmem:[#allocation12 + $0xe0] sm:$0xff]
    %v4449 = vld [vmem:[#allocation12 + $0xe8] sm:$0xff]
    %v4450 = vld [vmem:[#allocation12 + $0xf0] sm:$0xff]
    %v4451 = vld [vmem:[#allocation12 + $0xf8] sm:$0xff]
    %v4452 = vld [vmem:[#allocation12 + $0x100] sm:$0xff]
    %v4453 = vld [vmem:[#allocation12 + $0x108] sm:$0xff]
    %v4454 = vld [vmem:[#allocation12 + $0x110] sm:$0xff]
    %v4455 = vld [vmem:[#allocation12 + $0x118] sm:$0xff]
    %v4456 = vld [vmem:[#allocation12 + $0x120] sm:$0xff]
    %v4457 = vld [vmem:[#allocation12 + $0x128] sm:$0xff]
    %v4458 = vld [vmem:[#allocation12 + $0x130] sm:$0xff]
    %v4459 = vld [vmem:[#allocation12 + $0x138] sm:$0xff]
    %v4460 = vld [vmem:[#allocation12 + $0x140] sm:$0xff]
    %v4461 = vld [vmem:[#allocation12 + $0x148] sm:$0xff]
    %v4462 = vld [vmem:[#allocation12 + $0x150] sm:$0xff]
    %v4463 = vld [vmem:[#allocation12 + $0x158] sm:$0xff]
    %v4464 = vld [vmem:[#allocation12 + $0x160] sm:$0xff]
    %v4465 = vld [vmem:[#allocation12 + $0x168] sm:$0xff]
    %v4466 = vld [vmem:[#allocation12 + $0x170] sm:$0xff]
    %v4467 = vld [vmem:[#allocation12 + $0x178] sm:$0xff]
    %v4468 = vld [vmem:[#allocation12 + $0x180] sm:$0xff]
    %v4469 = vld [vmem:[#allocation12 + $0x188] sm:$0xff]
    %v4470 = vld [vmem:[#allocation12 + $0x190] sm:$0xff]
    %v4471 = vld [vmem:[#allocation12 + $0x198] sm:$0xff]
    %v4472 = vld [vmem:[#allocation12 + $0x1a0] sm:$0xff]
    %v4473 = vld [vmem:[#allocation12 + $0x1a8] sm:$0xff]
    %v4474 = vld [vmem:[#allocation12 + $0x1b0] sm:$0xff]
    %v4475 = vld [vmem:[#allocation12 + $0x1b8] sm:$0xff]
    %v4476 = vld [vmem:[#allocation12 + $0x1c0] sm:$0xff]
    %v4477 = vld [vmem:[#allocation12 + $0x1c8] sm:$0xff]
    %v4478 = vld [vmem:[#allocation12 + $0x1d0] sm:$0xff]
    %v4479 = vld [vmem:[#allocation12 + $0x1d8] sm:$0xff]
    %v4480 = vld [vmem:[#allocation12 + $0x1e0] sm:$0xff]
    %v4481 = vld [vmem:[#allocation12 + $0x1e8] sm:$0xff]
    %v4482 = vld [vmem:[#allocation12 + $0x1f0] sm:$0xff]
    %v4483 = vld [vmem:[#allocation12 + $0x1f8] sm:$0xff]
    %4484 = vmatpush.msra.mxu0 %v4480
    %4485 = vmatpush.msra.mxu0 %v4476
    %4486 = vmatpush.msra.mxu0 %v4472
    %4487 = vmatpush.msra.mxu0 %v4468
    %4488 = vmatpush.msra.mxu0 %v4464
    %4489 = vmatpush.msra.mxu0 %v4460
    %4490 = vmatpush.msra.mxu0 %v4456
    %4491 = vmatpush.msra.mxu0 %v4452
    %4492 = vmatpush.msra.mxu0 %v4448
    %4493 = vmatpush.msra.mxu0 %v4444
    %4494 = vmatpush.msra.mxu0 %v4440
    %4495 = vmatpush.msra.mxu0 %v4436
    %4496 = vmatpush.msra.mxu0 %v4432
    %4497 = vmatpush.msra.mxu0 %v4428
    %4498 = vmatpush.msra.mxu0 %v4424
    %4499 = vmatpush.msra.mxu0 %v4420
    %4500 = vmatmul.f32.gmra.mxu0 %v4414
    %v4501 = vpop.f32.mrf.mxu0
    %v4502 = vadd.f32 0.0, %v4501
    %4503 = vdwg.mxu0
    %4504 = vmatpush.msra.mxu0 %v4481
    %4505 = vmatpush.msra.mxu0 %v4477
    %4506 = vmatpush.msra.mxu0 %v4473
    %4507 = vmatpush.msra.mxu0 %v4469
    %4508 = vmatpush.msra.mxu0 %v4465
    %4509 = vmatpush.msra.mxu0 %v4461
    %4510 = vmatpush.msra.mxu0 %v4457
    %4511 = vmatpush.msra.mxu0 %v4453
    %4512 = vmatpush.msra.mxu0 %v4449
    %4513 = vmatpush.msra.mxu0 %v4445
    %4514 = vmatpush.msra.mxu0 %v4441
    %4515 = vmatpush.msra.mxu0 %v4437
    %4516 = vmatpush.msra.mxu0 %v4433
    %4517 = vmatpush.msra.mxu0 %v4429
    %4518 = vmatpush.msra.mxu0 %v4425
    %4519 = vmatpush.msra.mxu0 %v4421
    %4520 = vmatmul.f32.gmra.mxu0 %v4414
    %v4521 = vpop.f32.mrf.mxu0
    %v4522 = vadd.f32 0.0, %v4521
    %4523 = vdwg.mxu0
    %4524 = vmatpush.msra.mxu0 %v4482
    %4525 = vmatpush.msra.mxu0 %v4478
    %4526 = vmatpush.msra.mxu0 %v4474
    %4527 = vmatpush.msra.mxu0 %v4470
    %4528 = vmatpush.msra.mxu0 %v4466
    %4529 = vmatpush.msra.mxu0 %v4462
    %4530 = vmatpush.msra.mxu0 %v4458
    %4531 = vmatpush.msra.mxu0 %v4454
    %4532 = vmatpush.msra.mxu0 %v4450
    %4533 = vmatpush.msra.mxu0 %v4446
    %4534 = vmatpush.msra.mxu0 %v4442
    %4535 = vmatpush.msra.mxu0 %v4438
    %4536 = vmatpush.msra.mxu0 %v4434
    %4537 = vmatpush.msra.mxu0 %v4430
    %4538 = vmatpush.msra.mxu0 %v4426
    %4539 = vmatpush.msra.mxu0 %v4422
    %4540 = vmatmul.f32.gmra.mxu0 %v4414
    %v4541 = vpop.f32.mrf.mxu0
    %v4542 = vadd.f32 0.0, %v4541
    %4543 = vdwg.mxu0
    %4544 = vmatpush.msra.mxu0 %v4483
    %4545 = vmatpush.msra.mxu0 %v4479
    %4546 = vmatpush.msra.mxu0 %v4475
    %4547 = vmatpush.msra.mxu0 %v4471
    %4548 = vmatpush.msra.mxu0 %v4467
    %4549 = vmatpush.msra.mxu0 %v4463
    %4550 = vmatpush.msra.mxu0 %v4459
    %4551 = vmatpush.msra.mxu0 %v4455
    %4552 = vmatpush.msra.mxu0 %v4451
    %4553 = vmatpush.msra.mxu0 %v4447
    %4554 = vmatpush.msra.mxu0 %v4443
    %4555 = vmatpush.msra.mxu0 %v4439
    %4556 = vmatpush.msra.mxu0 %v4435
    %4557 = vmatpush.msra.mxu0 %v4431
    %4558 = vmatpush.msra.mxu0 %v4427
    %4559 = vmatpush.msra.mxu0 %v4423
    %4560 = vmatmul.f32.gmra.mxu0 %v4414
    %v4561 = vpop.f32.mrf.mxu0
    %v4562 = vadd.f32 0.0, %v4561
    %4563 = vdwg.mxu0
    %v4564 = vadd.f32 %v4416, %v4502
    %v4565 = vadd.f32 %v4417, %v4522
    %v4566 = vadd.f32 %v4418, %v4542
    %v4567 = vadd.f32 %v4419, %v4562
    %v4568 = vmul.f32 %v4564, 0.5
    %v4569 = vtanh.pop %v4568
    %v4570 = vmul.f32 %v4569, 0.5
    %v4571 = vadd.f32 %v4570, 0.5
    %v4572 = vmul.f32 %v4565, 0.5
    %v4573 = vtanh.pop %v4572
    %v4574 = vmul.f32 %v4573, 0.5
    %v4575 = vadd.f32 %v4574, 0.5
    %v4576 = vtanh.pop %v4566
    %v4577 = vmul.f32 %v4567, 0.5
    %v4578 = vtanh.pop %v4577
    %v4579 = vmul.f32 %v4578, 0.5
    %v4580 = vadd.f32 %v4579, 0.5
    %v4581 = vmul.f32 %v4575, %v4412
    %v4582 = vmul.f32 %v4571, %v4576
    %v4583 = vadd.f32 %v4581, %v4582
    %v4584 = vtanh.pop %v4583
    %v4585 = vmul.f32 %v4580, %v4584
    %4586 = vst [vmem:[%s1281] sm:$0xff] %v4585
    %v4587 = vld [vmem:[%s1285] sm:$0xff]
    %v4588 = vld [vmem:[%s1285 + $0x8] sm:$0xff]
    %v4589 = vld [vmem:[%s1285 + $0x10] sm:$0xff]
    %v4590 = vld [vmem:[%s1285 + $0x18] sm:$0xff]
    %v4591 = vld [vmem:[#allocation12] sm:$0xff]
    %v4592 = vld [vmem:[#allocation12 + $0x8] sm:$0xff]
    %v4593 = vld [vmem:[#allocation12 + $0x10] sm:$0xff]
    %v4594 = vld [vmem:[#allocation12 + $0x18] sm:$0xff]
    %v4595 = vld [vmem:[#allocation12 + $0x20] sm:$0xff]
    %v4596 = vld [vmem:[#allocation12 + $0x28] sm:$0xff]
    %v4597 = vld [vmem:[#allocation12 + $0x30] sm:$0xff]
    %v4598 = vld [vmem:[#allocation12 + $0x38] sm:$0xff]
    %v4599 = vld [vmem:[#allocation12 + $0x40] sm:$0xff]
    %v4600 = vld [vmem:[#allocation12 + $0x48] sm:$0xff]
    %v4601 = vld [vmem:[#allocation12 + $0x50] sm:$0xff]
    %v4602 = vld [vmem:[#allocation12 + $0x58] sm:$0xff]
    %v4603 = vld [vmem:[#allocation12 + $0x60] sm:$0xff]
    %v4604 = vld [vmem:[#allocation12 + $0x68] sm:$0xff]
    %v4605 = vld [vmem:[#allocation12 + $0x70] sm:$0xff]
    %v4606 = vld [vmem:[#allocation12 + $0x78] sm:$0xff]
    %v4607 = vld [vmem:[#allocation12 + $0x80] sm:$0xff]
    %v4608 = vld [vmem:[#allocation12 + $0x88] sm:$0xff]
    %v4609 = vld [vmem:[#allocation12 + $0x90] sm:$0xff]
    %v4610 = vld [vmem:[#allocation12 + $0x98] sm:$0xff]
    %v4611 = vld [vmem:[#allocation12 + $0xa0] sm:$0xff]
    %v4612 = vld [vmem:[#allocation12 + $0xa8] sm:$0xff]
    %v4613 = vld [vmem:[#allocation12 + $0xb0] sm:$0xff]
    %v4614 = vld [vmem:[#allocation12 + $0xb8] sm:$0xff]
    %v4615 = vld [vmem:[#allocation12 + $0xc0] sm:$0xff]
    %v4616 = vld [vmem:[#allocation12 + $0xc8] sm:$0xff]
    %v4617 = vld [vmem:[#allocation12 + $0xd0] sm:$0xff]
    %v4618 = vld [vmem:[#allocation12 + $0xd8] sm:$0xff]
    %v4619 = vld [vmem:[#allocation12 + $0xe0] sm:$0xff]
    %v4620 = vld [vmem:[#allocation12 + $0xe8] sm:$0xff]
    %v4621 = vld [vmem:[#allocation12 + $0xf0] sm:$0xff]
    %v4622 = vld [vmem:[#allocation12 + $0xf8] sm:$0xff]
    %v4623 = vld [vmem:[#allocation12 + $0x100] sm:$0xff]
    %v4624 = vld [vmem:[#allocation12 + $0x108] sm:$0xff]
    %v4625 = vld [vmem:[#allocation12 + $0x110] sm:$0xff]
    %v4626 = vld [vmem:[#allocation12 + $0x118] sm:$0xff]
    %v4627 = vld [vmem:[#allocation12 + $0x120] sm:$0xff]
    %v4628 = vld [vmem:[#allocation12 + $0x128] sm:$0xff]
    %v4629 = vld [vmem:[#allocation12 + $0x130] sm:$0xff]
    %v4630 = vld [vmem:[#allocation12 + $0x138] sm:$0xff]
    %v4631 = vld [vmem:[#allocation12 + $0x140] sm:$0xff]
    %v4632 = vld [vmem:[#allocation12 + $0x148] sm:$0xff]
    %v4633 = vld [vmem:[#allocation12 + $0x150] sm:$0xff]
    %v4634 = vld [vmem:[#allocation12 + $0x158] sm:$0xff]
    %v4635 = vld [vmem:[#allocation12 + $0x160] sm:$0xff]
    %v4636 = vld [vmem:[#allocation12 + $0x168] sm:$0xff]
    %v4637 = vld [vmem:[#allocation12 + $0x170] sm:$0xff]
    %v4638 = vld [vmem:[#allocation12 + $0x178] sm:$0xff]
    %v4639 = vld [vmem:[#allocation12 + $0x180] sm:$0xff]
    %v4640 = vld [vmem:[#allocation12 + $0x188] sm:$0xff]
    %v4641 = vld [vmem:[#allocation12 + $0x190] sm:$0xff]
    %v4642 = vld [vmem:[#allocation12 + $0x198] sm:$0xff]
    %v4643 = vld [vmem:[#allocation12 + $0x1a0] sm:$0xff]
    %v4644 = vld [vmem:[#allocation12 + $0x1a8] sm:$0xff]
    %v4645 = vld [vmem:[#allocation12 + $0x1b0] sm:$0xff]
    %v4646 = vld [vmem:[#allocation12 + $0x1b8] sm:$0xff]
    %v4647 = vld [vmem:[#allocation12 + $0x1c0] sm:$0xff]
    %v4648 = vld [vmem:[#allocation12 + $0x1c8] sm:$0xff]
    %v4649 = vld [vmem:[#allocation12 + $0x1d0] sm:$0xff]
    %v4650 = vld [vmem:[#allocation12 + $0x1d8] sm:$0xff]
    %v4651 = vld [vmem:[#allocation12 + $0x1e0] sm:$0xff]
    %v4652 = vld [vmem:[#allocation12 + $0x1e8] sm:$0xff]
    %v4653 = vld [vmem:[#allocation12 + $0x1f0] sm:$0xff]
    %v4654 = vld [vmem:[#allocation12 + $0x1f8] sm:$0xff]
    %4655 = vmatpush.msra.mxu0 %v4651
    %4656 = vmatpush.msra.mxu0 %v4647
    %4657 = vmatpush.msra.mxu0 %v4643
    %4658 = vmatpush.msra.mxu0 %v4639
    %4659 = vmatpush.msra.mxu0 %v4635
    %4660 = vmatpush.msra.mxu0 %v4631
    %4661 = vmatpush.msra.mxu0 %v4627
    %4662 = vmatpush.msra.mxu0 %v4623
    %4663 = vmatpush.msra.mxu0 %v4619
    %4664 = vmatpush.msra.mxu0 %v4615
    %4665 = vmatpush.msra.mxu0 %v4611
    %4666 = vmatpush.msra.mxu0 %v4607
    %4667 = vmatpush.msra.mxu0 %v4603
    %4668 = vmatpush.msra.mxu0 %v4599
    %4669 = vmatpush.msra.mxu0 %v4595
    %4670 = vmatpush.msra.mxu0 %v4591
    %4671 = vmatmul.f32.gmra.mxu0 %v4585
    %v4672 = vpop.f32.mrf.mxu0
    %v4673 = vadd.f32 0.0, %v4672
    %4674 = vdwg.mxu0
    %4675 = vmatpush.msra.mxu0 %v4652
    %4676 = vmatpush.msra.mxu0 %v4648
    %4677 = vmatpush.msra.mxu0 %v4644
    %4678 = vmatpush.msra.mxu0 %v4640
    %4679 = vmatpush.msra.mxu0 %v4636
    %4680 = vmatpush.msra.mxu0 %v4632
    %4681 = vmatpush.msra.mxu0 %v4628
    %4682 = vmatpush.msra.mxu0 %v4624
    %4683 = vmatpush.msra.mxu0 %v4620
    %4684 = vmatpush.msra.mxu0 %v4616
    %4685 = vmatpush.msra.mxu0 %v4612
    %4686 = vmatpush.msra.mxu0 %v4608
    %4687 = vmatpush.msra.mxu0 %v4604
    %4688 = vmatpush.msra.mxu0 %v4600
    %4689 = vmatpush.msra.mxu0 %v4596
    %4690 = vmatpush.msra.mxu0 %v4592
    %4691 = vmatmul.f32.gmra.mxu0 %v4585
    %v4692 = vpop.f32.mrf.mxu0
    %v4693 = vadd.f32 0.0, %v4692
    %4694 = vdwg.mxu0
    %4695 = vmatpush.msra.mxu0 %v4653
    %4696 = vmatpush.msra.mxu0 %v4649
    %4697 = vmatpush.msra.mxu0 %v4645
    %4698 = vmatpush.msra.mxu0 %v4641
    %4699 = vmatpush.msra.mxu0 %v4637
    %4700 = vmatpush.msra.mxu0 %v4633
    %4701 = vmatpush.msra.mxu0 %v4629
    %4702 = vmatpush.msra.mxu0 %v4625
    %4703 = vmatpush.msra.mxu0 %v4621
    %4704 = vmatpush.msra.mxu0 %v4617
    %4705 = vmatpush.msra.mxu0 %v4613
    %4706 = vmatpush.msra.mxu0 %v4609
    %4707 = vmatpush.msra.mxu0 %v4605
    %4708 = vmatpush.msra.mxu0 %v4601
    %4709 = vmatpush.msra.mxu0 %v4597
    %4710 = vmatpush.msra.mxu0 %v4593
    %4711 = vmatmul.f32.gmra.mxu0 %v4585
    %v4712 = vpop.f32.mrf.mxu0
    %v4713 = vadd.f32 0.0, %v4712
    %4714 = vdwg.mxu0
    %4715 = vmatpush.msra.mxu0 %v4654
    %4716 = vmatpush.msra.mxu0 %v4650
    %4717 = vmatpush.msra.mxu0 %v4646
    %4718 = vmatpush.msra.mxu0 %v4642
    %4719 = vmatpush.msra.mxu0 %v4638
    %4720 = vmatpush.msra.mxu0 %v4634
    %4721 = vmatpush.msra.mxu0 %v4630
    %4722 = vmatpush.msra.mxu0 %v4626
    %4723 = vmatpush.msra.mxu0 %v4622
    %4724 = vmatpush.msra.mxu0 %v4618
    %4725 = vmatpush.msra.mxu0 %v4614
    %4726 = vmatpush.msra.mxu0 %v4610
    %4727 = vmatpush.msra.mxu0 %v4606
    %4728 = vmatpush.msra.mxu0 %v4602
    %4729 = vmatpush.msra.mxu0 %v4598
    %4730 = vmatpush.msra.mxu0 %v4594
    %4731 = vmatmul.f32.gmra.mxu0 %v4585
    %v4732 = vpop.f32.mrf.mxu0
    %v4733 = vadd.f32 0.0, %v4732
    %4734 = vdwg.mxu0
    %v4735 = vadd.f32 %v4587, %v4673
    %v4736 = vadd.f32 %v4588, %v4693
    %v4737 = vadd.f32 %v4589, %v4713
    %v4738 = vadd.f32 %v4590, %v4733
    %v4739 = vmul.f32 %v4735, 0.5
    %v4740 = vtanh.pop %v4739
    %v4741 = vmul.f32 %v4740, 0.5
    %v4742 = vadd.f32 %v4741, 0.5
    %v4743 = vmul.f32 %v4736, 0.5
    %v4744 = vtanh.pop %v4743
    %v4745 = vmul.f32 %v4744, 0.5
    %v4746 = vadd.f32 %v4745, 0.5
    %v4747 = vtanh.pop %v4737
    %v4748 = vmul.f32 %v4738, 0.5
    %v4749 = vtanh.pop %v4748
    %v4750 = vmul.f32 %v4749, 0.5
    %v4751 = vadd.f32 %v4750, 0.5
    %v4752 = vmul.f32 %v4746, %v4583
    %v4753 = vmul.f32 %v4742, %v4747
    %v4754 = vadd.f32 %v4752, %v4753
    %v4755 = vtanh.pop %v4754
    %v4756 = vmul.f32 %v4751, %v4755
    %4757 = vst [vmem:[%s1456] sm:$0xff] %v4756
    %v4758 = vld [vmem:[%s1460] sm:$0xff]
    %v4759 = vld [vmem:[%s1460 + $0x8] sm:$0xff]
    %v4760 = vld [vmem:[%s1460 + $0x10] sm:$0xff]
    %v4761 = vld [vmem:[%s1460 + $0x18] sm:$0xff]
    %v4762 = vld [vmem:[#allocation12] sm:$0xff]
    %v4763 = vld [vmem:[#allocation12 + $0x8] sm:$0xff]
    %v4764 = vld [vmem:[#allocation12 + $0x10] sm:$0xff]
    %v4765 = vld [vmem:[#allocation12 + $0x18] sm:$0xff]
    %v4766 = vld [vmem:[#allocation12 + $0x20] sm:$0xff]
    %v4767 = vld [vmem:[#allocation12 + $0x28] sm:$0xff]
    %v4768 = vld [vmem:[#allocation12 + $0x30] sm:$0xff]
    %v4769 = vld [vmem:[#allocation12 + $0x38] sm:$0xff]
    %v4770 = vld [vmem:[#allocation12 + $0x40] sm:$0xff]
    %v4771 = vld [vmem:[#allocation12 + $0x48] sm:$0xff]
    %v4772 = vld [vmem:[#allocation12 + $0x50] sm:$0xff]
    %v4773 = vld [vmem:[#allocation12 + $0x58] sm:$0xff]
    %v4774 = vld [vmem:[#allocation12 + $0x60] sm:$0xff]
    %v4775 = vld [vmem:[#allocation12 + $0x68] sm:$0xff]
    %v4776 = vld [vmem:[#allocation12 + $0x70] sm:$0xff]
    %v4777 = vld [vmem:[#allocation12 + $0x78] sm:$0xff]
    %v4778 = vld [vmem:[#allocation12 + $0x80] sm:$0xff]
    %v4779 = vld [vmem:[#allocation12 + $0x88] sm:$0xff]
    %v4780 = vld [vmem:[#allocation12 + $0x90] sm:$0xff]
    %v4781 = vld [vmem:[#allocation12 + $0x98] sm:$0xff]
    %v4782 = vld [vmem:[#allocation12 + $0xa0] sm:$0xff]
    %v4783 = vld [vmem:[#allocation12 + $0xa8] sm:$0xff]
    %v4784 = vld [vmem:[#allocation12 + $0xb0] sm:$0xff]
    %v4785 = vld [vmem:[#allocation12 + $0xb8] sm:$0xff]
    %v4786 = vld [vmem:[#allocation12 + $0xc0] sm:$0xff]
    %v4787 = vld [vmem:[#allocation12 + $0xc8] sm:$0xff]
    %v4788 = vld [vmem:[#allocation12 + $0xd0] sm:$0xff]
    %v4789 = vld [vmem:[#allocation12 + $0xd8] sm:$0xff]
    %v4790 = vld [vmem:[#allocation12 + $0xe0] sm:$0xff]
    %v4791 = vld [vmem:[#allocation12 + $0xe8] sm:$0xff]
    %v4792 = vld [vmem:[#allocation12 + $0xf0] sm:$0xff]
    %v4793 = vld [vmem:[#allocation12 + $0xf8] sm:$0xff]
    %v4794 = vld [vmem:[#allocation12 + $0x100] sm:$0xff]
    %v4795 = vld [vmem:[#allocation12 + $0x108] sm:$0xff]
    %v4796 = vld [vmem:[#allocation12 + $0x110] sm:$0xff]
    %v4797 = vld [vmem:[#allocation12 + $0x118] sm:$0xff]
    %v4798 = vld [vmem:[#allocation12 + $0x120] sm:$0xff]
    %v4799 = vld [vmem:[#allocation12 + $0x128] sm:$0xff]
    %v4800 = vld [vmem:[#allocation12 + $0x130] sm:$0xff]
    %v4801 = vld [vmem:[#allocation12 + $0x138] sm:$0xff]
    %v4802 = vld [vmem:[#allocation12 + $0x140] sm:$0xff]
    %v4803 = vld [vmem:[#allocation12 + $0x148] sm:$0xff]
    %v4804 = vld [vmem:[#allocation12 + $0x150] sm:$0xff]
    %v4805 = vld [vmem:[#allocation12 + $0x158] sm:$0xff]
    %v4806 = vld [vmem:[#allocation12 + $0x160] sm:$0xff]
    %v4807 = vld [vmem:[#allocation12 + $0x168] sm:$0xff]
    %v4808 = vld [vmem:[#allocation12 + $0x170] sm:$0xff]
    %v4809 = vld [vmem:[#allocation12 + $0x178] sm:$0xff]
    %v4810 = vld [vmem:[#allocation12 + $0x180] sm:$0xff]
    %v4811 = vld [vmem:[#allocation12 + $0x188] sm:$0xff]
    %v4812 = vld [vmem:[#allocation12 + $0x190] sm:$0xff]
    %v4813 = vld [vmem:[#allocation12 + $0x198] sm:$0xff]
    %v4814 = vld [vmem:[#allocation12 + $0x1a0] sm:$0xff]
    %v4815 = vld [vmem:[#allocation12 + $0x1a8] sm:$0xff]
    %v4816 = vld [vmem:[#allocation12 + $0x1b0] sm:$0xff]
    %v4817 = vld [vmem:[#allocation12 + $0x1b8] sm:$0xff]
    %v4818 = vld [vmem:[#allocation12 + $0x1c0] sm:$0xff]
    %v4819 = vld [vmem:[#allocation12 + $0x1c8] sm:$0xff]
    %v4820 = vld [vmem:[#allocation12 + $0x1d0] sm:$0xff]
    %v4821 = vld [vmem:[#allocation12 + $0x1d8] sm:$0xff]
    %v4822 = vld [vmem:[#allocation12 + $0x1e0] sm:$0xff]
    %v4823 = vld [vmem:[#allocation12 + $0x1e8] sm:$0xff]
    %v4824 = vld [vmem:[#allocation12 + $0x1f0] sm:$0xff]
    %v4825 = vld [vmem:[#allocation12 + $0x1f8] sm:$0xff]
    %4826 = vmatpush.msra.mxu0 %v4822
    %4827 = vmatpush.msra.mxu0 %v4818
    %4828 = vmatpush.msra.mxu0 %v4814
    %4829 = vmatpush.msra.mxu0 %v4810
    %4830 = vmatpush.msra.mxu0 %v4806
    %4831 = vmatpush.msra.mxu0 %v4802
    %4832 = vmatpush.msra.mxu0 %v4798
    %4833 = vmatpush.msra.mxu0 %v4794
    %4834 = vmatpush.msra.mxu0 %v4790
    %4835 = vmatpush.msra.mxu0 %v4786
    %4836 = vmatpush.msra.mxu0 %v4782
    %4837 = vmatpush.msra.mxu0 %v4778
    %4838 = vmatpush.msra.mxu0 %v4774
    %4839 = vmatpush.msra.mxu0 %v4770
    %4840 = vmatpush.msra.mxu0 %v4766
    %4841 = vmatpush.msra.mxu0 %v4762
    %4842 = vmatmul.f32.gmra.mxu0 %v4756
    %v4843 = vpop.f32.mrf.mxu0
    %v4844 = vadd.f32 0.0, %v4843
    %4845 = vdwg.mxu0
    %4846 = vmatpush.msra.mxu0 %v4823
    %4847 = vmatpush.msra.mxu0 %v4819
    %4848 = vmatpush.msra.mxu0 %v4815
    %4849 = vmatpush.msra.mxu0 %v4811
    %4850 = vmatpush.msra.mxu0 %v4807
    %4851 = vmatpush.msra.mxu0 %v4803
    %4852 = vmatpush.msra.mxu0 %v4799
    %4853 = vmatpush.msra.mxu0 %v4795
    %4854 = vmatpush.msra.mxu0 %v4791
    %4855 = vmatpush.msra.mxu0 %v4787
    %4856 = vmatpush.msra.mxu0 %v4783
    %4857 = vmatpush.msra.mxu0 %v4779
    %4858 = vmatpush.msra.mxu0 %v4775
    %4859 = vmatpush.msra.mxu0 %v4771
    %4860 = vmatpush.msra.mxu0 %v4767
    %4861 = vmatpush.msra.mxu0 %v4763
    %4862 = vmatmul.f32.gmra.mxu0 %v4756
    %v4863 = vpop.f32.mrf.mxu0
    %v4864 = vadd.f32 0.0, %v4863
    %4865 = vdwg.mxu0
    %4866 = vmatpush.msra.mxu0 %v4824
    %4867 = vmatpush.msra.mxu0 %v4820
    %4868 = vmatpush.msra.mxu0 %v4816
    %4869 = vmatpush.msra.mxu0 %v4812
    %4870 = vmatpush.msra.mxu0 %v4808
    %4871 = vmatpush.msra.mxu0 %v4804
    %4872 = vmatpush.msra.mxu0 %v4800
    %4873 = vmatpush.msra.mxu0 %v4796
    %4874 = vmatpush.msra.mxu0 %v4792
    %4875 = vmatpush.msra.mxu0 %v4788
    %4876 = vmatpush.msra.mxu0 %v4784
    %4877 = vmatpush.msra.mxu0 %v4780
    %4878 = vmatpush.msra.mxu0 %v4776
    %4879 = vmatpush.msra.mxu0 %v4772
    %4880 = vmatpush.msra.mxu0 %v4768
    %4881 = vmatpush.msra.mxu0 %v4764
    %4882 = vmatmul.f32.gmra.mxu0 %v4756
    %v4883 = vpop.f32.mrf.mxu0
    %v4884 = vadd.f32 0.0, %v4883
    %4885 = vdwg.mxu0
    %4886 = vmatpush.msra.mxu0 %v4825
    %4887 = vmatpush.msra.mxu0 %v4821
    %4888 = vmatpush.msra.mxu0 %v4817
    %4889 = vmatpush.msra.mxu0 %v4813
    %4890 = vmatpush.msra.mxu0 %v4809
    %4891 = vmatpush.msra.mxu0 %v4805
    %4892 = vmatpush.msra.mxu0 %v4801
    %4893 = vmatpush.msra.mxu0 %v4797
    %4894 = vmatpush.msra.mxu0 %v4793
    %4895 = vmatpush.msra.mxu0 %v4789
    %4896 = vmatpush.msra.mxu0 %v4785
    %4897 = vmatpush.msra.mxu0 %v4781
    %4898 = vmatpush.msra.mxu0 %v4777
    %4899 = vmatpush.msra.mxu0 %v4773
    %4900 = vmatpush.msra.mxu0 %v4769
    %4901 = vmatpush.msra.mxu0 %v4765
    %4902 = vmatmul.f32.gmra.mxu0 %v4756
    %v4903 = vpop.f32.mrf.mxu0
    %v4904 = vadd.f32 0.0, %v4903
    %4905 = vdwg.mxu0
    %v4906 = vadd.f32 %v4758, %v4844
    %v4907 = vadd.f32 %v4759, %v4864
    %v4908 = vadd.f32 %v4760, %v4884
    %v4909 = vadd.f32 %v4761, %v4904
    %v4910 = vmul.f32 %v4906, 0.5
    %v4911 = vtanh.pop %v4910
    %v4912 = vmul.f32 %v4911, 0.5
    %v4913 = vadd.f32 %v4912, 0.5
    %v4914 = vmul.f32 %v4907, 0.5
    %v4915 = vtanh.pop %v4914
    %v4916 = vmul.f32 %v4915, 0.5
    %v4917 = vadd.f32 %v4916, 0.5
    %v4918 = vtanh.pop %v4908
    %v4919 = vmul.f32 %v4909, 0.5
    %v4920 = vtanh.pop %v4919
    %v4921 = vmul.f32 %v4920, 0.5
    %v4922 = vadd.f32 %v4921, 0.5
    %v4923 = vmul.f32 %v4917, %v4754
    %v4924 = vmul.f32 %v4913, %v4918
    %v4925 = vadd.f32 %v4923, %v4924
    %v4926 = vtanh.pop %v4925
    %v4927 = vmul.f32 %v4922, %v4926
    %4928 = vst [vmem:[%s1631] sm:$0xff] %v4927
    %v4929 = vld [vmem:[%s1635] sm:$0xff]
    %v4930 = vld [vmem:[%s1635 + $0x8] sm:$0xff]
    %v4931 = vld [vmem:[%s1635 + $0x10] sm:$0xff]
    %v4932 = vld [vmem:[%s1635 + $0x18] sm:$0xff]
    %v4933 = vld [vmem:[#allocation12] sm:$0xff]
    %v4934 = vld [vmem:[#allocation12 + $0x8] sm:$0xff]
    %v4935 = vld [vmem:[#allocation12 + $0x10] sm:$0xff]
    %v4936 = vld [vmem:[#allocation12 + $0x18] sm:$0xff]
    %v4937 = vld [vmem:[#allocation12 + $0x20] sm:$0xff]
    %v4938 = vld [vmem:[#allocation12 + $0x28] sm:$0xff]
    %v4939 = vld [vmem:[#allocation12 + $0x30] sm:$0xff]
    %v4940 = vld [vmem:[#allocation12 + $0x38] sm:$0xff]
    %v4941 = vld [vmem:[#allocation12 + $0x40] sm:$0xff]
    %v4942 = vld [vmem:[#allocation12 + $0x48] sm:$0xff]
    %v4943 = vld [vmem:[#allocation12 + $0x50] sm:$0xff]
    %v4944 = vld [vmem:[#allocation12 + $0x58] sm:$0xff]
    %v4945 = vld [vmem:[#allocation12 + $0x60] sm:$0xff]
    %v4946 = vld [vmem:[#allocation12 + $0x68] sm:$0xff]
    %v4947 = vld [vmem:[#allocation12 + $0x70] sm:$0xff]
    %v4948 = vld [vmem:[#allocation12 + $0x78] sm:$0xff]
    %v4949 = vld [vmem:[#allocation12 + $0x80] sm:$0xff]
    %v4950 = vld [vmem:[#allocation12 + $0x88] sm:$0xff]
    %v4951 = vld [vmem:[#allocation12 + $0x90] sm:$0xff]
    %v4952 = vld [vmem:[#allocation12 + $0x98] sm:$0xff]
    %v4953 = vld [vmem:[#allocation12 + $0xa0] sm:$0xff]
    %v4954 = vld [vmem:[#allocation12 + $0xa8] sm:$0xff]
    %v4955 = vld [vmem:[#allocation12 + $0xb0] sm:$0xff]
    %v4956 = vld [vmem:[#allocation12 + $0xb8] sm:$0xff]
    %v4957 = vld [vmem:[#allocation12 + $0xc0] sm:$0xff]
    %v4958 = vld [vmem:[#allocation12 + $0xc8] sm:$0xff]
    %v4959 = vld [vmem:[#allocation12 + $0xd0] sm:$0xff]
    %v4960 = vld [vmem:[#allocation12 + $0xd8] sm:$0xff]
    %v4961 = vld [vmem:[#allocation12 + $0xe0] sm:$0xff]
    %v4962 = vld [vmem:[#allocation12 + $0xe8] sm:$0xff]
    %v4963 = vld [vmem:[#allocation12 + $0xf0] sm:$0xff]
    %v4964 = vld [vmem:[#allocation12 + $0xf8] sm:$0xff]
    %v4965 = vld [vmem:[#allocation12 + $0x100] sm:$0xff]
    %v4966 = vld [vmem:[#allocation12 + $0x108] sm:$0xff]
    %v4967 = vld [vmem:[#allocation12 + $0x110] sm:$0xff]
    %v4968 = vld [vmem:[#allocation12 + $0x118] sm:$0xff]
    %v4969 = vld [vmem:[#allocation12 + $0x120] sm:$0xff]
    %v4970 = vld [vmem:[#allocation12 + $0x128] sm:$0xff]
    %v4971 = vld [vmem:[#allocation12 + $0x130] sm:$0xff]
    %v4972 = vld [vmem:[#allocation12 + $0x138] sm:$0xff]
    %v4973 = vld [vmem:[#allocation12 + $0x140] sm:$0xff]
    %v4974 = vld [vmem:[#allocation12 + $0x148] sm:$0xff]
    %v4975 = vld [vmem:[#allocation12 + $0x150] sm:$0xff]
    %v4976 = vld [vmem:[#allocation12 + $0x158] sm:$0xff]
    %v4977 = vld [vmem:[#allocation12 + $0x160] sm:$0xff]
    %v4978 = vld [vmem:[#allocation12 + $0x168] sm:$0xff]
    %v4979 = vld [vmem:[#allocation12 + $0x170] sm:$0xff]
    %v4980 = vld [vmem:[#allocation12 + $0x178] sm:$0xff]
    %v4981 = vld [vmem:[#allocation12 + $0x180] sm:$0xff]
    %v4982 = vld [vmem:[#allocation12 + $0x188] sm:$0xff]
    %v4983 = vld [vmem:[#allocation12 + $0x190] sm:$0xff]
    %v4984 = vld [vmem:[#allocation12 + $0x198] sm:$0xff]
    %v4985 = vld [vmem:[#allocation12 + $0x1a0] sm:$0xff]
    %v4986 = vld [vmem:[#allocation12 + $0x1a8] sm:$0xff]
    %v4987 = vld [vmem:[#allocation12 + $0x1b0] sm:$0xff]
    %v4988 = vld [vmem:[#allocation12 + $0x1b8] sm:$0xff]
    %v4989 = vld [vmem:[#allocation12 + $0x1c0] sm:$0xff]
    %v4990 = vld [vmem:[#allocation12 + $0x1c8] sm:$0xff]
    %v4991 = vld [vmem:[#allocation12 + $0x1d0] sm:$0xff]
    %v4992 = vld [vmem:[#allocation12 + $0x1d8] sm:$0xff]
    %v4993 = vld [vmem:[#allocation12 + $0x1e0] sm:$0xff]
    %v4994 = vld [vmem:[#allocation12 + $0x1e8] sm:$0xff]
    %v4995 = vld [vmem:[#allocation12 + $0x1f0] sm:$0xff]
    %v4996 = vld [vmem:[#allocation12 + $0x1f8] sm:$0xff]
    %4997 = vmatpush.msra.mxu0 %v4993
    %4998 = vmatpush.msra.mxu0 %v4989
    %4999 = vmatpush.msra.mxu0 %v4985
    %5000 = vmatpush.msra.mxu0 %v4981
    %5001 = vmatpush.msra.mxu0 %v4977
    %5002 = vmatpush.msra.mxu0 %v4973
    %5003 = vmatpush.msra.mxu0 %v4969
    %5004 = vmatpush.msra.mxu0 %v4965
    %5005 = vmatpush.msra.mxu0 %v4961
    %5006 = vmatpush.msra.mxu0 %v4957
    %5007 = vmatpush.msra.mxu0 %v4953
    %5008 = vmatpush.msra.mxu0 %v4949
    %5009 = vmatpush.msra.mxu0 %v4945
    %5010 = vmatpush.msra.mxu0 %v4941
    %5011 = vmatpush.msra.mxu0 %v4937
    %5012 = vmatpush.msra.mxu0 %v4933
    %5013 = vmatmul.f32.gmra.mxu0 %v4927
    %v5014 = vpop.f32.mrf.mxu0
    %v5015 = vadd.f32 0.0, %v5014
    %5016 = vdwg.mxu0
    %5017 = vmatpush.msra.mxu0 %v4994
    %5018 = vmatpush.msra.mxu0 %v4990
    %5019 = vmatpush.msra.mxu0 %v4986
    %5020 = vmatpush.msra.mxu0 %v4982
    %5021 = vmatpush.msra.mxu0 %v4978
    %5022 = vmatpush.msra.mxu0 %v4974
    %5023 = vmatpush.msra.mxu0 %v4970
    %5024 = vmatpush.msra.mxu0 %v4966
    %5025 = vmatpush.msra.mxu0 %v4962
    %5026 = vmatpush.msra.mxu0 %v4958
    %5027 = vmatpush.msra.mxu0 %v4954
    %5028 = vmatpush.msra.mxu0 %v4950
    %5029 = vmatpush.msra.mxu0 %v4946
    %5030 = vmatpush.msra.mxu0 %v4942
    %5031 = vmatpush.msra.mxu0 %v4938
    %5032 = vmatpush.msra.mxu0 %v4934
    %5033 = vmatmul.f32.gmra.mxu0 %v4927
    %v5034 = vpop.f32.mrf.mxu0
    %v5035 = vadd.f32 0.0, %v5034
    %5036 = vdwg.mxu0
    %5037 = vmatpush.msra.mxu0 %v4995
    %5038 = vmatpush.msra.mxu0 %v4991
    %5039 = vmatpush.msra.mxu0 %v4987
    %5040 = vmatpush.msra.mxu0 %v4983
    %5041 = vmatpush.msra.mxu0 %v4979
    %5042 = vmatpush.msra.mxu0 %v4975
    %5043 = vmatpush.msra.mxu0 %v4971
    %5044 = vmatpush.msra.mxu0 %v4967
    %5045 = vmatpush.msra.mxu0 %v4963
    %5046 = vmatpush.msra.mxu0 %v4959
    %5047 = vmatpush.msra.mxu0 %v4955
    %5048 = vmatpush.msra.mxu0 %v4951
    %5049 = vmatpush.msra.mxu0 %v4947
    %5050 = vmatpush.msra.mxu0 %v4943
    %5051 = vmatpush.msra.mxu0 %v4939
    %5052 = vmatpush.msra.mxu0 %v4935
    %5053 = vmatmul.f32.gmra.mxu0 %v4927
    %v5054 = vpop.f32.mrf.mxu0
    %v5055 = vadd.f32 0.0, %v5054
    %5056 = vdwg.mxu0
    %5057 = vmatpush.msra.mxu0 %v4996
    %5058 = vmatpush.msra.mxu0 %v4992
    %5059 = vmatpush.msra.mxu0 %v4988
    %5060 = vmatpush.msra.mxu0 %v4984
    %5061 = vmatpush.msra.mxu0 %v4980
    %5062 = vmatpush.msra.mxu0 %v4976
    %5063 = vmatpush.msra.mxu0 %v4972
    %5064 = vmatpush.msra.mxu0 %v4968
    %5065 = vmatpush.msra.mxu0 %v4964
    %5066 = vmatpush.msra.mxu0 %v4960
    %5067 = vmatpush.msra.mxu0 %v4956
    %5068 = vmatpush.msra.mxu0 %v4952
    %5069 = vmatpush.msra.mxu0 %v4948
    %5070 = vmatpush.msra.mxu0 %v4944
    %5071 = vmatpush.msra.mxu0 %v4940
    %5072 = vmatpush.msra.mxu0 %v4936
    %5073 = vmatmul.f32.gmra.mxu0 %v4927
    %v5074 = vpop.f32.mrf.mxu0
    %v5075 = vadd.f32 0.0, %v5074
    %5076 = vdwg.mxu0
    %v5077 = vadd.f32 %v4929, %v5015
    %v5078 = vadd.f32 %v4930, %v5035
    %v5079 = vadd.f32 %v4931, %v5055
    %v5080 = vadd.f32 %v4932, %v5075
    %v5081 = vmul.f32 %v5077, 0.5
    %v5082 = vtanh.pop %v5081
    %v5083 = vmul.f32 %v5082, 0.5
    %v5084 = vadd.f32 %v5083, 0.5
    %v5085 = vmul.f32 %v5078, 0.5
    %v5086 = vtanh.pop %v5085
    %v5087 = vmul.f32 %v5086, 0.5
    %v5088 = vadd.f32 %v5087, 0.5
    %v5089 = vtanh.pop %v5079
    %v5090 = vmul.f32 %v5080, 0.5
    %v5091 = vtanh.pop %v5090
    %v5092 = vmul.f32 %v5091, 0.5
    %v5093 = vadd.f32 %v5092, 0.5
    %v5094 = vmul.f32 %v5088, %v4925
    %v5095 = vmul.f32 %v5084, %v5089
    %v5096 = vadd.f32 %v5094, %v5095
    %v5097 = vtanh.pop %v5096
    %v5098 = vmul.f32 %v5093, %v5097
    %5099 = vst [vmem:[%s1806] sm:$0xff] %v5098
    %v5100 = vld [vmem:[#allocation3] sm:$0xff]
    %v5101 = vld [vmem:[#allocation3 + $0x8] sm:$0xff]
    %v5102 = vld [vmem:[#allocation3 + $0x10] sm:$0xff]
    %v5103 = vld [vmem:[#allocation3 + $0x18] sm:$0xff]
    %v5104 = vld [vmem:[#allocation3 + $0x20] sm:$0xff]
    %v5105 = vld [vmem:[#allocation3 + $0x28] sm:$0xff]
    %v5106 = vld [vmem:[#allocation3 + $0x30] sm:$0xff]
    %v5107 = vld [vmem:[#allocation3 + $0x38] sm:$0xff]
    %v5108 = vld [vmem:[%s11] sm:$0xff]
    %v5109 = vld [vmem:[%s11 + $0x8] sm:$0xff]
    %v5110 = vld [vmem:[%s11 + $0x10] sm:$0xff]
    %v5111 = vld [vmem:[%s11 + $0x18] sm:$0xff]
    %v5112 = vld [vmem:[%s11 + $0x20] sm:$0xff]
    %v5113 = vld [vmem:[%s11 + $0x28] sm:$0xff]
    %v5114 = vld [vmem:[%s11 + $0x30] sm:$0xff]
    %v5115 = vld [vmem:[%s11 + $0x38] sm:$0xff]
    %v5116 = vld [vmem:[%s11 + $0x40] sm:$0xff]
    %v5117 = vld [vmem:[%s11 + $0x48] sm:$0xff]
    %v5118 = vld [vmem:[%s11 + $0x50] sm:$0xff]
    %v5119 = vld [vmem:[%s11 + $0x58] sm:$0xff]
    %v5120 = vld [vmem:[%s11 + $0x60] sm:$0xff]
    %v5121 = vld [vmem:[%s11 + $0x68] sm:$0xff]
    %v5122 = vld [vmem:[%s11 + $0x70] sm:$0xff]
    %v5123 = vld [vmem:[%s11 + $0x78] sm:$0xff]
    %v5124 = vld [vmem:[%s12] sm:$0x1]
    %v5126 = vperm.slane %v5124, 0
    %5128 = vmatpush.msra.mxu0 %v5123
    %5129 = vmatpush.msra.mxu0 %v5122
    %5130 = vmatpush.msra.mxu0 %v5121
    %5131 = vmatpush.msra.mxu0 %v5120
    %5132 = vmatpush.msra.mxu0 %v5119
    %5133 = vmatpush.msra.mxu0 %v5118
    %5134 = vmatpush.msra.mxu0 %v5117
    %5135 = vmatpush.msra.mxu0 %v5116
    %5136 = vmatpush.msra.mxu0 %v5115
    %5137 = vmatpush.msra.mxu0 %v5114
    %5138 = vmatpush.msra.mxu0 %v5113
    %5139 = vmatpush.msra.mxu0 %v5112
    %5140 = vmatpush.msra.mxu0 %v5111
    %5141 = vmatpush.msra.mxu0 %v5110
    %5142 = vmatpush.msra.mxu0 %v5109
    %5143 = vmatpush.msra.mxu0 %v5108
    %5144 = vmatmul.f32.gmra.mxu0 %v5100
    %v5145 = vpop.f32.mrf.mxu0
    %v5146 = vadd.f32 %v5126, %v5145
    %5147 = vmatmul.f32.gmra.mxu0 %v5101
    %v5148 = vpop.f32.mrf.mxu0
    %v5149 = vadd.f32 %v5126, %v5148
    %5150 = vmatmul.f32.gmra.mxu0 %v5102
    %v5151 = vpop.f32.mrf.mxu0
    %v5152 = vadd.f32 %v5126, %v5151
    %5153 = vmatmul.f32.gmra.mxu0 %v5103
    %v5154 = vpop.f32.mrf.mxu0
    %v5155 = vadd.f32 %v5126, %v5154
    %5156 = vmatmul.f32.gmra.mxu0 %v5104
    %v5157 = vpop.f32.mrf.mxu0
    %v5158 = vadd.f32 %v5126, %v5157
    %5159 = vmatmul.f32.gmra.mxu0 %v5105
    %v5160 = vpop.f32.mrf.mxu0
    %v5161 = vadd.f32 %v5126, %v5160
    %5162 = vmatmul.f32.gmra.mxu0 %v5106
    %v5163 = vpop.f32.mrf.mxu0
    %v5164 = vadd.f32 %v5126, %v5163
    %5165 = vmatmul.f32.gmra.mxu0 %v5107
    %v5166 = vpop.f32.mrf.mxu0
    %v5167 = vadd.f32 %v5126, %v5166
    %5168 = vdwg.mxu0
    %v5169 = vmax.f32 %v5146, 0.0
    %v5170 = vmax.f32 %v5149, 0.0
    %v5171 = vmax.f32 %v5152, 0.0
    %v5172 = vmax.f32 %v5155, 0.0
    %v5173 = vmax.f32 %v5158, 0.0
    %v5174 = vmax.f32 %v5161, 0.0
    %v5175 = vmax.f32 %v5164, 0.0
    %v5176 = vmax.f32 %v5167, 0.0
    %v5177 = vld [vmem:[%s13] sm:$0xff]
    %v5178 = vld [vmem:[%s13 + $0x8] sm:$0xff]
    %v5179 = vld [vmem:[%s13 + $0x10] sm:$0xff]
    %v5180 = vld [vmem:[%s13 + $0x18] sm:$0xff]
    %v5181 = vld [vmem:[%s13 + $0x20] sm:$0xff]
    %v5182 = vld [vmem:[%s13 + $0x28] sm:$0xff]
    %v5183 = vld [vmem:[%s13 + $0x30] sm:$0xff]
    %v5184 = vld [vmem:[%s13 + $0x38] sm:$0xff]
    %v5185 = vld [vmem:[%s14] sm:$0x1]
    %v5187 = vperm.slane %v5185, 0
    %vm5189 = vcmask 523264
    %v5191 = vsel %vm5189, %v5169, 0
    %v5194 = vsel %vm5189, %v5170, 0
    %v5197 = vsel %vm5189, %v5171, 0
    %v5200 = vsel %vm5189, %v5172, 0
    %v5203 = vsel %vm5189, %v5173, 0
    %v5206 = vsel %vm5189, %v5174, 0
    %v5209 = vsel %vm5189, %v5175, 0
    %v5212 = vsel %vm5189, %v5176, 0
    %5214 = vmatpush.msra.mxu0 0.0
    %5215 = vmatpush.msra.mxu0 0.0
    %5216 = vmatpush.msra.mxu0 0.0
    %5217 = vmatpush.msra.mxu0 0.0
    %5218 = vmatpush.msra.mxu0 0.0
    %5219 = vmatpush.msra.mxu0 0.0
    %5220 = vmatpush.msra.mxu0 0.0
    %5221 = vmatpush.msra.mxu0 0.0
    %5222 = vmatpush.msra.mxu0 %v5184
    %5223 = vmatpush.msra.mxu0 %v5183
    %5224 = vmatpush.msra.mxu0 %v5182
    %5225 = vmatpush.msra.mxu0 %v5181
    %5226 = vmatpush.msra.mxu0 %v5180
    %5227 = vmatpush.msra.mxu0 %v5179
    %5228 = vmatpush.msra.mxu0 %v5178
    %5229 = vmatpush.msra.mxu0 %v5177
    %5230 = vmatmul.f32.gmra.mxu0 %v5191
    %v5231 = vpop.f32.mrf.mxu0
    %v5232 = vadd.f32 %v5187, %v5231
    %5233 = vmatmul.f32.gmra.mxu0 %v5194
    %v5234 = vpop.f32.mrf.mxu0
    %v5235 = vadd.f32 %v5187, %v5234
    %5236 = vmatmul.f32.gmra.mxu0 %v5197
    %v5237 = vpop.f32.mrf.mxu0
    %v5238 = vadd.f32 %v5187, %v5237
    %5239 = vmatmul.f32.gmra.mxu0 %v5200
    %v5240 = vpop.f32.mrf.mxu0
    %v5241 = vadd.f32 %v5187, %v5240
    %5242 = vmatmul.f32.gmra.mxu0 %v5203
    %v5243 = vpop.f32.mrf.mxu0
    %v5244 = vadd.f32 %v5187, %v5243
    %5245 = vmatmul.f32.gmra.mxu0 %v5206
    %v5246 = vpop.f32.mrf.mxu0
    %v5247 = vadd.f32 %v5187, %v5246
    %5248 = vmatmul.f32.gmra.mxu0 %v5209
    %v5249 = vpop.f32.mrf.mxu0
    %v5250 = vadd.f32 %v5187, %v5249
    %5251 = vmatmul.f32.gmra.mxu0 %v5212
    %v5252 = vpop.f32.mrf.mxu0
    %v5253 = vadd.f32 %v5187, %v5252
    %5254 = vdwg.mxu0
    %v5255 = vmax.f32 %v5232, 0.0
    %v5256 = vmax.f32 %v5235, 0.0
    %v5257 = vmax.f32 %v5238, 0.0
    %v5258 = vmax.f32 %v5241, 0.0
    %v5259 = vmax.f32 %v5244, 0.0
    %v5260 = vmax.f32 %v5247, 0.0
    %v5261 = vmax.f32 %v5250, 0.0
    %v5262 = vmax.f32 %v5253, 0.0
    %v5263 = vld [vmem:[%s15] sm:$0xff]
    %v5264 = vld [vmem:[%s15 + $0x8] sm:$0xff]
    %v5265 = vld [vmem:[%s15 + $0x10] sm:$0xff]
    %v5266 = vld [vmem:[%s15 + $0x18] sm:$0xff]
    %v5267 = vld [vmem:[%s15 + $0x20] sm:$0xff]
    %v5268 = vld [vmem:[%s15 + $0x28] sm:$0xff]
    %v5269 = vld [vmem:[%s15 + $0x30] sm:$0xff]
    %v5270 = vld [vmem:[%s15 + $0x38] sm:$0xff]
    %v5271 = vld [vmem:[%s16] sm:$0x1]
    %v5273 = vperm.slane %v5271, 0
    %v5276 = vsel %vm5189, %v5255, 0
    %v5279 = vsel %vm5189, %v5256, 0
    %v5282 = vsel %vm5189, %v5257, 0
    %v5285 = vsel %vm5189, %v5258, 0
    %v5288 = vsel %vm5189, %v5259, 0
    %v5291 = vsel %vm5189, %v5260, 0
    %v5294 = vsel %vm5189, %v5261, 0
    %v5297 = vsel %vm5189, %v5262, 0
    %5299 = vmatpush.msra.mxu0 0.0
    %5300 = vmatpush.msra.mxu0 0.0
    %5301 = vmatpush.msra.mxu0 0.0
    %5302 = vmatpush.msra.mxu0 0.0
    %5303 = vmatpush.msra.mxu0 0.0
    %5304 = vmatpush.msra.mxu0 0.0
    %5305 = vmatpush.msra.mxu0 0.0
    %5306 = vmatpush.msra.mxu0 0.0
    %5307 = vmatpush.msra.mxu0 %v5270
    %5308 = vmatpush.msra.mxu0 %v5269
    %5309 = vmatpush.msra.mxu0 %v5268
    %5310 = vmatpush.msra.mxu0 %v5267
    %5311 = vmatpush.msra.mxu0 %v5266
    %5312 = vmatpush.msra.mxu0 %v5265
    %5313 = vmatpush.msra.mxu0 %v5264
    %5314 = vmatpush.msra.mxu0 %v5263
    %5315 = vmatmul.f32.gmra.mxu0 %v5276
    %v5316 = vpop.f32.mrf.mxu0
    %v5317 = vadd.f32 %v5273, %v5316
    %5318 = vmatmul.f32.gmra.mxu0 %v5279
    %v5319 = vpop.f32.mrf.mxu0
    %v5320 = vadd.f32 %v5273, %v5319
    %5321 = vmatmul.f32.gmra.mxu0 %v5282
    %v5322 = vpop.f32.mrf.mxu0
    %v5323 = vadd.f32 %v5273, %v5322
    %5324 = vmatmul.f32.gmra.mxu0 %v5285
    %v5325 = vpop.f32.mrf.mxu0
    %v5326 = vadd.f32 %v5273, %v5325
    %5327 = vmatmul.f32.gmra.mxu0 %v5288
    %v5328 = vpop.f32.mrf.mxu0
    %v5329 = vadd.f32 %v5273, %v5328
    %5330 = vmatmul.f32.gmra.mxu0 %v5291
    %v5331 = vpop.f32.mrf.mxu0
    %v5332 = vadd.f32 %v5273, %v5331
    %5333 = vmatmul.f32.gmra.mxu0 %v5294
    %v5334 = vpop.f32.mrf.mxu0
    %v5335 = vadd.f32 %v5273, %v5334
    %5336 = vmatmul.f32.gmra.mxu0 %v5297
    %v5337 = vpop.f32.mrf.mxu0
    %v5338 = vadd.f32 %v5273, %v5337
    %5339 = vdwg.mxu0
    %v5340 = vmax.f32 %v5317, 0.0
    %v5341 = vmax.f32 %v5320, 0.0
    %v5342 = vmax.f32 %v5323, 0.0
    %v5343 = vmax.f32 %v5326, 0.0
    %v5344 = vmax.f32 %v5329, 0.0
    %v5345 = vmax.f32 %v5332, 0.0
    %v5346 = vmax.f32 %v5335, 0.0
    %v5347 = vmax.f32 %v5338, 0.0
    %v5348 = vld [vmem:[%s17] sm:$0xff]
    %v5349 = vld [vmem:[%s17 + $0x8] sm:$0xff]
    %v5350 = vld [vmem:[%s17 + $0x10] sm:$0xff]
    %v5351 = vld [vmem:[%s17 + $0x18] sm:$0xff]
    %v5352 = vld [vmem:[%s17 + $0x20] sm:$0xff]
    %v5353 = vld [vmem:[%s17 + $0x28] sm:$0xff]
    %v5354 = vld [vmem:[%s17 + $0x30] sm:$0xff]
    %v5355 = vld [vmem:[%s17 + $0x38] sm:$0xff]
    %v5356 = vld [vmem:[%s18] sm:$0x1]
    %v5358 = vperm.slane %v5356, 0
    %v5361 = vsel %vm5189, %v5340, 0
    %v5364 = vsel %vm5189, %v5341, 0
    %v5367 = vsel %vm5189, %v5342, 0
    %v5370 = vsel %vm5189, %v5343, 0
    %v5373 = vsel %vm5189, %v5344, 0
    %v5376 = vsel %vm5189, %v5345, 0
    %v5379 = vsel %vm5189, %v5346, 0
    %v5382 = vsel %vm5189, %v5347, 0
    %5384 = vmatpush.msra.mxu0 0.0
    %5385 = vmatpush.msra.mxu0 0.0
    %5386 = vmatpush.msra.mxu0 0.0
    %5387 = vmatpush.msra.mxu0 0.0
    %5388 = vmatpush.msra.mxu0 0.0
    %5389 = vmatpush.msra.mxu0 0.0
    %5390 = vmatpush.msra.mxu0 0.0
    %5391 = vmatpush.msra.mxu0 0.0
    %5392 = vmatpush.msra.mxu0 %v5355
    %5393 = vmatpush.msra.mxu0 %v5354
    %5394 = vmatpush.msra.mxu0 %v5353
    %5395 = vmatpush.msra.mxu0 %v5352
    %5396 = vmatpush.msra.mxu0 %v5351
    %5397 = vmatpush.msra.mxu0 %v5350
    %5398 = vmatpush.msra.mxu0 %v5349
    %5399 = vmatpush.msra.mxu0 %v5348
    %5400 = vmatmul.f32.gmra.mxu0 %v5361
    %v5401 = vpop.f32.mrf.mxu0
    %v5402 = vadd.f32 %v5358, %v5401
    %5403 = vmatmul.f32.gmra.mxu0 %v5364
    %v5404 = vpop.f32.mrf.mxu0
    %v5405 = vadd.f32 %v5358, %v5404
    %5406 = vmatmul.f32.gmra.mxu0 %v5367
    %v5407 = vpop.f32.mrf.mxu0
    %v5408 = vadd.f32 %v5358, %v5407
    %5409 = vmatmul.f32.gmra.mxu0 %v5370
    %v5410 = vpop.f32.mrf.mxu0
    %v5411 = vadd.f32 %v5358, %v5410
    %5412 = vmatmul.f32.gmra.mxu0 %v5373
    %v5413 = vpop.f32.mrf.mxu0
    %v5414 = vadd.f32 %v5358, %v5413
    %5415 = vmatmul.f32.gmra.mxu0 %v5376
    %v5416 = vpop.f32.mrf.mxu0
    %v5417 = vadd.f32 %v5358, %v5416
    %5418 = vmatmul.f32.gmra.mxu0 %v5379
    %v5419 = vpop.f32.mrf.mxu0
    %v5420 = vadd.f32 %v5358, %v5419
    %5421 = vmatmul.f32.gmra.mxu0 %v5382
    %v5422 = vpop.f32.mrf.mxu0
    %v5423 = vadd.f32 %v5358, %v5422
    %5424 = vdwg.mxu0
    %v5425 = vmax.f32 %v5402, 0.0
    %v5426 = vmax.f32 %v5405, 0.0
    %v5427 = vmax.f32 %v5408, 0.0
    %v5428 = vmax.f32 %v5411, 0.0
    %v5429 = vmax.f32 %v5414, 0.0
    %v5430 = vmax.f32 %v5417, 0.0
    %v5431 = vmax.f32 %v5420, 0.0
    %v5432 = vmax.f32 %v5423, 0.0
    %v5433 = vld [vmem:[%s19] sm:$0xff]
    %v5434 = vld [vmem:[%s19 + $0x8] sm:$0xff]
    %v5435 = vld [vmem:[%s19 + $0x10] sm:$0xff]
    %v5436 = vld [vmem:[%s19 + $0x18] sm:$0xff]
    %v5437 = vld [vmem:[%s19 + $0x20] sm:$0xff]
    %v5438 = vld [vmem:[%s19 + $0x28] sm:$0xff]
    %v5439 = vld [vmem:[%s19 + $0x30] sm:$0xff]
    %v5440 = vld [vmem:[%s19 + $0x38] sm:$0xff]
    %v5441 = vld [vmem:[%s20] sm:$0x1]
    %v5443 = vperm.slane %v5441, 0
    %v5446 = vsel %vm5189, %v5425, 0
    %v5449 = vsel %vm5189, %v5426, 0
    %v5452 = vsel %vm5189, %v5427, 0
    %v5455 = vsel %vm5189, %v5428, 0
    %v5458 = vsel %vm5189, %v5429, 0
    %v5461 = vsel %vm5189, %v5430, 0
    %v5464 = vsel %vm5189, %v5431, 0
    %v5467 = vsel %vm5189, %v5432, 0
    %5469 = vmatpush.msra.mxu0 0.0
    %5470 = vmatpush.msra.mxu0 0.0
    %5471 = vmatpush.msra.mxu0 0.0
    %5472 = vmatpush.msra.mxu0 0.0
    %5473 = vmatpush.msra.mxu0 0.0
    %5474 = vmatpush.msra.mxu0 0.0
    %5475 = vmatpush.msra.mxu0 0.0
    %5476 = vmatpush.msra.mxu0 0.0
    %5477 = vmatpush.msra.mxu0 %v5440
    %5478 = vmatpush.msra.mxu0 %v5439
    %5479 = vmatpush.msra.mxu0 %v5438
    %5480 = vmatpush.msra.mxu0 %v5437
    %5481 = vmatpush.msra.mxu0 %v5436
    %5482 = vmatpush.msra.mxu0 %v5435
    %5483 = vmatpush.msra.mxu0 %v5434
    %5484 = vmatpush.msra.mxu0 %v5433
    %5485 = vmatmul.f32.gmra.mxu0 %v5446
    %v5486 = vpop.f32.mrf.mxu0
    %v5487 = vadd.f32 %v5443, %v5486
    %5488 = vmatmul.f32.gmra.mxu0 %v5449
    %v5489 = vpop.f32.mrf.mxu0
    %v5490 = vadd.f32 %v5443, %v5489
    %5491 = vmatmul.f32.gmra.mxu0 %v5452
    %v5492 = vpop.f32.mrf.mxu0
    %v5493 = vadd.f32 %v5443, %v5492
    %5494 = vmatmul.f32.gmra.mxu0 %v5455
    %v5495 = vpop.f32.mrf.mxu0
    %v5496 = vadd.f32 %v5443, %v5495
    %5497 = vmatmul.f32.gmra.mxu0 %v5458
    %v5498 = vpop.f32.mrf.mxu0
    %v5499 = vadd.f32 %v5443, %v5498
    %5500 = vmatmul.f32.gmra.mxu0 %v5461
    %v5501 = vpop.f32.mrf.mxu0
    %v5502 = vadd.f32 %v5443, %v5501
    %5503 = vmatmul.f32.gmra.mxu0 %v5464
    %v5504 = vpop.f32.mrf.mxu0
    %v5505 = vadd.f32 %v5443, %v5504
    %5506 = vmatmul.f32.gmra.mxu0 %v5467
    %v5507 = vpop.f32.mrf.mxu0
    %v5508 = vadd.f32 %v5443, %v5507
    %5509 = vdwg.mxu0
    %s5510 = sld [smem:[#allocation4]]
    %vm5511 = vcmask 31744
    %5512 = vst.msk [vmem:[%s21] sm:$0xff] %vm5511, %v5487
    %5513 = vst.msk [vmem:[%s21 + $0x8] sm:$0xff] %vm5511, %v5490
    %5514 = vst.msk [vmem:[%s21 + $0x10] sm:$0xff] %vm5511, %v5493
    %5515 = vst.msk [vmem:[%s21 + $0x18] sm:$0xff] %vm5511, %v5496
    %5516 = vst.msk [vmem:[%s21 + $0x20] sm:$0xff] %vm5511, %v5499
    %5517 = vst.msk [vmem:[%s21 + $0x28] sm:$0xff] %vm5511, %v5502
    %5518 = vst.msk [vmem:[%s21 + $0x30] sm:$0xff] %vm5511, %v5505
    %5519 = vst.msk [vmem:[%s21 + $0x38] sm:$0xff] %vm5511, %v5508
    %v5520 = vld [vmem:[%s1] sm:$0xff]
    %v5521 = vld [vmem:[%s1 + $0x8] sm:$0xff]
    %v5522 = vld [vmem:[%s1 + $0x10] sm:$0xff]
    %v5523 = vld [vmem:[%s1 + $0x18] sm:$0xff]
    %v5524 = vld [vmem:[%s1 + $0x20] sm:$0xff]
    %v5525 = vld [vmem:[%s1 + $0x28] sm:$0xff]
    %v5526 = vld [vmem:[%s1 + $0x30] sm:$0xff]
    %v5527 = vld [vmem:[%s1 + $0x38] sm:$0xff]
    %5536 = vrot.lane.b32.xlu0 %v5520, 3
    %v5537 = vpop.permute.xlu0 %5536
    %5538 = vrot.lane.b32.xlu0 %v5521, 3
    %v5539 = vpop.permute.xlu0 %5538
    %5540 = vrot.lane.b32.xlu0 %v5522, 3
    %v5541 = vpop.permute.xlu0 %5540
    %5542 = vrot.lane.b32.xlu0 %v5523, 3
    %v5543 = vpop.permute.xlu0 %5542
    %5544 = vrot.lane.b32.xlu0 %v5524, 3
    %v5545 = vpop.permute.xlu0 %5544
    %5546 = vrot.lane.b32.xlu0 %v5525, 3
    %v5547 = vpop.permute.xlu0 %5546
    %5548 = vrot.lane.b32.xlu0 %v5526, 3
    %v5549 = vpop.permute.xlu0 %5548
    %5550 = vrot.lane.b32.xlu0 %v5527, 3
    %v5551 = vpop.permute.xlu0 %5550
    %v5560 = vmul.f32 %v5520, %v5537
    %v5561 = vmul.f32 %v5521, %v5539
    %v5562 = vmul.f32 %v5522, %v5541
    %v5563 = vmul.f32 %v5523, %v5543
    %v5564 = vmul.f32 %v5524, %v5545
    %v5565 = vmul.f32 %v5525, %v5547
    %v5566 = vmul.f32 %v5526, %v5549
    %v5567 = vmul.f32 %v5527, %v5551
    %5568 = vrot.lane.b32.xlu0 %v5520, 4
    %v5569 = vpop.permute.xlu0 %5568
    %5570 = vrot.lane.b32.xlu0 %v5521, 4
    %v5571 = vpop.permute.xlu0 %5570
    %5572 = vrot.lane.b32.xlu0 %v5522, 4
    %v5573 = vpop.permute.xlu0 %5572
    %5574 = vrot.lane.b32.xlu0 %v5523, 4
    %v5575 = vpop.permute.xlu0 %5574
    %5576 = vrot.lane.b32.xlu0 %v5524, 4
    %v5577 = vpop.permute.xlu0 %5576
    %5578 = vrot.lane.b32.xlu0 %v5525, 4
    %v5579 = vpop.permute.xlu0 %5578
    %5580 = vrot.lane.b32.xlu0 %v5526, 4
    %v5581 = vpop.permute.xlu0 %5580
    %5582 = vrot.lane.b32.xlu0 %v5527, 4
    %v5583 = vpop.permute.xlu0 %5582
    %v5592 = vmul.f32 %v5520, %v5569
    %v5593 = vmul.f32 %v5521, %v5571
    %v5594 = vmul.f32 %v5522, %v5573
    %v5595 = vmul.f32 %v5523, %v5575
    %v5596 = vmul.f32 %v5524, %v5577
    %v5597 = vmul.f32 %v5525, %v5579
    %v5598 = vmul.f32 %v5526, %v5581
    %v5599 = vmul.f32 %v5527, %v5583
    %v5600 = vstv %s5510
    %v5601 = vmul.f32 %v5487, %v5600
    %v5602 = vmul.f32 %v5490, %v5600
    %v5603 = vmul.f32 %v5493, %v5600
    %v5604 = vmul.f32 %v5496, %v5600
    %v5605 = vmul.f32 %v5499, %v5600
    %v5606 = vmul.f32 %v5502, %v5600
    %v5607 = vmul.f32 %v5505, %v5600
    %v5608 = vmul.f32 %v5508, %v5600
    %5617 = vrot.lane.b32.xlu0 %v5601, 1
    %v5618 = vpop.permute.xlu0 %5617
    %5619 = vrot.lane.b32.xlu0 %v5602, 1
    %v5620 = vpop.permute.xlu0 %5619
    %5621 = vrot.lane.b32.xlu0 %v5603, 1
    %v5622 = vpop.permute.xlu0 %5621
    %5623 = vrot.lane.b32.xlu0 %v5604, 1
    %v5624 = vpop.permute.xlu0 %5623
    %5625 = vrot.lane.b32.xlu0 %v5605, 1
    %v5626 = vpop.permute.xlu0 %5625
    %5627 = vrot.lane.b32.xlu0 %v5606, 1
    %v5628 = vpop.permute.xlu0 %5627
    %5629 = vrot.lane.b32.xlu0 %v5607, 1
    %v5630 = vpop.permute.xlu0 %5629
    %5631 = vrot.lane.b32.xlu0 %v5608, 1
    %v5632 = vpop.permute.xlu0 %5631
    %v5641 = vsub.f32 %v5520, %v5618
    %v5642 = vsub.f32 %v5521, %v5620
    %v5643 = vsub.f32 %v5522, %v5622
    %v5644 = vsub.f32 %v5523, %v5624
    %v5645 = vsub.f32 %v5524, %v5626
    %v5646 = vsub.f32 %v5525, %v5628
    %v5647 = vsub.f32 %v5526, %v5630
    %v5648 = vsub.f32 %v5527, %v5632
    %v5649 = vsub.f32 %v5641, %v5601
    %v5650 = vsub.f32 %v5642, %v5602
    %v5651 = vsub.f32 %v5643, %v5603
    %v5652 = vsub.f32 %v5644, %v5604
    %v5653 = vsub.f32 %v5645, %v5605
    %v5654 = vsub.f32 %v5646, %v5606
    %v5655 = vsub.f32 %v5647, %v5607
    %v5656 = vsub.f32 %v5648, %v5608
    %5657 = vrot.lane.b32.xlu0 %v5601, 2
    %v5658 = vpop.permute.xlu0 %5657
    %5659 = vrot.lane.b32.xlu0 %v5602, 2
    %v5660 = vpop.permute.xlu0 %5659
    %5661 = vrot.lane.b32.xlu0 %v5603, 2
    %v5662 = vpop.permute.xlu0 %5661
    %5663 = vrot.lane.b32.xlu0 %v5604, 2
    %v5664 = vpop.permute.xlu0 %5663
    %5665 = vrot.lane.b32.xlu0 %v5605, 2
    %v5666 = vpop.permute.xlu0 %5665
    %5667 = vrot.lane.b32.xlu0 %v5606, 2
    %v5668 = vpop.permute.xlu0 %5667
    %5669 = vrot.lane.b32.xlu0 %v5607, 2
    %v5670 = vpop.permute.xlu0 %5669
    %5671 = vrot.lane.b32.xlu0 %v5608, 2
    %v5672 = vpop.permute.xlu0 %5671
    %v5681 = vadd.f32 %v5520, %v5658
    %v5682 = vadd.f32 %v5521, %v5660
    %v5683 = vadd.f32 %v5522, %v5662
    %v5684 = vadd.f32 %v5523, %v5664
    %v5685 = vadd.f32 %v5524, %v5666
    %v5686 = vadd.f32 %v5525, %v5668
    %v5687 = vadd.f32 %v5526, %v5670
    %v5688 = vadd.f32 %v5527, %v5672
    %5689 = vrot.lane.b32.xlu0 %v5601, 6
    %v5690 = vpop.permute.xlu0 %5689
    %5691 = vrot.lane.b32.xlu0 %v5602, 6
    %v5692 = vpop.permute.xlu0 %5691
    %5693 = vrot.lane.b32.xlu0 %v5603, 6
    %v5694 = vpop.permute.xlu0 %5693
    %5695 = vrot.lane.b32.xlu0 %v5604, 6
    %v5696 = vpop.permute.xlu0 %5695
    %5697 = vrot.lane.b32.xlu0 %v5605, 6
    %v5698 = vpop.permute.xlu0 %5697
    %5699 = vrot.lane.b32.xlu0 %v5606, 6
    %v5700 = vpop.permute.xlu0 %5699
    %5701 = vrot.lane.b32.xlu0 %v5607, 6
    %v5702 = vpop.permute.xlu0 %5701
    %5703 = vrot.lane.b32.xlu0 %v5608, 6
    %v5704 = vpop.permute.xlu0 %5703
    %v5713 = vsub.f32 %v5560, %v5690
    %v5714 = vsub.f32 %v5561, %v5692
    %v5715 = vsub.f32 %v5562, %v5694
    %v5716 = vsub.f32 %v5563, %v5696
    %v5717 = vsub.f32 %v5564, %v5698
    %v5718 = vsub.f32 %v5565, %v5700
    %v5719 = vsub.f32 %v5566, %v5702
    %v5720 = vsub.f32 %v5567, %v5704
    %v5721 = vsub.f32 %v5592, %v5690
    %v5722 = vsub.f32 %v5593, %v5692
    %v5723 = vsub.f32 %v5594, %v5694
    %v5724 = vsub.f32 %v5595, %v5696
    %v5725 = vsub.f32 %v5596, %v5698
    %v5726 = vsub.f32 %v5597, %v5700
    %v5727 = vsub.f32 %v5598, %v5702
    %v5728 = vsub.f32 %v5599, %v5704
    %5729 = vrot.lane.b32.xlu0 %v5601, 8
    %v5730 = vpop.permute.xlu0 %5729
    %5731 = vrot.lane.b32.xlu0 %v5602, 8
    %v5732 = vpop.permute.xlu0 %5731
    %5733 = vrot.lane.b32.xlu0 %v5603, 8
    %v5734 = vpop.permute.xlu0 %5733
    %5735 = vrot.lane.b32.xlu0 %v5604, 8
    %v5736 = vpop.permute.xlu0 %5735
    %5737 = vrot.lane.b32.xlu0 %v5605, 8
    %v5738 = vpop.permute.xlu0 %5737
    %5739 = vrot.lane.b32.xlu0 %v5606, 8
    %v5740 = vpop.permute.xlu0 %5739
    %5741 = vrot.lane.b32.xlu0 %v5607, 8
    %v5742 = vpop.permute.xlu0 %5741
    %5743 = vrot.lane.b32.xlu0 %v5608, 8
    %v5744 = vpop.permute.xlu0 %5743
    %v5753 = vadd.f32 %v5592, %v5730
    %v5754 = vadd.f32 %v5593, %v5732
    %v5755 = vadd.f32 %v5594, %v5734
    %v5756 = vadd.f32 %v5595, %v5736
    %v5757 = vadd.f32 %v5596, %v5738
    %v5758 = vadd.f32 %v5597, %v5740
    %v5759 = vadd.f32 %v5598, %v5742
    %v5760 = vadd.f32 %v5599, %v5744
    %v5761 = vadd.f32 %v5649, 1e-06
    %v5762 = vadd.f32 %v5650, 1e-06
    %v5763 = vadd.f32 %v5651, 1e-06
    %v5764 = vadd.f32 %v5652, 1e-06
    %v5765 = vadd.f32 %v5653, 1e-06
    %v5766 = vadd.f32 %v5654, 1e-06
    %v5767 = vadd.f32 %v5655, 1e-06
    %v5768 = vadd.f32 %v5656, 1e-06
    %5777 = vrot.lane.b32.xlu0 %v5761, 3
    %v5778 = vpop.permute.xlu0 %5777
    %5779 = vrot.lane.b32.xlu0 %v5762, 3
    %v5780 = vpop.permute.xlu0 %5779
    %5781 = vrot.lane.b32.xlu0 %v5763, 3
    %v5782 = vpop.permute.xlu0 %5781
    %5783 = vrot.lane.b32.xlu0 %v5764, 3
    %v5784 = vpop.permute.xlu0 %5783
    %5785 = vrot.lane.b32.xlu0 %v5765, 3
    %v5786 = vpop.permute.xlu0 %5785
    %5787 = vrot.lane.b32.xlu0 %v5766, 3
    %v5788 = vpop.permute.xlu0 %5787
    %5789 = vrot.lane.b32.xlu0 %v5767, 3
    %v5790 = vpop.permute.xlu0 %5789
    %5791 = vrot.lane.b32.xlu0 %v5768, 3
    %v5792 = vpop.permute.xlu0 %5791
    %v5801 = vrcp.pop %v5778
    %v5802 = vmul.f32 %v5778, %v5801
    %v5803 = vsub.f32 1.0, %v5802
    %v5804 = vmul.f32 %v5801, %v5803
    %v5805 = vadd.f32 %v5801, %v5804
    %vm5806 = vweird.f32 %v5778
    %vm5807 = vweird.f32 %v5801
    %vm5808 = vmor %vm5806, %vm5807
    %v5809 = vsel %vm5808, %v5801, %v5805
    %v5810 = vand.u32 2147483647, %v5778
    %vm5811 = vcmp.eq.f32.partialorder %v5810, 8.507059e+37
    %v5812 = vand.u32 %v5778, 2147483648
    %v5813 = vor.u32 1.1754944e-38, %v5812
    %v5814 = vsel %vm5811, %v5813, %v5809
    %v5815 = vmul.f32 %v5713, %v5814
    %v5816 = vrcp.pop %v5780
    %v5817 = vmul.f32 %v5780, %v5816
    %v5818 = vsub.f32 1.0, %v5817
    %v5819 = vmul.f32 %v5816, %v5818
    %v5820 = vadd.f32 %v5816, %v5819
    %vm5821 = vweird.f32 %v5780
    %vm5822 = vweird.f32 %v5816
    %vm5823 = vmor %vm5821, %vm5822
    %v5824 = vsel %vm5823, %v5816, %v5820
    %v5825 = vand.u32 2147483647, %v5780
    %vm5826 = vcmp.eq.f32.partialorder %v5825, 8.507059e+37
    %v5827 = vand.u32 %v5780, 2147483648
    %v5828 = vor.u32 1.1754944e-38, %v5827
    %v5829 = vsel %vm5826, %v5828, %v5824
    %v5830 = vmul.f32 %v5714, %v5829
    %v5831 = vrcp.pop %v5782
    %v5832 = vmul.f32 %v5782, %v5831
    %v5833 = vsub.f32 1.0, %v5832
    %v5834 = vmul.f32 %v5831, %v5833
    %v5835 = vadd.f32 %v5831, %v5834
    %vm5836 = vweird.f32 %v5782
    %vm5837 = vweird.f32 %v5831
    %vm5838 = vmor %vm5836, %vm5837
    %v5839 = vsel %vm5838, %v5831, %v5835
    %v5840 = vand.u32 2147483647, %v5782
    %vm5841 = vcmp.eq.f32.partialorder %v5840, 8.507059e+37
    %v5842 = vand.u32 %v5782, 2147483648
    %v5843 = vor.u32 1.1754944e-38, %v5842
    %v5844 = vsel %vm5841, %v5843, %v5839
    %v5845 = vmul.f32 %v5715, %v5844
    %v5846 = vrcp.pop %v5784
    %v5847 = vmul.f32 %v5784, %v5846
    %v5848 = vsub.f32 1.0, %v5847
    %v5849 = vmul.f32 %v5846, %v5848
    %v5850 = vadd.f32 %v5846, %v5849
    %vm5851 = vweird.f32 %v5784
    %vm5852 = vweird.f32 %v5846
    %vm5853 = vmor %vm5851, %vm5852
    %v5854 = vsel %vm5853, %v5846, %v5850
    %v5855 = vand.u32 2147483647, %v5784
    %vm5856 = vcmp.eq.f32.partialorder %v5855, 8.507059e+37
    %v5857 = vand.u32 %v5784, 2147483648
    %v5858 = vor.u32 1.1754944e-38, %v5857
    %v5859 = vsel %vm5856, %v5858, %v5854
    %v5860 = vmul.f32 %v5716, %v5859
    %v5861 = vrcp.pop %v5786
    %v5862 = vmul.f32 %v5786, %v5861
    %v5863 = vsub.f32 1.0, %v5862
    %v5864 = vmul.f32 %v5861, %v5863
    %v5865 = vadd.f32 %v5861, %v5864
    %vm5866 = vweird.f32 %v5786
    %vm5867 = vweird.f32 %v5861
    %vm5868 = vmor %vm5866, %vm5867
    %v5869 = vsel %vm5868, %v5861, %v5865
    %v5870 = vand.u32 2147483647, %v5786
    %vm5871 = vcmp.eq.f32.partialorder %v5870, 8.507059e+37
    %v5872 = vand.u32 %v5786, 2147483648
    %v5873 = vor.u32 1.1754944e-38, %v5872
    %v5874 = vsel %vm5871, %v5873, %v5869
    %v5875 = vmul.f32 %v5717, %v5874
    %v5876 = vrcp.pop %v5788
    %v5877 = vmul.f32 %v5788, %v5876
    %v5878 = vsub.f32 1.0, %v5877
    %v5879 = vmul.f32 %v5876, %v5878
    %v5880 = vadd.f32 %v5876, %v5879
    %vm5881 = vweird.f32 %v5788
    %vm5882 = vweird.f32 %v5876
    %vm5883 = vmor %vm5881, %vm5882
    %v5884 = vsel %vm5883, %v5876, %v5880
    %v5885 = vand.u32 2147483647, %v5788
    %vm5886 = vcmp.eq.f32.partialorder %v5885, 8.507059e+37
    %v5887 = vand.u32 %v5788, 2147483648
    %v5888 = vor.u32 1.1754944e-38, %v5887
    %v5889 = vsel %vm5886, %v5888, %v5884
    %v5890 = vmul.f32 %v5718, %v5889
    %v5891 = vrcp.pop %v5790
    %v5892 = vmul.f32 %v5790, %v5891
    %v5893 = vsub.f32 1.0, %v5892
    %v5894 = vmul.f32 %v5891, %v5893
    %v5895 = vadd.f32 %v5891, %v5894
    %vm5896 = vweird.f32 %v5790
    %vm5897 = vweird.f32 %v5891
    %vm5898 = vmor %vm5896, %vm5897
    %v5899 = vsel %vm5898, %v5891, %v5895
    %v5900 = vand.u32 2147483647, %v5790
    %vm5901 = vcmp.eq.f32.partialorder %v5900, 8.507059e+37
    %v5902 = vand.u32 %v5790, 2147483648
    %v5903 = vor.u32 1.1754944e-38, %v5902
    %v5904 = vsel %vm5901, %v5903, %v5899
    %v5905 = vmul.f32 %v5719, %v5904
    %v5906 = vrcp.pop %v5792
    %v5907 = vmul.f32 %v5792, %v5906
    %v5908 = vsub.f32 1.0, %v5907
    %v5909 = vmul.f32 %v5906, %v5908
    %v5910 = vadd.f32 %v5906, %v5909
    %vm5911 = vweird.f32 %v5792
    %vm5912 = vweird.f32 %v5906
    %vm5913 = vmor %vm5911, %vm5912
    %v5914 = vsel %vm5913, %v5906, %v5910
    %v5915 = vand.u32 2147483647, %v5792
    %vm5916 = vcmp.eq.f32.partialorder %v5915, 8.507059e+37
    %v5917 = vand.u32 %v5792, 2147483648
    %v5918 = vor.u32 1.1754944e-38, %v5917
    %v5919 = vsel %vm5916, %v5918, %v5914
    %v5920 = vmul.f32 %v5720, %v5919
    %5921 = vrot.lane.b32.xlu0 %v5761, 4
    %v5922 = vpop.permute.xlu0 %5921
    %5923 = vrot.lane.b32.xlu0 %v5762, 4
    %v5924 = vpop.permute.xlu0 %5923
    %5925 = vrot.lane.b32.xlu0 %v5763, 4
    %v5926 = vpop.permute.xlu0 %5925
    %5927 = vrot.lane.b32.xlu0 %v5764, 4
    %v5928 = vpop.permute.xlu0 %5927
    %5929 = vrot.lane.b32.xlu0 %v5765, 4
    %v5930 = vpop.permute.xlu0 %5929
    %5931 = vrot.lane.b32.xlu0 %v5766, 4
    %v5932 = vpop.permute.xlu0 %5931
    %5933 = vrot.lane.b32.xlu0 %v5767, 4
    %v5934 = vpop.permute.xlu0 %5933
    %5935 = vrot.lane.b32.xlu0 %v5768, 4
    %v5936 = vpop.permute.xlu0 %5935
    %v5945 = vrcp.pop %v5922
    %v5946 = vmul.f32 %v5922, %v5945
    %v5947 = vsub.f32 1.0, %v5946
    %v5948 = vmul.f32 %v5945, %v5947
    %v5949 = vadd.f32 %v5945, %v5948
    %vm5950 = vweird.f32 %v5922
    %vm5951 = vweird.f32 %v5945
    %vm5952 = vmor %vm5950, %vm5951
    %v5953 = vsel %vm5952, %v5945, %v5949
    %v5954 = vand.u32 2147483647, %v5922
    %vm5955 = vcmp.eq.f32.partialorder %v5954, 8.507059e+37
    %v5956 = vand.u32 %v5922, 2147483648
    %v5957 = vor.u32 1.1754944e-38, %v5956
    %v5958 = vsel %vm5955, %v5957, %v5953
    %v5959 = vmul.f32 %v5721, %v5958
    %v5960 = vrcp.pop %v5924
    %v5961 = vmul.f32 %v5924, %v5960
    %v5962 = vsub.f32 1.0, %v5961
    %v5963 = vmul.f32 %v5960, %v5962
    %v5964 = vadd.f32 %v5960, %v5963
    %vm5965 = vweird.f32 %v5924
    %vm5966 = vweird.f32 %v5960
    %vm5967 = vmor %vm5965, %vm5966
    %v5968 = vsel %vm5967, %v5960, %v5964
    %v5969 = vand.u32 2147483647, %v5924
    %vm5970 = vcmp.eq.f32.partialorder %v5969, 8.507059e+37
    %v5971 = vand.u32 %v5924, 2147483648
    %v5972 = vor.u32 1.1754944e-38, %v5971
    %v5973 = vsel %vm5970, %v5972, %v5968
    %v5974 = vmul.f32 %v5722, %v5973
    %v5975 = vrcp.pop %v5926
    %v5976 = vmul.f32 %v5926, %v5975
    %v5977 = vsub.f32 1.0, %v5976
    %v5978 = vmul.f32 %v5975, %v5977
    %v5979 = vadd.f32 %v5975, %v5978
    %vm5980 = vweird.f32 %v5926
    %vm5981 = vweird.f32 %v5975
    %vm5982 = vmor %vm5980, %vm5981
    %v5983 = vsel %vm5982, %v5975, %v5979
    %v5984 = vand.u32 2147483647, %v5926
    %vm5985 = vcmp.eq.f32.partialorder %v5984, 8.507059e+37
    %v5986 = vand.u32 %v5926, 2147483648
    %v5987 = vor.u32 1.1754944e-38, %v5986
    %v5988 = vsel %vm5985, %v5987, %v5983
    %v5989 = vmul.f32 %v5723, %v5988
    %v5990 = vrcp.pop %v5928
    %v5991 = vmul.f32 %v5928, %v5990
    %v5992 = vsub.f32 1.0, %v5991
    %v5993 = vmul.f32 %v5990, %v5992
    %v5994 = vadd.f32 %v5990, %v5993
    %vm5995 = vweird.f32 %v5928
    %vm5996 = vweird.f32 %v5990
    %vm5997 = vmor %vm5995, %vm5996
    %v5998 = vsel %vm5997, %v5990, %v5994
    %v5999 = vand.u32 2147483647, %v5928
    %vm6000 = vcmp.eq.f32.partialorder %v5999, 8.507059e+37
    %v6001 = vand.u32 %v5928, 2147483648
    %v6002 = vor.u32 1.1754944e-38, %v6001
    %v6003 = vsel %vm6000, %v6002, %v5998
    %v6004 = vmul.f32 %v5724, %v6003
    %v6005 = vrcp.pop %v5930
    %v6006 = vmul.f32 %v5930, %v6005
    %v6007 = vsub.f32 1.0, %v6006
    %v6008 = vmul.f32 %v6005, %v6007
    %v6009 = vadd.f32 %v6005, %v6008
    %vm6010 = vweird.f32 %v5930
    %vm6011 = vweird.f32 %v6005
    %vm6012 = vmor %vm6010, %vm6011
    %v6013 = vsel %vm6012, %v6005, %v6009
    %v6014 = vand.u32 2147483647, %v5930
    %vm6015 = vcmp.eq.f32.partialorder %v6014, 8.507059e+37
    %v6016 = vand.u32 %v5930, 2147483648
    %v6017 = vor.u32 1.1754944e-38, %v6016
    %v6018 = vsel %vm6015, %v6017, %v6013
    %v6019 = vmul.f32 %v5725, %v6018
    %v6020 = vrcp.pop %v5932
    %v6021 = vmul.f32 %v5932, %v6020
    %v6022 = vsub.f32 1.0, %v6021
    %v6023 = vmul.f32 %v6020, %v6022
    %v6024 = vadd.f32 %v6020, %v6023
    %vm6025 = vweird.f32 %v5932
    %vm6026 = vweird.f32 %v6020
    %vm6027 = vmor %vm6025, %vm6026
    %v6028 = vsel %vm6027, %v6020, %v6024
    %v6029 = vand.u32 2147483647, %v5932
    %vm6030 = vcmp.eq.f32.partialorder %v6029, 8.507059e+37
    %v6031 = vand.u32 %v5932, 2147483648
    %v6032 = vor.u32 1.1754944e-38, %v6031
    %v6033 = vsel %vm6030, %v6032, %v6028
    %v6034 = vmul.f32 %v5726, %v6033
    %v6035 = vrcp.pop %v5934
    %v6036 = vmul.f32 %v5934, %v6035
    %v6037 = vsub.f32 1.0, %v6036
    %v6038 = vmul.f32 %v6035, %v6037
    %v6039 = vadd.f32 %v6035, %v6038
    %vm6040 = vweird.f32 %v5934
    %vm6041 = vweird.f32 %v6035
    %vm6042 = vmor %vm6040, %vm6041
    %v6043 = vsel %vm6042, %v6035, %v6039
    %v6044 = vand.u32 2147483647, %v5934
    %vm6045 = vcmp.eq.f32.partialorder %v6044, 8.507059e+37
    %v6046 = vand.u32 %v5934, 2147483648
    %v6047 = vor.u32 1.1754944e-38, %v6046
    %v6048 = vsel %vm6045, %v6047, %v6043
    %v6049 = vmul.f32 %v5727, %v6048
    %v6050 = vrcp.pop %v5936
    %v6051 = vmul.f32 %v5936, %v6050
    %v6052 = vsub.f32 1.0, %v6051
    %v6053 = vmul.f32 %v6050, %v6052
    %v6054 = vadd.f32 %v6050, %v6053
    %vm6055 = vweird.f32 %v5936
    %vm6056 = vweird.f32 %v6050
    %vm6057 = vmor %vm6055, %vm6056
    %v6058 = vsel %vm6057, %v6050, %v6054
    %v6059 = vand.u32 2147483647, %v5936
    %vm6060 = vcmp.eq.f32.partialorder %v6059, 8.507059e+37
    %v6061 = vand.u32 %v5936, 2147483648
    %v6062 = vor.u32 1.1754944e-38, %v6061
    %v6063 = vsel %vm6060, %v6062, %v6058
    %v6064 = vmul.f32 %v5728, %v6063
    %v6065 = vadd.f32 %v5681, 1e-06
    %v6066 = vadd.f32 %v5682, 1e-06
    %v6067 = vadd.f32 %v5683, 1e-06
    %v6068 = vadd.f32 %v5684, 1e-06
    %v6069 = vadd.f32 %v5685, 1e-06
    %v6070 = vadd.f32 %v5686, 1e-06
    %v6071 = vadd.f32 %v5687, 1e-06
    %v6072 = vadd.f32 %v5688, 1e-06
    %6081 = vrot.lane.b32.xlu0 %v6065, 4
    %v6082 = vpop.permute.xlu0 %6081
    %6083 = vrot.lane.b32.xlu0 %v6066, 4
    %v6084 = vpop.permute.xlu0 %6083
    %6085 = vrot.lane.b32.xlu0 %v6067, 4
    %v6086 = vpop.permute.xlu0 %6085
    %6087 = vrot.lane.b32.xlu0 %v6068, 4
    %v6088 = vpop.permute.xlu0 %6087
    %6089 = vrot.lane.b32.xlu0 %v6069, 4
    %v6090 = vpop.permute.xlu0 %6089
    %6091 = vrot.lane.b32.xlu0 %v6070, 4
    %v6092 = vpop.permute.xlu0 %6091
    %6093 = vrot.lane.b32.xlu0 %v6071, 4
    %v6094 = vpop.permute.xlu0 %6093
    %6095 = vrot.lane.b32.xlu0 %v6072, 4
    %v6096 = vpop.permute.xlu0 %6095
    %v6105 = vrcp.pop %v6082
    %v6106 = vmul.f32 %v6082, %v6105
    %v6107 = vsub.f32 1.0, %v6106
    %v6108 = vmul.f32 %v6105, %v6107
    %v6109 = vadd.f32 %v6105, %v6108
    %vm6110 = vweird.f32 %v6082
    %vm6111 = vweird.f32 %v6105
    %vm6112 = vmor %vm6110, %vm6111
    %v6113 = vsel %vm6112, %v6105, %v6109
    %v6114 = vand.u32 2147483647, %v6082
    %vm6115 = vcmp.eq.f32.partialorder %v6114, 8.507059e+37
    %v6116 = vand.u32 %v6082, 2147483648
    %v6117 = vor.u32 1.1754944e-38, %v6116
    %v6118 = vsel %vm6115, %v6117, %v6113
    %v6119 = vmul.f32 %v5753, %v6118
    %v6120 = vrcp.pop %v6084
    %v6121 = vmul.f32 %v6084, %v6120
    %v6122 = vsub.f32 1.0, %v6121
    %v6123 = vmul.f32 %v6120, %v6122
    %v6124 = vadd.f32 %v6120, %v6123
    %vm6125 = vweird.f32 %v6084
    %vm6126 = vweird.f32 %v6120
    %vm6127 = vmor %vm6125, %vm6126
    %v6128 = vsel %vm6127, %v6120, %v6124
    %v6129 = vand.u32 2147483647, %v6084
    %vm6130 = vcmp.eq.f32.partialorder %v6129, 8.507059e+37
    %v6131 = vand.u32 %v6084, 2147483648
    %v6132 = vor.u32 1.1754944e-38, %v6131
    %v6133 = vsel %vm6130, %v6132, %v6128
    %v6134 = vmul.f32 %v5754, %v6133
    %v6135 = vrcp.pop %v6086
    %v6136 = vmul.f32 %v6086, %v6135
    %v6137 = vsub.f32 1.0, %v6136
    %v6138 = vmul.f32 %v6135, %v6137
    %v6139 = vadd.f32 %v6135, %v6138
    %vm6140 = vweird.f32 %v6086
    %vm6141 = vweird.f32 %v6135
    %vm6142 = vmor %vm6140, %vm6141
    %v6143 = vsel %vm6142, %v6135, %v6139
    %v6144 = vand.u32 2147483647, %v6086
    %vm6145 = vcmp.eq.f32.partialorder %v6144, 8.507059e+37
    %v6146 = vand.u32 %v6086, 2147483648
    %v6147 = vor.u32 1.1754944e-38, %v6146
    %v6148 = vsel %vm6145, %v6147, %v6143
    %v6149 = vmul.f32 %v5755, %v6148
    %v6150 = vrcp.pop %v6088
    %v6151 = vmul.f32 %v6088, %v6150
    %v6152 = vsub.f32 1.0, %v6151
    %v6153 = vmul.f32 %v6150, %v6152
    %v6154 = vadd.f32 %v6150, %v6153
    %vm6155 = vweird.f32 %v6088
    %vm6156 = vweird.f32 %v6150
    %vm6157 = vmor %vm6155, %vm6156
    %v6158 = vsel %vm6157, %v6150, %v6154
    %v6159 = vand.u32 2147483647, %v6088
    %vm6160 = vcmp.eq.f32.partialorder %v6159, 8.507059e+37
    %v6161 = vand.u32 %v6088, 2147483648
    %v6162 = vor.u32 1.1754944e-38, %v6161
    %v6163 = vsel %vm6160, %v6162, %v6158
    %v6164 = vmul.f32 %v5756, %v6163
    %v6165 = vrcp.pop %v6090
    %v6166 = vmul.f32 %v6090, %v6165
    %v6167 = vsub.f32 1.0, %v6166
    %v6168 = vmul.f32 %v6165, %v6167
    %v6169 = vadd.f32 %v6165, %v6168
    %vm6170 = vweird.f32 %v6090
    %vm6171 = vweird.f32 %v6165
    %vm6172 = vmor %vm6170, %vm6171
    %v6173 = vsel %vm6172, %v6165, %v6169
    %v6174 = vand.u32 2147483647, %v6090
    %vm6175 = vcmp.eq.f32.partialorder %v6174, 8.507059e+37
    %v6176 = vand.u32 %v6090, 2147483648
    %v6177 = vor.u32 1.1754944e-38, %v6176
    %v6178 = vsel %vm6175, %v6177, %v6173
    %v6179 = vmul.f32 %v5757, %v6178
    %v6180 = vrcp.pop %v6092
    %v6181 = vmul.f32 %v6092, %v6180
    %v6182 = vsub.f32 1.0, %v6181
    %v6183 = vmul.f32 %v6180, %v6182
    %v6184 = vadd.f32 %v6180, %v6183
    %vm6185 = vweird.f32 %v6092
    %vm6186 = vweird.f32 %v6180
    %vm6187 = vmor %vm6185, %vm6186
    %v6188 = vsel %vm6187, %v6180, %v6184
    %v6189 = vand.u32 2147483647, %v6092
    %vm6190 = vcmp.eq.f32.partialorder %v6189, 8.507059e+37
    %v6191 = vand.u32 %v6092, 2147483648
    %v6192 = vor.u32 1.1754944e-38, %v6191
    %v6193 = vsel %vm6190, %v6192, %v6188
    %v6194 = vmul.f32 %v5758, %v6193
    %v6195 = vrcp.pop %v6094
    %v6196 = vmul.f32 %v6094, %v6195
    %v6197 = vsub.f32 1.0, %v6196
    %v6198 = vmul.f32 %v6195, %v6197
    %v6199 = vadd.f32 %v6195, %v6198
    %vm6200 = vweird.f32 %v6094
    %vm6201 = vweird.f32 %v6195
    %vm6202 = vmor %vm6200, %vm6201
    %v6203 = vsel %vm6202, %v6195, %v6199
    %v6204 = vand.u32 2147483647, %v6094
    %vm6205 = vcmp.eq.f32.partialorder %v6204, 8.507059e+37
    %v6206 = vand.u32 %v6094, 2147483648
    %v6207 = vor.u32 1.1754944e-38, %v6206
    %v6208 = vsel %vm6205, %v6207, %v6203
    %v6209 = vmul.f32 %v5759, %v6208
    %v6210 = vrcp.pop %v6096
    %v6211 = vmul.f32 %v6096, %v6210
    %v6212 = vsub.f32 1.0, %v6211
    %v6213 = vmul.f32 %v6210, %v6212
    %v6214 = vadd.f32 %v6210, %v6213
    %vm6215 = vweird.f32 %v6096
    %vm6216 = vweird.f32 %v6210
    %vm6217 = vmor %vm6215, %vm6216
    %v6218 = vsel %vm6217, %v6210, %v6214
    %v6219 = vand.u32 2147483647, %v6096
    %vm6220 = vcmp.eq.f32.partialorder %v6219, 8.507059e+37
    %v6221 = vand.u32 %v6096, 2147483648
    %v6222 = vor.u32 1.1754944e-38, %v6221
    %v6223 = vsel %vm6220, %v6222, %v6218
    %v6224 = vmul.f32 %v5760, %v6223
    %6233 = vrot.lane.b32.xlu0 %v5815, 125
    %v6234 = vpop.permute.xlu0 %6233
    %6235 = vrot.lane.b32.xlu0 %v5830, 125
    %v6236 = vpop.permute.xlu0 %6235
    %6237 = vrot.lane.b32.xlu0 %v5845, 125
    %v6238 = vpop.permute.xlu0 %6237
    %6239 = vrot.lane.b32.xlu0 %v5860, 125
    %v6240 = vpop.permute.xlu0 %6239
    %6241 = vrot.lane.b32.xlu0 %v5875, 125
    %v6242 = vpop.permute.xlu0 %6241
    %6243 = vrot.lane.b32.xlu0 %v5890, 125
    %v6244 = vpop.permute.xlu0 %6243
    %6245 = vrot.lane.b32.xlu0 %v5905, 125
    %v6246 = vpop.permute.xlu0 %6245
    %6247 = vrot.lane.b32.xlu0 %v5920, 125
    %v6248 = vpop.permute.xlu0 %6247
    %6265 = vrot.lane.b32.xlu0 %v5959, 125
    %v6266 = vpop.permute.xlu0 %6265
    %6267 = vrot.lane.b32.xlu0 %v5974, 125
    %v6268 = vpop.permute.xlu0 %6267
    %6269 = vrot.lane.b32.xlu0 %v5989, 125
    %v6270 = vpop.permute.xlu0 %6269
    %6271 = vrot.lane.b32.xlu0 %v6004, 125
    %v6272 = vpop.permute.xlu0 %6271
    %6273 = vrot.lane.b32.xlu0 %v6019, 125
    %v6274 = vpop.permute.xlu0 %6273
    %6275 = vrot.lane.b32.xlu0 %v6034, 125
    %v6276 = vpop.permute.xlu0 %6275
    %6277 = vrot.lane.b32.xlu0 %v6049, 125
    %v6278 = vpop.permute.xlu0 %6277
    %6279 = vrot.lane.b32.xlu0 %v6064, 125
    %v6280 = vpop.permute.xlu0 %6279
    %6297 = vrot.lane.b32.xlu0 %v6119, 125
    %v6298 = vpop.permute.xlu0 %6297
    %6299 = vrot.lane.b32.xlu0 %v6134, 125
    %v6300 = vpop.permute.xlu0 %6299
    %6301 = vrot.lane.b32.xlu0 %v6149, 125
    %v6302 = vpop.permute.xlu0 %6301
    %6303 = vrot.lane.b32.xlu0 %v6164, 125
    %v6304 = vpop.permute.xlu0 %6303
    %6305 = vrot.lane.b32.xlu0 %v6179, 125
    %v6306 = vpop.permute.xlu0 %6305
    %6307 = vrot.lane.b32.xlu0 %v6194, 125
    %v6308 = vpop.permute.xlu0 %6307
    %6309 = vrot.lane.b32.xlu0 %v6209, 125
    %v6310 = vpop.permute.xlu0 %6309
    %6311 = vrot.lane.b32.xlu0 %v6224, 125
    %v6312 = vpop.permute.xlu0 %6311
    %6329 = vrot.lane.b32.xlu0 %v5649, 4
    %v6330 = vpop.permute.xlu0 %6329
    %6331 = vrot.lane.b32.xlu0 %v5650, 4
    %v6332 = vpop.permute.xlu0 %6331
    %6333 = vrot.lane.b32.xlu0 %v5651, 4
    %v6334 = vpop.permute.xlu0 %6333
    %6335 = vrot.lane.b32.xlu0 %v5652, 4
    %v6336 = vpop.permute.xlu0 %6335
    %6337 = vrot.lane.b32.xlu0 %v5653, 4
    %v6338 = vpop.permute.xlu0 %6337
    %6339 = vrot.lane.b32.xlu0 %v5654, 4
    %v6340 = vpop.permute.xlu0 %6339
    %6341 = vrot.lane.b32.xlu0 %v5655, 4
    %v6342 = vpop.permute.xlu0 %6341
    %6343 = vrot.lane.b32.xlu0 %v5656, 4
    %v6344 = vpop.permute.xlu0 %6343
    %6361 = vrot.lane.b32.xlu0 %v5681, 4
    %v6362 = vpop.permute.xlu0 %6361
    %6363 = vrot.lane.b32.xlu0 %v5682, 4
    %v6364 = vpop.permute.xlu0 %6363
    %6365 = vrot.lane.b32.xlu0 %v5683, 4
    %v6366 = vpop.permute.xlu0 %6365
    %6367 = vrot.lane.b32.xlu0 %v5684, 4
    %v6368 = vpop.permute.xlu0 %6367
    %6369 = vrot.lane.b32.xlu0 %v5685, 4
    %v6370 = vpop.permute.xlu0 %6369
    %6371 = vrot.lane.b32.xlu0 %v5686, 4
    %v6372 = vpop.permute.xlu0 %6371
    %6373 = vrot.lane.b32.xlu0 %v5687, 4
    %v6374 = vpop.permute.xlu0 %6373
    %6375 = vrot.lane.b32.xlu0 %v5688, 4
    %v6376 = vpop.permute.xlu0 %6375
    %vm6385 = vcmask 23552
    %v6386 = vsel %vm6385, %v5520, %v6234
    %v6387 = vsel %vm6385, %v5521, %v6236
    %v6388 = vsel %vm6385, %v5522, %v6238
    %v6389 = vsel %vm6385, %v5523, %v6240
    %v6390 = vsel %vm6385, %v5524, %v6242
    %v6391 = vsel %vm6385, %v5525, %v6244
    %v6392 = vsel %vm6385, %v5526, %v6246
    %v6393 = vsel %vm6385, %v5527, %v6248
    %v6394 = vsel %vm5511, %v6386, %v6266
    %v6395 = vsel %vm5511, %v6387, %v6268
    %v6396 = vsel %vm5511, %v6388, %v6270
    %v6397 = vsel %vm5511, %v6389, %v6272
    %v6398 = vsel %vm5511, %v6390, %v6274
    %v6399 = vsel %vm5511, %v6391, %v6276
    %v6400 = vsel %vm5511, %v6392, %v6278
    %v6401 = vsel %vm5511, %v6393, %v6280
    %vm6402 = vcmask 39936
    %v6403 = vsel %vm6402, %v6394, %v6298
    %v6404 = vsel %vm6402, %v6395, %v6300
    %v6405 = vsel %vm6402, %v6396, %v6302
    %v6406 = vsel %vm6402, %v6397, %v6304
    %v6407 = vsel %vm6402, %v6398, %v6306
    %v6408 = vsel %vm6402, %v6399, %v6308
    %v6409 = vsel %vm6402, %v6400, %v6310
    %v6410 = vsel %vm6402, %v6401, %v6312
    %vm6411 = vcmask 48128
    %v6412 = vsel %vm6411, %v6403, %v6298
    %v6413 = vsel %vm6411, %v6404, %v6300
    %v6414 = vsel %vm6411, %v6405, %v6302
    %v6415 = vsel %vm6411, %v6406, %v6304
    %v6416 = vsel %vm6411, %v6407, %v6306
    %v6417 = vsel %vm6411, %v6408, %v6308
    %v6418 = vsel %vm6411, %v6409, %v6310
    %v6419 = vsel %vm6411, %v6410, %v6312
    %vm6420 = vcmask 56320
    %v6421 = vsel %vm6420, %v6412, %v6330
    %v6422 = vsel %vm6420, %v6413, %v6332
    %v6423 = vsel %vm6420, %v6414, %v6334
    %v6424 = vsel %vm6420, %v6415, %v6336
    %v6425 = vsel %vm6420, %v6416, %v6338
    %v6426 = vsel %vm6420, %v6417, %v6340
    %v6427 = vsel %vm6420, %v6418, %v6342
    %v6428 = vsel %vm6420, %v6419, %v6344
    %vm6429 = vcmask 64512
    %v6430 = vsel %vm6429, %v6421, %v6362
    %v6431 = vsel %vm6429, %v6422, %v6364
    %v6432 = vsel %vm6429, %v6423, %v6366
    %v6433 = vsel %vm6429, %v6424, %v6368
    %v6434 = vsel %vm6429, %v6425, %v6370
    %v6435 = vsel %vm6429, %v6426, %v6372
    %v6436 = vsel %vm6429, %v6427, %v6374
    %v6437 = vsel %vm6429, %v6428, %v6376
    %vm6438 = vcmask 72704
    %v6439 = vsel %vm6438, %v6430, %v6362
    %v6440 = vsel %vm6438, %v6431, %v6364
    %v6441 = vsel %vm6438, %v6432, %v6366
    %v6442 = vsel %vm6438, %v6433, %v6368
    %v6443 = vsel %vm6438, %v6434, %v6370
    %v6444 = vsel %vm6438, %v6435, %v6372
    %v6445 = vsel %vm6438, %v6436, %v6374
    %v6446 = vsel %vm6438, %v6437, %v6376
    %6447 = vst.msk [vmem:[%s22] sm:$0xff] %vm175, %v6439
    %6448 = vst.msk [vmem:[%s22 + $0x8] sm:$0xff] %vm175, %v6440
    %6449 = vst.msk [vmem:[%s22 + $0x10] sm:$0xff] %vm175, %v6441
    %6450 = vst.msk [vmem:[%s22 + $0x18] sm:$0xff] %vm175, %v6442
    %6451 = vst.msk [vmem:[%s22 + $0x20] sm:$0xff] %vm175, %v6443
    %6452 = vst.msk [vmem:[%s22 + $0x28] sm:$0xff] %vm175, %v6444
    %6453 = vst.msk [vmem:[%s22 + $0x30] sm:$0xff] %vm175, %v6445
    %6454 = vst.msk [vmem:[%s22 + $0x38] sm:$0xff] %vm175, %v6446
    // Predicated region
    $region106: #{tpu_custom_call.1} parent=1 // pred_check
      _
    $region107: #{tpu_custom_call.1} parent=1 // pred_check_branch
      %6456 = sbr.rel (0) target = $region109
    $region108: #{tpu_custom_call.1} parent=1 // pred_region
      _
    $region109: #{tpu_custom_call.1} parent=1 // pred_fallthru
      _
    // Predicated region
    $region110: #{tpu_custom_call.1} parent=1 // pred_check
      _
    $region111: #{tpu_custom_call.1} parent=1 // pred_check_branch
      %6458 = sbr.rel (0) target = $region113
    $region112: #{tpu_custom_call.1} parent=1 // pred_region
      _
    $region113: #{tpu_custom_call.1} parent=1 // pred_fallthru
      _
    // Predicated region
    $region114: #{tpu_custom_call.1} parent=1 // pred_check
      _
    $region115: #{tpu_custom_call.1} parent=1 // pred_check_branch
      %6460 = sbr.rel (0) target = $region117
    $region116: #{tpu_custom_call.1} parent=1 // pred_region
      _
    $region117: #{tpu_custom_call.1} parent=1 // pred_fallthru
      _
    // Predicated region
    $region118: #{tpu_custom_call.1} parent=1 // pred_check
      _
    $region119: #{tpu_custom_call.1} parent=1 // pred_check_branch
      %6462 = sbr.rel (0) target = $region121
    $region120: #{tpu_custom_call.1} parent=1 // pred_region
      _
    $region121: #{tpu_custom_call.1} parent=1 // pred_fallthru
      _
    %6463 = vsyncpa [#allocation6], 1
    %6464 = vsyncpa [#allocation8], 1
    %6465 = vsyncpa [#allocation11], 1

</llo_original>
